<compile_context>
chip_gen: v5e
topology: v5e:2x2
jax: 0.10.0
libtpu: 0.0.40
codegen_flags: <defaults>
</compile_context>

<pallas_src>
import jax
import jax.numpy as jnp
import numpy as np
from jax import lax
from jax.experimental import pallas as pl
from jax.experimental.pallas import tpu as pltpu

BN_EPS = 1e-3                       # matches nn.BatchNorm2d(eps=0.001)
COMPUTE_DTYPE = jnp.bfloat16        # MXU operand dtype (set jnp.float32 for exact-f32)

# 5-point cross (union of the 3x1 and 1x3 tap offsets) and the 3x3 taps,
# ordered to match the (kh, kw)-major weight reshape.
OFFS_CROSS = ((-1, 0), (0, -1), (0, 0), (0, 1), (1, 0))
OFFS_3X3 = tuple((ky - 1, kx - 1) for ky in range(3) for kx in range(3))
_VERT = {(-1, 0): 0, (0, 0): 1, (1, 0): 2}     # (3,1) kernel: tap index by offset
_HORZ = {(0, -1): 0, (0, 0): 1, (0, 1): 2}     # (1,3) kernel: tap index by offset


# --------------------------------------------------------------------------
# Fused Pallas kernel
# --------------------------------------------------------------------------
def _make_fcb_kernel(H, W, C, dilated):
    HW = H * W
    D = max(int(dilated), 1)                   # border width of the full padded scratch
    offs_dil = tuple((dy * D, dx * D) for dy, dx in OFFS_3X3)

    def conv_acc(src_ref, pad, w_ref, offsets, acc_ref):
        """acc = sum_t shifted_window(src) @ w[t]; accumulated in-place (f32).

        The window load is a pitched VMEM read; for W % 8 == 0 the (H,W,C) ->
        (HW,C) reshape is layout-preserving (no extra copy).  Operands are cast
        to bf16 (weights pre-cast at prep time) so the MXU runs at bf16 rate.
        """
        for t, (dy, dx) in enumerate(offsets):
            patch = src_ref[pad + dy:pad + dy + H, pad + dx:pad + dx + W, :]
            a = patch.reshape(HW, C).astype(COMPUTE_DTYPE)
            contrib = jnp.dot(a, w_ref[t], preferred_element_type=jnp.float32)
            if t == 0:
                acc_ref[...] = contrib
            else:
                acc_ref[...] += contrib

    def kernel(x_ref,
               w1_ref, b1_ref, w2_ref, b2_ref,
               wa_ref, ba_ref, wb_ref, bb_ref,
               o_ref,
               xp_ref, hm_ref, acc_ref):
        f32 = jnp.float32
        # Zero only the border frames (interiors are fully overwritten every
        # step).  Re-done each grid step so megacore sharding of the batch
        # axis stays correct regardless of which core sees which step.
        xp_ref[0:D, :, :] = jnp.zeros((D, W + 2 * D, C), f32)
        xp_ref[D + H:, :, :] = jnp.zeros((D, W + 2 * D, C), f32)
        xp_ref[:, 0:D, :] = jnp.zeros((H + 2 * D, D, C), f32)
        xp_ref[:, D + W:, :] = jnp.zeros((H + 2 * D, D, C), f32)
        hm_ref[0:1, :, :] = jnp.zeros((1, W + 2, C), f32)
        hm_ref[1 + H:, :, :] = jnp.zeros((1, W + 2, C), f32)
        hm_ref[:, 0:1, :] = jnp.zeros((H + 2, 1, C), f32)
        hm_ref[:, 1 + W:, :] = jnp.zeros((H + 2, 1, C), f32)

        x = x_ref[0]                                    # (H, W, C) f32, channels pre-shuffled
        xp_ref[D:D + H, D:D + W, :] = x                 # in-kernel zero padding

        # ---- stage 1: conv3x1_l(x1) | conv1x3_r(x2), BN folded, ReLU.
        # Split() + the input channel shuffle are folded into W1's rows; the
        # two branches occupy disjoint output column halves.
        conv_acc(xp_ref, D, w1_ref, OFFS_CROSS, acc_ref)
        s1 = jnp.maximum(acc_ref[...] + b1_ref[...], 0.0)
        hm_ref[1:1 + H, 1:1 + W, :] = s1.reshape(H, W, C)

        # ---- stage 2: conv1x3_l(o1) | conv3x1_r(o2), BN folded, ReLU.
        # Output channel order == Merge(output1_mid, output2_mid).
        conv_acc(hm_ref, 1, w2_ref, OFFS_CROSS, acc_ref)
        s2 = jnp.maximum(acc_ref[...] + b2_ref[...], 0.0)
        hm_ref[1:1 + H, 1:1 + W, :] = s2.reshape(H, W, C)

        # ---- conv_a: 3x3, pad 1 (Dropout2d is identity in eval mode) ----
        conv_acc(hm_ref, 1, wa_ref, OFFS_3X3, acc_ref)
        t1 = acc_ref[...] + ba_ref[...]
        xp_ref[D:D + H, D:D + W, :] = t1.reshape(H, W, C)   # x no longer needed there

        # ---- conv_b (dilated 3x3) with conv_c(1x1) + BN + ReLU + channel
        # shuffle folded into its weights/bias ----
        conv_acc(xp_ref, D, wb_ref, offs_dil, acc_ref)
        t3 = jnp.maximum(acc_ref[...] + bb_ref[...], 0.0)

        # ---- residual add + ReLU in f32; channels already shuffled ----
        y = jnp.maximum(x.reshape(HW, C) + t3, 0.0)
        o_ref[0] = y.reshape(H, W, C)

    return kernel


# --------------------------------------------------------------------------
# Parameter preparation (all folds done once, host-side, in f32)
# --------------------------------------------------------------------------
_PARAM_ORDER = ('W1', 'B1', 'W2', 'B2', 'WA', 'BA', 'WB', 'BB')


def bn_fold(bn):
    gamma, beta, mean, var = (np.asarray(a, np.float32) for a in bn)
    scale = gamma / np.sqrt(var + BN_EPS)
    shift = beta - mean * scale
    return scale, shift


def _prep_params(p, C, c1):
    def taps(w):                         # OIHW -> (kh*kw, Cin, Cout), f32 numpy
        w = np.asarray(w, np.float32)
        co, ci, kh, kw = w.shape
        return np.transpose(w, (2, 3, 1, 0)).reshape(kh * kw, ci, co)

    sc_l, sh_l = bn_fold(p['bn_l'])
    sc_r, sh_r = bn_fold(p['bn_r'])
    sc_m, sh_m = bn_fold(p['bn'])

    w3l = taps(p['c3x1_l'][0]); b3l = np.asarray(p['c3x1_l'][1], np.float32)
    w1l = taps(p['c1x3_l'][0]); b1l = np.asarray(p['c1x3_l'][1], np.float32)
    w1r = taps(p['c1x3_r'][0]); b1r = np.asarray(p['c1x3_r'][1], np.float32)
    w3r = taps(p['c3x1_r'][0]); b3r = np.asarray(p['c3x1_r'][1], np.float32)

    # Channel_shuffle(groups=2) source indices: y_shuf[..., j] = y[..., src[j]]
    src = np.arange(C).reshape(2, C // 2).T.reshape(-1)

    # ---- stage 1 block weight (5 cross taps, C x C): left = conv3x1_l on
    # x[:, :c1] -> cols [:c1]; right = conv1x3_r on x[:, c1:] -> cols [c1:].
    # BN scale folded into columns; Split() folded as zero row blocks; the
    # kernel's input is pre-shuffled, so permute the input rows accordingly.
    W1 = np.zeros((5, C, C), np.float32)
    for t, off in enumerate(OFFS_CROSS):
        if off in _VERT:
            W1[t, :c1, :c1] = w3l[_VERT[off]] * sc_l[None, :]
        if off in _HORZ:
            W1[t, c1:, c1:] = w1r[_HORZ[off]] * sc_r[None, :]
    W1 = W1[:, src, :]
    B1 = np.concatenate([b3l * sc_l + sh_l, b1r * sc_r + sh_r]).reshape(1, C)

    # ---- stage 2 block weight: left = conv1x3_l on s1[:, :c1]; right =
    # conv3x1_r on s1[:, c1:].  Output order == Merge(left, right).
    W2 = np.zeros((5, C, C), np.float32)
    for t, off in enumerate(OFFS_CROSS):
        if off in _HORZ:
            W2[t, :c1, :c1] = w1l[_HORZ[off]] * sc_l[None, :]
        if off in _VERT:
            W2[t, c1:, c1:] = w3r[_VERT[off]] * sc_r[None, :]
    B2 = np.concatenate([b1l * sc_l + sh_l, b3r * sc_r + sh_r]).reshape(1, C)

    # ---- conv_a: plain 3x3 (bias only; no BN before conv_b) ----
    WA = taps(p['conv_a'][0])                                   # (9, C, C)
    BA = np.asarray(p['conv_a'][1], np.float32).reshape(1, C)

    # ---- conv_b (dilated 3x3) with conv_c (1x1) + BN folded in (exact), then
    # the output channel shuffle folded into the columns ----
    wc = taps(p['conv_c'][0])[0] * sc_m[None, :]                # (C, C)
    bc = np.asarray(p['conv_c'][1], np.float32) * sc_m + sh_m
    wbt = taps(p['conv_b'][0])                                  # (9, C, C)
    bbv = np.asarray(p['conv_b'][1], np.float32)
    WB = np.einsum('tij,jk->tik', wbt, wc)
    BB = bbv @ wc + bc
    WB = WB[:, :, src]
    BB = BB[src].reshape(1, C)

    cvt_w = lambda a: jnp.asarray(a, COMPUTE_DTYPE)             # bf16 MXU operands
    cvt_b = lambda a: jnp.asarray(a, jnp.float32)               # f32 epilogue terms
    return {'W1': cvt_w(W1), 'B1': cvt_b(B1), 'W2': cvt_w(W2), 'B2': cvt_b(B2),
            'WA': cvt_w(WA), 'BA': cvt_b(BA), 'WB': cvt_w(WB), 'BB': cvt_b(BB)}


def _full_spec(shape):
    zeros = (0,) * len(shape)
    return pl.BlockSpec(tuple(shape), lambda n: zeros)


# --------------------------------------------------------------------------
# FCB forward (single fused pallas_call)
# --------------------------------------------------------------------------
def fcb_forward(x_nchw, p, dilated):
    N, C, H, W = x_nchw.shape
    assert C % 2 == 0, "FCB assumes an even channel count"
    c1 = int(round(C * 0.5))
    D = max(int(dilated), 1)

    prep = _prep_params(p, C, c1)
    params = [prep[k] for k in _PARAM_ORDER]

    # NCHW -> NHWC once at entry, with the channel shuffle pre-applied (folds
    # into the same XLA gather/transpose); the kernel emits shuffled output.
    src = np.arange(C).reshape(2, C // 2).T.reshape(-1)
    x_shuf = jnp.transpose(x_nchw[:, src], (0, 2, 3, 1)).astype(jnp.float32)

    kernel = _make_fcb_kernel(H, W, C, dilated)
    in_specs = [pl.BlockSpec((1, H, W, C), lambda n: (n, 0, 0, 0))]
    in_specs += [_full_spec(t.shape) for t in params]

    y_nhwc = pl.pallas_call(
        kernel,
        out_shape=jax.ShapeDtypeStruct((N, H, W, C), jnp.float32),
        grid=(N,),
        in_specs=in_specs,
        out_specs=pl.BlockSpec((1, H, W, C), lambda n: (n, 0, 0, 0)),
        scratch_shapes=[
            pltpu.VMEM((H + 2 * D, W + 2 * D, C), jnp.float32),  # padded full-C activation
            pltpu.VMEM((H + 2, W + 2, C), jnp.float32),          # padded merged activation
            pltpu.VMEM((H * W, C), jnp.float32),                 # in-place tap accumulator
        ],
        compiler_params=pltpu.CompilerParams(
            dimension_semantics=("parallel",),
            # Above the 16/32 MiB defaults, below v7x's 64 MiB physical VMEM.
            vmem_limit_bytes=48 * 1024 * 1024,
        ),
    )(x_shuf, *params)

    # NHWC -> NCHW (channel shuffle already applied via the folded weights).
    return jnp.transpose(y_nhwc, (0, 3, 1, 2))


# --------------------------------------------------------------------------
# Deterministic synthetic parameters (shapes from FCB.__init__)
# --------------------------------------------------------------------------
def init_fcb_params(key, chann):
    oup_inc = chann // 2

    def conv_p(k, cout, cin, kh, kw):
        kw_, kb_ = jax.random.split(k)
        w = jax.random.normal(kw_, (cout, cin, kh, kw), jnp.float32) * 0.1
        b = jax.random.normal(kb_, (cout,), jnp.float32) * 0.05
        return w, b

    def bn_p(k, c):
        k1, k2, k3, k4 = jax.random.split(k, 4)
        gamma = 1.0 + 0.1 * jax.random.normal(k1, (c,), jnp.float32)
        beta = 0.05 * jax.random.normal(k2, (c,), jnp.float32)
        mean = 0.05 * jax.random.normal(k3, (c,), jnp.float32)
        var = 1.0 + 0.1 * jax.random.uniform(k4, (c,), jnp.float32)
        return gamma, beta, mean, var

    keys = jax.random.split(key, 10)
    return {
        'c3x1_l': conv_p(keys[0], oup_inc, oup_inc, 3, 1),
        'c1x3_l': conv_p(keys[1], oup_inc, oup_inc, 1, 3),
        'bn_l':   bn_p(keys[2], oup_inc),
        'c3x1_r': conv_p(keys[3], oup_inc, oup_inc, 3, 1),
        'c1x3_r': conv_p(keys[4], oup_inc, oup_inc, 1, 3),
        'bn_r':   bn_p(keys[5], oup_inc),
        'conv_a': conv_p(keys[6], chann, chann, 3, 3),
        'conv_b': conv_p(keys[7], chann, chann, 3, 3),
        'conv_c': conv_p(keys[8], chann, chann, 1, 1),
        'bn':     bn_p(keys[9], chann),
    }


# --------------------------------------------------------------------------
# Pure-JAX reference (NCHW, lax.conv) matching the PyTorch module exactly
# --------------------------------------------------------------------------
def ref_forward(x_nchw, p, dilated):
    def conv(x, w, b, pad, dil=(1, 1)):
        y = lax.conv_general_dilated(
            x, w, (1, 1), [(pad[0], pad[0]), (pad[1], pad[1])],
            rhs_dilation=dil, dimension_numbers=('NCHW', 'OIHW', 'NCHW'))
        return y + b.reshape(1, -1, 1, 1)

    def bn(x, params):
        gamma, beta, mean, var = params
        r = lambda a: a.reshape(1, -1, 1, 1)
        return r(gamma) * (x - r(mean)) / jnp.sqrt(r(var) + BN_EPS) + r(beta)

    relu = lambda t: jnp.maximum(t, 0.0)
    C = x_nchw.shape[1]
    c1 = int(round(C * 0.5))
    x1, x2 = x_nchw[:, :c1], x_nchw[:, c1:]
    o1 = relu(bn(conv(x1, *p['c3x1_l'], (1, 0)), p['bn_l']))
    o1 = relu(bn(conv(o1, *p['c1x3_l'], (0, 1)), p['bn_l']))
    o2 = relu(bn(conv(x2, *p['c1x3_r'], (0, 1)), p['bn_r']))
    o2 = relu(bn(conv(o2, *p['c3x1_r'], (1, 0)), p['bn_r']))
    out = jnp.concatenate([o1, o2], axis=1)
    out = conv(out, *p['conv_a'], (1, 1))
    out = conv(out, *p['conv_b'], (dilated, dilated), dil=(dilated, dilated))
    out = conv(out, *p['conv_c'], (0, 0))
    out = relu(bn(out, p['bn']))
    out = relu(x_nchw + out)
    groups, cpg = 2, C // 2
    perm = jnp.arange(C).reshape(groups, cpg).T.reshape(-1)
    return out[:, perm]


# --------------------------------------------------------------------------
if __name__ == "__main__":
    key = jax.random.PRNGKey(0)
    kx, kp = jax.random.split(key)

    chann, dropprob, dilated = 4, 0.3, 2
    x = jax.random.normal(kx, (2, chann, 16, 16), jnp.float32)   # NCHW
    params = init_fcb_params(kp, chann)

    out = jax.block_until_ready(fcb_forward(x, params, dilated))
    assert out.shape == x.shape and out.dtype == jnp.float32

    ref = jax.block_until_ready(ref_forward(x, params, dilated))
    # bf16 MXU operands -> relaxed tolerance (f32 accumulation + f32 epilogue).
    np.testing.assert_allclose(np.asarray(out), np.asarray(ref),
                               rtol=2e-2, atol=2e-2)
    print("KERNEL_OK")
</pallas_src>

<mosaic_0001>
module attributes {stable_mosaic.version = 11 : i64} {
  func.func @kernel(%arg0: i32, %arg1: memref<1x16x16x4xf32, #tpu.memory_space<vmem>>, %arg2: memref<5x4x4xbf16, #tpu.memory_space<vmem>>, %arg3: memref<1x4xf32, #tpu.memory_space<vmem>>, %arg4: memref<5x4x4xbf16, #tpu.memory_space<vmem>>, %arg5: memref<1x4xf32, #tpu.memory_space<vmem>>, %arg6: memref<9x4x4xbf16, #tpu.memory_space<vmem>>, %arg7: memref<1x4xf32, #tpu.memory_space<vmem>>, %arg8: memref<9x4x4xbf16, #tpu.memory_space<vmem>>, %arg9: memref<1x4xf32, #tpu.memory_space<vmem>>, %arg10: memref<1x16x16x4xf32, #tpu.memory_space<vmem>>, %arg11: memref<20x20x4xf32, #tpu.memory_space<vmem>>, %arg12: memref<18x18x4xf32, #tpu.memory_space<vmem>>, %arg13: memref<256x4xf32, #tpu.memory_space<vmem>>) attributes {dimension_semantics = [#tpu.dimension_semantics<parallel>], iteration_bounds = array<i64: 2>, scalar_prefetch = 0 : i64, scratch_operands = 3 : i64, tpu.core_type = #tpu.core_type<tc>, window_params = [{transform_indices = @transform_0, window_bounds = array<i64: 1, 16, 16, 4>}, {pipeline_mode = #tpu.pipeline_mode<synchronous>, transform_indices = @transform_1, window_bounds = array<i64: 5, 4, 4>}, {pipeline_mode = #tpu.pipeline_mode<synchronous>, transform_indices = @transform_2, window_bounds = array<i64: 1, 4>}, {pipeline_mode = #tpu.pipeline_mode<synchronous>, transform_indices = @transform_3, window_bounds = array<i64: 5, 4, 4>}, {pipeline_mode = #tpu.pipeline_mode<synchronous>, transform_indices = @transform_4, window_bounds = array<i64: 1, 4>}, {pipeline_mode = #tpu.pipeline_mode<synchronous>, transform_indices = @transform_5, window_bounds = array<i64: 9, 4, 4>}, {pipeline_mode = #tpu.pipeline_mode<synchronous>, transform_indices = @transform_6, window_bounds = array<i64: 1, 4>}, {pipeline_mode = #tpu.pipeline_mode<synchronous>, transform_indices = @transform_7, window_bounds = array<i64: 9, 4, 4>}, {pipeline_mode = #tpu.pipeline_mode<synchronous>, transform_indices = @transform_8, window_bounds = array<i64: 1, 4>}, {transform_indices = @transform_9, window_bounds = array<i64: 1, 16, 16, 4>}]} {
    %cst = arith.constant 0.000000e+00 : f32
    %0 = vector.broadcast %cst : f32 to vector<2x20x4xf32>
    %c0 = arith.constant 0 : index
    %c0_0 = arith.constant 0 : index
    %c0_1 = arith.constant 0 : index
    %1 = vector.load %arg11[%c0, %c0_0, %c0_1] : memref<20x20x4xf32, #tpu.memory_space<vmem>>, vector<2x20x4xf32>
    tpu.vector_store %arg11[%c0, %c0_0, %c0_1], %0 {strides = array<i32>} : memref<20x20x4xf32, #tpu.memory_space<vmem>>, vector<2x20x4xf32>,
    %cst_2 = arith.constant 0.000000e+00 : f32
    %2 = vector.broadcast %cst_2 : f32 to vector<2x20x4xf32>
    %c18 = arith.constant 18 : index
    %c0_3 = arith.constant 0 : index
    %c0_4 = arith.constant 0 : index
    %3 = vector.load %arg11[%c18, %c0_3, %c0_4] : memref<20x20x4xf32, #tpu.memory_space<vmem>>, vector<2x20x4xf32>
    tpu.vector_store %arg11[%c18, %c0_3, %c0_4], %2 {strides = array<i32>} : memref<20x20x4xf32, #tpu.memory_space<vmem>>, vector<2x20x4xf32>,
    %cst_5 = arith.constant 0.000000e+00 : f32
    %4 = vector.broadcast %cst_5 : f32 to vector<20x2x4xf32>
    %c0_6 = arith.constant 0 : index
    %c0_7 = arith.constant 0 : index
    %c0_8 = arith.constant 0 : index
    %5 = vector.load %arg11[%c0_6, %c0_7, %c0_8] : memref<20x20x4xf32, #tpu.memory_space<vmem>>, vector<20x2x4xf32>
    tpu.vector_store %arg11[%c0_6, %c0_7, %c0_8], %4 {strides = array<i32>} : memref<20x20x4xf32, #tpu.memory_space<vmem>>, vector<20x2x4xf32>,
    %cst_9 = arith.constant 0.000000e+00 : f32
    %6 = vector.broadcast %cst_9 : f32 to vector<20x2x4xf32>
    %c0_10 = arith.constant 0 : index
    %c18_11 = arith.constant 18 : index
    %c0_12 = arith.constant 0 : index
    %7 = vector.load %arg11[%c0_10, %c18_11, %c0_12] : memref<20x20x4xf32, #tpu.memory_space<vmem>>, vector<20x2x4xf32>
    tpu.vector_store %arg11[%c0_10, %c18_11, %c0_12], %6 {strides = array<i32>} : memref<20x20x4xf32, #tpu.memory_space<vmem>>, vector<20x2x4xf32>,
    %cst_13 = arith.constant 0.000000e+00 : f32
    %8 = vector.broadcast %cst_13 : f32 to vector<1x18x4xf32>
    %c0_14 = arith.constant 0 : index
    %c0_15 = arith.constant 0 : index
    %c0_16 = arith.constant 0 : index
    %9 = vector.load %arg12[%c0_14, %c0_15, %c0_16] : memref<18x18x4xf32, #tpu.memory_space<vmem>>, vector<1x18x4xf32>
    tpu.vector_store %arg12[%c0_14, %c0_15, %c0_16], %8 {strides = array<i32>} : memref<18x18x4xf32, #tpu.memory_space<vmem>>, vector<1x18x4xf32>,
    %cst_17 = arith.constant 0.000000e+00 : f32
    %10 = vector.broadcast %cst_17 : f32 to vector<1x18x4xf32>
    %c17 = arith.constant 17 : index
    %c0_18 = arith.constant 0 : index
    %c0_19 = arith.constant 0 : index
    %11 = vector.load %arg12[%c17, %c0_18, %c0_19] : memref<18x18x4xf32, #tpu.memory_space<vmem>>, vector<1x18x4xf32>
    tpu.vector_store %arg12[%c17, %c0_18, %c0_19], %10 {strides = array<i32>} : memref<18x18x4xf32, #tpu.memory_space<vmem>>, vector<1x18x4xf32>,
    %cst_20 = arith.constant 0.000000e+00 : f32
    %12 = vector.broadcast %cst_20 : f32 to vector<18x1x4xf32>
    %c0_21 = arith.constant 0 : index
    %c0_22 = arith.constant 0 : index
    %c0_23 = arith.constant 0 : index
    %13 = vector.load %arg12[%c0_21, %c0_22, %c0_23] : memref<18x18x4xf32, #tpu.memory_space<vmem>>, vector<18x1x4xf32>
    tpu.vector_store %arg12[%c0_21, %c0_22, %c0_23], %12 {strides = array<i32>} : memref<18x18x4xf32, #tpu.memory_space<vmem>>, vector<18x1x4xf32>,
    %cst_24 = arith.constant 0.000000e+00 : f32
    %14 = vector.broadcast %cst_24 : f32 to vector<18x1x4xf32>
    %c0_25 = arith.constant 0 : index
    %c17_26 = arith.constant 17 : index
    %c0_27 = arith.constant 0 : index
    %15 = vector.load %arg12[%c0_25, %c17_26, %c0_27] : memref<18x18x4xf32, #tpu.memory_space<vmem>>, vector<18x1x4xf32>
    tpu.vector_store %arg12[%c0_25, %c17_26, %c0_27], %14 {strides = array<i32>} : memref<18x18x4xf32, #tpu.memory_space<vmem>>, vector<18x1x4xf32>,
    %c0_28 = arith.constant 0 : index
    %c0_29 = arith.constant 0 : index
    %c0_30 = arith.constant 0 : index
    %c0_31 = arith.constant 0 : index
    %16 = vector.load %arg1[%c0_28, %c0_29, %c0_30, %c0_31] : memref<1x16x16x4xf32, #tpu.memory_space<vmem>>, vector<1x16x16x4xf32>
    %17 = vector.shape_cast %16 : vector<1x16x16x4xf32> to vector<16x16x4xf32>
    %c2 = arith.constant 2 : index
    %c2_32 = arith.constant 2 : index
    %c0_33 = arith.constant 0 : index
    %18 = vector.load %arg11[%c2, %c2_32, %c0_33] : memref<20x20x4xf32, #tpu.memory_space<vmem>>, vector<16x16x4xf32>
    tpu.vector_store %arg11[%c2, %c2_32, %c0_33], %17 {strides = array<i32>} : memref<20x20x4xf32, #tpu.memory_space<vmem>>, vector<16x16x4xf32>,
    %c1 = arith.constant 1 : index
    %c2_34 = arith.constant 2 : index
    %c0_35 = arith.constant 0 : index
    %19 = vector.load %arg11[%c1, %c2_34, %c0_35] : memref<20x20x4xf32, #tpu.memory_space<vmem>>, vector<16x16x4xf32>
    %20 = vector.shape_cast %19 : vector<16x16x4xf32> to vector<256x4xf32>
    %21 = arith.truncf %20 : vector<256x4xf32> to vector<256x4xbf16>
    %c0_36 = arith.constant 0 : index
    %c0_37 = arith.constant 0 : index
    %c0_38 = arith.constant 0 : index
    %22 = vector.load %arg2[%c0_36, %c0_37, %c0_38] : memref<5x4x4xbf16, #tpu.memory_space<vmem>>, vector<1x4x4xbf16>
    %23 = vector.shape_cast %22 : vector<1x4x4xbf16> to vector<4x4xbf16>
    %cst_39 = arith.constant dense<0.000000e+00> : vector<256x4xf32>
    %24 = tpu.matmul %21, %23, %cst_39 {dimension_numbers = #tpu.dot_dimension_numbers<[1], [0], [0], [1], [0, 0, 1, 1], [], []>} : vector<256x4xbf16>, vector<4x4xbf16>, vector<256x4xf32> -> vector<256x4xf32>
    %c0_40 = arith.constant 0 : index
    %c0_41 = arith.constant 0 : index
    %25 = vector.load %arg13[%c0_40, %c0_41] : memref<256x4xf32, #tpu.memory_space<vmem>>, vector<256x4xf32>
    tpu.vector_store %arg13[%c0_40, %c0_41], %24 {strides = array<i32>} : memref<256x4xf32, #tpu.memory_space<vmem>>, vector<256x4xf32>,
    %c2_42 = arith.constant 2 : index
    %c1_43 = arith.constant 1 : index
    %c0_44 = arith.constant 0 : index
    %26 = vector.load %arg11[%c2_42, %c1_43, %c0_44] : memref<20x20x4xf32, #tpu.memory_space<vmem>>, vector<16x16x4xf32>
    %27 = vector.shape_cast %26 : vector<16x16x4xf32> to vector<256x4xf32>
    %28 = arith.truncf %27 : vector<256x4xf32> to vector<256x4xbf16>
    %c1_45 = arith.constant 1 : index
    %c0_46 = arith.constant 0 : index
    %c0_47 = arith.constant 0 : index
    %29 = vector.load %arg2[%c1_45, %c0_46, %c0_47] : memref<5x4x4xbf16, #tpu.memory_space<vmem>>, vector<1x4x4xbf16>
    %30 = vector.shape_cast %29 : vector<1x4x4xbf16> to vector<4x4xbf16>
    %cst_48 = arith.constant dense<0.000000e+00> : vector<256x4xf32>
    %31 = tpu.matmul %28, %30, %cst_48 {dimension_numbers = #tpu.dot_dimension_numbers<[1], [0], [0], [1], [0, 0, 1, 1], [], []>} : vector<256x4xbf16>, vector<4x4xbf16>, vector<256x4xf32> -> vector<256x4xf32>
    %c0_49 = arith.constant 0 : index
    %c0_50 = arith.constant 0 : index
    %32 = vector.load %arg13[%c0_49, %c0_50] : memref<256x4xf32, #tpu.memory_space<vmem>>, vector<256x4xf32>
    %33 = arith.addf %32, %31 : vector<256x4xf32>
    %c0_51 = arith.constant 0 : index
    %c0_52 = arith.constant 0 : index
    %34 = vector.load %arg13[%c0_51, %c0_52] : memref<256x4xf32, #tpu.memory_space<vmem>>, vector<256x4xf32>
    tpu.vector_store %arg13[%c0_51, %c0_52], %33 {strides = array<i32>} : memref<256x4xf32, #tpu.memory_space<vmem>>, vector<256x4xf32>,
    %c2_53 = arith.constant 2 : index
    %c2_54 = arith.constant 2 : index
    %c0_55 = arith.constant 0 : index
    %35 = vector.load %arg11[%c2_53, %c2_54, %c0_55] : memref<20x20x4xf32, #tpu.memory_space<vmem>>, vector<16x16x4xf32>
    %36 = vector.shape_cast %35 : vector<16x16x4xf32> to vector<256x4xf32>
    %37 = arith.truncf %36 : vector<256x4xf32> to vector<256x4xbf16>
    %c2_56 = arith.constant 2 : index
    %c0_57 = arith.constant 0 : index
    %c0_58 = arith.constant 0 : index
    %38 = vector.load %arg2[%c2_56, %c0_57, %c0_58] : memref<5x4x4xbf16, #tpu.memory_space<vmem>>, vector<1x4x4xbf16>
    %39 = vector.shape_cast %38 : vector<1x4x4xbf16> to vector<4x4xbf16>
    %cst_59 = arith.constant dense<0.000000e+00> : vector<256x4xf32>
    %40 = tpu.matmul %37, %39, %cst_59 {dimension_numbers = #tpu.dot_dimension_numbers<[1], [0], [0], [1], [0, 0, 1, 1], [], []>} : vector<256x4xbf16>, vector<4x4xbf16>, vector<256x4xf32> -> vector<256x4xf32>
    %c0_60 = arith.constant 0 : index
    %c0_61 = arith.constant 0 : index
    %41 = vector.load %arg13[%c0_60, %c0_61] : memref<256x4xf32, #tpu.memory_space<vmem>>, vector<256x4xf32>
    %42 = arith.addf %41, %40 : vector<256x4xf32>
    %c0_62 = arith.constant 0 : index
    %c0_63 = arith.constant 0 : index
    %43 = vector.load %arg13[%c0_62, %c0_63] : memref<256x4xf32, #tpu.memory_space<vmem>>, vector<256x4xf32>
    tpu.vector_store %arg13[%c0_62, %c0_63], %42 {strides = array<i32>} : memref<256x4xf32, #tpu.memory_space<vmem>>, vector<256x4xf32>,
    %c2_64 = arith.constant 2 : index
    %c3 = arith.constant 3 : index
    %c0_65 = arith.constant 0 : index
    %44 = vector.load %arg11[%c2_64, %c3, %c0_65] : memref<20x20x4xf32, #tpu.memory_space<vmem>>, vector<16x16x4xf32>
    %45 = vector.shape_cast %44 : vector<16x16x4xf32> to vector<256x4xf32>
    %46 = arith.truncf %45 : vector<256x4xf32> to vector<256x4xbf16>
    %c3_66 = arith.constant 3 : index
    %c0_67 = arith.constant 0 : index
    %c0_68 = arith.constant 0 : index
    %47 = vector.load %arg2[%c3_66, %c0_67, %c0_68] : memref<5x4x4xbf16, #tpu.memory_space<vmem>>, vector<1x4x4xbf16>
    %48 = vector.shape_cast %47 : vector<1x4x4xbf16> to vector<4x4xbf16>
    %cst_69 = arith.constant dense<0.000000e+00> : vector<256x4xf32>
    %49 = tpu.matmul %46, %48, %cst_69 {dimension_numbers = #tpu.dot_dimension_numbers<[1], [0], [0], [1], [0, 0, 1, 1], [], []>} : vector<256x4xbf16>, vector<4x4xbf16>, vector<256x4xf32> -> vector<256x4xf32>
    %c0_70 = arith.constant 0 : index
    %c0_71 = arith.constant 0 : index
    %50 = vector.load %arg13[%c0_70, %c0_71] : memref<256x4xf32, #tpu.memory_space<vmem>>, vector<256x4xf32>
    %51 = arith.addf %50, %49 : vector<256x4xf32>
    %c0_72 = arith.constant 0 : index
    %c0_73 = arith.constant 0 : index
    %52 = vector.load %arg13[%c0_72, %c0_73] : memref<256x4xf32, #tpu.memory_space<vmem>>, vector<256x4xf32>
    tpu.vector_store %arg13[%c0_72, %c0_73], %51 {strides = array<i32>} : memref<256x4xf32, #tpu.memory_space<vmem>>, vector<256x4xf32>,
    %c3_74 = arith.constant 3 : index
    %c2_75 = arith.constant 2 : index
    %c0_76 = arith.constant 0 : index
    %53 = vector.load %arg11[%c3_74, %c2_75, %c0_76] : memref<20x20x4xf32, #tpu.memory_space<vmem>>, vector<16x16x4xf32>
    %54 = vector.shape_cast %53 : vector<16x16x4xf32> to vector<256x4xf32>
    %55 = arith.truncf %54 : vector<256x4xf32> to vector<256x4xbf16>
    %c4 = arith.constant 4 : index
    %c0_77 = arith.constant 0 : index
    %c0_78 = arith.constant 0 : index
    %56 = vector.load %arg2[%c4, %c0_77, %c0_78] : memref<5x4x4xbf16, #tpu.memory_space<vmem>>, vector<1x4x4xbf16>
    %57 = vector.shape_cast %56 : vector<1x4x4xbf16> to vector<4x4xbf16>
    %cst_79 = arith.constant dense<0.000000e+00> : vector<256x4xf32>
    %58 = tpu.matmul %55, %57, %cst_79 {dimension_numbers = #tpu.dot_dimension_numbers<[1], [0], [0], [1], [0, 0, 1, 1], [], []>} : vector<256x4xbf16>, vector<4x4xbf16>, vector<256x4xf32> -> vector<256x4xf32>
    %c0_80 = arith.constant 0 : index
    %c0_81 = arith.constant 0 : index
    %59 = vector.load %arg13[%c0_80, %c0_81] : memref<256x4xf32, #tpu.memory_space<vmem>>, vector<256x4xf32>
    %60 = arith.addf %59, %58 : vector<256x4xf32>
    %c0_82 = arith.constant 0 : index
    %c0_83 = arith.constant 0 : index
    %61 = vector.load %arg13[%c0_82, %c0_83] : memref<256x4xf32, #tpu.memory_space<vmem>>, vector<256x4xf32>
    tpu.vector_store %arg13[%c0_82, %c0_83], %60 {strides = array<i32>} : memref<256x4xf32, #tpu.memory_space<vmem>>, vector<256x4xf32>,
    %c0_84 = arith.constant 0 : index
    %c0_85 = arith.constant 0 : index
    %62 = vector.load %arg13[%c0_84, %c0_85] : memref<256x4xf32, #tpu.memory_space<vmem>>, vector<256x4xf32>
    %c0_86 = arith.constant 0 : index
    %c0_87 = arith.constant 0 : index
    %63 = vector.load %arg3[%c0_86, %c0_87] : memref<1x4xf32, #tpu.memory_space<vmem>>, vector<1x4xf32>
    %64 = vector.broadcast %63 : vector<1x4xf32> to vector<256x4xf32>
    %65 = arith.addf %62, %64 : vector<256x4xf32>
    %cst_88 = arith.constant 0.000000e+00 : f32
    %66 = vector.broadcast %cst_88 : f32 to vector<256x4xf32>
    %67 = arith.maximumf %65, %66 : vector<256x4xf32>
    %68 = vector.shape_cast %67 : vector<256x4xf32> to vector<16x16x4xf32>
    %c1_89 = arith.constant 1 : index
    %c1_90 = arith.constant 1 : index
    %c0_91 = arith.constant 0 : index
    %69 = vector.load %arg12[%c1_89, %c1_90, %c0_91] : memref<18x18x4xf32, #tpu.memory_space<vmem>>, vector<16x16x4xf32>
    tpu.vector_store %arg12[%c1_89, %c1_90, %c0_91], %68 {strides = array<i32>} : memref<18x18x4xf32, #tpu.memory_space<vmem>>, vector<16x16x4xf32>,
    %c0_92 = arith.constant 0 : index
    %c1_93 = arith.constant 1 : index
    %c0_94 = arith.constant 0 : index
    %70 = vector.load %arg12[%c0_92, %c1_93, %c0_94] : memref<18x18x4xf32, #tpu.memory_space<vmem>>, vector<16x16x4xf32>
    %71 = vector.shape_cast %70 : vector<16x16x4xf32> to vector<256x4xf32>
    %72 = arith.truncf %71 : vector<256x4xf32> to vector<256x4xbf16>
    %c0_95 = arith.constant 0 : index
    %c0_96 = arith.constant 0 : index
    %c0_97 = arith.constant 0 : index
    %73 = vector.load %arg4[%c0_95, %c0_96, %c0_97] : memref<5x4x4xbf16, #tpu.memory_space<vmem>>, vector<1x4x4xbf16>
    %74 = vector.shape_cast %73 : vector<1x4x4xbf16> to vector<4x4xbf16>
    %cst_98 = arith.constant dense<0.000000e+00> : vector<256x4xf32>
    %75 = tpu.matmul %72, %74, %cst_98 {dimension_numbers = #tpu.dot_dimension_numbers<[1], [0], [0], [1], [0, 0, 1, 1], [], []>} : vector<256x4xbf16>, vector<4x4xbf16>, vector<256x4xf32> -> vector<256x4xf32>
    %c0_99 = arith.constant 0 : index
    %c0_100 = arith.constant 0 : index
    %76 = vector.load %arg13[%c0_99, %c0_100] : memref<256x4xf32, #tpu.memory_space<vmem>>, vector<256x4xf32>
    tpu.vector_store %arg13[%c0_99, %c0_100], %75 {strides = array<i32>} : memref<256x4xf32, #tpu.memory_space<vmem>>, vector<256x4xf32>,
    %c1_101 = arith.constant 1 : index
    %c0_102 = arith.constant 0 : index
    %c0_103 = arith.constant 0 : index
    %77 = vector.load %arg12[%c1_101, %c0_102, %c0_103] : memref<18x18x4xf32, #tpu.memory_space<vmem>>, vector<16x16x4xf32>
    %78 = vector.shape_cast %77 : vector<16x16x4xf32> to vector<256x4xf32>
    %79 = arith.truncf %78 : vector<256x4xf32> to vector<256x4xbf16>
    %c1_104 = arith.constant 1 : index
    %c0_105 = arith.constant 0 : index
    %c0_106 = arith.constant 0 : index
    %80 = vector.load %arg4[%c1_104, %c0_105, %c0_106] : memref<5x4x4xbf16, #tpu.memory_space<vmem>>, vector<1x4x4xbf16>
    %81 = vector.shape_cast %80 : vector<1x4x4xbf16> to vector<4x4xbf16>
    %cst_107 = arith.constant dense<0.000000e+00> : vector<256x4xf32>
    %82 = tpu.matmul %79, %81, %cst_107 {dimension_numbers = #tpu.dot_dimension_numbers<[1], [0], [0], [1], [0, 0, 1, 1], [], []>} : vector<256x4xbf16>, vector<4x4xbf16>, vector<256x4xf32> -> vector<256x4xf32>
    %c0_108 = arith.constant 0 : index
    %c0_109 = arith.constant 0 : index
    %83 = vector.load %arg13[%c0_108, %c0_109] : memref<256x4xf32, #tpu.memory_space<vmem>>, vector<256x4xf32>
    %84 = arith.addf %83, %82 : vector<256x4xf32>
    %c0_110 = arith.constant 0 : index
    %c0_111 = arith.constant 0 : index
    %85 = vector.load %arg13[%c0_110, %c0_111] : memref<256x4xf32, #tpu.memory_space<vmem>>, vector<256x4xf32>
    tpu.vector_store %arg13[%c0_110, %c0_111], %84 {strides = array<i32>} : memref<256x4xf32, #tpu.memory_space<vmem>>, vector<256x4xf32>,
    %c1_112 = arith.constant 1 : index
    %c1_113 = arith.constant 1 : index
    %c0_114 = arith.constant 0 : index
    %86 = vector.load %arg12[%c1_112, %c1_113, %c0_114] : memref<18x18x4xf32, #tpu.memory_space<vmem>>, vector<16x16x4xf32>
    %87 = vector.shape_cast %86 : vector<16x16x4xf32> to vector<256x4xf32>
    %88 = arith.truncf %87 : vector<256x4xf32> to vector<256x4xbf16>
    %c2_115 = arith.constant 2 : index
    %c0_116 = arith.constant 0 : index
    %c0_117 = arith.constant 0 : index
    %89 = vector.load %arg4[%c2_115, %c0_116, %c0_117] : memref<5x4x4xbf16, #tpu.memory_space<vmem>>, vector<1x4x4xbf16>
    %90 = vector.shape_cast %89 : vector<1x4x4xbf16> to vector<4x4xbf16>
    %cst_118 = arith.constant dense<0.000000e+00> : vector<256x4xf32>
    %91 = tpu.matmul %88, %90, %cst_118 {dimension_numbers = #tpu.dot_dimension_numbers<[1], [0], [0], [1], [0, 0, 1, 1], [], []>} : vector<256x4xbf16>, vector<4x4xbf16>, vector<256x4xf32> -> vector<256x4xf32>
    %c0_119 = arith.constant 0 : index
    %c0_120 = arith.constant 0 : index
    %92 = vector.load %arg13[%c0_119, %c0_120] : memref<256x4xf32, #tpu.memory_space<vmem>>, vector<256x4xf32>
    %93 = arith.addf %92, %91 : vector<256x4xf32>
    %c0_121 = arith.constant 0 : index
    %c0_122 = arith.constant 0 : index
    %94 = vector.load %arg13[%c0_121, %c0_122] : memref<256x4xf32, #tpu.memory_space<vmem>>, vector<256x4xf32>
    tpu.vector_store %arg13[%c0_121, %c0_122], %93 {strides = array<i32>} : memref<256x4xf32, #tpu.memory_space<vmem>>, vector<256x4xf32>,
    %c1_123 = arith.constant 1 : index
    %c2_124 = arith.constant 2 : index
    %c0_125 = arith.constant 0 : index
    %95 = vector.load %arg12[%c1_123, %c2_124, %c0_125] : memref<18x18x4xf32, #tpu.memory_space<vmem>>, vector<16x16x4xf32>
    %96 = vector.shape_cast %95 : vector<16x16x4xf32> to vector<256x4xf32>
    %97 = arith.truncf %96 : vector<256x4xf32> to vector<256x4xbf16>
    %c3_126 = arith.constant 3 : index
    %c0_127 = arith.constant 0 : index
    %c0_128 = arith.constant 0 : index
    %98 = vector.load %arg4[%c3_126, %c0_127, %c0_128] : memref<5x4x4xbf16, #tpu.memory_space<vmem>>, vector<1x4x4xbf16>
    %99 = vector.shape_cast %98 : vector<1x4x4xbf16> to vector<4x4xbf16>
    %cst_129 = arith.constant dense<0.000000e+00> : vector<256x4xf32>
    %100 = tpu.matmul %97, %99, %cst_129 {dimension_numbers = #tpu.dot_dimension_numbers<[1], [0], [0], [1], [0, 0, 1, 1], [], []>} : vector<256x4xbf16>, vector<4x4xbf16>, vector<256x4xf32> -> vector<256x4xf32>
    %c0_130 = arith.constant 0 : index
    %c0_131 = arith.constant 0 : index
    %101 = vector.load %arg13[%c0_130, %c0_131] : memref<256x4xf32, #tpu.memory_space<vmem>>, vector<256x4xf32>
    %102 = arith.addf %101, %100 : vector<256x4xf32>
    %c0_132 = arith.constant 0 : index
    %c0_133 = arith.constant 0 : index
    %103 = vector.load %arg13[%c0_132, %c0_133] : memref<256x4xf32, #tpu.memory_space<vmem>>, vector<256x4xf32>
    tpu.vector_store %arg13[%c0_132, %c0_133], %102 {strides = array<i32>} : memref<256x4xf32, #tpu.memory_space<vmem>>, vector<256x4xf32>,
    %c2_134 = arith.constant 2 : index
    %c1_135 = arith.constant 1 : index
    %c0_136 = arith.constant 0 : index
    %104 = vector.load %arg12[%c2_134, %c1_135, %c0_136] : memref<18x18x4xf32, #tpu.memory_space<vmem>>, vector<16x16x4xf32>
    %105 = vector.shape_cast %104 : vector<16x16x4xf32> to vector<256x4xf32>
    %106 = arith.truncf %105 : vector<256x4xf32> to vector<256x4xbf16>
    %c4_137 = arith.constant 4 : index
    %c0_138 = arith.constant 0 : index
    %c0_139 = arith.constant 0 : index
    %107 = vector.load %arg4[%c4_137, %c0_138, %c0_139] : memref<5x4x4xbf16, #tpu.memory_space<vmem>>, vector<1x4x4xbf16>
    %108 = vector.shape_cast %107 : vector<1x4x4xbf16> to vector<4x4xbf16>
    %cst_140 = arith.constant dense<0.000000e+00> : vector<256x4xf32>
    %109 = tpu.matmul %106, %108, %cst_140 {dimension_numbers = #tpu.dot_dimension_numbers<[1], [0], [0], [1], [0, 0, 1, 1], [], []>} : vector<256x4xbf16>, vector<4x4xbf16>, vector<256x4xf32> -> vector<256x4xf32>
    %c0_141 = arith.constant 0 : index
    %c0_142 = arith.constant 0 : index
    %110 = vector.load %arg13[%c0_141, %c0_142] : memref<256x4xf32, #tpu.memory_space<vmem>>, vector<256x4xf32>
    %111 = arith.addf %110, %109 : vector<256x4xf32>
    %c0_143 = arith.constant 0 : index
    %c0_144 = arith.constant 0 : index
    %112 = vector.load %arg13[%c0_143, %c0_144] : memref<256x4xf32, #tpu.memory_space<vmem>>, vector<256x4xf32>
    tpu.vector_store %arg13[%c0_143, %c0_144], %111 {strides = array<i32>} : memref<256x4xf32, #tpu.memory_space<vmem>>, vector<256x4xf32>,
    %c0_145 = arith.constant 0 : index
    %c0_146 = arith.constant 0 : index
    %113 = vector.load %arg13[%c0_145, %c0_146] : memref<256x4xf32, #tpu.memory_space<vmem>>, vector<256x4xf32>
    %c0_147 = arith.constant 0 : index
    %c0_148 = arith.constant 0 : index
    %114 = vector.load %arg5[%c0_147, %c0_148] : memref<1x4xf32, #tpu.memory_space<vmem>>, vector<1x4xf32>
    %115 = vector.broadcast %114 : vector<1x4xf32> to vector<256x4xf32>
    %116 = arith.addf %113, %115 : vector<256x4xf32>
    %cst_149 = arith.constant 0.000000e+00 : f32
    %117 = vector.broadcast %cst_149 : f32 to vector<256x4xf32>
    %118 = arith.maximumf %116, %117 : vector<256x4xf32>
    %119 = vector.shape_cast %118 : vector<256x4xf32> to vector<16x16x4xf32>
    %c1_150 = arith.constant 1 : index
    %c1_151 = arith.constant 1 : index
    %c0_152 = arith.constant 0 : index
    %120 = vector.load %arg12[%c1_150, %c1_151, %c0_152] : memref<18x18x4xf32, #tpu.memory_space<vmem>>, vector<16x16x4xf32>
    tpu.vector_store %arg12[%c1_150, %c1_151, %c0_152], %119 {strides = array<i32>} : memref<18x18x4xf32, #tpu.memory_space<vmem>>, vector<16x16x4xf32>,
    %c0_153 = arith.constant 0 : index
    %c0_154 = arith.constant 0 : index
    %c0_155 = arith.constant 0 : index
    %121 = vector.load %arg12[%c0_153, %c0_154, %c0_155] : memref<18x18x4xf32, #tpu.memory_space<vmem>>, vector<16x16x4xf32>
    %122 = vector.shape_cast %121 : vector<16x16x4xf32> to vector<256x4xf32>
    %123 = arith.truncf %122 : vector<256x4xf32> to vector<256x4xbf16>
    %c0_156 = arith.constant 0 : index
    %c0_157 = arith.constant 0 : index
    %c0_158 = arith.constant 0 : index
    %124 = vector.load %arg6[%c0_156, %c0_157, %c0_158] : memref<9x4x4xbf16, #tpu.memory_space<vmem>>, vector<1x4x4xbf16>
    %125 = vector.shape_cast %124 : vector<1x4x4xbf16> to vector<4x4xbf16>
    %cst_159 = arith.constant dense<0.000000e+00> : vector<256x4xf32>
    %126 = tpu.matmul %123, %125, %cst_159 {dimension_numbers = #tpu.dot_dimension_numbers<[1], [0], [0], [1], [0, 0, 1, 1], [], []>} : vector<256x4xbf16>, vector<4x4xbf16>, vector<256x4xf32> -> vector<256x4xf32>
    %c0_160 = arith.constant 0 : index
    %c0_161 = arith.constant 0 : index
    %127 = vector.load %arg13[%c0_160, %c0_161] : memref<256x4xf32, #tpu.memory_space<vmem>>, vector<256x4xf32>
    tpu.vector_store %arg13[%c0_160, %c0_161], %126 {strides = array<i32>} : memref<256x4xf32, #tpu.memory_space<vmem>>, vector<256x4xf32>,
    %c0_162 = arith.constant 0 : index
    %c1_163 = arith.constant 1 : index
    %c0_164 = arith.constant 0 : index
    %128 = vector.load %arg12[%c0_162, %c1_163, %c0_164] : memref<18x18x4xf32, #tpu.memory_space<vmem>>, vector<16x16x4xf32>
    %129 = vector.shape_cast %128 : vector<16x16x4xf32> to vector<256x4xf32>
    %130 = arith.truncf %129 : vector<256x4xf32> to vector<256x4xbf16>
    %c1_165 = arith.constant 1 : index
    %c0_166 = arith.constant 0 : index
    %c0_167 = arith.constant 0 : index
    %131 = vector.load %arg6[%c1_165, %c0_166, %c0_167] : memref<9x4x4xbf16, #tpu.memory_space<vmem>>, vector<1x4x4xbf16>
    %132 = vector.shape_cast %131 : vector<1x4x4xbf16> to vector<4x4xbf16>
    %cst_168 = arith.constant dense<0.000000e+00> : vector<256x4xf32>
    %133 = tpu.matmul %130, %132, %cst_168 {dimension_numbers = #tpu.dot_dimension_numbers<[1], [0], [0], [1], [0, 0, 1, 1], [], []>} : vector<256x4xbf16>, vector<4x4xbf16>, vector<256x4xf32> -> vector<256x4xf32>
    %c0_169 = arith.constant 0 : index
    %c0_170 = arith.constant 0 : index
    %134 = vector.load %arg13[%c0_169, %c0_170] : memref<256x4xf32, #tpu.memory_space<vmem>>, vector<256x4xf32>
    %135 = arith.addf %134, %133 : vector<256x4xf32>
    %c0_171 = arith.constant 0 : index
    %c0_172 = arith.constant 0 : index
    %136 = vector.load %arg13[%c0_171, %c0_172] : memref<256x4xf32, #tpu.memory_space<vmem>>, vector<256x4xf32>
    tpu.vector_store %arg13[%c0_171, %c0_172], %135 {strides = array<i32>} : memref<256x4xf32, #tpu.memory_space<vmem>>, vector<256x4xf32>,
    %c0_173 = arith.constant 0 : index
    %c2_174 = arith.constant 2 : index
    %c0_175 = arith.constant 0 : index
    %137 = vector.load %arg12[%c0_173, %c2_174, %c0_175] : memref<18x18x4xf32, #tpu.memory_space<vmem>>, vector<16x16x4xf32>
    %138 = vector.shape_cast %137 : vector<16x16x4xf32> to vector<256x4xf32>
    %139 = arith.truncf %138 : vector<256x4xf32> to vector<256x4xbf16>
    %c2_176 = arith.constant 2 : index
    %c0_177 = arith.constant 0 : index
    %c0_178 = arith.constant 0 : index
    %140 = vector.load %arg6[%c2_176, %c0_177, %c0_178] : memref<9x4x4xbf16, #tpu.memory_space<vmem>>, vector<1x4x4xbf16>
    %141 = vector.shape_cast %140 : vector<1x4x4xbf16> to vector<4x4xbf16>
    %cst_179 = arith.constant dense<0.000000e+00> : vector<256x4xf32>
    %142 = tpu.matmul %139, %141, %cst_179 {dimension_numbers = #tpu.dot_dimension_numbers<[1], [0], [0], [1], [0, 0, 1, 1], [], []>} : vector<256x4xbf16>, vector<4x4xbf16>, vector<256x4xf32> -> vector<256x4xf32>
    %c0_180 = arith.constant 0 : index
    %c0_181 = arith.constant 0 : index
    %143 = vector.load %arg13[%c0_180, %c0_181] : memref<256x4xf32, #tpu.memory_space<vmem>>, vector<256x4xf32>
    %144 = arith.addf %143, %142 : vector<256x4xf32>
    %c0_182 = arith.constant 0 : index
    %c0_183 = arith.constant 0 : index
    %145 = vector.load %arg13[%c0_182, %c0_183] : memref<256x4xf32, #tpu.memory_space<vmem>>, vector<256x4xf32>
    tpu.vector_store %arg13[%c0_182, %c0_183], %144 {strides = array<i32>} : memref<256x4xf32, #tpu.memory_space<vmem>>, vector<256x4xf32>,
    %c1_184 = arith.constant 1 : index
    %c0_185 = arith.constant 0 : index
    %c0_186 = arith.constant 0 : index
    %146 = vector.load %arg12[%c1_184, %c0_185, %c0_186] : memref<18x18x4xf32, #tpu.memory_space<vmem>>, vector<16x16x4xf32>
    %147 = vector.shape_cast %146 : vector<16x16x4xf32> to vector<256x4xf32>
    %148 = arith.truncf %147 : vector<256x4xf32> to vector<256x4xbf16>
    %c3_187 = arith.constant 3 : index
    %c0_188 = arith.constant 0 : index
    %c0_189 = arith.constant 0 : index
    %149 = vector.load %arg6[%c3_187, %c0_188, %c0_189] : memref<9x4x4xbf16, #tpu.memory_space<vmem>>, vector<1x4x4xbf16>
    %150 = vector.shape_cast %149 : vector<1x4x4xbf16> to vector<4x4xbf16>
    %cst_190 = arith.constant dense<0.000000e+00> : vector<256x4xf32>
    %151 = tpu.matmul %148, %150, %cst_190 {dimension_numbers = #tpu.dot_dimension_numbers<[1], [0], [0], [1], [0, 0, 1, 1], [], []>} : vector<256x4xbf16>, vector<4x4xbf16>, vector<256x4xf32> -> vector<256x4xf32>
    %c0_191 = arith.constant 0 : index
    %c0_192 = arith.constant 0 : index
    %152 = vector.load %arg13[%c0_191, %c0_192] : memref<256x4xf32, #tpu.memory_space<vmem>>, vector<256x4xf32>
    %153 = arith.addf %152, %151 : vector<256x4xf32>
    %c0_193 = arith.constant 0 : index
    %c0_194 = arith.constant 0 : index
    %154 = vector.load %arg13[%c0_193, %c0_194] : memref<256x4xf32, #tpu.memory_space<vmem>>, vector<256x4xf32>
    tpu.vector_store %arg13[%c0_193, %c0_194], %153 {strides = array<i32>} : memref<256x4xf32, #tpu.memory_space<vmem>>, vector<256x4xf32>,
    %c1_195 = arith.constant 1 : index
    %c1_196 = arith.constant 1 : index
    %c0_197 = arith.constant 0 : index
    %155 = vector.load %arg12[%c1_195, %c1_196, %c0_197] : memref<18x18x4xf32, #tpu.memory_space<vmem>>, vector<16x16x4xf32>
    %156 = vector.shape_cast %155 : vector<16x16x4xf32> to vector<256x4xf32>
    %157 = arith.truncf %156 : vector<256x4xf32> to vector<256x4xbf16>
    %c4_198 = arith.constant 4 : index
    %c0_199 = arith.constant 0 : index
    %c0_200 = arith.constant 0 : index
    %158 = vector.load %arg6[%c4_198, %c0_199, %c0_200] : memref<9x4x4xbf16, #tpu.memory_space<vmem>>, vector<1x4x4xbf16>
    %159 = vector.shape_cast %158 : vector<1x4x4xbf16> to vector<4x4xbf16>
    %cst_201 = arith.constant dense<0.000000e+00> : vector<256x4xf32>
    %160 = tpu.matmul %157, %159, %cst_201 {dimension_numbers = #tpu.dot_dimension_numbers<[1], [0], [0], [1], [0, 0, 1, 1], [], []>} : vector<256x4xbf16>, vector<4x4xbf16>, vector<256x4xf32> -> vector<256x4xf32>
    %c0_202 = arith.constant 0 : index
    %c0_203 = arith.constant 0 : index
    %161 = vector.load %arg13[%c0_202, %c0_203] : memref<256x4xf32, #tpu.memory_space<vmem>>, vector<256x4xf32>
    %162 = arith.addf %161, %160 : vector<256x4xf32>
    %c0_204 = arith.constant 0 : index
    %c0_205 = arith.constant 0 : index
    %163 = vector.load %arg13[%c0_204, %c0_205] : memref<256x4xf32, #tpu.memory_space<vmem>>, vector<256x4xf32>
    tpu.vector_store %arg13[%c0_204, %c0_205], %162 {strides = array<i32>} : memref<256x4xf32, #tpu.memory_space<vmem>>, vector<256x4xf32>,
    %c1_206 = arith.constant 1 : index
    %c2_207 = arith.constant 2 : index
    %c0_208 = arith.constant 0 : index
    %164 = vector.load %arg12[%c1_206, %c2_207, %c0_208] : memref<18x18x4xf32, #tpu.memory_space<vmem>>, vector<16x16x4xf32>
    %165 = vector.shape_cast %164 : vector<16x16x4xf32> to vector<256x4xf32>
    %166 = arith.truncf %165 : vector<256x4xf32> to vector<256x4xbf16>
    %c5 = arith.constant 5 : index
    %c0_209 = arith.constant 0 : index
    %c0_210 = arith.constant 0 : index
    %167 = vector.load %arg6[%c5, %c0_209, %c0_210] : memref<9x4x4xbf16, #tpu.memory_space<vmem>>, vector<1x4x4xbf16>
    %168 = vector.shape_cast %167 : vector<1x4x4xbf16> to vector<4x4xbf16>
    %cst_211 = arith.constant dense<0.000000e+00> : vector<256x4xf32>
    %169 = tpu.matmul %166, %168, %cst_211 {dimension_numbers = #tpu.dot_dimension_numbers<[1], [0], [0], [1], [0, 0, 1, 1], [], []>} : vector<256x4xbf16>, vector<4x4xbf16>, vector<256x4xf32> -> vector<256x4xf32>
    %c0_212 = arith.constant 0 : index
    %c0_213 = arith.constant 0 : index
    %170 = vector.load %arg13[%c0_212, %c0_213] : memref<256x4xf32, #tpu.memory_space<vmem>>, vector<256x4xf32>
    %171 = arith.addf %170, %169 : vector<256x4xf32>
    %c0_214 = arith.constant 0 : index
    %c0_215 = arith.constant 0 : index
    %172 = vector.load %arg13[%c0_214, %c0_215] : memref<256x4xf32, #tpu.memory_space<vmem>>, vector<256x4xf32>
    tpu.vector_store %arg13[%c0_214, %c0_215], %171 {strides = array<i32>} : memref<256x4xf32, #tpu.memory_space<vmem>>, vector<256x4xf32>,
    %c2_216 = arith.constant 2 : index
    %c0_217 = arith.constant 0 : index
    %c0_218 = arith.constant 0 : index
    %173 = vector.load %arg12[%c2_216, %c0_217, %c0_218] : memref<18x18x4xf32, #tpu.memory_space<vmem>>, vector<16x16x4xf32>
    %174 = vector.shape_cast %173 : vector<16x16x4xf32> to vector<256x4xf32>
    %175 = arith.truncf %174 : vector<256x4xf32> to vector<256x4xbf16>
    %c6 = arith.constant 6 : index
    %c0_219 = arith.constant 0 : index
    %c0_220 = arith.constant 0 : index
    %176 = vector.load %arg6[%c6, %c0_219, %c0_220] : memref<9x4x4xbf16, #tpu.memory_space<vmem>>, vector<1x4x4xbf16>
    %177 = vector.shape_cast %176 : vector<1x4x4xbf16> to vector<4x4xbf16>
    %cst_221 = arith.constant dense<0.000000e+00> : vector<256x4xf32>
    %178 = tpu.matmul %175, %177, %cst_221 {dimension_numbers = #tpu.dot_dimension_numbers<[1], [0], [0], [1], [0, 0, 1, 1], [], []>} : vector<256x4xbf16>, vector<4x4xbf16>, vector<256x4xf32> -> vector<256x4xf32>
    %c0_222 = arith.constant 0 : index
    %c0_223 = arith.constant 0 : index
    %179 = vector.load %arg13[%c0_222, %c0_223] : memref<256x4xf32, #tpu.memory_space<vmem>>, vector<256x4xf32>
    %180 = arith.addf %179, %178 : vector<256x4xf32>
    %c0_224 = arith.constant 0 : index
    %c0_225 = arith.constant 0 : index
    %181 = vector.load %arg13[%c0_224, %c0_225] : memref<256x4xf32, #tpu.memory_space<vmem>>, vector<256x4xf32>
    tpu.vector_store %arg13[%c0_224, %c0_225], %180 {strides = array<i32>} : memref<256x4xf32, #tpu.memory_space<vmem>>, vector<256x4xf32>,
    %c2_226 = arith.constant 2 : index
    %c1_227 = arith.constant 1 : index
    %c0_228 = arith.constant 0 : index
    %182 = vector.load %arg12[%c2_226, %c1_227, %c0_228] : memref<18x18x4xf32, #tpu.memory_space<vmem>>, vector<16x16x4xf32>
    %183 = vector.shape_cast %182 : vector<16x16x4xf32> to vector<256x4xf32>
    %184 = arith.truncf %183 : vector<256x4xf32> to vector<256x4xbf16>
    %c7 = arith.constant 7 : index
    %c0_229 = arith.constant 0 : index
    %c0_230 = arith.constant 0 : index
    %185 = vector.load %arg6[%c7, %c0_229, %c0_230] : memref<9x4x4xbf16, #tpu.memory_space<vmem>>, vector<1x4x4xbf16>
    %186 = vector.shape_cast %185 : vector<1x4x4xbf16> to vector<4x4xbf16>
    %cst_231 = arith.constant dense<0.000000e+00> : vector<256x4xf32>
    %187 = tpu.matmul %184, %186, %cst_231 {dimension_numbers = #tpu.dot_dimension_numbers<[1], [0], [0], [1], [0, 0, 1, 1], [], []>} : vector<256x4xbf16>, vector<4x4xbf16>, vector<256x4xf32> -> vector<256x4xf32>
    %c0_232 = arith.constant 0 : index
    %c0_233 = arith.constant 0 : index
    %188 = vector.load %arg13[%c0_232, %c0_233] : memref<256x4xf32, #tpu.memory_space<vmem>>, vector<256x4xf32>
    %189 = arith.addf %188, %187 : vector<256x4xf32>
    %c0_234 = arith.constant 0 : index
    %c0_235 = arith.constant 0 : index
    %190 = vector.load %arg13[%c0_234, %c0_235] : memref<256x4xf32, #tpu.memory_space<vmem>>, vector<256x4xf32>
    tpu.vector_store %arg13[%c0_234, %c0_235], %189 {strides = array<i32>} : memref<256x4xf32, #tpu.memory_space<vmem>>, vector<256x4xf32>,
    %c2_236 = arith.constant 2 : index
    %c2_237 = arith.constant 2 : index
    %c0_238 = arith.constant 0 : index
    %191 = vector.load %arg12[%c2_236, %c2_237, %c0_238] : memref<18x18x4xf32, #tpu.memory_space<vmem>>, vector<16x16x4xf32>
    %192 = vector.shape_cast %191 : vector<16x16x4xf32> to vector<256x4xf32>
    %193 = arith.truncf %192 : vector<256x4xf32> to vector<256x4xbf16>
    %c8 = arith.constant 8 : index
    %c0_239 = arith.constant 0 : index
    %c0_240 = arith.constant 0 : index
    %194 = vector.load %arg6[%c8, %c0_239, %c0_240] : memref<9x4x4xbf16, #tpu.memory_space<vmem>>, vector<1x4x4xbf16>
    %195 = vector.shape_cast %194 : vector<1x4x4xbf16> to vector<4x4xbf16>
    %cst_241 = arith.constant dense<0.000000e+00> : vector<256x4xf32>
    %196 = tpu.matmul %193, %195, %cst_241 {dimension_numbers = #tpu.dot_dimension_numbers<[1], [0], [0], [1], [0, 0, 1, 1], [], []>} : vector<256x4xbf16>, vector<4x4xbf16>, vector<256x4xf32> -> vector<256x4xf32>
    %c0_242 = arith.constant 0 : index
    %c0_243 = arith.constant 0 : index
    %197 = vector.load %arg13[%c0_242, %c0_243] : memref<256x4xf32, #tpu.memory_space<vmem>>, vector<256x4xf32>
    %198 = arith.addf %197, %196 : vector<256x4xf32>
    %c0_244 = arith.constant 0 : index
    %c0_245 = arith.constant 0 : index
    %199 = vector.load %arg13[%c0_244, %c0_245] : memref<256x4xf32, #tpu.memory_space<vmem>>, vector<256x4xf32>
    tpu.vector_store %arg13[%c0_244, %c0_245], %198 {strides = array<i32>} : memref<256x4xf32, #tpu.memory_space<vmem>>, vector<256x4xf32>,
    %c0_246 = arith.constant 0 : index
    %c0_247 = arith.constant 0 : index
    %200 = vector.load %arg13[%c0_246, %c0_247] : memref<256x4xf32, #tpu.memory_space<vmem>>, vector<256x4xf32>
    %c0_248 = arith.constant 0 : index
    %c0_249 = arith.constant 0 : index
    %201 = vector.load %arg7[%c0_248, %c0_249] : memref<1x4xf32, #tpu.memory_space<vmem>>, vector<1x4xf32>
    %202 = vector.broadcast %201 : vector<1x4xf32> to vector<256x4xf32>
    %203 = arith.addf %200, %202 : vector<256x4xf32>
    %204 = vector.shape_cast %203 : vector<256x4xf32> to vector<16x16x4xf32>
    %c2_250 = arith.constant 2 : index
    %c2_251 = arith.constant 2 : index
    %c0_252 = arith.constant 0 : index
    %205 = vector.load %arg11[%c2_250, %c2_251, %c0_252] : memref<20x20x4xf32, #tpu.memory_space<vmem>>, vector<16x16x4xf32>
    tpu.vector_store %arg11[%c2_250, %c2_251, %c0_252], %204 {strides = array<i32>} : memref<20x20x4xf32, #tpu.memory_space<vmem>>, vector<16x16x4xf32>,
    %c0_253 = arith.constant 0 : index
    %c0_254 = arith.constant 0 : index
    %c0_255 = arith.constant 0 : index
    %206 = vector.load %arg11[%c0_253, %c0_254, %c0_255] : memref<20x20x4xf32, #tpu.memory_space<vmem>>, vector<16x16x4xf32>
    %207 = vector.shape_cast %206 : vector<16x16x4xf32> to vector<256x4xf32>
    %208 = arith.truncf %207 : vector<256x4xf32> to vector<256x4xbf16>
    %c0_256 = arith.constant 0 : index
    %c0_257 = arith.constant 0 : index
    %c0_258 = arith.constant 0 : index
    %209 = vector.load %arg8[%c0_256, %c0_257, %c0_258] : memref<9x4x4xbf16, #tpu.memory_space<vmem>>, vector<1x4x4xbf16>
    %210 = vector.shape_cast %209 : vector<1x4x4xbf16> to vector<4x4xbf16>
    %cst_259 = arith.constant dense<0.000000e+00> : vector<256x4xf32>
    %211 = tpu.matmul %208, %210, %cst_259 {dimension_numbers = #tpu.dot_dimension_numbers<[1], [0], [0], [1], [0, 0, 1, 1], [], []>} : vector<256x4xbf16>, vector<4x4xbf16>, vector<256x4xf32> -> vector<256x4xf32>
    %c0_260 = arith.constant 0 : index
    %c0_261 = arith.constant 0 : index
    %212 = vector.load %arg13[%c0_260, %c0_261] : memref<256x4xf32, #tpu.memory_space<vmem>>, vector<256x4xf32>
    tpu.vector_store %arg13[%c0_260, %c0_261], %211 {strides = array<i32>} : memref<256x4xf32, #tpu.memory_space<vmem>>, vector<256x4xf32>,
    %c0_262 = arith.constant 0 : index
    %c2_263 = arith.constant 2 : index
    %c0_264 = arith.constant 0 : index
    %213 = vector.load %arg11[%c0_262, %c2_263, %c0_264] : memref<20x20x4xf32, #tpu.memory_space<vmem>>, vector<16x16x4xf32>
    %214 = vector.shape_cast %213 : vector<16x16x4xf32> to vector<256x4xf32>
    %215 = arith.truncf %214 : vector<256x4xf32> to vector<256x4xbf16>
    %c1_265 = arith.constant 1 : index
    %c0_266 = arith.constant 0 : index
    %c0_267 = arith.constant 0 : index
    %216 = vector.load %arg8[%c1_265, %c0_266, %c0_267] : memref<9x4x4xbf16, #tpu.memory_space<vmem>>, vector<1x4x4xbf16>
    %217 = vector.shape_cast %216 : vector<1x4x4xbf16> to vector<4x4xbf16>
    %cst_268 = arith.constant dense<0.000000e+00> : vector<256x4xf32>
    %218 = tpu.matmul %215, %217, %cst_268 {dimension_numbers = #tpu.dot_dimension_numbers<[1], [0], [0], [1], [0, 0, 1, 1], [], []>} : vector<256x4xbf16>, vector<4x4xbf16>, vector<256x4xf32> -> vector<256x4xf32>
    %c0_269 = arith.constant 0 : index
    %c0_270 = arith.constant 0 : index
    %219 = vector.load %arg13[%c0_269, %c0_270] : memref<256x4xf32, #tpu.memory_space<vmem>>, vector<256x4xf32>
    %220 = arith.addf %219, %218 : vector<256x4xf32>
    %c0_271 = arith.constant 0 : index
    %c0_272 = arith.constant 0 : index
    %221 = vector.load %arg13[%c0_271, %c0_272] : memref<256x4xf32, #tpu.memory_space<vmem>>, vector<256x4xf32>
    tpu.vector_store %arg13[%c0_271, %c0_272], %220 {strides = array<i32>} : memref<256x4xf32, #tpu.memory_space<vmem>>, vector<256x4xf32>,
    %c0_273 = arith.constant 0 : index
    %c4_274 = arith.constant 4 : index
    %c0_275 = arith.constant 0 : index
    %222 = vector.load %arg11[%c0_273, %c4_274, %c0_275] : memref<20x20x4xf32, #tpu.memory_space<vmem>>, vector<16x16x4xf32>
    %223 = vector.shape_cast %222 : vector<16x16x4xf32> to vector<256x4xf32>
    %224 = arith.truncf %223 : vector<256x4xf32> to vector<256x4xbf16>
    %c2_276 = arith.constant 2 : index
    %c0_277 = arith.constant 0 : index
    %c0_278 = arith.constant 0 : index
    %225 = vector.load %arg8[%c2_276, %c0_277, %c0_278] : memref<9x4x4xbf16, #tpu.memory_space<vmem>>, vector<1x4x4xbf16>
    %226 = vector.shape_cast %225 : vector<1x4x4xbf16> to vector<4x4xbf16>
    %cst_279 = arith.constant dense<0.000000e+00> : vector<256x4xf32>
    %227 = tpu.matmul %224, %226, %cst_279 {dimension_numbers = #tpu.dot_dimension_numbers<[1], [0], [0], [1], [0, 0, 1, 1], [], []>} : vector<256x4xbf16>, vector<4x4xbf16>, vector<256x4xf32> -> vector<256x4xf32>
    %c0_280 = arith.constant 0 : index
    %c0_281 = arith.constant 0 : index
    %228 = vector.load %arg13[%c0_280, %c0_281] : memref<256x4xf32, #tpu.memory_space<vmem>>, vector<256x4xf32>
    %229 = arith.addf %228, %227 : vector<256x4xf32>
    %c0_282 = arith.constant 0 : index
    %c0_283 = arith.constant 0 : index
    %230 = vector.load %arg13[%c0_282, %c0_283] : memref<256x4xf32, #tpu.memory_space<vmem>>, vector<256x4xf32>
    tpu.vector_store %arg13[%c0_282, %c0_283], %229 {strides = array<i32>} : memref<256x4xf32, #tpu.memory_space<vmem>>, vector<256x4xf32>,
    %c2_284 = arith.constant 2 : index
    %c0_285 = arith.constant 0 : index
    %c0_286 = arith.constant 0 : index
    %231 = vector.load %arg11[%c2_284, %c0_285, %c0_286] : memref<20x20x4xf32, #tpu.memory_space<vmem>>, vector<16x16x4xf32>
    %232 = vector.shape_cast %231 : vector<16x16x4xf32> to vector<256x4xf32>
    %233 = arith.truncf %232 : vector<256x4xf32> to vector<256x4xbf16>
    %c3_287 = arith.constant 3 : index
    %c0_288 = arith.constant 0 : index
    %c0_289 = arith.constant 0 : index
    %234 = vector.load %arg8[%c3_287, %c0_288, %c0_289] : memref<9x4x4xbf16, #tpu.memory_space<vmem>>, vector<1x4x4xbf16>
    %235 = vector.shape_cast %234 : vector<1x4x4xbf16> to vector<4x4xbf16>
    %cst_290 = arith.constant dense<0.000000e+00> : vector<256x4xf32>
    %236 = tpu.matmul %233, %235, %cst_290 {dimension_numbers = #tpu.dot_dimension_numbers<[1], [0], [0], [1], [0, 0, 1, 1], [], []>} : vector<256x4xbf16>, vector<4x4xbf16>, vector<256x4xf32> -> vector<256x4xf32>
    %c0_291 = arith.constant 0 : index
    %c0_292 = arith.constant 0 : index
    %237 = vector.load %arg13[%c0_291, %c0_292] : memref<256x4xf32, #tpu.memory_space<vmem>>, vector<256x4xf32>
    %238 = arith.addf %237, %236 : vector<256x4xf32>
    %c0_293 = arith.constant 0 : index
    %c0_294 = arith.constant 0 : index
    %239 = vector.load %arg13[%c0_293, %c0_294] : memref<256x4xf32, #tpu.memory_space<vmem>>, vector<256x4xf32>
    tpu.vector_store %arg13[%c0_293, %c0_294], %238 {strides = array<i32>} : memref<256x4xf32, #tpu.memory_space<vmem>>, vector<256x4xf32>,
    %c2_295 = arith.constant 2 : index
    %c2_296 = arith.constant 2 : index
    %c0_297 = arith.constant 0 : index
    %240 = vector.load %arg11[%c2_295, %c2_296, %c0_297] : memref<20x20x4xf32, #tpu.memory_space<vmem>>, vector<16x16x4xf32>
    %241 = vector.shape_cast %240 : vector<16x16x4xf32> to vector<256x4xf32>
    %242 = arith.truncf %241 : vector<256x4xf32> to vector<256x4xbf16>
    %c4_298 = arith.constant 4 : index
    %c0_299 = arith.constant 0 : index
    %c0_300 = arith.constant 0 : index
    %243 = vector.load %arg8[%c4_298, %c0_299, %c0_300] : memref<9x4x4xbf16, #tpu.memory_space<vmem>>, vector<1x4x4xbf16>
    %244 = vector.shape_cast %243 : vector<1x4x4xbf16> to vector<4x4xbf16>
    %cst_301 = arith.constant dense<0.000000e+00> : vector<256x4xf32>
    %245 = tpu.matmul %242, %244, %cst_301 {dimension_numbers = #tpu.dot_dimension_numbers<[1], [0], [0], [1], [0, 0, 1, 1], [], []>} : vector<256x4xbf16>, vector<4x4xbf16>, vector<256x4xf32> -> vector<256x4xf32>
    %c0_302 = arith.constant 0 : index
    %c0_303 = arith.constant 0 : index
    %246 = vector.load %arg13[%c0_302, %c0_303] : memref<256x4xf32, #tpu.memory_space<vmem>>, vector<256x4xf32>
    %247 = arith.addf %246, %245 : vector<256x4xf32>
    %c0_304 = arith.constant 0 : index
    %c0_305 = arith.constant 0 : index
    %248 = vector.load %arg13[%c0_304, %c0_305] : memref<256x4xf32, #tpu.memory_space<vmem>>, vector<256x4xf32>
    tpu.vector_store %arg13[%c0_304, %c0_305], %247 {strides = array<i32>} : memref<256x4xf32, #tpu.memory_space<vmem>>, vector<256x4xf32>,
    %c2_306 = arith.constant 2 : index
    %c4_307 = arith.constant 4 : index
    %c0_308 = arith.constant 0 : index
    %249 = vector.load %arg11[%c2_306, %c4_307, %c0_308] : memref<20x20x4xf32, #tpu.memory_space<vmem>>, vector<16x16x4xf32>
    %250 = vector.shape_cast %249 : vector<16x16x4xf32> to vector<256x4xf32>
    %251 = arith.truncf %250 : vector<256x4xf32> to vector<256x4xbf16>
    %c5_309 = arith.constant 5 : index
    %c0_310 = arith.constant 0 : index
    %c0_311 = arith.constant 0 : index
    %252 = vector.load %arg8[%c5_309, %c0_310, %c0_311] : memref<9x4x4xbf16, #tpu.memory_space<vmem>>, vector<1x4x4xbf16>
    %253 = vector.shape_cast %252 : vector<1x4x4xbf16> to vector<4x4xbf16>
    %cst_312 = arith.constant dense<0.000000e+00> : vector<256x4xf32>
    %254 = tpu.matmul %251, %253, %cst_312 {dimension_numbers = #tpu.dot_dimension_numbers<[1], [0], [0], [1], [0, 0, 1, 1], [], []>} : vector<256x4xbf16>, vector<4x4xbf16>, vector<256x4xf32> -> vector<256x4xf32>
    %c0_313 = arith.constant 0 : index
    %c0_314 = arith.constant 0 : index
    %255 = vector.load %arg13[%c0_313, %c0_314] : memref<256x4xf32, #tpu.memory_space<vmem>>, vector<256x4xf32>
    %256 = arith.addf %255, %254 : vector<256x4xf32>
    %c0_315 = arith.constant 0 : index
    %c0_316 = arith.constant 0 : index
    %257 = vector.load %arg13[%c0_315, %c0_316] : memref<256x4xf32, #tpu.memory_space<vmem>>, vector<256x4xf32>
    tpu.vector_store %arg13[%c0_315, %c0_316], %256 {strides = array<i32>} : memref<256x4xf32, #tpu.memory_space<vmem>>, vector<256x4xf32>,
    %c4_317 = arith.constant 4 : index
    %c0_318 = arith.constant 0 : index
    %c0_319 = arith.constant 0 : index
    %258 = vector.load %arg11[%c4_317, %c0_318, %c0_319] : memref<20x20x4xf32, #tpu.memory_space<vmem>>, vector<16x16x4xf32>
    %259 = vector.shape_cast %258 : vector<16x16x4xf32> to vector<256x4xf32>
    %260 = arith.truncf %259 : vector<256x4xf32> to vector<256x4xbf16>
    %c6_320 = arith.constant 6 : index
    %c0_321 = arith.constant 0 : index
    %c0_322 = arith.constant 0 : index
    %261 = vector.load %arg8[%c6_320, %c0_321, %c0_322] : memref<9x4x4xbf16, #tpu.memory_space<vmem>>, vector<1x4x4xbf16>
    %262 = vector.shape_cast %261 : vector<1x4x4xbf16> to vector<4x4xbf16>
    %cst_323 = arith.constant dense<0.000000e+00> : vector<256x4xf32>
    %263 = tpu.matmul %260, %262, %cst_323 {dimension_numbers = #tpu.dot_dimension_numbers<[1], [0], [0], [1], [0, 0, 1, 1], [], []>} : vector<256x4xbf16>, vector<4x4xbf16>, vector<256x4xf32> -> vector<256x4xf32>
    %c0_324 = arith.constant 0 : index
    %c0_325 = arith.constant 0 : index
    %264 = vector.load %arg13[%c0_324, %c0_325] : memref<256x4xf32, #tpu.memory_space<vmem>>, vector<256x4xf32>
    %265 = arith.addf %264, %263 : vector<256x4xf32>
    %c0_326 = arith.constant 0 : index
    %c0_327 = arith.constant 0 : index
    %266 = vector.load %arg13[%c0_326, %c0_327] : memref<256x4xf32, #tpu.memory_space<vmem>>, vector<256x4xf32>
    tpu.vector_store %arg13[%c0_326, %c0_327], %265 {strides = array<i32>} : memref<256x4xf32, #tpu.memory_space<vmem>>, vector<256x4xf32>,
    %c4_328 = arith.constant 4 : index
    %c2_329 = arith.constant 2 : index
    %c0_330 = arith.constant 0 : index
    %267 = vector.load %arg11[%c4_328, %c2_329, %c0_330] : memref<20x20x4xf32, #tpu.memory_space<vmem>>, vector<16x16x4xf32>
    %268 = vector.shape_cast %267 : vector<16x16x4xf32> to vector<256x4xf32>
    %269 = arith.truncf %268 : vector<256x4xf32> to vector<256x4xbf16>
    %c7_331 = arith.constant 7 : index
    %c0_332 = arith.constant 0 : index
    %c0_333 = arith.constant 0 : index
    %270 = vector.load %arg8[%c7_331, %c0_332, %c0_333] : memref<9x4x4xbf16, #tpu.memory_space<vmem>>, vector<1x4x4xbf16>
    %271 = vector.shape_cast %270 : vector<1x4x4xbf16> to vector<4x4xbf16>
    %cst_334 = arith.constant dense<0.000000e+00> : vector<256x4xf32>
    %272 = tpu.matmul %269, %271, %cst_334 {dimension_numbers = #tpu.dot_dimension_numbers<[1], [0], [0], [1], [0, 0, 1, 1], [], []>} : vector<256x4xbf16>, vector<4x4xbf16>, vector<256x4xf32> -> vector<256x4xf32>
    %c0_335 = arith.constant 0 : index
    %c0_336 = arith.constant 0 : index
    %273 = vector.load %arg13[%c0_335, %c0_336] : memref<256x4xf32, #tpu.memory_space<vmem>>, vector<256x4xf32>
    %274 = arith.addf %273, %272 : vector<256x4xf32>
    %c0_337 = arith.constant 0 : index
    %c0_338 = arith.constant 0 : index
    %275 = vector.load %arg13[%c0_337, %c0_338] : memref<256x4xf32, #tpu.memory_space<vmem>>, vector<256x4xf32>
    tpu.vector_store %arg13[%c0_337, %c0_338], %274 {strides = array<i32>} : memref<256x4xf32, #tpu.memory_space<vmem>>, vector<256x4xf32>,
    %c4_339 = arith.constant 4 : index
    %c4_340 = arith.constant 4 : index
    %c0_341 = arith.constant 0 : index
    %276 = vector.load %arg11[%c4_339, %c4_340, %c0_341] : memref<20x20x4xf32, #tpu.memory_space<vmem>>, vector<16x16x4xf32>
    %277 = vector.shape_cast %276 : vector<16x16x4xf32> to vector<256x4xf32>
    %278 = arith.truncf %277 : vector<256x4xf32> to vector<256x4xbf16>
    %c8_342 = arith.constant 8 : index
    %c0_343 = arith.constant 0 : index
    %c0_344 = arith.constant 0 : index
    %279 = vector.load %arg8[%c8_342, %c0_343, %c0_344] : memref<9x4x4xbf16, #tpu.memory_space<vmem>>, vector<1x4x4xbf16>
    %280 = vector.shape_cast %279 : vector<1x4x4xbf16> to vector<4x4xbf16>
    %cst_345 = arith.constant dense<0.000000e+00> : vector<256x4xf32>
    %281 = tpu.matmul %278, %280, %cst_345 {dimension_numbers = #tpu.dot_dimension_numbers<[1], [0], [0], [1], [0, 0, 1, 1], [], []>} : vector<256x4xbf16>, vector<4x4xbf16>, vector<256x4xf32> -> vector<256x4xf32>
    %c0_346 = arith.constant 0 : index
    %c0_347 = arith.constant 0 : index
    %282 = vector.load %arg13[%c0_346, %c0_347] : memref<256x4xf32, #tpu.memory_space<vmem>>, vector<256x4xf32>
    %283 = arith.addf %282, %281 : vector<256x4xf32>
    %c0_348 = arith.constant 0 : index
    %c0_349 = arith.constant 0 : index
    %284 = vector.load %arg13[%c0_348, %c0_349] : memref<256x4xf32, #tpu.memory_space<vmem>>, vector<256x4xf32>
    tpu.vector_store %arg13[%c0_348, %c0_349], %283 {strides = array<i32>} : memref<256x4xf32, #tpu.memory_space<vmem>>, vector<256x4xf32>,
    %c0_350 = arith.constant 0 : index
    %c0_351 = arith.constant 0 : index
    %285 = vector.load %arg13[%c0_350, %c0_351] : memref<256x4xf32, #tpu.memory_space<vmem>>, vector<256x4xf32>
    %c0_352 = arith.constant 0 : index
    %c0_353 = arith.constant 0 : index
    %286 = vector.load %arg9[%c0_352, %c0_353] : memref<1x4xf32, #tpu.memory_space<vmem>>, vector<1x4xf32>
    %287 = vector.broadcast %286 : vector<1x4xf32> to vector<256x4xf32>
    %288 = arith.addf %285, %287 : vector<256x4xf32>
    %cst_354 = arith.constant 0.000000e+00 : f32
    %289 = vector.broadcast %cst_354 : f32 to vector<256x4xf32>
    %290 = arith.maximumf %288, %289 : vector<256x4xf32>
    %291 = vector.shape_cast %17 : vector<16x16x4xf32> to vector<256x4xf32>
    %292 = arith.addf %291, %290 : vector<256x4xf32>
    %cst_355 = arith.constant 0.000000e+00 : f32
    %293 = vector.broadcast %cst_355 : f32 to vector<256x4xf32>
    %294 = arith.maximumf %292, %293 : vector<256x4xf32>
    %295 = vector.shape_cast %294 : vector<256x4xf32> to vector<16x16x4xf32>
    %c0_356 = arith.constant 0 : index
    %c0_357 = arith.constant 0 : index
    %c0_358 = arith.constant 0 : index
    %c0_359 = arith.constant 0 : index
    %296 = vector.load %arg10[%c0_356, %c0_357, %c0_358, %c0_359] : memref<1x16x16x4xf32, #tpu.memory_space<vmem>>, vector<1x16x16x4xf32>
    %297 = vector.shape_cast %296 : vector<1x16x16x4xf32> to vector<16x16x4xf32>
    %298 = vector.shape_cast %295 : vector<16x16x4xf32> to vector<1x16x16x4xf32>
    tpu.vector_store %arg10[%c0_356, %c0_357, %c0_358, %c0_359], %298 {strides = array<i32>} : memref<1x16x16x4xf32, #tpu.memory_space<vmem>>, vector<1x16x16x4xf32>,
    return
  }
  func.func @transform_0(%arg0: i32) -> (i32, i32, i32, i32) {
    %c0_i32 = arith.constant 0 : i32
    %c0_i32_0 = arith.constant 0 : i32
    %c0_i32_1 = arith.constant 0 : i32
    %c0_i32_2 = arith.constant 0 : i32
    return %arg0, %c0_i32, %c0_i32_0, %c0_i32_1 : i32, i32, i32, i32
  }
  func.func @transform_1(%arg0: i32) -> (i32, i32, i32) {
    %c0_i32 = arith.constant 0 : i32
    %c0_i32_0 = arith.constant 0 : i32
    %c0_i32_1 = arith.constant 0 : i32
    %c0_i32_2 = arith.constant 0 : i32
    return %c0_i32, %c0_i32_0, %c0_i32_1 : i32, i32, i32
  }
  func.func @transform_2(%arg0: i32) -> (i32, i32) {
    %c0_i32 = arith.constant 0 : i32
    %c0_i32_0 = arith.constant 0 : i32
    %c0_i32_1 = arith.constant 0 : i32
    return %c0_i32, %c0_i32_0 : i32, i32
  }
  func.func @transform_3(%arg0: i32) -> (i32, i32, i32) {
    %c0_i32 = arith.constant 0 : i32
    %c0_i32_0 = arith.constant 0 : i32
    %c0_i32_1 = arith.constant 0 : i32
    %c0_i32_2 = arith.constant 0 : i32
    return %c0_i32, %c0_i32_0, %c0_i32_1 : i32, i32, i32
  }
  func.func @transform_4(%arg0: i32) -> (i32, i32) {
    %c0_i32 = arith.constant 0 : i32
    %c0_i32_0 = arith.constant 0 : i32
    %c0_i32_1 = arith.constant 0 : i32
    return %c0_i32, %c0_i32_0 : i32, i32
  }
  func.func @transform_5(%arg0: i32) -> (i32, i32, i32) {
    %c0_i32 = arith.constant 0 : i32
    %c0_i32_0 = arith.constant 0 : i32
    %c0_i32_1 = arith.constant 0 : i32
    %c0_i32_2 = arith.constant 0 : i32
    return %c0_i32, %c0_i32_0, %c0_i32_1 : i32, i32, i32
  }
  func.func @transform_6(%arg0: i32) -> (i32, i32) {
    %c0_i32 = arith.constant 0 : i32
    %c0_i32_0 = arith.constant 0 : i32
    %c0_i32_1 = arith.constant 0 : i32
    return %c0_i32, %c0_i32_0 : i32, i32
  }
  func.func @transform_7(%arg0: i32) -> (i32, i32, i32) {
    %c0_i32 = arith.constant 0 : i32
    %c0_i32_0 = arith.constant 0 : i32
    %c0_i32_1 = arith.constant 0 : i32
    %c0_i32_2 = arith.constant 0 : i32
    return %c0_i32, %c0_i32_0, %c0_i32_1 : i32, i32, i32
  }
  func.func @transform_8(%arg0: i32) -> (i32, i32) {
    %c0_i32 = arith.constant 0 : i32
    %c0_i32_0 = arith.constant 0 : i32
    %c0_i32_1 = arith.constant 0 : i32
    return %c0_i32, %c0_i32_0 : i32, i32
  }
  func.func @transform_9(%arg0: i32) -> (i32, i32, i32, i32) {
    %c0_i32 = arith.constant 0 : i32
    %c0_i32_0 = arith.constant 0 : i32
    %c0_i32_1 = arith.constant 0 : i32
    %c0_i32_2 = arith.constant 0 : i32
    return %arg0, %c0_i32, %c0_i32_0, %c0_i32_1 : i32, i32, i32, i32
  }
}

</mosaic_0001>

<llo_original>
// kernel: tpu_custom_call.1
$region0: #{tpu_custom_call.1}
  #allocation0 [shape = 'u32[]', space=smem, size = 0x4, offset = 0x4, fixed_abs, tag = 'smem constant byte address 0x4 - core index']
  #allocation1 [shape = 'u32[72,128]{1,0:T(1,128)}', space=vmem, size = 0x9000, scoped, tag = 'internal scratch']
  #allocation2 [shape = 'f32[20,20,4]{2,1,0:T(8,128)}', space=vmem, size = 0x3c000, scoped, tag = 'scratch operand']
  #allocation3 [shape = 'f32[18,18,4]{2,1,0:T(8,128)}', space=vmem, size = 0x36000, scoped, tag = 'scratch operand']
  #allocation4 [shape = 'f32[256,4]{1,0:T(8,128)}', space=vmem, size = 0x20000, scoped, tag = 'scratch operand']
  %s0 = inlined_call_operand.vmem [shape: f32[2,16,16,4], index: 0, kind: input, shape index: {}]
  %s1 = inlined_call_operand.vmem [shape: bf16[5,4,4], index: 1, kind: input, shape index: {}]
  %s2 = inlined_call_operand.vmem [shape: f32[1,4], index: 2, kind: input, shape index: {}]
  %s3 = inlined_call_operand.vmem [shape: bf16[5,4,4], index: 3, kind: input, shape index: {}]
  %s4 = inlined_call_operand.vmem [shape: f32[1,4], index: 4, kind: input, shape index: {}]
  %s5 = inlined_call_operand.vmem [shape: bf16[9,4,4], index: 5, kind: input, shape index: {}]
  %s6 = inlined_call_operand.vmem [shape: f32[1,4], index: 6, kind: input, shape index: {}]
  %s7 = inlined_call_operand.vmem [shape: bf16[9,4,4], index: 7, kind: input, shape index: {}]
  %s8 = inlined_call_operand.vmem [shape: f32[1,4], index: 8, kind: input, shape index: {}]
  %s9 = inlined_call_operand.vmem [shape: f32[2,16,16,4], index: 9, kind: output, shape index: {}]
  %s10 = sld [smem:[#allocation0]]
  $region69: #{tpu_custom_call.1} parent=0
    _
  %s12 = ssub.s32 1, %s10
  %s13 = scalar_select 0, %s12, %s10
  loop: start=0, step=1, limit=4
  $region2: #{tpu_custom_call.1} parent=0 // loop_pre_header
    _
  $region3: #{tpu_custom_call.1} parent=0 // loop_header
    %s15 = sphi 0, %s19
    %p16 = scmp.ge.s32.totalorder %s15, 4
    %s25 = sphi 0, %s27
    %s28 = sphi 0, %s25
    %s29 = sphi 0, %s28
    %s45 = sphi 0, %s29
    %s49 = sphi 0, %s49
    %s51 = sphi 0, %s49
    %s52 = sphi 0, %s51
    %s66 = sphi 0, %s52
    %s70 = sphi 0, %s70
    %s72 = sphi 0, %s70
    %s73 = sphi 0, %s72
    %s87 = sphi 0, %s73
    %s91 = sphi 0, %s91
    %s93 = sphi 0, %s91
    %s94 = sphi 0, %s93
    %s108 = sphi 0, %s94
    %s112 = sphi 0, %s112
    %s114 = sphi 0, %s112
    %s115 = sphi 0, %s114
    %s129 = sphi 0, %s115
    %s133 = sphi 0, %s133
    %s135 = sphi 0, %s133
    %s136 = sphi 0, %s135
    %s150 = sphi 0, %s136
    %s154 = sphi 0, %s154
    %s156 = sphi 0, %s154
    %s157 = sphi 0, %s156
    %s171 = sphi 0, %s157
    %s175 = sphi 0, %s175
    %s177 = sphi 0, %s175
    %s178 = sphi 0, %s177
    %s192 = sphi 0, %s178
    %s196 = sphi 0, %s196
    %s198 = sphi 0, %s196
    %s199 = sphi 0, %s198
    %s213 = sphi 0, %s199
    %s219 = sphi 0, %s221
    %s222 = sphi 0, %s219
    %s223 = sphi 0, %s222
    %s239 = sphi 0, %s223
  $region4: #{tpu_custom_call.1} parent=0 // loop_header_branch
    %18 = sbr.rel (%p16) target = $region8
  $region5: #{tpu_custom_call.1} parent=0 // loop_body
    %s20 = ssub.s32 %s15, 1
    %s21 = ssub.s32 %s15, 2
    %s22 = sadd.s32 %s15, 1
    %s23 = ssub.s32 %s15, %s22
    %p24 = scmp.eq.s32.totalorder %s23, 0
    %s26 = sadd.s32 %s25, 1
    %s27 = scalar_select %p24, %s25, %s26
    %p30 = pneg %p24
    %p31 = scmp.eq.s32.totalorder %s15, 1
    %p32 = por %p30, %p31
    %p33 = scmp.ne.s32.totalorder %s25, %s28
    %p34 = scmp.eq.s32.totalorder %s15, 0
    %p35 = por %p33, %p34
    %p36 = scmp.ne.s32.totalorder %s25, %s28
    %p37 = scmp.eq.s32.totalorder %s20, 1
    %p38 = por %p36, %p37
    %p39 = scmp.ne.s32.totalorder %s28, %s29
    %p40 = scmp.eq.s32.totalorder %s20, 0
    %p41 = por %p39, %p40
    %p42 = scmp.ne.s32.totalorder %s28, %s29
    %p43 = scmp.eq.s32.totalorder %s21, 1
    %p44 = por %p42, %p43
    %p46 = scmp.ne.s32.totalorder %s29, %s45
    %p47 = scmp.eq.s32.totalorder %s21, 0
    %p48 = por %p46, %p47
    %s50 = sadd.s32 %s49, 1
    %p53 = scmp.eq.s32.totalorder %s15, 1
    %p54 = scmp.ne.s32.totalorder %s49, %s51
    %p55 = scmp.eq.s32.totalorder %s15, 0
    %p56 = por %p54, %p55
    %p57 = scmp.ne.s32.totalorder %s49, %s51
    %p58 = scmp.eq.s32.totalorder %s20, 1
    %p59 = por %p57, %p58
    %p60 = scmp.ne.s32.totalorder %s51, %s52
    %p61 = scmp.eq.s32.totalorder %s20, 0
    %p62 = por %p60, %p61
    %p63 = scmp.ne.s32.totalorder %s51, %s52
    %p64 = scmp.eq.s32.totalorder %s21, 1
    %p65 = por %p63, %p64
    %p67 = scmp.ne.s32.totalorder %s52, %s66
    %p68 = scmp.eq.s32.totalorder %s21, 0
    %p69 = por %p67, %p68
    %s71 = sadd.s32 %s70, 1
    %p74 = scmp.eq.s32.totalorder %s15, 1
    %p75 = scmp.ne.s32.totalorder %s70, %s72
    %p76 = scmp.eq.s32.totalorder %s15, 0
    %p77 = por %p75, %p76
    %p78 = scmp.ne.s32.totalorder %s70, %s72
    %p79 = scmp.eq.s32.totalorder %s20, 1
    %p80 = por %p78, %p79
    %p81 = scmp.ne.s32.totalorder %s72, %s73
    %p82 = scmp.eq.s32.totalorder %s20, 0
    %p83 = por %p81, %p82
    %p84 = scmp.ne.s32.totalorder %s72, %s73
    %p85 = scmp.eq.s32.totalorder %s21, 1
    %p86 = por %p84, %p85
    %p88 = scmp.ne.s32.totalorder %s73, %s87
    %p89 = scmp.eq.s32.totalorder %s21, 0
    %p90 = por %p88, %p89
    %s92 = sadd.s32 %s91, 1
    %p95 = scmp.eq.s32.totalorder %s15, 1
    %p96 = scmp.ne.s32.totalorder %s91, %s93
    %p97 = scmp.eq.s32.totalorder %s15, 0
    %p98 = por %p96, %p97
    %p99 = scmp.ne.s32.totalorder %s91, %s93
    %p100 = scmp.eq.s32.totalorder %s20, 1
    %p101 = por %p99, %p100
    %p102 = scmp.ne.s32.totalorder %s93, %s94
    %p103 = scmp.eq.s32.totalorder %s20, 0
    %p104 = por %p102, %p103
    %p105 = scmp.ne.s32.totalorder %s93, %s94
    %p106 = scmp.eq.s32.totalorder %s21, 1
    %p107 = por %p105, %p106
    %p109 = scmp.ne.s32.totalorder %s94, %s108
    %p110 = scmp.eq.s32.totalorder %s21, 0
    %p111 = por %p109, %p110
    %s113 = sadd.s32 %s112, 1
    %p116 = scmp.eq.s32.totalorder %s15, 1
    %p117 = scmp.ne.s32.totalorder %s112, %s114
    %p118 = scmp.eq.s32.totalorder %s15, 0
    %p119 = por %p117, %p118
    %p120 = scmp.ne.s32.totalorder %s112, %s114
    %p121 = scmp.eq.s32.totalorder %s20, 1
    %p122 = por %p120, %p121
    %p123 = scmp.ne.s32.totalorder %s114, %s115
    %p124 = scmp.eq.s32.totalorder %s20, 0
    %p125 = por %p123, %p124
    %p126 = scmp.ne.s32.totalorder %s114, %s115
    %p127 = scmp.eq.s32.totalorder %s21, 1
    %p128 = por %p126, %p127
    %p130 = scmp.ne.s32.totalorder %s115, %s129
    %p131 = scmp.eq.s32.totalorder %s21, 0
    %p132 = por %p130, %p131
    %s134 = sadd.s32 %s133, 1
    %p137 = scmp.eq.s32.totalorder %s15, 1
    %p138 = scmp.ne.s32.totalorder %s133, %s135
    %p139 = scmp.eq.s32.totalorder %s15, 0
    %p140 = por %p138, %p139
    %p141 = scmp.ne.s32.totalorder %s133, %s135
    %p142 = scmp.eq.s32.totalorder %s20, 1
    %p143 = por %p141, %p142
    %p144 = scmp.ne.s32.totalorder %s135, %s136
    %p145 = scmp.eq.s32.totalorder %s20, 0
    %p146 = por %p144, %p145
    %p147 = scmp.ne.s32.totalorder %s135, %s136
    %p148 = scmp.eq.s32.totalorder %s21, 1
    %p149 = por %p147, %p148
    %p151 = scmp.ne.s32.totalorder %s136, %s150
    %p152 = scmp.eq.s32.totalorder %s21, 0
    %p153 = por %p151, %p152
    %s155 = sadd.s32 %s154, 1
    %p158 = scmp.eq.s32.totalorder %s15, 1
    %p159 = scmp.ne.s32.totalorder %s154, %s156
    %p160 = scmp.eq.s32.totalorder %s15, 0
    %p161 = por %p159, %p160
    %p162 = scmp.ne.s32.totalorder %s154, %s156
    %p163 = scmp.eq.s32.totalorder %s20, 1
    %p164 = por %p162, %p163
    %p165 = scmp.ne.s32.totalorder %s156, %s157
    %p166 = scmp.eq.s32.totalorder %s20, 0
    %p167 = por %p165, %p166
    %p168 = scmp.ne.s32.totalorder %s156, %s157
    %p169 = scmp.eq.s32.totalorder %s21, 1
    %p170 = por %p168, %p169
    %p172 = scmp.ne.s32.totalorder %s157, %s171
    %p173 = scmp.eq.s32.totalorder %s21, 0
    %p174 = por %p172, %p173
    %s176 = sadd.s32 %s175, 1
    %p179 = scmp.eq.s32.totalorder %s15, 1
    %p180 = scmp.ne.s32.totalorder %s175, %s177
    %p181 = scmp.eq.s32.totalorder %s15, 0
    %p182 = por %p180, %p181
    %p183 = scmp.ne.s32.totalorder %s175, %s177
    %p184 = scmp.eq.s32.totalorder %s20, 1
    %p185 = por %p183, %p184
    %p186 = scmp.ne.s32.totalorder %s177, %s178
    %p187 = scmp.eq.s32.totalorder %s20, 0
    %p188 = por %p186, %p187
    %p189 = scmp.ne.s32.totalorder %s177, %s178
    %p190 = scmp.eq.s32.totalorder %s21, 1
    %p191 = por %p189, %p190
    %p193 = scmp.ne.s32.totalorder %s178, %s192
    %p194 = scmp.eq.s32.totalorder %s21, 0
    %p195 = por %p193, %p194
    %s197 = sadd.s32 %s196, 1
    %p200 = scmp.eq.s32.totalorder %s15, 1
    %p201 = scmp.ne.s32.totalorder %s196, %s198
    %p202 = scmp.eq.s32.totalorder %s15, 0
    %p203 = por %p201, %p202
    %p204 = scmp.ne.s32.totalorder %s196, %s198
    %p205 = scmp.eq.s32.totalorder %s20, 1
    %p206 = por %p204, %p205
    %p207 = scmp.ne.s32.totalorder %s198, %s199
    %p208 = scmp.eq.s32.totalorder %s20, 0
    %p209 = por %p207, %p208
    %p210 = scmp.ne.s32.totalorder %s198, %s199
    %p211 = scmp.eq.s32.totalorder %s21, 1
    %p212 = por %p210, %p211
    %p214 = scmp.ne.s32.totalorder %s199, %s213
    %p215 = scmp.eq.s32.totalorder %s21, 0
    %p216 = por %p214, %p215
    %s217 = ssub.s32 %s15, %s22
    %p218 = scmp.eq.s32.totalorder %s217, 0
    %s220 = sadd.s32 %s219, 1
    %s221 = scalar_select %p218, %s219, %s220
    %p224 = pneg %p218
    %p225 = scmp.eq.s32.totalorder %s15, 1
    %p226 = por %p224, %p225
    %p227 = scmp.ne.s32.totalorder %s219, %s222
    %p228 = scmp.eq.s32.totalorder %s15, 0
    %p229 = por %p227, %p228
    %p230 = scmp.ne.s32.totalorder %s219, %s222
    %p231 = scmp.eq.s32.totalorder %s20, 1
    %p232 = por %p230, %p231
    %p233 = scmp.ne.s32.totalorder %s222, %s223
    %p234 = scmp.eq.s32.totalorder %s20, 0
    %p235 = por %p233, %p234
    %p236 = scmp.ne.s32.totalorder %s222, %s223
    %p237 = scmp.eq.s32.totalorder %s21, 1
    %p238 = por %p236, %p237
    %p240 = scmp.ne.s32.totalorder %s223, %s239
    %p241 = scmp.eq.s32.totalorder %s21, 0
    %p242 = por %p240, %p241
    %p243 = scmp.le.s32.totalorder 1, %s15
    %p244 = scmp.lt.s32.totalorder %s15, 3
    %p245 = pnand %p243, %p244
    %p246 = pneg %p245
    // Predicated region
    $region9: #{tpu_custom_call.1} parent=5 // pred_check
      _
    $region10: #{tpu_custom_call.1} parent=5 // pred_check_branch
      %248 = sbr.rel (%p245) target = $region12
    $region11: #{tpu_custom_call.1} parent=5 // pred_region
      %s249 = ssub.s32 %s15, 1
      // Predicated region
      $region13: #{tpu_custom_call.1} parent=11 // pred_check
        %p250 = pneg %p62
      $region14: #{tpu_custom_call.1} parent=11 // pred_check_branch
        %252 = sbr.rel (%p250) target = $region16
      $region15: #{tpu_custom_call.1} parent=11 // pred_region
        _
      $region16: #{tpu_custom_call.1} parent=11 // pred_fallthru
        _
      // Predicated region
      $region17: #{tpu_custom_call.1} parent=11 // pred_check
        %p253 = pneg %p83
      $region18: #{tpu_custom_call.1} parent=11 // pred_check_branch
        %255 = sbr.rel (%p253) target = $region20
      $region19: #{tpu_custom_call.1} parent=11 // pred_region
        _
      $region20: #{tpu_custom_call.1} parent=11 // pred_fallthru
        _
      // Predicated region
      $region21: #{tpu_custom_call.1} parent=11 // pred_check
        %p256 = pneg %p104
      $region22: #{tpu_custom_call.1} parent=11 // pred_check_branch
        %258 = sbr.rel (%p256) target = $region24
      $region23: #{tpu_custom_call.1} parent=11 // pred_region
        _
      $region24: #{tpu_custom_call.1} parent=11 // pred_fallthru
        _
      // Predicated region
      $region25: #{tpu_custom_call.1} parent=11 // pred_check
        %p259 = pneg %p125
      $region26: #{tpu_custom_call.1} parent=11 // pred_check_branch
        %261 = sbr.rel (%p259) target = $region28
      $region27: #{tpu_custom_call.1} parent=11 // pred_region
        _
      $region28: #{tpu_custom_call.1} parent=11 // pred_fallthru
        _
      // Predicated region
      $region29: #{tpu_custom_call.1} parent=11 // pred_check
        %p262 = pneg %p146
      $region30: #{tpu_custom_call.1} parent=11 // pred_check_branch
        %264 = sbr.rel (%p262) target = $region32
      $region31: #{tpu_custom_call.1} parent=11 // pred_region
        _
      $region32: #{tpu_custom_call.1} parent=11 // pred_fallthru
        _
      // Predicated region
      $region33: #{tpu_custom_call.1} parent=11 // pred_check
        %p265 = pneg %p167
      $region34: #{tpu_custom_call.1} parent=11 // pred_check_branch
        %267 = sbr.rel (%p265) target = $region36
      $region35: #{tpu_custom_call.1} parent=11 // pred_region
        _
      $region36: #{tpu_custom_call.1} parent=11 // pred_fallthru
        _
      // Predicated region
      $region37: #{tpu_custom_call.1} parent=11 // pred_check
        %p268 = pneg %p188
      $region38: #{tpu_custom_call.1} parent=11 // pred_check_branch
        %270 = sbr.rel (%p268) target = $region40
      $region39: #{tpu_custom_call.1} parent=11 // pred_region
        _
      $region40: #{tpu_custom_call.1} parent=11 // pred_fallthru
        _
      // Predicated region
      $region41: #{tpu_custom_call.1} parent=11 // pred_check
        %p271 = pneg %p209
      $region42: #{tpu_custom_call.1} parent=11 // pred_check_branch
        %273 = sbr.rel (%p271) target = $region44
      $region43: #{tpu_custom_call.1} parent=11 // pred_region
        _
      $region44: #{tpu_custom_call.1} parent=11 // pred_fallthru
        _
    $region12: #{tpu_custom_call.1} parent=5 // pred_fallthru
      _
    %p274 = scmp.lt.s32.totalorder %s15, 2
    // Predicated region
    $region45: #{tpu_custom_call.1} parent=5 // pred_check
      %p275 = pneg %p274
    $region46: #{tpu_custom_call.1} parent=5 // pred_check_branch
      %277 = sbr.rel (%p275) target = $region48
    $region47: #{tpu_custom_call.1} parent=5 // pred_region
      // Predicated region
      $region49: #{tpu_custom_call.1} parent=47 // pred_check
        %p278 = pneg %p35
      $region50: #{tpu_custom_call.1} parent=47 // pred_check_branch
        %280 = sbr.rel (%p278) target = $region52
      $region51: #{tpu_custom_call.1} parent=47 // pred_region
        %p281 = scmp.lt.s32.totalorder %s15, 1
        %s282 = scalar_select %p281, %s15, 1
        %s283 = smul.addr %s282, 32
        %s284 = smul.addr %s283, 8
        %s285 = scalar_lea.vmem %s0, %s284
      $region52: #{tpu_custom_call.1} parent=47 // pred_fallthru
        _
    $region48: #{tpu_custom_call.1} parent=5 // pred_fallthru
      _
    %p286 = scmp.le.s32.totalorder 1, %s15
    %p287 = scmp.lt.s32.totalorder %s15, 3
    %p288 = pnand %p286, %p287
    %p289 = pneg %p288
    // Predicated region
    $region53: #{tpu_custom_call.1} parent=5 // pred_check
      _
    $region54: #{tpu_custom_call.1} parent=5 // pred_check_branch
      %291 = sbr.rel (%p288) target = $region56
    $region55: #{tpu_custom_call.1} parent=5 // pred_region
      %s292 = ssub.s32 %s15, 1
      %p293 = scmp.lt.s32.totalorder %s20, 1
      %s294 = scalar_select %p293, %s20, 1
      %s295 = smul.addr %s294, 32
      %s296 = smul.addr %s295, 8
      %s297 = scalar_lea.vmem %s0, %s296
      %p298 = pneg %p41
      %p299 = pneg %p38
      %p300 = pneg %p62
      %p301 = pneg %p59
      %p302 = pneg %p83
      %p303 = pneg %p80
      %p304 = pneg %p104
      %p305 = pneg %p101
      %p306 = pneg %p125
      %p307 = pneg %p122
      %p308 = pneg %p146
      %p309 = pneg %p143
      %p310 = pneg %p167
      %p311 = pneg %p164
      %p312 = pneg %p188
      %p313 = pneg %p185
      %p314 = pneg %p209
      %p315 = pneg %p206
      %p316 = pneg %p235
      %p317 = pneg %p232
      %p318 = scmp.lt.s32.totalorder %s20, 1
      %s319 = scalar_select %p318, %s20, 1
      %s320 = smul.addr %s319, 32
      %s321 = smul.addr %s320, 8
      %s322 = scalar_lea.vmem %s9, %s321
      %p323 = scmp.lt.s32.totalorder %s20, 1
      %s324 = scalar_select %p323, %s20, 1
      %s325 = smul.addr %s324, 32
      %s326 = smul.addr %s325, 8
      %s327 = scalar_lea.vmem %s0, %s326
      %p328 = scmp.lt.s32.totalorder %s20, 1
      %s329 = scalar_select %p328, %s20, 1
      %s330 = smul.addr %s329, 32
      %s331 = smul.addr %s330, 8
      %s332 = scalar_lea.vmem %s9, %s331
      %vm334 = vcmask 31744
      %335 = vst.msk [vmem:[#allocation2] sm:$0xff] %vm334, 0.0
      %336 = vst.msk [vmem:[#allocation2 + $0x8] sm:$0xff] %vm334, 0.0
      %vm337 = vcmask 27648
      %338 = vst.msk [vmem:[#allocation2 + $0x10] sm:$0xf] %vm337, 0.0
      %339 = vst.msk [vmem:[#allocation2 + $0x18] sm:$0xff] %vm334, 0.0
      %340 = vst.msk [vmem:[#allocation2 + $0x20] sm:$0xff] %vm334, 0.0
      %341 = vst.msk [vmem:[#allocation2 + $0x28] sm:$0xf] %vm337, 0.0
      %s342 = scalar_lea.vmem [#allocation2], 432
      %343 = vst.msk [vmem:[%s342] sm:$0xff] %vm334, 0.0
      %344 = vst.msk [vmem:[%s342 + $0x8] sm:$0xff] %vm334, 0.0
      %345 = vst.msk [vmem:[%s342 + $0x10] sm:$0xf] %vm337, 0.0
      %346 = vst.msk [vmem:[%s342 + $0x18] sm:$0xff] %vm334, 0.0
      %347 = vst.msk [vmem:[%s342 + $0x20] sm:$0xff] %vm334, 0.0
      %348 = vst.msk [vmem:[%s342 + $0x28] sm:$0xf] %vm337, 0.0
      %vm349 = vcmask 25600
      %350 = vst.msk [vmem:[#allocation2] sm:$0x3] %vm349, 0.0
      %351 = vst.msk [vmem:[#allocation2 + $0x18] sm:$0x3] %vm349, 0.0
      %352 = vst.msk [vmem:[#allocation2 + $0x30] sm:$0x3] %vm349, 0.0
      %353 = vst.msk [vmem:[#allocation2 + $0x48] sm:$0x3] %vm349, 0.0
      %354 = vst.msk [vmem:[#allocation2 + $0x60] sm:$0x3] %vm349, 0.0
      %355 = vst.msk [vmem:[#allocation2 + $0x78] sm:$0x3] %vm349, 0.0
      %356 = vst.msk [vmem:[#allocation2 + $0x90] sm:$0x3] %vm349, 0.0
      %357 = vst.msk [vmem:[#allocation2 + $0xa8] sm:$0x3] %vm349, 0.0
      %358 = vst.msk [vmem:[#allocation2 + $0xc0] sm:$0x3] %vm349, 0.0
      %359 = vst.msk [vmem:[#allocation2 + $0xd8] sm:$0x3] %vm349, 0.0
      %360 = vst.msk [vmem:[#allocation2 + $0xf0] sm:$0x3] %vm349, 0.0
      %361 = vst.msk [vmem:[#allocation2 + $0x108] sm:$0x3] %vm349, 0.0
      %362 = vst.msk [vmem:[#allocation2 + $0x120] sm:$0x3] %vm349, 0.0
      %363 = vst.msk [vmem:[#allocation2 + $0x138] sm:$0x3] %vm349, 0.0
      %364 = vst.msk [vmem:[#allocation2 + $0x150] sm:$0x3] %vm349, 0.0
      %365 = vst.msk [vmem:[#allocation2 + $0x168] sm:$0x3] %vm349, 0.0
      %366 = vst.msk [vmem:[#allocation2 + $0x180] sm:$0x3] %vm349, 0.0
      %367 = vst.msk [vmem:[#allocation2 + $0x198] sm:$0x3] %vm349, 0.0
      %368 = vst.msk [vmem:[#allocation2 + $0x1b0] sm:$0x3] %vm349, 0.0
      %369 = vst.msk [vmem:[#allocation2 + $0x1c8] sm:$0x3] %vm349, 0.0
      %370 = vst.msk [vmem:[#allocation2 + $0x12] sm:$0x3] %vm349, 0.0
      %371 = vst.msk [vmem:[#allocation2 + $0x2a] sm:$0x3] %vm349, 0.0
      %372 = vst.msk [vmem:[#allocation2 + $0x42] sm:$0x3] %vm349, 0.0
      %373 = vst.msk [vmem:[#allocation2 + $0x5a] sm:$0x3] %vm349, 0.0
      %374 = vst.msk [vmem:[#allocation2 + $0x72] sm:$0x3] %vm349, 0.0
      %375 = vst.msk [vmem:[#allocation2 + $0x8a] sm:$0x3] %vm349, 0.0
      %376 = vst.msk [vmem:[#allocation2 + $0xa2] sm:$0x3] %vm349, 0.0
      %377 = vst.msk [vmem:[#allocation2 + $0xba] sm:$0x3] %vm349, 0.0
      %378 = vst.msk [vmem:[#allocation2 + $0xd2] sm:$0x3] %vm349, 0.0
      %379 = vst.msk [vmem:[#allocation2 + $0xea] sm:$0x3] %vm349, 0.0
      %380 = vst.msk [vmem:[#allocation2 + $0x102] sm:$0x3] %vm349, 0.0
      %381 = vst.msk [vmem:[#allocation2 + $0x11a] sm:$0x3] %vm349, 0.0
      %382 = vst.msk [vmem:[#allocation2 + $0x132] sm:$0x3] %vm349, 0.0
      %383 = vst.msk [vmem:[#allocation2 + $0x14a] sm:$0x3] %vm349, 0.0
      %384 = vst.msk [vmem:[#allocation2 + $0x162] sm:$0x3] %vm349, 0.0
      %385 = vst.msk [vmem:[#allocation2 + $0x17a] sm:$0x3] %vm349, 0.0
      %386 = vst.msk [vmem:[#allocation2 + $0x192] sm:$0x3] %vm349, 0.0
      %387 = vst.msk [vmem:[#allocation2 + $0x1aa] sm:$0x3] %vm349, 0.0
      %388 = vst.msk [vmem:[#allocation2 + $0x1c2] sm:$0x3] %vm349, 0.0
      %389 = vst.msk [vmem:[#allocation2 + $0x1da] sm:$0x3] %vm349, 0.0
      %390 = vst.msk [vmem:[#allocation3] sm:$0xff] %vm334, 0.0
      %391 = vst.msk [vmem:[#allocation3 + $0x8] sm:$0xff] %vm334, 0.0
      %392 = vst.msk [vmem:[#allocation3 + $0x10] sm:$0x3] %vm349, 0.0
      %s393 = scalar_lea.vmem [#allocation3], 408
      %394 = vst.msk [vmem:[%s393] sm:$0xff] %vm334, 0.0
      %395 = vst.msk [vmem:[%s393 + $0x8] sm:$0xff] %vm334, 0.0
      %396 = vst.msk [vmem:[%s393 + $0x10] sm:$0x3] %vm349, 0.0
      %vm397 = vcmask 24576
      %398 = vst.msk [vmem:[#allocation3] sm:$0x1] %vm397, 0.0
      %399 = vst.msk [vmem:[#allocation3 + $0x18] sm:$0x1] %vm397, 0.0
      %400 = vst.msk [vmem:[#allocation3 + $0x30] sm:$0x1] %vm397, 0.0
      %401 = vst.msk [vmem:[#allocation3 + $0x48] sm:$0x1] %vm397, 0.0
      %402 = vst.msk [vmem:[#allocation3 + $0x60] sm:$0x1] %vm397, 0.0
      %403 = vst.msk [vmem:[#allocation3 + $0x78] sm:$0x1] %vm397, 0.0
      %404 = vst.msk [vmem:[#allocation3 + $0x90] sm:$0x1] %vm397, 0.0
      %405 = vst.msk [vmem:[#allocation3 + $0xa8] sm:$0x1] %vm397, 0.0
      %406 = vst.msk [vmem:[#allocation3 + $0xc0] sm:$0x1] %vm397, 0.0
      %407 = vst.msk [vmem:[#allocation3 + $0xd8] sm:$0x1] %vm397, 0.0
      %408 = vst.msk [vmem:[#allocation3 + $0xf0] sm:$0x1] %vm397, 0.0
      %409 = vst.msk [vmem:[#allocation3 + $0x108] sm:$0x1] %vm397, 0.0
      %410 = vst.msk [vmem:[#allocation3 + $0x120] sm:$0x1] %vm397, 0.0
      %411 = vst.msk [vmem:[#allocation3 + $0x138] sm:$0x1] %vm397, 0.0
      %412 = vst.msk [vmem:[#allocation3 + $0x150] sm:$0x1] %vm397, 0.0
      %413 = vst.msk [vmem:[#allocation3 + $0x168] sm:$0x1] %vm397, 0.0
      %414 = vst.msk [vmem:[#allocation3 + $0x180] sm:$0x1] %vm397, 0.0
      %415 = vst.msk [vmem:[#allocation3 + $0x198] sm:$0x1] %vm397, 0.0
      %416 = vst.msk [vmem:[#allocation3 + $0x11] sm:$0x1] %vm397, 0.0
      %417 = vst.msk [vmem:[#allocation3 + $0x29] sm:$0x1] %vm397, 0.0
      %418 = vst.msk [vmem:[#allocation3 + $0x41] sm:$0x1] %vm397, 0.0
      %419 = vst.msk [vmem:[#allocation3 + $0x59] sm:$0x1] %vm397, 0.0
      %420 = vst.msk [vmem:[#allocation3 + $0x71] sm:$0x1] %vm397, 0.0
      %421 = vst.msk [vmem:[#allocation3 + $0x89] sm:$0x1] %vm397, 0.0
      %422 = vst.msk [vmem:[#allocation3 + $0xa1] sm:$0x1] %vm397, 0.0
      %423 = vst.msk [vmem:[#allocation3 + $0xb9] sm:$0x1] %vm397, 0.0
      %424 = vst.msk [vmem:[#allocation3 + $0xd1] sm:$0x1] %vm397, 0.0
      %425 = vst.msk [vmem:[#allocation3 + $0xe9] sm:$0x1] %vm397, 0.0
      %426 = vst.msk [vmem:[#allocation3 + $0x101] sm:$0x1] %vm397, 0.0
      %427 = vst.msk [vmem:[#allocation3 + $0x119] sm:$0x1] %vm397, 0.0
      %428 = vst.msk [vmem:[#allocation3 + $0x131] sm:$0x1] %vm397, 0.0
      %429 = vst.msk [vmem:[#allocation3 + $0x149] sm:$0x1] %vm397, 0.0
      %430 = vst.msk [vmem:[#allocation3 + $0x161] sm:$0x1] %vm397, 0.0
      %431 = vst.msk [vmem:[#allocation3 + $0x179] sm:$0x1] %vm397, 0.0
      %432 = vst.msk [vmem:[#allocation3 + $0x191] sm:$0x1] %vm397, 0.0
      %433 = vst.msk [vmem:[#allocation3 + $0x1a9] sm:$0x1] %vm397, 0.0
      %v434 = vld [vmem:[%s327] sm:$0xff]
      %v435 = vld [vmem:[%s327 + $0x8] sm:$0xff]
      %v436 = vld [vmem:[%s327 + $0x10] sm:$0xff]
      %v437 = vld [vmem:[%s327 + $0x18] sm:$0xff]
      %v438 = vld [vmem:[%s327 + $0x20] sm:$0xff]
      %v439 = vld [vmem:[%s327 + $0x28] sm:$0xff]
      %v440 = vld [vmem:[%s327 + $0x30] sm:$0xff]
      %v441 = vld [vmem:[%s327 + $0x38] sm:$0xff]
      %v442 = vld [vmem:[%s327 + $0x40] sm:$0xff]
      %v443 = vld [vmem:[%s327 + $0x48] sm:$0xff]
      %v444 = vld [vmem:[%s327 + $0x50] sm:$0xff]
      %v445 = vld [vmem:[%s327 + $0x58] sm:$0xff]
      %v446 = vld [vmem:[%s327 + $0x60] sm:$0xff]
      %v447 = vld [vmem:[%s327 + $0x68] sm:$0xff]
      %v448 = vld [vmem:[%s327 + $0x70] sm:$0xff]
      %v449 = vld [vmem:[%s327 + $0x78] sm:$0xff]
      %v450 = vld [vmem:[%s327 + $0x80] sm:$0xff]
      %v451 = vld [vmem:[%s327 + $0x88] sm:$0xff]
      %v452 = vld [vmem:[%s327 + $0x90] sm:$0xff]
      %v453 = vld [vmem:[%s327 + $0x98] sm:$0xff]
      %v454 = vld [vmem:[%s327 + $0xa0] sm:$0xff]
      %v455 = vld [vmem:[%s327 + $0xa8] sm:$0xff]
      %v456 = vld [vmem:[%s327 + $0xb0] sm:$0xff]
      %v457 = vld [vmem:[%s327 + $0xb8] sm:$0xff]
      %v458 = vld [vmem:[%s327 + $0xc0] sm:$0xff]
      %v459 = vld [vmem:[%s327 + $0xc8] sm:$0xff]
      %v460 = vld [vmem:[%s327 + $0xd0] sm:$0xff]
      %v461 = vld [vmem:[%s327 + $0xd8] sm:$0xff]
      %v462 = vld [vmem:[%s327 + $0xe0] sm:$0xff]
      %v463 = vld [vmem:[%s327 + $0xe8] sm:$0xff]
      %v464 = vld [vmem:[%s327 + $0xf0] sm:$0xff]
      %v465 = vld [vmem:[%s327 + $0xf8] sm:$0xff]
      %s466 = scalar_lea.vmem [#allocation2], 48
      %467 = vst.msk [vmem:[%s466 + $0x2] sm:$0xff] %vm334, %v434
      %468 = vst.msk [vmem:[%s466 + $0xa] sm:$0xff] %vm334, %v435
      %469 = vst.msk [vmem:[%s466 + $0x1a] sm:$0xff] %vm334, %v436
      %470 = vst.msk [vmem:[%s466 + $0x22] sm:$0xff] %vm334, %v437
      %471 = vst.msk [vmem:[%s466 + $0x32] sm:$0xff] %vm334, %v438
      %472 = vst.msk [vmem:[%s466 + $0x3a] sm:$0xff] %vm334, %v439
      %473 = vst.msk [vmem:[%s466 + $0x4a] sm:$0xff] %vm334, %v440
      %474 = vst.msk [vmem:[%s466 + $0x52] sm:$0xff] %vm334, %v441
      %475 = vst.msk [vmem:[%s466 + $0x62] sm:$0xff] %vm334, %v442
      %476 = vst.msk [vmem:[%s466 + $0x6a] sm:$0xff] %vm334, %v443
      %477 = vst.msk [vmem:[%s466 + $0x7a] sm:$0xff] %vm334, %v444
      %478 = vst.msk [vmem:[%s466 + $0x82] sm:$0xff] %vm334, %v445
      %479 = vst.msk [vmem:[%s466 + $0x92] sm:$0xff] %vm334, %v446
      %480 = vst.msk [vmem:[%s466 + $0x9a] sm:$0xff] %vm334, %v447
      %481 = vst.msk [vmem:[%s466 + $0xaa] sm:$0xff] %vm334, %v448
      %482 = vst.msk [vmem:[%s466 + $0xb2] sm:$0xff] %vm334, %v449
      %483 = vst.msk [vmem:[%s466 + $0xc2] sm:$0xff] %vm334, %v450
      %484 = vst.msk [vmem:[%s466 + $0xca] sm:$0xff] %vm334, %v451
      %485 = vst.msk [vmem:[%s466 + $0xda] sm:$0xff] %vm334, %v452
      %486 = vst.msk [vmem:[%s466 + $0xe2] sm:$0xff] %vm334, %v453
      %487 = vst.msk [vmem:[%s466 + $0xf2] sm:$0xff] %vm334, %v454
      %488 = vst.msk [vmem:[%s466 + $0xfa] sm:$0xff] %vm334, %v455
      %489 = vst.msk [vmem:[%s466 + $0x10a] sm:$0xff] %vm334, %v456
      %490 = vst.msk [vmem:[%s466 + $0x112] sm:$0xff] %vm334, %v457
      %491 = vst.msk [vmem:[%s466 + $0x122] sm:$0xff] %vm334, %v458
      %492 = vst.msk [vmem:[%s466 + $0x12a] sm:$0xff] %vm334, %v459
      %493 = vst.msk [vmem:[%s466 + $0x13a] sm:$0xff] %vm334, %v460
      %494 = vst.msk [vmem:[%s466 + $0x142] sm:$0xff] %vm334, %v461
      %495 = vst.msk [vmem:[%s466 + $0x152] sm:$0xff] %vm334, %v462
      %496 = vst.msk [vmem:[%s466 + $0x15a] sm:$0xff] %vm334, %v463
      %497 = vst.msk [vmem:[%s466 + $0x16a] sm:$0xff] %vm334, %v464
      %498 = vst.msk [vmem:[%s466 + $0x172] sm:$0xff] %vm334, %v465
      %s499 = scalar_lea.vmem [#allocation2], 24
      %v500 = vld [vmem:[%s499 + $0x2] sm:$0xff]
      %v501 = vld [vmem:[%s499 + $0xa] sm:$0xff]
      %v502 = vld [vmem:[%s499 + $0x1a] sm:$0xff]
      %v503 = vld [vmem:[%s499 + $0x22] sm:$0xff]
      %v504 = vld [vmem:[%s499 + $0x32] sm:$0xff]
      %v505 = vld [vmem:[%s499 + $0x3a] sm:$0xff]
      %v506 = vld [vmem:[%s499 + $0x4a] sm:$0xff]
      %v507 = vld [vmem:[%s499 + $0x52] sm:$0xff]
      %v508 = vld [vmem:[%s499 + $0x62] sm:$0xff]
      %v509 = vld [vmem:[%s499 + $0x6a] sm:$0xff]
      %v510 = vld [vmem:[%s499 + $0x7a] sm:$0xff]
      %v511 = vld [vmem:[%s499 + $0x82] sm:$0xff]
      %v512 = vld [vmem:[%s499 + $0x92] sm:$0xff]
      %v513 = vld [vmem:[%s499 + $0x9a] sm:$0xff]
      %v514 = vld [vmem:[%s499 + $0xaa] sm:$0xff]
      %v515 = vld [vmem:[%s499 + $0xb2] sm:$0xff]
      %v516 = vld [vmem:[%s499 + $0xc2] sm:$0xff]
      %v517 = vld [vmem:[%s499 + $0xca] sm:$0xff]
      %v518 = vld [vmem:[%s499 + $0xda] sm:$0xff]
      %v519 = vld [vmem:[%s499 + $0xe2] sm:$0xff]
      %v520 = vld [vmem:[%s499 + $0xf2] sm:$0xff]
      %v521 = vld [vmem:[%s499 + $0xfa] sm:$0xff]
      %v522 = vld [vmem:[%s499 + $0x10a] sm:$0xff]
      %v523 = vld [vmem:[%s499 + $0x112] sm:$0xff]
      %v524 = vld [vmem:[%s499 + $0x122] sm:$0xff]
      %v525 = vld [vmem:[%s499 + $0x12a] sm:$0xff]
      %v526 = vld [vmem:[%s499 + $0x13a] sm:$0xff]
      %v527 = vld [vmem:[%s499 + $0x142] sm:$0xff]
      %v528 = vld [vmem:[%s499 + $0x152] sm:$0xff]
      %v529 = vld [vmem:[%s499 + $0x15a] sm:$0xff]
      %v530 = vld [vmem:[%s499 + $0x16a] sm:$0xff]
      %v531 = vld [vmem:[%s499 + $0x172] sm:$0xff]
      %v532 = vpack.c.bf16 %v501, %v500
      %v533 = vpack.c.bf16 %v503, %v502
      %v534 = vpack.c.bf16 %v505, %v504
      %v535 = vpack.c.bf16 %v507, %v506
      %v536 = vpack.c.bf16 %v509, %v508
      %v537 = vpack.c.bf16 %v511, %v510
      %v538 = vpack.c.bf16 %v513, %v512
      %v539 = vpack.c.bf16 %v515, %v514
      %v540 = vpack.c.bf16 %v517, %v516
      %v541 = vpack.c.bf16 %v519, %v518
      %v542 = vpack.c.bf16 %v521, %v520
      %v543 = vpack.c.bf16 %v523, %v522
      %v544 = vpack.c.bf16 %v525, %v524
      %v545 = vpack.c.bf16 %v527, %v526
      %v546 = vpack.c.bf16 %v529, %v528
      %v547 = vpack.c.bf16 %v531, %v530
      %v548 = vld [vmem:[%s1] sm:$0x3]
      %v550 = vsel %vm334, %v532, 0
      %v553 = vsel %vm334, %v533, 0
      %v556 = vsel %vm334, %v534, 0
      %v559 = vsel %vm334, %v535, 0
      %v562 = vsel %vm334, %v536, 0
      %v565 = vsel %vm334, %v537, 0
      %v568 = vsel %vm334, %v538, 0
      %v571 = vsel %vm334, %v539, 0
      %v574 = vsel %vm334, %v540, 0
      %v577 = vsel %vm334, %v541, 0
      %v580 = vsel %vm334, %v542, 0
      %v583 = vsel %vm334, %v543, 0
      %v586 = vsel %vm334, %v544, 0
      %v589 = vsel %vm334, %v545, 0
      %v592 = vsel %vm334, %v546, 0
      %v595 = vsel %vm334, %v547, 0
      %vm597 = vcmask 1041408
      %v599 = vsel %vm597, %v548, 0
      %601 = vmatpush.bf16.msra.mxu0 0
      %602 = vmatpush.bf16.msra.mxu0 0
      %603 = vmatpush.bf16.msra.mxu0 0
      %604 = vmatpush.bf16.msra.mxu0 0
      %605 = vmatpush.bf16.msra.mxu0 0
      %606 = vmatpush.bf16.msra.mxu0 0
      %607 = vmatpush.bf16.msra.mxu0 0
      %608 = vmatpush.bf16.msra.mxu0 %v599
      %609 = vmatmul.bf16.gmra.mxu0 %v550
      %v610 = vpop.f32.mrf.mxu0
      %v611 = vadd.f32 0.0, %v610
      %v612 = vpop.f32.mrf.mxu0
      %v613 = vadd.f32 0.0, %v612
      %614 = vmatmul.bf16.gmra.mxu0 %v553
      %v615 = vpop.f32.mrf.mxu0
      %v616 = vadd.f32 0.0, %v615
      %v617 = vpop.f32.mrf.mxu0
      %v618 = vadd.f32 0.0, %v617
      %619 = vmatmul.bf16.gmra.mxu0 %v556
      %v620 = vpop.f32.mrf.mxu0
      %v621 = vadd.f32 0.0, %v620
      %v622 = vpop.f32.mrf.mxu0
      %v623 = vadd.f32 0.0, %v622
      %624 = vmatmul.bf16.gmra.mxu0 %v559
      %v625 = vpop.f32.mrf.mxu0
      %v626 = vadd.f32 0.0, %v625
      %v627 = vpop.f32.mrf.mxu0
      %v628 = vadd.f32 0.0, %v627
      %629 = vmatmul.bf16.gmra.mxu0 %v562
      %v630 = vpop.f32.mrf.mxu0
      %v631 = vadd.f32 0.0, %v630
      %v632 = vpop.f32.mrf.mxu0
      %v633 = vadd.f32 0.0, %v632
      %634 = vmatmul.bf16.gmra.mxu0 %v565
      %v635 = vpop.f32.mrf.mxu0
      %v636 = vadd.f32 0.0, %v635
      %v637 = vpop.f32.mrf.mxu0
      %v638 = vadd.f32 0.0, %v637
      %639 = vmatmul.bf16.gmra.mxu0 %v568
      %v640 = vpop.f32.mrf.mxu0
      %v641 = vadd.f32 0.0, %v640
      %v642 = vpop.f32.mrf.mxu0
      %v643 = vadd.f32 0.0, %v642
      %644 = vmatmul.bf16.gmra.mxu0 %v571
      %v645 = vpop.f32.mrf.mxu0
      %v646 = vadd.f32 0.0, %v645
      %v647 = vpop.f32.mrf.mxu0
      %v648 = vadd.f32 0.0, %v647
      %649 = vmatmul.bf16.gmra.mxu0 %v574
      %v650 = vpop.f32.mrf.mxu0
      %v651 = vadd.f32 0.0, %v650
      %v652 = vpop.f32.mrf.mxu0
      %v653 = vadd.f32 0.0, %v652
      %654 = vmatmul.bf16.gmra.mxu0 %v577
      %v655 = vpop.f32.mrf.mxu0
      %v656 = vadd.f32 0.0, %v655
      %v657 = vpop.f32.mrf.mxu0
      %v658 = vadd.f32 0.0, %v657
      %659 = vmatmul.bf16.gmra.mxu0 %v580
      %v660 = vpop.f32.mrf.mxu0
      %v661 = vadd.f32 0.0, %v660
      %v662 = vpop.f32.mrf.mxu0
      %v663 = vadd.f32 0.0, %v662
      %664 = vmatmul.bf16.gmra.mxu0 %v583
      %v665 = vpop.f32.mrf.mxu0
      %v666 = vadd.f32 0.0, %v665
      %v667 = vpop.f32.mrf.mxu0
      %v668 = vadd.f32 0.0, %v667
      %669 = vmatmul.bf16.gmra.mxu0 %v586
      %v670 = vpop.f32.mrf.mxu0
      %v671 = vadd.f32 0.0, %v670
      %v672 = vpop.f32.mrf.mxu0
      %v673 = vadd.f32 0.0, %v672
      %674 = vmatmul.bf16.gmra.mxu0 %v589
      %v675 = vpop.f32.mrf.mxu0
      %v676 = vadd.f32 0.0, %v675
      %v677 = vpop.f32.mrf.mxu0
      %v678 = vadd.f32 0.0, %v677
      %679 = vmatmul.bf16.gmra.mxu0 %v592
      %v680 = vpop.f32.mrf.mxu0
      %v681 = vadd.f32 0.0, %v680
      %v682 = vpop.f32.mrf.mxu0
      %v683 = vadd.f32 0.0, %v682
      %684 = vmatmul.bf16.gmra.mxu0 %v595
      %v685 = vpop.f32.mrf.mxu0
      %v686 = vadd.f32 0.0, %v685
      %v687 = vpop.f32.mrf.mxu0
      %v688 = vadd.f32 0.0, %v687
      %689 = vdwg.mxu0
      %690 = vst.msk [vmem:[#allocation4] sm:$0xff] %vm334, %v611
      %691 = vst.msk [vmem:[#allocation4 + $0x8] sm:$0xff] %vm334, %v613
      %692 = vst.msk [vmem:[#allocation4 + $0x10] sm:$0xff] %vm334, %v616
      %693 = vst.msk [vmem:[#allocation4 + $0x18] sm:$0xff] %vm334, %v618
      %694 = vst.msk [vmem:[#allocation4 + $0x20] sm:$0xff] %vm334, %v621
      %695 = vst.msk [vmem:[#allocation4 + $0x28] sm:$0xff] %vm334, %v623
      %696 = vst.msk [vmem:[#allocation4 + $0x30] sm:$0xff] %vm334, %v626
      %697 = vst.msk [vmem:[#allocation4 + $0x38] sm:$0xff] %vm334, %v628
      %698 = vst.msk [vmem:[#allocation4 + $0x40] sm:$0xff] %vm334, %v631
      %699 = vst.msk [vmem:[#allocation4 + $0x48] sm:$0xff] %vm334, %v633
      %700 = vst.msk [vmem:[#allocation4 + $0x50] sm:$0xff] %vm334, %v636
      %701 = vst.msk [vmem:[#allocation4 + $0x58] sm:$0xff] %vm334, %v638
      %702 = vst.msk [vmem:[#allocation4 + $0x60] sm:$0xff] %vm334, %v641
      %703 = vst.msk [vmem:[#allocation4 + $0x68] sm:$0xff] %vm334, %v643
      %704 = vst.msk [vmem:[#allocation4 + $0x70] sm:$0xff] %vm334, %v646
      %705 = vst.msk [vmem:[#allocation4 + $0x78] sm:$0xff] %vm334, %v648
      %706 = vst.msk [vmem:[#allocation4 + $0x80] sm:$0xff] %vm334, %v651
      %707 = vst.msk [vmem:[#allocation4 + $0x88] sm:$0xff] %vm334, %v653
      %708 = vst.msk [vmem:[#allocation4 + $0x90] sm:$0xff] %vm334, %v656
      %709 = vst.msk [vmem:[#allocation4 + $0x98] sm:$0xff] %vm334, %v658
      %710 = vst.msk [vmem:[#allocation4 + $0xa0] sm:$0xff] %vm334, %v661
      %711 = vst.msk [vmem:[#allocation4 + $0xa8] sm:$0xff] %vm334, %v663
      %712 = vst.msk [vmem:[#allocation4 + $0xb0] sm:$0xff] %vm334, %v666
      %713 = vst.msk [vmem:[#allocation4 + $0xb8] sm:$0xff] %vm334, %v668
      %714 = vst.msk [vmem:[#allocation4 + $0xc0] sm:$0xff] %vm334, %v671
      %715 = vst.msk [vmem:[#allocation4 + $0xc8] sm:$0xff] %vm334, %v673
      %716 = vst.msk [vmem:[#allocation4 + $0xd0] sm:$0xff] %vm334, %v676
      %717 = vst.msk [vmem:[#allocation4 + $0xd8] sm:$0xff] %vm334, %v678
      %718 = vst.msk [vmem:[#allocation4 + $0xe0] sm:$0xff] %vm334, %v681
      %719 = vst.msk [vmem:[#allocation4 + $0xe8] sm:$0xff] %vm334, %v683
      %720 = vst.msk [vmem:[#allocation4 + $0xf0] sm:$0xff] %vm334, %v686
      %721 = vst.msk [vmem:[#allocation4 + $0xf8] sm:$0xff] %vm334, %v688
      %v722 = vld [vmem:[%s466 + $0x1] sm:$0xff]
      %v723 = vld [vmem:[%s466 + $0x9] sm:$0xff]
      %v724 = vld [vmem:[%s466 + $0x19] sm:$0xff]
      %v725 = vld [vmem:[%s466 + $0x21] sm:$0xff]
      %v726 = vld [vmem:[%s466 + $0x31] sm:$0xff]
      %v727 = vld [vmem:[%s466 + $0x39] sm:$0xff]
      %v728 = vld [vmem:[%s466 + $0x49] sm:$0xff]
      %v729 = vld [vmem:[%s466 + $0x51] sm:$0xff]
      %v730 = vld [vmem:[%s466 + $0x61] sm:$0xff]
      %v731 = vld [vmem:[%s466 + $0x69] sm:$0xff]
      %v732 = vld [vmem:[%s466 + $0x79] sm:$0xff]
      %v733 = vld [vmem:[%s466 + $0x81] sm:$0xff]
      %v734 = vld [vmem:[%s466 + $0x91] sm:$0xff]
      %v735 = vld [vmem:[%s466 + $0x99] sm:$0xff]
      %v736 = vld [vmem:[%s466 + $0xa9] sm:$0xff]
      %v737 = vld [vmem:[%s466 + $0xb1] sm:$0xff]
      %v738 = vld [vmem:[%s466 + $0xc1] sm:$0xff]
      %v739 = vld [vmem:[%s466 + $0xc9] sm:$0xff]
      %v740 = vld [vmem:[%s466 + $0xd9] sm:$0xff]
      %v741 = vld [vmem:[%s466 + $0xe1] sm:$0xff]
      %v742 = vld [vmem:[%s466 + $0xf1] sm:$0xff]
      %v743 = vld [vmem:[%s466 + $0xf9] sm:$0xff]
      %v744 = vld [vmem:[%s466 + $0x109] sm:$0xff]
      %v745 = vld [vmem:[%s466 + $0x111] sm:$0xff]
      %v746 = vld [vmem:[%s466 + $0x121] sm:$0xff]
      %v747 = vld [vmem:[%s466 + $0x129] sm:$0xff]
      %v748 = vld [vmem:[%s466 + $0x139] sm:$0xff]
      %v749 = vld [vmem:[%s466 + $0x141] sm:$0xff]
      %v750 = vld [vmem:[%s466 + $0x151] sm:$0xff]
      %v751 = vld [vmem:[%s466 + $0x159] sm:$0xff]
      %v752 = vld [vmem:[%s466 + $0x169] sm:$0xff]
      %v753 = vld [vmem:[%s466 + $0x171] sm:$0xff]
      %v754 = vpack.c.bf16 %v723, %v722
      %v755 = vpack.c.bf16 %v725, %v724
      %v756 = vpack.c.bf16 %v727, %v726
      %v757 = vpack.c.bf16 %v729, %v728
      %v758 = vpack.c.bf16 %v731, %v730
      %v759 = vpack.c.bf16 %v733, %v732
      %v760 = vpack.c.bf16 %v735, %v734
      %v761 = vpack.c.bf16 %v737, %v736
      %v762 = vpack.c.bf16 %v739, %v738
      %v763 = vpack.c.bf16 %v741, %v740
      %v764 = vpack.c.bf16 %v743, %v742
      %v765 = vpack.c.bf16 %v745, %v744
      %v766 = vpack.c.bf16 %v747, %v746
      %v767 = vpack.c.bf16 %v749, %v748
      %v768 = vpack.c.bf16 %v751, %v750
      %v769 = vpack.c.bf16 %v753, %v752
      %s770 = scalar_lea.vmem %s1, 2
      %v771 = vld [vmem:[%s770] sm:$0x3]
      %v773 = vsel %vm334, %v754, 0
      %v776 = vsel %vm334, %v755, 0
      %v779 = vsel %vm334, %v756, 0
      %v782 = vsel %vm334, %v757, 0
      %v785 = vsel %vm334, %v758, 0
      %v788 = vsel %vm334, %v759, 0
      %v791 = vsel %vm334, %v760, 0
      %v794 = vsel %vm334, %v761, 0
      %v797 = vsel %vm334, %v762, 0
      %v800 = vsel %vm334, %v763, 0
      %v803 = vsel %vm334, %v764, 0
      %v806 = vsel %vm334, %v765, 0
      %v809 = vsel %vm334, %v766, 0
      %v812 = vsel %vm334, %v767, 0
      %v815 = vsel %vm334, %v768, 0
      %v818 = vsel %vm334, %v769, 0
      %v821 = vsel %vm597, %v771, 0
      %823 = vmatpush.bf16.msra.mxu0 0
      %824 = vmatpush.bf16.msra.mxu0 0
      %825 = vmatpush.bf16.msra.mxu0 0
      %826 = vmatpush.bf16.msra.mxu0 0
      %827 = vmatpush.bf16.msra.mxu0 0
      %828 = vmatpush.bf16.msra.mxu0 0
      %829 = vmatpush.bf16.msra.mxu0 0
      %830 = vmatpush.bf16.msra.mxu0 %v821
      %831 = vmatmul.bf16.gmra.mxu0 %v773
      %v832 = vpop.f32.mrf.mxu0
      %v833 = vadd.f32 0.0, %v832
      %v834 = vpop.f32.mrf.mxu0
      %v835 = vadd.f32 0.0, %v834
      %836 = vmatmul.bf16.gmra.mxu0 %v776
      %v837 = vpop.f32.mrf.mxu0
      %v838 = vadd.f32 0.0, %v837
      %v839 = vpop.f32.mrf.mxu0
      %v840 = vadd.f32 0.0, %v839
      %841 = vmatmul.bf16.gmra.mxu0 %v779
      %v842 = vpop.f32.mrf.mxu0
      %v843 = vadd.f32 0.0, %v842
      %v844 = vpop.f32.mrf.mxu0
      %v845 = vadd.f32 0.0, %v844
      %846 = vmatmul.bf16.gmra.mxu0 %v782
      %v847 = vpop.f32.mrf.mxu0
      %v848 = vadd.f32 0.0, %v847
      %v849 = vpop.f32.mrf.mxu0
      %v850 = vadd.f32 0.0, %v849
      %851 = vmatmul.bf16.gmra.mxu0 %v785
      %v852 = vpop.f32.mrf.mxu0
      %v853 = vadd.f32 0.0, %v852
      %v854 = vpop.f32.mrf.mxu0
      %v855 = vadd.f32 0.0, %v854
      %856 = vmatmul.bf16.gmra.mxu0 %v788
      %v857 = vpop.f32.mrf.mxu0
      %v858 = vadd.f32 0.0, %v857
      %v859 = vpop.f32.mrf.mxu0
      %v860 = vadd.f32 0.0, %v859
      %861 = vmatmul.bf16.gmra.mxu0 %v791
      %v862 = vpop.f32.mrf.mxu0
      %v863 = vadd.f32 0.0, %v862
      %v864 = vpop.f32.mrf.mxu0
      %v865 = vadd.f32 0.0, %v864
      %866 = vmatmul.bf16.gmra.mxu0 %v794
      %v867 = vpop.f32.mrf.mxu0
      %v868 = vadd.f32 0.0, %v867
      %v869 = vpop.f32.mrf.mxu0
      %v870 = vadd.f32 0.0, %v869
      %871 = vmatmul.bf16.gmra.mxu0 %v797
      %v872 = vpop.f32.mrf.mxu0
      %v873 = vadd.f32 0.0, %v872
      %v874 = vpop.f32.mrf.mxu0
      %v875 = vadd.f32 0.0, %v874
      %876 = vmatmul.bf16.gmra.mxu0 %v800
      %v877 = vpop.f32.mrf.mxu0
      %v878 = vadd.f32 0.0, %v877
      %v879 = vpop.f32.mrf.mxu0
      %v880 = vadd.f32 0.0, %v879
      %881 = vmatmul.bf16.gmra.mxu0 %v803
      %v882 = vpop.f32.mrf.mxu0
      %v883 = vadd.f32 0.0, %v882
      %v884 = vpop.f32.mrf.mxu0
      %v885 = vadd.f32 0.0, %v884
      %886 = vmatmul.bf16.gmra.mxu0 %v806
      %v887 = vpop.f32.mrf.mxu0
      %v888 = vadd.f32 0.0, %v887
      %v889 = vpop.f32.mrf.mxu0
      %v890 = vadd.f32 0.0, %v889
      %891 = vmatmul.bf16.gmra.mxu0 %v809
      %v892 = vpop.f32.mrf.mxu0
      %v893 = vadd.f32 0.0, %v892
      %v894 = vpop.f32.mrf.mxu0
      %v895 = vadd.f32 0.0, %v894
      %896 = vmatmul.bf16.gmra.mxu0 %v812
      %v897 = vpop.f32.mrf.mxu0
      %v898 = vadd.f32 0.0, %v897
      %v899 = vpop.f32.mrf.mxu0
      %v900 = vadd.f32 0.0, %v899
      %901 = vmatmul.bf16.gmra.mxu0 %v815
      %v902 = vpop.f32.mrf.mxu0
      %v903 = vadd.f32 0.0, %v902
      %v904 = vpop.f32.mrf.mxu0
      %v905 = vadd.f32 0.0, %v904
      %906 = vmatmul.bf16.gmra.mxu0 %v818
      %v907 = vpop.f32.mrf.mxu0
      %v908 = vadd.f32 0.0, %v907
      %v909 = vpop.f32.mrf.mxu0
      %v910 = vadd.f32 0.0, %v909
      %911 = vdwg.mxu0
      %v912 = vld [vmem:[#allocation4] sm:$0xff]
      %v913 = vld [vmem:[#allocation4 + $0x8] sm:$0xff]
      %v914 = vld [vmem:[#allocation4 + $0x10] sm:$0xff]
      %v915 = vld [vmem:[#allocation4 + $0x18] sm:$0xff]
      %v916 = vld [vmem:[#allocation4 + $0x20] sm:$0xff]
      %v917 = vld [vmem:[#allocation4 + $0x28] sm:$0xff]
      %v918 = vld [vmem:[#allocation4 + $0x30] sm:$0xff]
      %v919 = vld [vmem:[#allocation4 + $0x38] sm:$0xff]
      %v920 = vld [vmem:[#allocation4 + $0x40] sm:$0xff]
      %v921 = vld [vmem:[#allocation4 + $0x48] sm:$0xff]
      %v922 = vld [vmem:[#allocation4 + $0x50] sm:$0xff]
      %v923 = vld [vmem:[#allocation4 + $0x58] sm:$0xff]
      %v924 = vld [vmem:[#allocation4 + $0x60] sm:$0xff]
      %v925 = vld [vmem:[#allocation4 + $0x68] sm:$0xff]
      %v926 = vld [vmem:[#allocation4 + $0x70] sm:$0xff]
      %v927 = vld [vmem:[#allocation4 + $0x78] sm:$0xff]
      %v928 = vld [vmem:[#allocation4 + $0x80] sm:$0xff]
      %v929 = vld [vmem:[#allocation4 + $0x88] sm:$0xff]
      %v930 = vld [vmem:[#allocation4 + $0x90] sm:$0xff]
      %v931 = vld [vmem:[#allocation4 + $0x98] sm:$0xff]
      %v932 = vld [vmem:[#allocation4 + $0xa0] sm:$0xff]
      %v933 = vld [vmem:[#allocation4 + $0xa8] sm:$0xff]
      %v934 = vld [vmem:[#allocation4 + $0xb0] sm:$0xff]
      %v935 = vld [vmem:[#allocation4 + $0xb8] sm:$0xff]
      %v936 = vld [vmem:[#allocation4 + $0xc0] sm:$0xff]
      %v937 = vld [vmem:[#allocation4 + $0xc8] sm:$0xff]
      %v938 = vld [vmem:[#allocation4 + $0xd0] sm:$0xff]
      %v939 = vld [vmem:[#allocation4 + $0xd8] sm:$0xff]
      %v940 = vld [vmem:[#allocation4 + $0xe0] sm:$0xff]
      %v941 = vld [vmem:[#allocation4 + $0xe8] sm:$0xff]
      %v942 = vld [vmem:[#allocation4 + $0xf0] sm:$0xff]
      %v943 = vld [vmem:[#allocation4 + $0xf8] sm:$0xff]
      %v944 = vadd.f32 %v912, %v833
      %v945 = vadd.f32 %v913, %v835
      %v946 = vadd.f32 %v914, %v838
      %v947 = vadd.f32 %v915, %v840
      %v948 = vadd.f32 %v916, %v843
      %v949 = vadd.f32 %v917, %v845
      %v950 = vadd.f32 %v918, %v848
      %v951 = vadd.f32 %v919, %v850
      %v952 = vadd.f32 %v920, %v853
      %v953 = vadd.f32 %v921, %v855
      %v954 = vadd.f32 %v922, %v858
      %v955 = vadd.f32 %v923, %v860
      %v956 = vadd.f32 %v924, %v863
      %v957 = vadd.f32 %v925, %v865
      %v958 = vadd.f32 %v926, %v868
      %v959 = vadd.f32 %v927, %v870
      %v960 = vadd.f32 %v928, %v873
      %v961 = vadd.f32 %v929, %v875
      %v962 = vadd.f32 %v930, %v878
      %v963 = vadd.f32 %v931, %v880
      %v964 = vadd.f32 %v932, %v883
      %v965 = vadd.f32 %v933, %v885
      %v966 = vadd.f32 %v934, %v888
      %v967 = vadd.f32 %v935, %v890
      %v968 = vadd.f32 %v936, %v893
      %v969 = vadd.f32 %v937, %v895
      %v970 = vadd.f32 %v938, %v898
      %v971 = vadd.f32 %v939, %v900
      %v972 = vadd.f32 %v940, %v903
      %v973 = vadd.f32 %v941, %v905
      %v974 = vadd.f32 %v942, %v908
      %v975 = vadd.f32 %v943, %v910
      %976 = vst.msk [vmem:[#allocation4] sm:$0xff] %vm334, %v944
      %977 = vst.msk [vmem:[#allocation4 + $0x8] sm:$0xff] %vm334, %v945
      %978 = vst.msk [vmem:[#allocation4 + $0x10] sm:$0xff] %vm334, %v946
      %979 = vst.msk [vmem:[#allocation4 + $0x18] sm:$0xff] %vm334, %v947
      %980 = vst.msk [vmem:[#allocation4 + $0x20] sm:$0xff] %vm334, %v948
      %981 = vst.msk [vmem:[#allocation4 + $0x28] sm:$0xff] %vm334, %v949
      %982 = vst.msk [vmem:[#allocation4 + $0x30] sm:$0xff] %vm334, %v950
      %983 = vst.msk [vmem:[#allocation4 + $0x38] sm:$0xff] %vm334, %v951
      %984 = vst.msk [vmem:[#allocation4 + $0x40] sm:$0xff] %vm334, %v952
      %985 = vst.msk [vmem:[#allocation4 + $0x48] sm:$0xff] %vm334, %v953
      %986 = vst.msk [vmem:[#allocation4 + $0x50] sm:$0xff] %vm334, %v954
      %987 = vst.msk [vmem:[#allocation4 + $0x58] sm:$0xff] %vm334, %v955
      %988 = vst.msk [vmem:[#allocation4 + $0x60] sm:$0xff] %vm334, %v956
      %989 = vst.msk [vmem:[#allocation4 + $0x68] sm:$0xff] %vm334, %v957
      %990 = vst.msk [vmem:[#allocation4 + $0x70] sm:$0xff] %vm334, %v958
      %991 = vst.msk [vmem:[#allocation4 + $0x78] sm:$0xff] %vm334, %v959
      %992 = vst.msk [vmem:[#allocation4 + $0x80] sm:$0xff] %vm334, %v960
      %993 = vst.msk [vmem:[#allocation4 + $0x88] sm:$0xff] %vm334, %v961
      %994 = vst.msk [vmem:[#allocation4 + $0x90] sm:$0xff] %vm334, %v962
      %995 = vst.msk [vmem:[#allocation4 + $0x98] sm:$0xff] %vm334, %v963
      %996 = vst.msk [vmem:[#allocation4 + $0xa0] sm:$0xff] %vm334, %v964
      %997 = vst.msk [vmem:[#allocation4 + $0xa8] sm:$0xff] %vm334, %v965
      %998 = vst.msk [vmem:[#allocation4 + $0xb0] sm:$0xff] %vm334, %v966
      %999 = vst.msk [vmem:[#allocation4 + $0xb8] sm:$0xff] %vm334, %v967
      %1000 = vst.msk [vmem:[#allocation4 + $0xc0] sm:$0xff] %vm334, %v968
      %1001 = vst.msk [vmem:[#allocation4 + $0xc8] sm:$0xff] %vm334, %v969
      %1002 = vst.msk [vmem:[#allocation4 + $0xd0] sm:$0xff] %vm334, %v970
      %1003 = vst.msk [vmem:[#allocation4 + $0xd8] sm:$0xff] %vm334, %v971
      %1004 = vst.msk [vmem:[#allocation4 + $0xe0] sm:$0xff] %vm334, %v972
      %1005 = vst.msk [vmem:[#allocation4 + $0xe8] sm:$0xff] %vm334, %v973
      %1006 = vst.msk [vmem:[#allocation4 + $0xf0] sm:$0xff] %vm334, %v974
      %1007 = vst.msk [vmem:[#allocation4 + $0xf8] sm:$0xff] %vm334, %v975
      %v1008 = vld [vmem:[%s466 + $0x2] sm:$0xff]
      %v1009 = vld [vmem:[%s466 + $0xa] sm:$0xff]
      %v1010 = vld [vmem:[%s466 + $0x1a] sm:$0xff]
      %v1011 = vld [vmem:[%s466 + $0x22] sm:$0xff]
      %v1012 = vld [vmem:[%s466 + $0x32] sm:$0xff]
      %v1013 = vld [vmem:[%s466 + $0x3a] sm:$0xff]
      %v1014 = vld [vmem:[%s466 + $0x4a] sm:$0xff]
      %v1015 = vld [vmem:[%s466 + $0x52] sm:$0xff]
      %v1016 = vld [vmem:[%s466 + $0x62] sm:$0xff]
      %v1017 = vld [vmem:[%s466 + $0x6a] sm:$0xff]
      %v1018 = vld [vmem:[%s466 + $0x7a] sm:$0xff]
      %v1019 = vld [vmem:[%s466 + $0x82] sm:$0xff]
      %v1020 = vld [vmem:[%s466 + $0x92] sm:$0xff]
      %v1021 = vld [vmem:[%s466 + $0x9a] sm:$0xff]
      %v1022 = vld [vmem:[%s466 + $0xaa] sm:$0xff]
      %v1023 = vld [vmem:[%s466 + $0xb2] sm:$0xff]
      %v1024 = vld [vmem:[%s466 + $0xc2] sm:$0xff]
      %v1025 = vld [vmem:[%s466 + $0xca] sm:$0xff]
      %v1026 = vld [vmem:[%s466 + $0xda] sm:$0xff]
      %v1027 = vld [vmem:[%s466 + $0xe2] sm:$0xff]
      %v1028 = vld [vmem:[%s466 + $0xf2] sm:$0xff]
      %v1029 = vld [vmem:[%s466 + $0xfa] sm:$0xff]
      %v1030 = vld [vmem:[%s466 + $0x10a] sm:$0xff]
      %v1031 = vld [vmem:[%s466 + $0x112] sm:$0xff]
      %v1032 = vld [vmem:[%s466 + $0x122] sm:$0xff]
      %v1033 = vld [vmem:[%s466 + $0x12a] sm:$0xff]
      %v1034 = vld [vmem:[%s466 + $0x13a] sm:$0xff]
      %v1035 = vld [vmem:[%s466 + $0x142] sm:$0xff]
      %v1036 = vld [vmem:[%s466 + $0x152] sm:$0xff]
      %v1037 = vld [vmem:[%s466 + $0x15a] sm:$0xff]
      %v1038 = vld [vmem:[%s466 + $0x16a] sm:$0xff]
      %v1039 = vld [vmem:[%s466 + $0x172] sm:$0xff]
      %v1040 = vpack.c.bf16 %v1009, %v1008
      %v1041 = vpack.c.bf16 %v1011, %v1010
      %v1042 = vpack.c.bf16 %v1013, %v1012
      %v1043 = vpack.c.bf16 %v1015, %v1014
      %v1044 = vpack.c.bf16 %v1017, %v1016
      %v1045 = vpack.c.bf16 %v1019, %v1018
      %v1046 = vpack.c.bf16 %v1021, %v1020
      %v1047 = vpack.c.bf16 %v1023, %v1022
      %v1048 = vpack.c.bf16 %v1025, %v1024
      %v1049 = vpack.c.bf16 %v1027, %v1026
      %v1050 = vpack.c.bf16 %v1029, %v1028
      %v1051 = vpack.c.bf16 %v1031, %v1030
      %v1052 = vpack.c.bf16 %v1033, %v1032
      %v1053 = vpack.c.bf16 %v1035, %v1034
      %v1054 = vpack.c.bf16 %v1037, %v1036
      %v1055 = vpack.c.bf16 %v1039, %v1038
      %s1056 = scalar_lea.vmem %s1, 4
      %v1057 = vld [vmem:[%s1056] sm:$0x3]
      %v1059 = vsel %vm334, %v1040, 0
      %v1062 = vsel %vm334, %v1041, 0
      %v1065 = vsel %vm334, %v1042, 0
      %v1068 = vsel %vm334, %v1043, 0
      %v1071 = vsel %vm334, %v1044, 0
      %v1074 = vsel %vm334, %v1045, 0
      %v1077 = vsel %vm334, %v1046, 0
      %v1080 = vsel %vm334, %v1047, 0
      %v1083 = vsel %vm334, %v1048, 0
      %v1086 = vsel %vm334, %v1049, 0
      %v1089 = vsel %vm334, %v1050, 0
      %v1092 = vsel %vm334, %v1051, 0
      %v1095 = vsel %vm334, %v1052, 0
      %v1098 = vsel %vm334, %v1053, 0
      %v1101 = vsel %vm334, %v1054, 0
      %v1104 = vsel %vm334, %v1055, 0
      %v1107 = vsel %vm597, %v1057, 0
      %1109 = vmatpush.bf16.msra.mxu0 0
      %1110 = vmatpush.bf16.msra.mxu0 0
      %1111 = vmatpush.bf16.msra.mxu0 0
      %1112 = vmatpush.bf16.msra.mxu0 0
      %1113 = vmatpush.bf16.msra.mxu0 0
      %1114 = vmatpush.bf16.msra.mxu0 0
      %1115 = vmatpush.bf16.msra.mxu0 0
      %1116 = vmatpush.bf16.msra.mxu0 %v1107
      %1117 = vmatmul.bf16.gmra.mxu0 %v1059
      %v1118 = vpop.f32.mrf.mxu0
      %v1119 = vadd.f32 0.0, %v1118
      %v1120 = vpop.f32.mrf.mxu0
      %v1121 = vadd.f32 0.0, %v1120
      %1122 = vmatmul.bf16.gmra.mxu0 %v1062
      %v1123 = vpop.f32.mrf.mxu0
      %v1124 = vadd.f32 0.0, %v1123
      %v1125 = vpop.f32.mrf.mxu0
      %v1126 = vadd.f32 0.0, %v1125
      %1127 = vmatmul.bf16.gmra.mxu0 %v1065
      %v1128 = vpop.f32.mrf.mxu0
      %v1129 = vadd.f32 0.0, %v1128
      %v1130 = vpop.f32.mrf.mxu0
      %v1131 = vadd.f32 0.0, %v1130
      %1132 = vmatmul.bf16.gmra.mxu0 %v1068
      %v1133 = vpop.f32.mrf.mxu0
      %v1134 = vadd.f32 0.0, %v1133
      %v1135 = vpop.f32.mrf.mxu0
      %v1136 = vadd.f32 0.0, %v1135
      %1137 = vmatmul.bf16.gmra.mxu0 %v1071
      %v1138 = vpop.f32.mrf.mxu0
      %v1139 = vadd.f32 0.0, %v1138
      %v1140 = vpop.f32.mrf.mxu0
      %v1141 = vadd.f32 0.0, %v1140
      %1142 = vmatmul.bf16.gmra.mxu0 %v1074
      %v1143 = vpop.f32.mrf.mxu0
      %v1144 = vadd.f32 0.0, %v1143
      %v1145 = vpop.f32.mrf.mxu0
      %v1146 = vadd.f32 0.0, %v1145
      %1147 = vmatmul.bf16.gmra.mxu0 %v1077
      %v1148 = vpop.f32.mrf.mxu0
      %v1149 = vadd.f32 0.0, %v1148
      %v1150 = vpop.f32.mrf.mxu0
      %v1151 = vadd.f32 0.0, %v1150
      %1152 = vmatmul.bf16.gmra.mxu0 %v1080
      %v1153 = vpop.f32.mrf.mxu0
      %v1154 = vadd.f32 0.0, %v1153
      %v1155 = vpop.f32.mrf.mxu0
      %v1156 = vadd.f32 0.0, %v1155
      %1157 = vmatmul.bf16.gmra.mxu0 %v1083
      %v1158 = vpop.f32.mrf.mxu0
      %v1159 = vadd.f32 0.0, %v1158
      %v1160 = vpop.f32.mrf.mxu0
      %v1161 = vadd.f32 0.0, %v1160
      %1162 = vmatmul.bf16.gmra.mxu0 %v1086
      %v1163 = vpop.f32.mrf.mxu0
      %v1164 = vadd.f32 0.0, %v1163
      %v1165 = vpop.f32.mrf.mxu0
      %v1166 = vadd.f32 0.0, %v1165
      %1167 = vmatmul.bf16.gmra.mxu0 %v1089
      %v1168 = vpop.f32.mrf.mxu0
      %v1169 = vadd.f32 0.0, %v1168
      %v1170 = vpop.f32.mrf.mxu0
      %v1171 = vadd.f32 0.0, %v1170
      %1172 = vmatmul.bf16.gmra.mxu0 %v1092
      %v1173 = vpop.f32.mrf.mxu0
      %v1174 = vadd.f32 0.0, %v1173
      %v1175 = vpop.f32.mrf.mxu0
      %v1176 = vadd.f32 0.0, %v1175
      %1177 = vmatmul.bf16.gmra.mxu0 %v1095
      %v1178 = vpop.f32.mrf.mxu0
      %v1179 = vadd.f32 0.0, %v1178
      %v1180 = vpop.f32.mrf.mxu0
      %v1181 = vadd.f32 0.0, %v1180
      %1182 = vmatmul.bf16.gmra.mxu0 %v1098
      %v1183 = vpop.f32.mrf.mxu0
      %v1184 = vadd.f32 0.0, %v1183
      %v1185 = vpop.f32.mrf.mxu0
      %v1186 = vadd.f32 0.0, %v1185
      %1187 = vmatmul.bf16.gmra.mxu0 %v1101
      %v1188 = vpop.f32.mrf.mxu0
      %v1189 = vadd.f32 0.0, %v1188
      %v1190 = vpop.f32.mrf.mxu0
      %v1191 = vadd.f32 0.0, %v1190
      %1192 = vmatmul.bf16.gmra.mxu0 %v1104
      %v1193 = vpop.f32.mrf.mxu0
      %v1194 = vadd.f32 0.0, %v1193
      %v1195 = vpop.f32.mrf.mxu0
      %v1196 = vadd.f32 0.0, %v1195
      %1197 = vdwg.mxu0
      %v1198 = vld [vmem:[#allocation4] sm:$0xff]
      %v1199 = vld [vmem:[#allocation4 + $0x8] sm:$0xff]
      %v1200 = vld [vmem:[#allocation4 + $0x10] sm:$0xff]
      %v1201 = vld [vmem:[#allocation4 + $0x18] sm:$0xff]
      %v1202 = vld [vmem:[#allocation4 + $0x20] sm:$0xff]
      %v1203 = vld [vmem:[#allocation4 + $0x28] sm:$0xff]
      %v1204 = vld [vmem:[#allocation4 + $0x30] sm:$0xff]
      %v1205 = vld [vmem:[#allocation4 + $0x38] sm:$0xff]
      %v1206 = vld [vmem:[#allocation4 + $0x40] sm:$0xff]
      %v1207 = vld [vmem:[#allocation4 + $0x48] sm:$0xff]
      %v1208 = vld [vmem:[#allocation4 + $0x50] sm:$0xff]
      %v1209 = vld [vmem:[#allocation4 + $0x58] sm:$0xff]
      %v1210 = vld [vmem:[#allocation4 + $0x60] sm:$0xff]
      %v1211 = vld [vmem:[#allocation4 + $0x68] sm:$0xff]
      %v1212 = vld [vmem:[#allocation4 + $0x70] sm:$0xff]
      %v1213 = vld [vmem:[#allocation4 + $0x78] sm:$0xff]
      %v1214 = vld [vmem:[#allocation4 + $0x80] sm:$0xff]
      %v1215 = vld [vmem:[#allocation4 + $0x88] sm:$0xff]
      %v1216 = vld [vmem:[#allocation4 + $0x90] sm:$0xff]
      %v1217 = vld [vmem:[#allocation4 + $0x98] sm:$0xff]
      %v1218 = vld [vmem:[#allocation4 + $0xa0] sm:$0xff]
      %v1219 = vld [vmem:[#allocation4 + $0xa8] sm:$0xff]
      %v1220 = vld [vmem:[#allocation4 + $0xb0] sm:$0xff]
      %v1221 = vld [vmem:[#allocation4 + $0xb8] sm:$0xff]
      %v1222 = vld [vmem:[#allocation4 + $0xc0] sm:$0xff]
      %v1223 = vld [vmem:[#allocation4 + $0xc8] sm:$0xff]
      %v1224 = vld [vmem:[#allocation4 + $0xd0] sm:$0xff]
      %v1225 = vld [vmem:[#allocation4 + $0xd8] sm:$0xff]
      %v1226 = vld [vmem:[#allocation4 + $0xe0] sm:$0xff]
      %v1227 = vld [vmem:[#allocation4 + $0xe8] sm:$0xff]
      %v1228 = vld [vmem:[#allocation4 + $0xf0] sm:$0xff]
      %v1229 = vld [vmem:[#allocation4 + $0xf8] sm:$0xff]
      %v1230 = vadd.f32 %v1198, %v1119
      %v1231 = vadd.f32 %v1199, %v1121
      %v1232 = vadd.f32 %v1200, %v1124
      %v1233 = vadd.f32 %v1201, %v1126
      %v1234 = vadd.f32 %v1202, %v1129
      %v1235 = vadd.f32 %v1203, %v1131
      %v1236 = vadd.f32 %v1204, %v1134
      %v1237 = vadd.f32 %v1205, %v1136
      %v1238 = vadd.f32 %v1206, %v1139
      %v1239 = vadd.f32 %v1207, %v1141
      %v1240 = vadd.f32 %v1208, %v1144
      %v1241 = vadd.f32 %v1209, %v1146
      %v1242 = vadd.f32 %v1210, %v1149
      %v1243 = vadd.f32 %v1211, %v1151
      %v1244 = vadd.f32 %v1212, %v1154
      %v1245 = vadd.f32 %v1213, %v1156
      %v1246 = vadd.f32 %v1214, %v1159
      %v1247 = vadd.f32 %v1215, %v1161
      %v1248 = vadd.f32 %v1216, %v1164
      %v1249 = vadd.f32 %v1217, %v1166
      %v1250 = vadd.f32 %v1218, %v1169
      %v1251 = vadd.f32 %v1219, %v1171
      %v1252 = vadd.f32 %v1220, %v1174
      %v1253 = vadd.f32 %v1221, %v1176
      %v1254 = vadd.f32 %v1222, %v1179
      %v1255 = vadd.f32 %v1223, %v1181
      %v1256 = vadd.f32 %v1224, %v1184
      %v1257 = vadd.f32 %v1225, %v1186
      %v1258 = vadd.f32 %v1226, %v1189
      %v1259 = vadd.f32 %v1227, %v1191
      %v1260 = vadd.f32 %v1228, %v1194
      %v1261 = vadd.f32 %v1229, %v1196
      %1262 = vst.msk [vmem:[#allocation4] sm:$0xff] %vm334, %v1230
      %1263 = vst.msk [vmem:[#allocation4 + $0x8] sm:$0xff] %vm334, %v1231
      %1264 = vst.msk [vmem:[#allocation4 + $0x10] sm:$0xff] %vm334, %v1232
      %1265 = vst.msk [vmem:[#allocation4 + $0x18] sm:$0xff] %vm334, %v1233
      %1266 = vst.msk [vmem:[#allocation4 + $0x20] sm:$0xff] %vm334, %v1234
      %1267 = vst.msk [vmem:[#allocation4 + $0x28] sm:$0xff] %vm334, %v1235
      %1268 = vst.msk [vmem:[#allocation4 + $0x30] sm:$0xff] %vm334, %v1236
      %1269 = vst.msk [vmem:[#allocation4 + $0x38] sm:$0xff] %vm334, %v1237
      %1270 = vst.msk [vmem:[#allocation4 + $0x40] sm:$0xff] %vm334, %v1238
      %1271 = vst.msk [vmem:[#allocation4 + $0x48] sm:$0xff] %vm334, %v1239
      %1272 = vst.msk [vmem:[#allocation4 + $0x50] sm:$0xff] %vm334, %v1240
      %1273 = vst.msk [vmem:[#allocation4 + $0x58] sm:$0xff] %vm334, %v1241
      %1274 = vst.msk [vmem:[#allocation4 + $0x60] sm:$0xff] %vm334, %v1242
      %1275 = vst.msk [vmem:[#allocation4 + $0x68] sm:$0xff] %vm334, %v1243
      %1276 = vst.msk [vmem:[#allocation4 + $0x70] sm:$0xff] %vm334, %v1244
      %1277 = vst.msk [vmem:[#allocation4 + $0x78] sm:$0xff] %vm334, %v1245
      %1278 = vst.msk [vmem:[#allocation4 + $0x80] sm:$0xff] %vm334, %v1246
      %1279 = vst.msk [vmem:[#allocation4 + $0x88] sm:$0xff] %vm334, %v1247
      %1280 = vst.msk [vmem:[#allocation4 + $0x90] sm:$0xff] %vm334, %v1248
      %1281 = vst.msk [vmem:[#allocation4 + $0x98] sm:$0xff] %vm334, %v1249
      %1282 = vst.msk [vmem:[#allocation4 + $0xa0] sm:$0xff] %vm334, %v1250
      %1283 = vst.msk [vmem:[#allocation4 + $0xa8] sm:$0xff] %vm334, %v1251
      %1284 = vst.msk [vmem:[#allocation4 + $0xb0] sm:$0xff] %vm334, %v1252
      %1285 = vst.msk [vmem:[#allocation4 + $0xb8] sm:$0xff] %vm334, %v1253
      %1286 = vst.msk [vmem:[#allocation4 + $0xc0] sm:$0xff] %vm334, %v1254
      %1287 = vst.msk [vmem:[#allocation4 + $0xc8] sm:$0xff] %vm334, %v1255
      %1288 = vst.msk [vmem:[#allocation4 + $0xd0] sm:$0xff] %vm334, %v1256
      %1289 = vst.msk [vmem:[#allocation4 + $0xd8] sm:$0xff] %vm334, %v1257
      %1290 = vst.msk [vmem:[#allocation4 + $0xe0] sm:$0xff] %vm334, %v1258
      %1291 = vst.msk [vmem:[#allocation4 + $0xe8] sm:$0xff] %vm334, %v1259
      %1292 = vst.msk [vmem:[#allocation4 + $0xf0] sm:$0xff] %vm334, %v1260
      %1293 = vst.msk [vmem:[#allocation4 + $0xf8] sm:$0xff] %vm334, %v1261
      %v1294 = vld [vmem:[%s466 + $0x3] sm:$0xff]
      %v1295 = vld [vmem:[%s466 + $0xb] sm:$0xff]
      %v1296 = vld [vmem:[%s466 + $0x1b] sm:$0xff]
      %v1297 = vld [vmem:[%s466 + $0x23] sm:$0xff]
      %v1298 = vld [vmem:[%s466 + $0x33] sm:$0xff]
      %v1299 = vld [vmem:[%s466 + $0x3b] sm:$0xff]
      %v1300 = vld [vmem:[%s466 + $0x4b] sm:$0xff]
      %v1301 = vld [vmem:[%s466 + $0x53] sm:$0xff]
      %v1302 = vld [vmem:[%s466 + $0x63] sm:$0xff]
      %v1303 = vld [vmem:[%s466 + $0x6b] sm:$0xff]
      %v1304 = vld [vmem:[%s466 + $0x7b] sm:$0xff]
      %v1305 = vld [vmem:[%s466 + $0x83] sm:$0xff]
      %v1306 = vld [vmem:[%s466 + $0x93] sm:$0xff]
      %v1307 = vld [vmem:[%s466 + $0x9b] sm:$0xff]
      %v1308 = vld [vmem:[%s466 + $0xab] sm:$0xff]
      %v1309 = vld [vmem:[%s466 + $0xb3] sm:$0xff]
      %v1310 = vld [vmem:[%s466 + $0xc3] sm:$0xff]
      %v1311 = vld [vmem:[%s466 + $0xcb] sm:$0xff]
      %v1312 = vld [vmem:[%s466 + $0xdb] sm:$0xff]
      %v1313 = vld [vmem:[%s466 + $0xe3] sm:$0xff]
      %v1314 = vld [vmem:[%s466 + $0xf3] sm:$0xff]
      %v1315 = vld [vmem:[%s466 + $0xfb] sm:$0xff]
      %v1316 = vld [vmem:[%s466 + $0x10b] sm:$0xff]
      %v1317 = vld [vmem:[%s466 + $0x113] sm:$0xff]
      %v1318 = vld [vmem:[%s466 + $0x123] sm:$0xff]
      %v1319 = vld [vmem:[%s466 + $0x12b] sm:$0xff]
      %v1320 = vld [vmem:[%s466 + $0x13b] sm:$0xff]
      %v1321 = vld [vmem:[%s466 + $0x143] sm:$0xff]
      %v1322 = vld [vmem:[%s466 + $0x153] sm:$0xff]
      %v1323 = vld [vmem:[%s466 + $0x15b] sm:$0xff]
      %v1324 = vld [vmem:[%s466 + $0x16b] sm:$0xff]
      %v1325 = vld [vmem:[%s466 + $0x173] sm:$0xff]
      %v1326 = vpack.c.bf16 %v1295, %v1294
      %v1327 = vpack.c.bf16 %v1297, %v1296
      %v1328 = vpack.c.bf16 %v1299, %v1298
      %v1329 = vpack.c.bf16 %v1301, %v1300
      %v1330 = vpack.c.bf16 %v1303, %v1302
      %v1331 = vpack.c.bf16 %v1305, %v1304
      %v1332 = vpack.c.bf16 %v1307, %v1306
      %v1333 = vpack.c.bf16 %v1309, %v1308
      %v1334 = vpack.c.bf16 %v1311, %v1310
      %v1335 = vpack.c.bf16 %v1313, %v1312
      %v1336 = vpack.c.bf16 %v1315, %v1314
      %v1337 = vpack.c.bf16 %v1317, %v1316
      %v1338 = vpack.c.bf16 %v1319, %v1318
      %v1339 = vpack.c.bf16 %v1321, %v1320
      %v1340 = vpack.c.bf16 %v1323, %v1322
      %v1341 = vpack.c.bf16 %v1325, %v1324
      %s1342 = scalar_lea.vmem %s1, 6
      %v1343 = vld [vmem:[%s1342] sm:$0x3]
      %v1345 = vsel %vm334, %v1326, 0
      %v1348 = vsel %vm334, %v1327, 0
      %v1351 = vsel %vm334, %v1328, 0
      %v1354 = vsel %vm334, %v1329, 0
      %v1357 = vsel %vm334, %v1330, 0
      %v1360 = vsel %vm334, %v1331, 0
      %v1363 = vsel %vm334, %v1332, 0
      %v1366 = vsel %vm334, %v1333, 0
      %v1369 = vsel %vm334, %v1334, 0
      %v1372 = vsel %vm334, %v1335, 0
      %v1375 = vsel %vm334, %v1336, 0
      %v1378 = vsel %vm334, %v1337, 0
      %v1381 = vsel %vm334, %v1338, 0
      %v1384 = vsel %vm334, %v1339, 0
      %v1387 = vsel %vm334, %v1340, 0
      %v1390 = vsel %vm334, %v1341, 0
      %v1393 = vsel %vm597, %v1343, 0
      %1395 = vmatpush.bf16.msra.mxu0 0
      %1396 = vmatpush.bf16.msra.mxu0 0
      %1397 = vmatpush.bf16.msra.mxu0 0
      %1398 = vmatpush.bf16.msra.mxu0 0
      %1399 = vmatpush.bf16.msra.mxu0 0
      %1400 = vmatpush.bf16.msra.mxu0 0
      %1401 = vmatpush.bf16.msra.mxu0 0
      %1402 = vmatpush.bf16.msra.mxu0 %v1393
      %1403 = vmatmul.bf16.gmra.mxu0 %v1345
      %v1404 = vpop.f32.mrf.mxu0
      %v1405 = vadd.f32 0.0, %v1404
      %v1406 = vpop.f32.mrf.mxu0
      %v1407 = vadd.f32 0.0, %v1406
      %1408 = vmatmul.bf16.gmra.mxu0 %v1348
      %v1409 = vpop.f32.mrf.mxu0
      %v1410 = vadd.f32 0.0, %v1409
      %v1411 = vpop.f32.mrf.mxu0
      %v1412 = vadd.f32 0.0, %v1411
      %1413 = vmatmul.bf16.gmra.mxu0 %v1351
      %v1414 = vpop.f32.mrf.mxu0
      %v1415 = vadd.f32 0.0, %v1414
      %v1416 = vpop.f32.mrf.mxu0
      %v1417 = vadd.f32 0.0, %v1416
      %1418 = vmatmul.bf16.gmra.mxu0 %v1354
      %v1419 = vpop.f32.mrf.mxu0
      %v1420 = vadd.f32 0.0, %v1419
      %v1421 = vpop.f32.mrf.mxu0
      %v1422 = vadd.f32 0.0, %v1421
      %1423 = vmatmul.bf16.gmra.mxu0 %v1357
      %v1424 = vpop.f32.mrf.mxu0
      %v1425 = vadd.f32 0.0, %v1424
      %v1426 = vpop.f32.mrf.mxu0
      %v1427 = vadd.f32 0.0, %v1426
      %1428 = vmatmul.bf16.gmra.mxu0 %v1360
      %v1429 = vpop.f32.mrf.mxu0
      %v1430 = vadd.f32 0.0, %v1429
      %v1431 = vpop.f32.mrf.mxu0
      %v1432 = vadd.f32 0.0, %v1431
      %1433 = vmatmul.bf16.gmra.mxu0 %v1363
      %v1434 = vpop.f32.mrf.mxu0
      %v1435 = vadd.f32 0.0, %v1434
      %v1436 = vpop.f32.mrf.mxu0
      %v1437 = vadd.f32 0.0, %v1436
      %1438 = vmatmul.bf16.gmra.mxu0 %v1366
      %v1439 = vpop.f32.mrf.mxu0
      %v1440 = vadd.f32 0.0, %v1439
      %v1441 = vpop.f32.mrf.mxu0
      %v1442 = vadd.f32 0.0, %v1441
      %1443 = vmatmul.bf16.gmra.mxu0 %v1369
      %v1444 = vpop.f32.mrf.mxu0
      %v1445 = vadd.f32 0.0, %v1444
      %v1446 = vpop.f32.mrf.mxu0
      %v1447 = vadd.f32 0.0, %v1446
      %1448 = vmatmul.bf16.gmra.mxu0 %v1372
      %v1449 = vpop.f32.mrf.mxu0
      %v1450 = vadd.f32 0.0, %v1449
      %v1451 = vpop.f32.mrf.mxu0
      %v1452 = vadd.f32 0.0, %v1451
      %1453 = vmatmul.bf16.gmra.mxu0 %v1375
      %v1454 = vpop.f32.mrf.mxu0
      %v1455 = vadd.f32 0.0, %v1454
      %v1456 = vpop.f32.mrf.mxu0
      %v1457 = vadd.f32 0.0, %v1456
      %1458 = vmatmul.bf16.gmra.mxu0 %v1378
      %v1459 = vpop.f32.mrf.mxu0
      %v1460 = vadd.f32 0.0, %v1459
      %v1461 = vpop.f32.mrf.mxu0
      %v1462 = vadd.f32 0.0, %v1461
      %1463 = vmatmul.bf16.gmra.mxu0 %v1381
      %v1464 = vpop.f32.mrf.mxu0
      %v1465 = vadd.f32 0.0, %v1464
      %v1466 = vpop.f32.mrf.mxu0
      %v1467 = vadd.f32 0.0, %v1466
      %1468 = vmatmul.bf16.gmra.mxu0 %v1384
      %v1469 = vpop.f32.mrf.mxu0
      %v1470 = vadd.f32 0.0, %v1469
      %v1471 = vpop.f32.mrf.mxu0
      %v1472 = vadd.f32 0.0, %v1471
      %1473 = vmatmul.bf16.gmra.mxu0 %v1387
      %v1474 = vpop.f32.mrf.mxu0
      %v1475 = vadd.f32 0.0, %v1474
      %v1476 = vpop.f32.mrf.mxu0
      %v1477 = vadd.f32 0.0, %v1476
      %1478 = vmatmul.bf16.gmra.mxu0 %v1390
      %v1479 = vpop.f32.mrf.mxu0
      %v1480 = vadd.f32 0.0, %v1479
      %v1481 = vpop.f32.mrf.mxu0
      %v1482 = vadd.f32 0.0, %v1481
      %1483 = vdwg.mxu0
      %v1484 = vld [vmem:[#allocation4] sm:$0xff]
      %v1485 = vld [vmem:[#allocation4 + $0x8] sm:$0xff]
      %v1486 = vld [vmem:[#allocation4 + $0x10] sm:$0xff]
      %v1487 = vld [vmem:[#allocation4 + $0x18] sm:$0xff]
      %v1488 = vld [vmem:[#allocation4 + $0x20] sm:$0xff]
      %v1489 = vld [vmem:[#allocation4 + $0x28] sm:$0xff]
      %v1490 = vld [vmem:[#allocation4 + $0x30] sm:$0xff]
      %v1491 = vld [vmem:[#allocation4 + $0x38] sm:$0xff]
      %v1492 = vld [vmem:[#allocation4 + $0x40] sm:$0xff]
      %v1493 = vld [vmem:[#allocation4 + $0x48] sm:$0xff]
      %v1494 = vld [vmem:[#allocation4 + $0x50] sm:$0xff]
      %v1495 = vld [vmem:[#allocation4 + $0x58] sm:$0xff]
      %v1496 = vld [vmem:[#allocation4 + $0x60] sm:$0xff]
      %v1497 = vld [vmem:[#allocation4 + $0x68] sm:$0xff]
      %v1498 = vld [vmem:[#allocation4 + $0x70] sm:$0xff]
      %v1499 = vld [vmem:[#allocation4 + $0x78] sm:$0xff]
      %v1500 = vld [vmem:[#allocation4 + $0x80] sm:$0xff]
      %v1501 = vld [vmem:[#allocation4 + $0x88] sm:$0xff]
      %v1502 = vld [vmem:[#allocation4 + $0x90] sm:$0xff]
      %v1503 = vld [vmem:[#allocation4 + $0x98] sm:$0xff]
      %v1504 = vld [vmem:[#allocation4 + $0xa0] sm:$0xff]
      %v1505 = vld [vmem:[#allocation4 + $0xa8] sm:$0xff]
      %v1506 = vld [vmem:[#allocation4 + $0xb0] sm:$0xff]
      %v1507 = vld [vmem:[#allocation4 + $0xb8] sm:$0xff]
      %v1508 = vld [vmem:[#allocation4 + $0xc0] sm:$0xff]
      %v1509 = vld [vmem:[#allocation4 + $0xc8] sm:$0xff]
      %v1510 = vld [vmem:[#allocation4 + $0xd0] sm:$0xff]
      %v1511 = vld [vmem:[#allocation4 + $0xd8] sm:$0xff]
      %v1512 = vld [vmem:[#allocation4 + $0xe0] sm:$0xff]
      %v1513 = vld [vmem:[#allocation4 + $0xe8] sm:$0xff]
      %v1514 = vld [vmem:[#allocation4 + $0xf0] sm:$0xff]
      %v1515 = vld [vmem:[#allocation4 + $0xf8] sm:$0xff]
      %v1516 = vadd.f32 %v1484, %v1405
      %v1517 = vadd.f32 %v1485, %v1407
      %v1518 = vadd.f32 %v1486, %v1410
      %v1519 = vadd.f32 %v1487, %v1412
      %v1520 = vadd.f32 %v1488, %v1415
      %v1521 = vadd.f32 %v1489, %v1417
      %v1522 = vadd.f32 %v1490, %v1420
      %v1523 = vadd.f32 %v1491, %v1422
      %v1524 = vadd.f32 %v1492, %v1425
      %v1525 = vadd.f32 %v1493, %v1427
      %v1526 = vadd.f32 %v1494, %v1430
      %v1527 = vadd.f32 %v1495, %v1432
      %v1528 = vadd.f32 %v1496, %v1435
      %v1529 = vadd.f32 %v1497, %v1437
      %v1530 = vadd.f32 %v1498, %v1440
      %v1531 = vadd.f32 %v1499, %v1442
      %v1532 = vadd.f32 %v1500, %v1445
      %v1533 = vadd.f32 %v1501, %v1447
      %v1534 = vadd.f32 %v1502, %v1450
      %v1535 = vadd.f32 %v1503, %v1452
      %v1536 = vadd.f32 %v1504, %v1455
      %v1537 = vadd.f32 %v1505, %v1457
      %v1538 = vadd.f32 %v1506, %v1460
      %v1539 = vadd.f32 %v1507, %v1462
      %v1540 = vadd.f32 %v1508, %v1465
      %v1541 = vadd.f32 %v1509, %v1467
      %v1542 = vadd.f32 %v1510, %v1470
      %v1543 = vadd.f32 %v1511, %v1472
      %v1544 = vadd.f32 %v1512, %v1475
      %v1545 = vadd.f32 %v1513, %v1477
      %v1546 = vadd.f32 %v1514, %v1480
      %v1547 = vadd.f32 %v1515, %v1482
      %1548 = vst.msk [vmem:[#allocation4] sm:$0xff] %vm334, %v1516
      %1549 = vst.msk [vmem:[#allocation4 + $0x8] sm:$0xff] %vm334, %v1517
      %1550 = vst.msk [vmem:[#allocation4 + $0x10] sm:$0xff] %vm334, %v1518
      %1551 = vst.msk [vmem:[#allocation4 + $0x18] sm:$0xff] %vm334, %v1519
      %1552 = vst.msk [vmem:[#allocation4 + $0x20] sm:$0xff] %vm334, %v1520
      %1553 = vst.msk [vmem:[#allocation4 + $0x28] sm:$0xff] %vm334, %v1521
      %1554 = vst.msk [vmem:[#allocation4 + $0x30] sm:$0xff] %vm334, %v1522
      %1555 = vst.msk [vmem:[#allocation4 + $0x38] sm:$0xff] %vm334, %v1523
      %1556 = vst.msk [vmem:[#allocation4 + $0x40] sm:$0xff] %vm334, %v1524
      %1557 = vst.msk [vmem:[#allocation4 + $0x48] sm:$0xff] %vm334, %v1525
      %1558 = vst.msk [vmem:[#allocation4 + $0x50] sm:$0xff] %vm334, %v1526
      %1559 = vst.msk [vmem:[#allocation4 + $0x58] sm:$0xff] %vm334, %v1527
      %1560 = vst.msk [vmem:[#allocation4 + $0x60] sm:$0xff] %vm334, %v1528
      %1561 = vst.msk [vmem:[#allocation4 + $0x68] sm:$0xff] %vm334, %v1529
      %1562 = vst.msk [vmem:[#allocation4 + $0x70] sm:$0xff] %vm334, %v1530
      %1563 = vst.msk [vmem:[#allocation4 + $0x78] sm:$0xff] %vm334, %v1531
      %1564 = vst.msk [vmem:[#allocation4 + $0x80] sm:$0xff] %vm334, %v1532
      %1565 = vst.msk [vmem:[#allocation4 + $0x88] sm:$0xff] %vm334, %v1533
      %1566 = vst.msk [vmem:[#allocation4 + $0x90] sm:$0xff] %vm334, %v1534
      %1567 = vst.msk [vmem:[#allocation4 + $0x98] sm:$0xff] %vm334, %v1535
      %1568 = vst.msk [vmem:[#allocation4 + $0xa0] sm:$0xff] %vm334, %v1536
      %1569 = vst.msk [vmem:[#allocation4 + $0xa8] sm:$0xff] %vm334, %v1537
      %1570 = vst.msk [vmem:[#allocation4 + $0xb0] sm:$0xff] %vm334, %v1538
      %1571 = vst.msk [vmem:[#allocation4 + $0xb8] sm:$0xff] %vm334, %v1539
      %1572 = vst.msk [vmem:[#allocation4 + $0xc0] sm:$0xff] %vm334, %v1540
      %1573 = vst.msk [vmem:[#allocation4 + $0xc8] sm:$0xff] %vm334, %v1541
      %1574 = vst.msk [vmem:[#allocation4 + $0xd0] sm:$0xff] %vm334, %v1542
      %1575 = vst.msk [vmem:[#allocation4 + $0xd8] sm:$0xff] %vm334, %v1543
      %1576 = vst.msk [vmem:[#allocation4 + $0xe0] sm:$0xff] %vm334, %v1544
      %1577 = vst.msk [vmem:[#allocation4 + $0xe8] sm:$0xff] %vm334, %v1545
      %1578 = vst.msk [vmem:[#allocation4 + $0xf0] sm:$0xff] %vm334, %v1546
      %1579 = vst.msk [vmem:[#allocation4 + $0xf8] sm:$0xff] %vm334, %v1547
      %s1580 = scalar_lea.vmem [#allocation2], 72
      %v1581 = vld [vmem:[%s1580 + $0x2] sm:$0xff]
      %v1582 = vld [vmem:[%s1580 + $0xa] sm:$0xff]
      %v1583 = vld [vmem:[%s1580 + $0x1a] sm:$0xff]
      %v1584 = vld [vmem:[%s1580 + $0x22] sm:$0xff]
      %v1585 = vld [vmem:[%s1580 + $0x32] sm:$0xff]
      %v1586 = vld [vmem:[%s1580 + $0x3a] sm:$0xff]
      %v1587 = vld [vmem:[%s1580 + $0x4a] sm:$0xff]
      %v1588 = vld [vmem:[%s1580 + $0x52] sm:$0xff]
      %v1589 = vld [vmem:[%s1580 + $0x62] sm:$0xff]
      %v1590 = vld [vmem:[%s1580 + $0x6a] sm:$0xff]
      %v1591 = vld [vmem:[%s1580 + $0x7a] sm:$0xff]
      %v1592 = vld [vmem:[%s1580 + $0x82] sm:$0xff]
      %v1593 = vld [vmem:[%s1580 + $0x92] sm:$0xff]
      %v1594 = vld [vmem:[%s1580 + $0x9a] sm:$0xff]
      %v1595 = vld [vmem:[%s1580 + $0xaa] sm:$0xff]
      %v1596 = vld [vmem:[%s1580 + $0xb2] sm:$0xff]
      %v1597 = vld [vmem:[%s1580 + $0xc2] sm:$0xff]
      %v1598 = vld [vmem:[%s1580 + $0xca] sm:$0xff]
      %v1599 = vld [vmem:[%s1580 + $0xda] sm:$0xff]
      %v1600 = vld [vmem:[%s1580 + $0xe2] sm:$0xff]
      %v1601 = vld [vmem:[%s1580 + $0xf2] sm:$0xff]
      %v1602 = vld [vmem:[%s1580 + $0xfa] sm:$0xff]
      %v1603 = vld [vmem:[%s1580 + $0x10a] sm:$0xff]
      %v1604 = vld [vmem:[%s1580 + $0x112] sm:$0xff]
      %v1605 = vld [vmem:[%s1580 + $0x122] sm:$0xff]
      %v1606 = vld [vmem:[%s1580 + $0x12a] sm:$0xff]
      %v1607 = vld [vmem:[%s1580 + $0x13a] sm:$0xff]
      %v1608 = vld [vmem:[%s1580 + $0x142] sm:$0xff]
      %v1609 = vld [vmem:[%s1580 + $0x152] sm:$0xff]
      %v1610 = vld [vmem:[%s1580 + $0x15a] sm:$0xff]
      %v1611 = vld [vmem:[%s1580 + $0x16a] sm:$0xff]
      %v1612 = vld [vmem:[%s1580 + $0x172] sm:$0xff]
      %v1613 = vpack.c.bf16 %v1582, %v1581
      %v1614 = vpack.c.bf16 %v1584, %v1583
      %v1615 = vpack.c.bf16 %v1586, %v1585
      %v1616 = vpack.c.bf16 %v1588, %v1587
      %v1617 = vpack.c.bf16 %v1590, %v1589
      %v1618 = vpack.c.bf16 %v1592, %v1591
      %v1619 = vpack.c.bf16 %v1594, %v1593
      %v1620 = vpack.c.bf16 %v1596, %v1595
      %v1621 = vpack.c.bf16 %v1598, %v1597
      %v1622 = vpack.c.bf16 %v1600, %v1599
      %v1623 = vpack.c.bf16 %v1602, %v1601
      %v1624 = vpack.c.bf16 %v1604, %v1603
      %v1625 = vpack.c.bf16 %v1606, %v1605
      %v1626 = vpack.c.bf16 %v1608, %v1607
      %v1627 = vpack.c.bf16 %v1610, %v1609
      %v1628 = vpack.c.bf16 %v1612, %v1611
      %s1629 = scalar_lea.vmem %s1, 8
      %v1630 = vld [vmem:[%s1629] sm:$0x3]
      %v1632 = vsel %vm334, %v1613, 0
      %v1635 = vsel %vm334, %v1614, 0
      %v1638 = vsel %vm334, %v1615, 0
      %v1641 = vsel %vm334, %v1616, 0
      %v1644 = vsel %vm334, %v1617, 0
      %v1647 = vsel %vm334, %v1618, 0
      %v1650 = vsel %vm334, %v1619, 0
      %v1653 = vsel %vm334, %v1620, 0
      %v1656 = vsel %vm334, %v1621, 0
      %v1659 = vsel %vm334, %v1622, 0
      %v1662 = vsel %vm334, %v1623, 0
      %v1665 = vsel %vm334, %v1624, 0
      %v1668 = vsel %vm334, %v1625, 0
      %v1671 = vsel %vm334, %v1626, 0
      %v1674 = vsel %vm334, %v1627, 0
      %v1677 = vsel %vm334, %v1628, 0
      %v1680 = vsel %vm597, %v1630, 0
      %1682 = vmatpush.bf16.msra.mxu0 0
      %1683 = vmatpush.bf16.msra.mxu0 0
      %1684 = vmatpush.bf16.msra.mxu0 0
      %1685 = vmatpush.bf16.msra.mxu0 0
      %1686 = vmatpush.bf16.msra.mxu0 0
      %1687 = vmatpush.bf16.msra.mxu0 0
      %1688 = vmatpush.bf16.msra.mxu0 0
      %1689 = vmatpush.bf16.msra.mxu0 %v1680
      %1690 = vmatmul.bf16.gmra.mxu0 %v1632
      %v1691 = vpop.f32.mrf.mxu0
      %v1692 = vadd.f32 0.0, %v1691
      %v1693 = vpop.f32.mrf.mxu0
      %v1694 = vadd.f32 0.0, %v1693
      %1695 = vmatmul.bf16.gmra.mxu0 %v1635
      %v1696 = vpop.f32.mrf.mxu0
      %v1697 = vadd.f32 0.0, %v1696
      %v1698 = vpop.f32.mrf.mxu0
      %v1699 = vadd.f32 0.0, %v1698
      %1700 = vmatmul.bf16.gmra.mxu0 %v1638
      %v1701 = vpop.f32.mrf.mxu0
      %v1702 = vadd.f32 0.0, %v1701
      %v1703 = vpop.f32.mrf.mxu0
      %v1704 = vadd.f32 0.0, %v1703
      %1705 = vmatmul.bf16.gmra.mxu0 %v1641
      %v1706 = vpop.f32.mrf.mxu0
      %v1707 = vadd.f32 0.0, %v1706
      %v1708 = vpop.f32.mrf.mxu0
      %v1709 = vadd.f32 0.0, %v1708
      %1710 = vmatmul.bf16.gmra.mxu0 %v1644
      %v1711 = vpop.f32.mrf.mxu0
      %v1712 = vadd.f32 0.0, %v1711
      %v1713 = vpop.f32.mrf.mxu0
      %v1714 = vadd.f32 0.0, %v1713
      %1715 = vmatmul.bf16.gmra.mxu0 %v1647
      %v1716 = vpop.f32.mrf.mxu0
      %v1717 = vadd.f32 0.0, %v1716
      %v1718 = vpop.f32.mrf.mxu0
      %v1719 = vadd.f32 0.0, %v1718
      %1720 = vmatmul.bf16.gmra.mxu0 %v1650
      %v1721 = vpop.f32.mrf.mxu0
      %v1722 = vadd.f32 0.0, %v1721
      %v1723 = vpop.f32.mrf.mxu0
      %v1724 = vadd.f32 0.0, %v1723
      %1725 = vmatmul.bf16.gmra.mxu0 %v1653
      %v1726 = vpop.f32.mrf.mxu0
      %v1727 = vadd.f32 0.0, %v1726
      %v1728 = vpop.f32.mrf.mxu0
      %v1729 = vadd.f32 0.0, %v1728
      %1730 = vmatmul.bf16.gmra.mxu0 %v1656
      %v1731 = vpop.f32.mrf.mxu0
      %v1732 = vadd.f32 0.0, %v1731
      %v1733 = vpop.f32.mrf.mxu0
      %v1734 = vadd.f32 0.0, %v1733
      %1735 = vmatmul.bf16.gmra.mxu0 %v1659
      %v1736 = vpop.f32.mrf.mxu0
      %v1737 = vadd.f32 0.0, %v1736
      %v1738 = vpop.f32.mrf.mxu0
      %v1739 = vadd.f32 0.0, %v1738
      %1740 = vmatmul.bf16.gmra.mxu0 %v1662
      %v1741 = vpop.f32.mrf.mxu0
      %v1742 = vadd.f32 0.0, %v1741
      %v1743 = vpop.f32.mrf.mxu0
      %v1744 = vadd.f32 0.0, %v1743
      %1745 = vmatmul.bf16.gmra.mxu0 %v1665
      %v1746 = vpop.f32.mrf.mxu0
      %v1747 = vadd.f32 0.0, %v1746
      %v1748 = vpop.f32.mrf.mxu0
      %v1749 = vadd.f32 0.0, %v1748
      %1750 = vmatmul.bf16.gmra.mxu0 %v1668
      %v1751 = vpop.f32.mrf.mxu0
      %v1752 = vadd.f32 0.0, %v1751
      %v1753 = vpop.f32.mrf.mxu0
      %v1754 = vadd.f32 0.0, %v1753
      %1755 = vmatmul.bf16.gmra.mxu0 %v1671
      %v1756 = vpop.f32.mrf.mxu0
      %v1757 = vadd.f32 0.0, %v1756
      %v1758 = vpop.f32.mrf.mxu0
      %v1759 = vadd.f32 0.0, %v1758
      %1760 = vmatmul.bf16.gmra.mxu0 %v1674
      %v1761 = vpop.f32.mrf.mxu0
      %v1762 = vadd.f32 0.0, %v1761
      %v1763 = vpop.f32.mrf.mxu0
      %v1764 = vadd.f32 0.0, %v1763
      %1765 = vmatmul.bf16.gmra.mxu0 %v1677
      %v1766 = vpop.f32.mrf.mxu0
      %v1767 = vadd.f32 0.0, %v1766
      %v1768 = vpop.f32.mrf.mxu0
      %v1769 = vadd.f32 0.0, %v1768
      %1770 = vdwg.mxu0
      %v1771 = vld [vmem:[#allocation4] sm:$0xff]
      %v1772 = vld [vmem:[#allocation4 + $0x8] sm:$0xff]
      %v1773 = vld [vmem:[#allocation4 + $0x10] sm:$0xff]
      %v1774 = vld [vmem:[#allocation4 + $0x18] sm:$0xff]
      %v1775 = vld [vmem:[#allocation4 + $0x20] sm:$0xff]
      %v1776 = vld [vmem:[#allocation4 + $0x28] sm:$0xff]
      %v1777 = vld [vmem:[#allocation4 + $0x30] sm:$0xff]
      %v1778 = vld [vmem:[#allocation4 + $0x38] sm:$0xff]
      %v1779 = vld [vmem:[#allocation4 + $0x40] sm:$0xff]
      %v1780 = vld [vmem:[#allocation4 + $0x48] sm:$0xff]
      %v1781 = vld [vmem:[#allocation4 + $0x50] sm:$0xff]
      %v1782 = vld [vmem:[#allocation4 + $0x58] sm:$0xff]
      %v1783 = vld [vmem:[#allocation4 + $0x60] sm:$0xff]
      %v1784 = vld [vmem:[#allocation4 + $0x68] sm:$0xff]
      %v1785 = vld [vmem:[#allocation4 + $0x70] sm:$0xff]
      %v1786 = vld [vmem:[#allocation4 + $0x78] sm:$0xff]
      %v1787 = vld [vmem:[#allocation4 + $0x80] sm:$0xff]
      %v1788 = vld [vmem:[#allocation4 + $0x88] sm:$0xff]
      %v1789 = vld [vmem:[#allocation4 + $0x90] sm:$0xff]
      %v1790 = vld [vmem:[#allocation4 + $0x98] sm:$0xff]
      %v1791 = vld [vmem:[#allocation4 + $0xa0] sm:$0xff]
      %v1792 = vld [vmem:[#allocation4 + $0xa8] sm:$0xff]
      %v1793 = vld [vmem:[#allocation4 + $0xb0] sm:$0xff]
      %v1794 = vld [vmem:[#allocation4 + $0xb8] sm:$0xff]
      %v1795 = vld [vmem:[#allocation4 + $0xc0] sm:$0xff]
      %v1796 = vld [vmem:[#allocation4 + $0xc8] sm:$0xff]
      %v1797 = vld [vmem:[#allocation4 + $0xd0] sm:$0xff]
      %v1798 = vld [vmem:[#allocation4 + $0xd8] sm:$0xff]
      %v1799 = vld [vmem:[#allocation4 + $0xe0] sm:$0xff]
      %v1800 = vld [vmem:[#allocation4 + $0xe8] sm:$0xff]
      %v1801 = vld [vmem:[#allocation4 + $0xf0] sm:$0xff]
      %v1802 = vld [vmem:[#allocation4 + $0xf8] sm:$0xff]
      %v1803 = vadd.f32 %v1771, %v1692
      %v1804 = vadd.f32 %v1772, %v1694
      %v1805 = vadd.f32 %v1773, %v1697
      %v1806 = vadd.f32 %v1774, %v1699
      %v1807 = vadd.f32 %v1775, %v1702
      %v1808 = vadd.f32 %v1776, %v1704
      %v1809 = vadd.f32 %v1777, %v1707
      %v1810 = vadd.f32 %v1778, %v1709
      %v1811 = vadd.f32 %v1779, %v1712
      %v1812 = vadd.f32 %v1780, %v1714
      %v1813 = vadd.f32 %v1781, %v1717
      %v1814 = vadd.f32 %v1782, %v1719
      %v1815 = vadd.f32 %v1783, %v1722
      %v1816 = vadd.f32 %v1784, %v1724
      %v1817 = vadd.f32 %v1785, %v1727
      %v1818 = vadd.f32 %v1786, %v1729
      %v1819 = vadd.f32 %v1787, %v1732
      %v1820 = vadd.f32 %v1788, %v1734
      %v1821 = vadd.f32 %v1789, %v1737
      %v1822 = vadd.f32 %v1790, %v1739
      %v1823 = vadd.f32 %v1791, %v1742
      %v1824 = vadd.f32 %v1792, %v1744
      %v1825 = vadd.f32 %v1793, %v1747
      %v1826 = vadd.f32 %v1794, %v1749
      %v1827 = vadd.f32 %v1795, %v1752
      %v1828 = vadd.f32 %v1796, %v1754
      %v1829 = vadd.f32 %v1797, %v1757
      %v1830 = vadd.f32 %v1798, %v1759
      %v1831 = vadd.f32 %v1799, %v1762
      %v1832 = vadd.f32 %v1800, %v1764
      %v1833 = vadd.f32 %v1801, %v1767
      %v1834 = vadd.f32 %v1802, %v1769
      %1835 = vst.msk [vmem:[#allocation4] sm:$0xff] %vm334, %v1803
      %1836 = vst.msk [vmem:[#allocation4 + $0x8] sm:$0xff] %vm334, %v1804
      %1837 = vst.msk [vmem:[#allocation4 + $0x10] sm:$0xff] %vm334, %v1805
      %1838 = vst.msk [vmem:[#allocation4 + $0x18] sm:$0xff] %vm334, %v1806
      %1839 = vst.msk [vmem:[#allocation4 + $0x20] sm:$0xff] %vm334, %v1807
      %1840 = vst.msk [vmem:[#allocation4 + $0x28] sm:$0xff] %vm334, %v1808
      %1841 = vst.msk [vmem:[#allocation4 + $0x30] sm:$0xff] %vm334, %v1809
      %1842 = vst.msk [vmem:[#allocation4 + $0x38] sm:$0xff] %vm334, %v1810
      %1843 = vst.msk [vmem:[#allocation4 + $0x40] sm:$0xff] %vm334, %v1811
      %1844 = vst.msk [vmem:[#allocation4 + $0x48] sm:$0xff] %vm334, %v1812
      %1845 = vst.msk [vmem:[#allocation4 + $0x50] sm:$0xff] %vm334, %v1813
      %1846 = vst.msk [vmem:[#allocation4 + $0x58] sm:$0xff] %vm334, %v1814
      %1847 = vst.msk [vmem:[#allocation4 + $0x60] sm:$0xff] %vm334, %v1815
      %1848 = vst.msk [vmem:[#allocation4 + $0x68] sm:$0xff] %vm334, %v1816
      %1849 = vst.msk [vmem:[#allocation4 + $0x70] sm:$0xff] %vm334, %v1817
      %1850 = vst.msk [vmem:[#allocation4 + $0x78] sm:$0xff] %vm334, %v1818
      %1851 = vst.msk [vmem:[#allocation4 + $0x80] sm:$0xff] %vm334, %v1819
      %1852 = vst.msk [vmem:[#allocation4 + $0x88] sm:$0xff] %vm334, %v1820
      %1853 = vst.msk [vmem:[#allocation4 + $0x90] sm:$0xff] %vm334, %v1821
      %1854 = vst.msk [vmem:[#allocation4 + $0x98] sm:$0xff] %vm334, %v1822
      %1855 = vst.msk [vmem:[#allocation4 + $0xa0] sm:$0xff] %vm334, %v1823
      %1856 = vst.msk [vmem:[#allocation4 + $0xa8] sm:$0xff] %vm334, %v1824
      %1857 = vst.msk [vmem:[#allocation4 + $0xb0] sm:$0xff] %vm334, %v1825
      %1858 = vst.msk [vmem:[#allocation4 + $0xb8] sm:$0xff] %vm334, %v1826
      %1859 = vst.msk [vmem:[#allocation4 + $0xc0] sm:$0xff] %vm334, %v1827
      %1860 = vst.msk [vmem:[#allocation4 + $0xc8] sm:$0xff] %vm334, %v1828
      %1861 = vst.msk [vmem:[#allocation4 + $0xd0] sm:$0xff] %vm334, %v1829
      %1862 = vst.msk [vmem:[#allocation4 + $0xd8] sm:$0xff] %vm334, %v1830
      %1863 = vst.msk [vmem:[#allocation4 + $0xe0] sm:$0xff] %vm334, %v1831
      %1864 = vst.msk [vmem:[#allocation4 + $0xe8] sm:$0xff] %vm334, %v1832
      %1865 = vst.msk [vmem:[#allocation4 + $0xf0] sm:$0xff] %vm334, %v1833
      %1866 = vst.msk [vmem:[#allocation4 + $0xf8] sm:$0xff] %vm334, %v1834
      %v1867 = vld [vmem:[#allocation4] sm:$0xff]
      %v1868 = vld [vmem:[#allocation4 + $0x8] sm:$0xff]
      %v1869 = vld [vmem:[#allocation4 + $0x10] sm:$0xff]
      %v1870 = vld [vmem:[#allocation4 + $0x18] sm:$0xff]
      %v1871 = vld [vmem:[#allocation4 + $0x20] sm:$0xff]
      %v1872 = vld [vmem:[#allocation4 + $0x28] sm:$0xff]
      %v1873 = vld [vmem:[#allocation4 + $0x30] sm:$0xff]
      %v1874 = vld [vmem:[#allocation4 + $0x38] sm:$0xff]
      %v1875 = vld [vmem:[#allocation4 + $0x40] sm:$0xff]
      %v1876 = vld [vmem:[#allocation4 + $0x48] sm:$0xff]
      %v1877 = vld [vmem:[#allocation4 + $0x50] sm:$0xff]
      %v1878 = vld [vmem:[#allocation4 + $0x58] sm:$0xff]
      %v1879 = vld [vmem:[#allocation4 + $0x60] sm:$0xff]
      %v1880 = vld [vmem:[#allocation4 + $0x68] sm:$0xff]
      %v1881 = vld [vmem:[#allocation4 + $0x70] sm:$0xff]
      %v1882 = vld [vmem:[#allocation4 + $0x78] sm:$0xff]
      %v1883 = vld [vmem:[#allocation4 + $0x80] sm:$0xff]
      %v1884 = vld [vmem:[#allocation4 + $0x88] sm:$0xff]
      %v1885 = vld [vmem:[#allocation4 + $0x90] sm:$0xff]
      %v1886 = vld [vmem:[#allocation4 + $0x98] sm:$0xff]
      %v1887 = vld [vmem:[#allocation4 + $0xa0] sm:$0xff]
      %v1888 = vld [vmem:[#allocation4 + $0xa8] sm:$0xff]
      %v1889 = vld [vmem:[#allocation4 + $0xb0] sm:$0xff]
      %v1890 = vld [vmem:[#allocation4 + $0xb8] sm:$0xff]
      %v1891 = vld [vmem:[#allocation4 + $0xc0] sm:$0xff]
      %v1892 = vld [vmem:[#allocation4 + $0xc8] sm:$0xff]
      %v1893 = vld [vmem:[#allocation4 + $0xd0] sm:$0xff]
      %v1894 = vld [vmem:[#allocation4 + $0xd8] sm:$0xff]
      %v1895 = vld [vmem:[#allocation4 + $0xe0] sm:$0xff]
      %v1896 = vld [vmem:[#allocation4 + $0xe8] sm:$0xff]
      %v1897 = vld [vmem:[#allocation4 + $0xf0] sm:$0xff]
      %v1898 = vld [vmem:[#allocation4 + $0xf8] sm:$0xff]
      %v1899 = vld [vmem:[%s2] sm:$0x1]
      %v1901 = vperm.slane %v1899, 0
      %v1903 = vadd.f32 %v1867, %v1901
      %v1904 = vadd.f32 %v1868, %v1901
      %v1905 = vadd.f32 %v1869, %v1901
      %v1906 = vadd.f32 %v1870, %v1901
      %v1907 = vadd.f32 %v1871, %v1901
      %v1908 = vadd.f32 %v1872, %v1901
      %v1909 = vadd.f32 %v1873, %v1901
      %v1910 = vadd.f32 %v1874, %v1901
      %v1911 = vadd.f32 %v1875, %v1901
      %v1912 = vadd.f32 %v1876, %v1901
      %v1913 = vadd.f32 %v1877, %v1901
      %v1914 = vadd.f32 %v1878, %v1901
      %v1915 = vadd.f32 %v1879, %v1901
      %v1916 = vadd.f32 %v1880, %v1901
      %v1917 = vadd.f32 %v1881, %v1901
      %v1918 = vadd.f32 %v1882, %v1901
      %v1919 = vadd.f32 %v1883, %v1901
      %v1920 = vadd.f32 %v1884, %v1901
      %v1921 = vadd.f32 %v1885, %v1901
      %v1922 = vadd.f32 %v1886, %v1901
      %v1923 = vadd.f32 %v1887, %v1901
      %v1924 = vadd.f32 %v1888, %v1901
      %v1925 = vadd.f32 %v1889, %v1901
      %v1926 = vadd.f32 %v1890, %v1901
      %v1927 = vadd.f32 %v1891, %v1901
      %v1928 = vadd.f32 %v1892, %v1901
      %v1929 = vadd.f32 %v1893, %v1901
      %v1930 = vadd.f32 %v1894, %v1901
      %v1931 = vadd.f32 %v1895, %v1901
      %v1932 = vadd.f32 %v1896, %v1901
      %v1933 = vadd.f32 %v1897, %v1901
      %v1934 = vadd.f32 %v1898, %v1901
      %v1935 = vmax.f32 %v1903, 0.0
      %v1936 = vmax.f32 %v1904, 0.0
      %v1937 = vmax.f32 %v1905, 0.0
      %v1938 = vmax.f32 %v1906, 0.0
      %v1939 = vmax.f32 %v1907, 0.0
      %v1940 = vmax.f32 %v1908, 0.0
      %v1941 = vmax.f32 %v1909, 0.0
      %v1942 = vmax.f32 %v1910, 0.0
      %v1943 = vmax.f32 %v1911, 0.0
      %v1944 = vmax.f32 %v1912, 0.0
      %v1945 = vmax.f32 %v1913, 0.0
      %v1946 = vmax.f32 %v1914, 0.0
      %v1947 = vmax.f32 %v1915, 0.0
      %v1948 = vmax.f32 %v1916, 0.0
      %v1949 = vmax.f32 %v1917, 0.0
      %v1950 = vmax.f32 %v1918, 0.0
      %v1951 = vmax.f32 %v1919, 0.0
      %v1952 = vmax.f32 %v1920, 0.0
      %v1953 = vmax.f32 %v1921, 0.0
      %v1954 = vmax.f32 %v1922, 0.0
      %v1955 = vmax.f32 %v1923, 0.0
      %v1956 = vmax.f32 %v1924, 0.0
      %v1957 = vmax.f32 %v1925, 0.0
      %v1958 = vmax.f32 %v1926, 0.0
      %v1959 = vmax.f32 %v1927, 0.0
      %v1960 = vmax.f32 %v1928, 0.0
      %v1961 = vmax.f32 %v1929, 0.0
      %v1962 = vmax.f32 %v1930, 0.0
      %v1963 = vmax.f32 %v1931, 0.0
      %v1964 = vmax.f32 %v1932, 0.0
      %v1965 = vmax.f32 %v1933, 0.0
      %v1966 = vmax.f32 %v1934, 0.0
      %s1967 = scalar_lea.vmem [#allocation3], 24
      %1968 = vst.msk [vmem:[%s1967 + $0x1] sm:$0xff] %vm334, %v1935
      %1969 = vst.msk [vmem:[%s1967 + $0x9] sm:$0xff] %vm334, %v1936
      %1970 = vst.msk [vmem:[%s1967 + $0x19] sm:$0xff] %vm334, %v1937
      %1971 = vst.msk [vmem:[%s1967 + $0x21] sm:$0xff] %vm334, %v1938
      %1972 = vst.msk [vmem:[%s1967 + $0x31] sm:$0xff] %vm334, %v1939
      %1973 = vst.msk [vmem:[%s1967 + $0x39] sm:$0xff] %vm334, %v1940
      %1974 = vst.msk [vmem:[%s1967 + $0x49] sm:$0xff] %vm334, %v1941
      %1975 = vst.msk [vmem:[%s1967 + $0x51] sm:$0xff] %vm334, %v1942
      %1976 = vst.msk [vmem:[%s1967 + $0x61] sm:$0xff] %vm334, %v1943
      %1977 = vst.msk [vmem:[%s1967 + $0x69] sm:$0xff] %vm334, %v1944
      %1978 = vst.msk [vmem:[%s1967 + $0x79] sm:$0xff] %vm334, %v1945
      %1979 = vst.msk [vmem:[%s1967 + $0x81] sm:$0xff] %vm334, %v1946
      %1980 = vst.msk [vmem:[%s1967 + $0x91] sm:$0xff] %vm334, %v1947
      %1981 = vst.msk [vmem:[%s1967 + $0x99] sm:$0xff] %vm334, %v1948
      %1982 = vst.msk [vmem:[%s1967 + $0xa9] sm:$0xff] %vm334, %v1949
      %1983 = vst.msk [vmem:[%s1967 + $0xb1] sm:$0xff] %vm334, %v1950
      %1984 = vst.msk [vmem:[%s1967 + $0xc1] sm:$0xff] %vm334, %v1951
      %1985 = vst.msk [vmem:[%s1967 + $0xc9] sm:$0xff] %vm334, %v1952
      %1986 = vst.msk [vmem:[%s1967 + $0xd9] sm:$0xff] %vm334, %v1953
      %1987 = vst.msk [vmem:[%s1967 + $0xe1] sm:$0xff] %vm334, %v1954
      %1988 = vst.msk [vmem:[%s1967 + $0xf1] sm:$0xff] %vm334, %v1955
      %1989 = vst.msk [vmem:[%s1967 + $0xf9] sm:$0xff] %vm334, %v1956
      %1990 = vst.msk [vmem:[%s1967 + $0x109] sm:$0xff] %vm334, %v1957
      %1991 = vst.msk [vmem:[%s1967 + $0x111] sm:$0xff] %vm334, %v1958
      %1992 = vst.msk [vmem:[%s1967 + $0x121] sm:$0xff] %vm334, %v1959
      %1993 = vst.msk [vmem:[%s1967 + $0x129] sm:$0xff] %vm334, %v1960
      %1994 = vst.msk [vmem:[%s1967 + $0x139] sm:$0xff] %vm334, %v1961
      %1995 = vst.msk [vmem:[%s1967 + $0x141] sm:$0xff] %vm334, %v1962
      %1996 = vst.msk [vmem:[%s1967 + $0x151] sm:$0xff] %vm334, %v1963
      %1997 = vst.msk [vmem:[%s1967 + $0x159] sm:$0xff] %vm334, %v1964
      %1998 = vst.msk [vmem:[%s1967 + $0x169] sm:$0xff] %vm334, %v1965
      %1999 = vst.msk [vmem:[%s1967 + $0x171] sm:$0xff] %vm334, %v1966
      %v2000 = vld [vmem:[#allocation3 + $0x1] sm:$0xff]
      %v2001 = vld [vmem:[#allocation3 + $0x9] sm:$0xff]
      %v2002 = vld [vmem:[#allocation3 + $0x19] sm:$0xff]
      %v2003 = vld [vmem:[#allocation3 + $0x21] sm:$0xff]
      %v2004 = vld [vmem:[#allocation3 + $0x31] sm:$0xff]
      %v2005 = vld [vmem:[#allocation3 + $0x39] sm:$0xff]
      %v2006 = vld [vmem:[#allocation3 + $0x49] sm:$0xff]
      %v2007 = vld [vmem:[#allocation3 + $0x51] sm:$0xff]
      %v2008 = vld [vmem:[#allocation3 + $0x61] sm:$0xff]
      %v2009 = vld [vmem:[#allocation3 + $0x69] sm:$0xff]
      %v2010 = vld [vmem:[#allocation3 + $0x79] sm:$0xff]
      %v2011 = vld [vmem:[#allocation3 + $0x81] sm:$0xff]
      %v2012 = vld [vmem:[#allocation3 + $0x91] sm:$0xff]
      %v2013 = vld [vmem:[#allocation3 + $0x99] sm:$0xff]
      %v2014 = vld [vmem:[#allocation3 + $0xa9] sm:$0xff]
      %v2015 = vld [vmem:[#allocation3 + $0xb1] sm:$0xff]
      %v2016 = vld [vmem:[#allocation3 + $0xc1] sm:$0xff]
      %v2017 = vld [vmem:[#allocation3 + $0xc9] sm:$0xff]
      %v2018 = vld [vmem:[#allocation3 + $0xd9] sm:$0xff]
      %v2019 = vld [vmem:[#allocation3 + $0xe1] sm:$0xff]
      %v2020 = vld [vmem:[#allocation3 + $0xf1] sm:$0xff]
      %v2021 = vld [vmem:[#allocation3 + $0xf9] sm:$0xff]
      %v2022 = vld [vmem:[#allocation3 + $0x109] sm:$0xff]
      %v2023 = vld [vmem:[#allocation3 + $0x111] sm:$0xff]
      %v2024 = vld [vmem:[#allocation3 + $0x121] sm:$0xff]
      %v2025 = vld [vmem:[#allocation3 + $0x129] sm:$0xff]
      %v2026 = vld [vmem:[#allocation3 + $0x139] sm:$0xff]
      %v2027 = vld [vmem:[#allocation3 + $0x141] sm:$0xff]
      %v2028 = vld [vmem:[#allocation3 + $0x151] sm:$0xff]
      %v2029 = vld [vmem:[#allocation3 + $0x159] sm:$0xff]
      %v2030 = vld [vmem:[#allocation3 + $0x169] sm:$0xff]
      %v2031 = vld [vmem:[#allocation3 + $0x171] sm:$0xff]
      %v2032 = vpack.c.bf16 %v2001, %v2000
      %v2033 = vpack.c.bf16 %v2003, %v2002
      %v2034 = vpack.c.bf16 %v2005, %v2004
      %v2035 = vpack.c.bf16 %v2007, %v2006
      %v2036 = vpack.c.bf16 %v2009, %v2008
      %v2037 = vpack.c.bf16 %v2011, %v2010
      %v2038 = vpack.c.bf16 %v2013, %v2012
      %v2039 = vpack.c.bf16 %v2015, %v2014
      %v2040 = vpack.c.bf16 %v2017, %v2016
      %v2041 = vpack.c.bf16 %v2019, %v2018
      %v2042 = vpack.c.bf16 %v2021, %v2020
      %v2043 = vpack.c.bf16 %v2023, %v2022
      %v2044 = vpack.c.bf16 %v2025, %v2024
      %v2045 = vpack.c.bf16 %v2027, %v2026
      %v2046 = vpack.c.bf16 %v2029, %v2028
      %v2047 = vpack.c.bf16 %v2031, %v2030
      %v2048 = vld [vmem:[%s3] sm:$0x3]
      %v2050 = vsel %vm334, %v2032, 0
      %v2053 = vsel %vm334, %v2033, 0
      %v2056 = vsel %vm334, %v2034, 0
      %v2059 = vsel %vm334, %v2035, 0
      %v2062 = vsel %vm334, %v2036, 0
      %v2065 = vsel %vm334, %v2037, 0
      %v2068 = vsel %vm334, %v2038, 0
      %v2071 = vsel %vm334, %v2039, 0
      %v2074 = vsel %vm334, %v2040, 0
      %v2077 = vsel %vm334, %v2041, 0
      %v2080 = vsel %vm334, %v2042, 0
      %v2083 = vsel %vm334, %v2043, 0
      %v2086 = vsel %vm334, %v2044, 0
      %v2089 = vsel %vm334, %v2045, 0
      %v2092 = vsel %vm334, %v2046, 0
      %v2095 = vsel %vm334, %v2047, 0
      %v2098 = vsel %vm597, %v2048, 0
      %2100 = vmatpush.bf16.msra.mxu0 0
      %2101 = vmatpush.bf16.msra.mxu0 0
      %2102 = vmatpush.bf16.msra.mxu0 0
      %2103 = vmatpush.bf16.msra.mxu0 0
      %2104 = vmatpush.bf16.msra.mxu0 0
      %2105 = vmatpush.bf16.msra.mxu0 0
      %2106 = vmatpush.bf16.msra.mxu0 0
      %2107 = vmatpush.bf16.msra.mxu0 %v2098
      %2108 = vmatmul.bf16.gmra.mxu0 %v2050
      %v2109 = vpop.f32.mrf.mxu0
      %v2110 = vadd.f32 0.0, %v2109
      %v2111 = vpop.f32.mrf.mxu0
      %v2112 = vadd.f32 0.0, %v2111
      %2113 = vmatmul.bf16.gmra.mxu0 %v2053
      %v2114 = vpop.f32.mrf.mxu0
      %v2115 = vadd.f32 0.0, %v2114
      %v2116 = vpop.f32.mrf.mxu0
      %v2117 = vadd.f32 0.0, %v2116
      %2118 = vmatmul.bf16.gmra.mxu0 %v2056
      %v2119 = vpop.f32.mrf.mxu0
      %v2120 = vadd.f32 0.0, %v2119
      %v2121 = vpop.f32.mrf.mxu0
      %v2122 = vadd.f32 0.0, %v2121
      %2123 = vmatmul.bf16.gmra.mxu0 %v2059
      %v2124 = vpop.f32.mrf.mxu0
      %v2125 = vadd.f32 0.0, %v2124
      %v2126 = vpop.f32.mrf.mxu0
      %v2127 = vadd.f32 0.0, %v2126
      %2128 = vmatmul.bf16.gmra.mxu0 %v2062
      %v2129 = vpop.f32.mrf.mxu0
      %v2130 = vadd.f32 0.0, %v2129
      %v2131 = vpop.f32.mrf.mxu0
      %v2132 = vadd.f32 0.0, %v2131
      %2133 = vmatmul.bf16.gmra.mxu0 %v2065
      %v2134 = vpop.f32.mrf.mxu0
      %v2135 = vadd.f32 0.0, %v2134
      %v2136 = vpop.f32.mrf.mxu0
      %v2137 = vadd.f32 0.0, %v2136
      %2138 = vmatmul.bf16.gmra.mxu0 %v2068
      %v2139 = vpop.f32.mrf.mxu0
      %v2140 = vadd.f32 0.0, %v2139
      %v2141 = vpop.f32.mrf.mxu0
      %v2142 = vadd.f32 0.0, %v2141
      %2143 = vmatmul.bf16.gmra.mxu0 %v2071
      %v2144 = vpop.f32.mrf.mxu0
      %v2145 = vadd.f32 0.0, %v2144
      %v2146 = vpop.f32.mrf.mxu0
      %v2147 = vadd.f32 0.0, %v2146
      %2148 = vmatmul.bf16.gmra.mxu0 %v2074
      %v2149 = vpop.f32.mrf.mxu0
      %v2150 = vadd.f32 0.0, %v2149
      %v2151 = vpop.f32.mrf.mxu0
      %v2152 = vadd.f32 0.0, %v2151
      %2153 = vmatmul.bf16.gmra.mxu0 %v2077
      %v2154 = vpop.f32.mrf.mxu0
      %v2155 = vadd.f32 0.0, %v2154
      %v2156 = vpop.f32.mrf.mxu0
      %v2157 = vadd.f32 0.0, %v2156
      %2158 = vmatmul.bf16.gmra.mxu0 %v2080
      %v2159 = vpop.f32.mrf.mxu0
      %v2160 = vadd.f32 0.0, %v2159
      %v2161 = vpop.f32.mrf.mxu0
      %v2162 = vadd.f32 0.0, %v2161
      %2163 = vmatmul.bf16.gmra.mxu0 %v2083
      %v2164 = vpop.f32.mrf.mxu0
      %v2165 = vadd.f32 0.0, %v2164
      %v2166 = vpop.f32.mrf.mxu0
      %v2167 = vadd.f32 0.0, %v2166
      %2168 = vmatmul.bf16.gmra.mxu0 %v2086
      %v2169 = vpop.f32.mrf.mxu0
      %v2170 = vadd.f32 0.0, %v2169
      %v2171 = vpop.f32.mrf.mxu0
      %v2172 = vadd.f32 0.0, %v2171
      %2173 = vmatmul.bf16.gmra.mxu0 %v2089
      %v2174 = vpop.f32.mrf.mxu0
      %v2175 = vadd.f32 0.0, %v2174
      %v2176 = vpop.f32.mrf.mxu0
      %v2177 = vadd.f32 0.0, %v2176
      %2178 = vmatmul.bf16.gmra.mxu0 %v2092
      %v2179 = vpop.f32.mrf.mxu0
      %v2180 = vadd.f32 0.0, %v2179
      %v2181 = vpop.f32.mrf.mxu0
      %v2182 = vadd.f32 0.0, %v2181
      %2183 = vmatmul.bf16.gmra.mxu0 %v2095
      %v2184 = vpop.f32.mrf.mxu0
      %v2185 = vadd.f32 0.0, %v2184
      %v2186 = vpop.f32.mrf.mxu0
      %v2187 = vadd.f32 0.0, %v2186
      %2188 = vdwg.mxu0
      %2189 = vst.msk [vmem:[#allocation4] sm:$0xff] %vm334, %v2110
      %2190 = vst.msk [vmem:[#allocation4 + $0x8] sm:$0xff] %vm334, %v2112
      %2191 = vst.msk [vmem:[#allocation4 + $0x10] sm:$0xff] %vm334, %v2115
      %2192 = vst.msk [vmem:[#allocation4 + $0x18] sm:$0xff] %vm334, %v2117
      %2193 = vst.msk [vmem:[#allocation4 + $0x20] sm:$0xff] %vm334, %v2120
      %2194 = vst.msk [vmem:[#allocation4 + $0x28] sm:$0xff] %vm334, %v2122
      %2195 = vst.msk [vmem:[#allocation4 + $0x30] sm:$0xff] %vm334, %v2125
      %2196 = vst.msk [vmem:[#allocation4 + $0x38] sm:$0xff] %vm334, %v2127
      %2197 = vst.msk [vmem:[#allocation4 + $0x40] sm:$0xff] %vm334, %v2130
      %2198 = vst.msk [vmem:[#allocation4 + $0x48] sm:$0xff] %vm334, %v2132
      %2199 = vst.msk [vmem:[#allocation4 + $0x50] sm:$0xff] %vm334, %v2135
      %2200 = vst.msk [vmem:[#allocation4 + $0x58] sm:$0xff] %vm334, %v2137
      %2201 = vst.msk [vmem:[#allocation4 + $0x60] sm:$0xff] %vm334, %v2140
      %2202 = vst.msk [vmem:[#allocation4 + $0x68] sm:$0xff] %vm334, %v2142
      %2203 = vst.msk [vmem:[#allocation4 + $0x70] sm:$0xff] %vm334, %v2145
      %2204 = vst.msk [vmem:[#allocation4 + $0x78] sm:$0xff] %vm334, %v2147
      %2205 = vst.msk [vmem:[#allocation4 + $0x80] sm:$0xff] %vm334, %v2150
      %2206 = vst.msk [vmem:[#allocation4 + $0x88] sm:$0xff] %vm334, %v2152
      %2207 = vst.msk [vmem:[#allocation4 + $0x90] sm:$0xff] %vm334, %v2155
      %2208 = vst.msk [vmem:[#allocation4 + $0x98] sm:$0xff] %vm334, %v2157
      %2209 = vst.msk [vmem:[#allocation4 + $0xa0] sm:$0xff] %vm334, %v2160
      %2210 = vst.msk [vmem:[#allocation4 + $0xa8] sm:$0xff] %vm334, %v2162
      %2211 = vst.msk [vmem:[#allocation4 + $0xb0] sm:$0xff] %vm334, %v2165
      %2212 = vst.msk [vmem:[#allocation4 + $0xb8] sm:$0xff] %vm334, %v2167
      %2213 = vst.msk [vmem:[#allocation4 + $0xc0] sm:$0xff] %vm334, %v2170
      %2214 = vst.msk [vmem:[#allocation4 + $0xc8] sm:$0xff] %vm334, %v2172
      %2215 = vst.msk [vmem:[#allocation4 + $0xd0] sm:$0xff] %vm334, %v2175
      %2216 = vst.msk [vmem:[#allocation4 + $0xd8] sm:$0xff] %vm334, %v2177
      %2217 = vst.msk [vmem:[#allocation4 + $0xe0] sm:$0xff] %vm334, %v2180
      %2218 = vst.msk [vmem:[#allocation4 + $0xe8] sm:$0xff] %vm334, %v2182
      %2219 = vst.msk [vmem:[#allocation4 + $0xf0] sm:$0xff] %vm334, %v2185
      %2220 = vst.msk [vmem:[#allocation4 + $0xf8] sm:$0xff] %vm334, %v2187
      %v2221 = vld [vmem:[%s1967] sm:$0xff]
      %v2222 = vld [vmem:[%s1967 + $0x8] sm:$0xff]
      %v2223 = vld [vmem:[%s1967 + $0x18] sm:$0xff]
      %v2224 = vld [vmem:[%s1967 + $0x20] sm:$0xff]
      %v2225 = vld [vmem:[%s1967 + $0x30] sm:$0xff]
      %v2226 = vld [vmem:[%s1967 + $0x38] sm:$0xff]
      %v2227 = vld [vmem:[%s1967 + $0x48] sm:$0xff]
      %v2228 = vld [vmem:[%s1967 + $0x50] sm:$0xff]
      %v2229 = vld [vmem:[%s1967 + $0x60] sm:$0xff]
      %v2230 = vld [vmem:[%s1967 + $0x68] sm:$0xff]
      %v2231 = vld [vmem:[%s1967 + $0x78] sm:$0xff]
      %v2232 = vld [vmem:[%s1967 + $0x80] sm:$0xff]
      %v2233 = vld [vmem:[%s1967 + $0x90] sm:$0xff]
      %v2234 = vld [vmem:[%s1967 + $0x98] sm:$0xff]
      %v2235 = vld [vmem:[%s1967 + $0xa8] sm:$0xff]
      %v2236 = vld [vmem:[%s1967 + $0xb0] sm:$0xff]
      %v2237 = vld [vmem:[%s1967 + $0xc0] sm:$0xff]
      %v2238 = vld [vmem:[%s1967 + $0xc8] sm:$0xff]
      %v2239 = vld [vmem:[%s1967 + $0xd8] sm:$0xff]
      %v2240 = vld [vmem:[%s1967 + $0xe0] sm:$0xff]
      %v2241 = vld [vmem:[%s1967 + $0xf0] sm:$0xff]
      %v2242 = vld [vmem:[%s1967 + $0xf8] sm:$0xff]
      %v2243 = vld [vmem:[%s1967 + $0x108] sm:$0xff]
      %v2244 = vld [vmem:[%s1967 + $0x110] sm:$0xff]
      %v2245 = vld [vmem:[%s1967 + $0x120] sm:$0xff]
      %v2246 = vld [vmem:[%s1967 + $0x128] sm:$0xff]
      %v2247 = vld [vmem:[%s1967 + $0x138] sm:$0xff]
      %v2248 = vld [vmem:[%s1967 + $0x140] sm:$0xff]
      %v2249 = vld [vmem:[%s1967 + $0x150] sm:$0xff]
      %v2250 = vld [vmem:[%s1967 + $0x158] sm:$0xff]
      %v2251 = vld [vmem:[%s1967 + $0x168] sm:$0xff]
      %v2252 = vld [vmem:[%s1967 + $0x170] sm:$0xff]
      %v2253 = vpack.c.bf16 %v2222, %v2221
      %v2254 = vpack.c.bf16 %v2224, %v2223
      %v2255 = vpack.c.bf16 %v2226, %v2225
      %v2256 = vpack.c.bf16 %v2228, %v2227
      %v2257 = vpack.c.bf16 %v2230, %v2229
      %v2258 = vpack.c.bf16 %v2232, %v2231
      %v2259 = vpack.c.bf16 %v2234, %v2233
      %v2260 = vpack.c.bf16 %v2236, %v2235
      %v2261 = vpack.c.bf16 %v2238, %v2237
      %v2262 = vpack.c.bf16 %v2240, %v2239
      %v2263 = vpack.c.bf16 %v2242, %v2241
      %v2264 = vpack.c.bf16 %v2244, %v2243
      %v2265 = vpack.c.bf16 %v2246, %v2245
      %v2266 = vpack.c.bf16 %v2248, %v2247
      %v2267 = vpack.c.bf16 %v2250, %v2249
      %v2268 = vpack.c.bf16 %v2252, %v2251
      %s2269 = scalar_lea.vmem %s3, 2
      %v2270 = vld [vmem:[%s2269] sm:$0x3]
      %v2272 = vsel %vm334, %v2253, 0
      %v2275 = vsel %vm334, %v2254, 0
      %v2278 = vsel %vm334, %v2255, 0
      %v2281 = vsel %vm334, %v2256, 0
      %v2284 = vsel %vm334, %v2257, 0
      %v2287 = vsel %vm334, %v2258, 0
      %v2290 = vsel %vm334, %v2259, 0
      %v2293 = vsel %vm334, %v2260, 0
      %v2296 = vsel %vm334, %v2261, 0
      %v2299 = vsel %vm334, %v2262, 0
      %v2302 = vsel %vm334, %v2263, 0
      %v2305 = vsel %vm334, %v2264, 0
      %v2308 = vsel %vm334, %v2265, 0
      %v2311 = vsel %vm334, %v2266, 0
      %v2314 = vsel %vm334, %v2267, 0
      %v2317 = vsel %vm334, %v2268, 0
      %v2320 = vsel %vm597, %v2270, 0
      %2322 = vmatpush.bf16.msra.mxu0 0
      %2323 = vmatpush.bf16.msra.mxu0 0
      %2324 = vmatpush.bf16.msra.mxu0 0
      %2325 = vmatpush.bf16.msra.mxu0 0
      %2326 = vmatpush.bf16.msra.mxu0 0
      %2327 = vmatpush.bf16.msra.mxu0 0
      %2328 = vmatpush.bf16.msra.mxu0 0
      %2329 = vmatpush.bf16.msra.mxu0 %v2320
      %2330 = vmatmul.bf16.gmra.mxu0 %v2272
      %v2331 = vpop.f32.mrf.mxu0
      %v2332 = vadd.f32 0.0, %v2331
      %v2333 = vpop.f32.mrf.mxu0
      %v2334 = vadd.f32 0.0, %v2333
      %2335 = vmatmul.bf16.gmra.mxu0 %v2275
      %v2336 = vpop.f32.mrf.mxu0
      %v2337 = vadd.f32 0.0, %v2336
      %v2338 = vpop.f32.mrf.mxu0
      %v2339 = vadd.f32 0.0, %v2338
      %2340 = vmatmul.bf16.gmra.mxu0 %v2278
      %v2341 = vpop.f32.mrf.mxu0
      %v2342 = vadd.f32 0.0, %v2341
      %v2343 = vpop.f32.mrf.mxu0
      %v2344 = vadd.f32 0.0, %v2343
      %2345 = vmatmul.bf16.gmra.mxu0 %v2281
      %v2346 = vpop.f32.mrf.mxu0
      %v2347 = vadd.f32 0.0, %v2346
      %v2348 = vpop.f32.mrf.mxu0
      %v2349 = vadd.f32 0.0, %v2348
      %2350 = vmatmul.bf16.gmra.mxu0 %v2284
      %v2351 = vpop.f32.mrf.mxu0
      %v2352 = vadd.f32 0.0, %v2351
      %v2353 = vpop.f32.mrf.mxu0
      %v2354 = vadd.f32 0.0, %v2353
      %2355 = vmatmul.bf16.gmra.mxu0 %v2287
      %v2356 = vpop.f32.mrf.mxu0
      %v2357 = vadd.f32 0.0, %v2356
      %v2358 = vpop.f32.mrf.mxu0
      %v2359 = vadd.f32 0.0, %v2358
      %2360 = vmatmul.bf16.gmra.mxu0 %v2290
      %v2361 = vpop.f32.mrf.mxu0
      %v2362 = vadd.f32 0.0, %v2361
      %v2363 = vpop.f32.mrf.mxu0
      %v2364 = vadd.f32 0.0, %v2363
      %2365 = vmatmul.bf16.gmra.mxu0 %v2293
      %v2366 = vpop.f32.mrf.mxu0
      %v2367 = vadd.f32 0.0, %v2366
      %v2368 = vpop.f32.mrf.mxu0
      %v2369 = vadd.f32 0.0, %v2368
      %2370 = vmatmul.bf16.gmra.mxu0 %v2296
      %v2371 = vpop.f32.mrf.mxu0
      %v2372 = vadd.f32 0.0, %v2371
      %v2373 = vpop.f32.mrf.mxu0
      %v2374 = vadd.f32 0.0, %v2373
      %2375 = vmatmul.bf16.gmra.mxu0 %v2299
      %v2376 = vpop.f32.mrf.mxu0
      %v2377 = vadd.f32 0.0, %v2376
      %v2378 = vpop.f32.mrf.mxu0
      %v2379 = vadd.f32 0.0, %v2378
      %2380 = vmatmul.bf16.gmra.mxu0 %v2302
      %v2381 = vpop.f32.mrf.mxu0
      %v2382 = vadd.f32 0.0, %v2381
      %v2383 = vpop.f32.mrf.mxu0
      %v2384 = vadd.f32 0.0, %v2383
      %2385 = vmatmul.bf16.gmra.mxu0 %v2305
      %v2386 = vpop.f32.mrf.mxu0
      %v2387 = vadd.f32 0.0, %v2386
      %v2388 = vpop.f32.mrf.mxu0
      %v2389 = vadd.f32 0.0, %v2388
      %2390 = vmatmul.bf16.gmra.mxu0 %v2308
      %v2391 = vpop.f32.mrf.mxu0
      %v2392 = vadd.f32 0.0, %v2391
      %v2393 = vpop.f32.mrf.mxu0
      %v2394 = vadd.f32 0.0, %v2393
      %2395 = vmatmul.bf16.gmra.mxu0 %v2311
      %v2396 = vpop.f32.mrf.mxu0
      %v2397 = vadd.f32 0.0, %v2396
      %v2398 = vpop.f32.mrf.mxu0
      %v2399 = vadd.f32 0.0, %v2398
      %2400 = vmatmul.bf16.gmra.mxu0 %v2314
      %v2401 = vpop.f32.mrf.mxu0
      %v2402 = vadd.f32 0.0, %v2401
      %v2403 = vpop.f32.mrf.mxu0
      %v2404 = vadd.f32 0.0, %v2403
      %2405 = vmatmul.bf16.gmra.mxu0 %v2317
      %v2406 = vpop.f32.mrf.mxu0
      %v2407 = vadd.f32 0.0, %v2406
      %v2408 = vpop.f32.mrf.mxu0
      %v2409 = vadd.f32 0.0, %v2408
      %2410 = vdwg.mxu0
      %v2411 = vld [vmem:[#allocation4] sm:$0xff]
      %v2412 = vld [vmem:[#allocation4 + $0x8] sm:$0xff]
      %v2413 = vld [vmem:[#allocation4 + $0x10] sm:$0xff]
      %v2414 = vld [vmem:[#allocation4 + $0x18] sm:$0xff]
      %v2415 = vld [vmem:[#allocation4 + $0x20] sm:$0xff]
      %v2416 = vld [vmem:[#allocation4 + $0x28] sm:$0xff]
      %v2417 = vld [vmem:[#allocation4 + $0x30] sm:$0xff]
      %v2418 = vld [vmem:[#allocation4 + $0x38] sm:$0xff]
      %v2419 = vld [vmem:[#allocation4 + $0x40] sm:$0xff]
      %v2420 = vld [vmem:[#allocation4 + $0x48] sm:$0xff]
      %v2421 = vld [vmem:[#allocation4 + $0x50] sm:$0xff]
      %v2422 = vld [vmem:[#allocation4 + $0x58] sm:$0xff]
      %v2423 = vld [vmem:[#allocation4 + $0x60] sm:$0xff]
      %v2424 = vld [vmem:[#allocation4 + $0x68] sm:$0xff]
      %v2425 = vld [vmem:[#allocation4 + $0x70] sm:$0xff]
      %v2426 = vld [vmem:[#allocation4 + $0x78] sm:$0xff]
      %v2427 = vld [vmem:[#allocation4 + $0x80] sm:$0xff]
      %v2428 = vld [vmem:[#allocation4 + $0x88] sm:$0xff]
      %v2429 = vld [vmem:[#allocation4 + $0x90] sm:$0xff]
      %v2430 = vld [vmem:[#allocation4 + $0x98] sm:$0xff]
      %v2431 = vld [vmem:[#allocation4 + $0xa0] sm:$0xff]
      %v2432 = vld [vmem:[#allocation4 + $0xa8] sm:$0xff]
      %v2433 = vld [vmem:[#allocation4 + $0xb0] sm:$0xff]
      %v2434 = vld [vmem:[#allocation4 + $0xb8] sm:$0xff]
      %v2435 = vld [vmem:[#allocation4 + $0xc0] sm:$0xff]
      %v2436 = vld [vmem:[#allocation4 + $0xc8] sm:$0xff]
      %v2437 = vld [vmem:[#allocation4 + $0xd0] sm:$0xff]
      %v2438 = vld [vmem:[#allocation4 + $0xd8] sm:$0xff]
      %v2439 = vld [vmem:[#allocation4 + $0xe0] sm:$0xff]
      %v2440 = vld [vmem:[#allocation4 + $0xe8] sm:$0xff]
      %v2441 = vld [vmem:[#allocation4 + $0xf0] sm:$0xff]
      %v2442 = vld [vmem:[#allocation4 + $0xf8] sm:$0xff]
      %v2443 = vadd.f32 %v2411, %v2332
      %v2444 = vadd.f32 %v2412, %v2334
      %v2445 = vadd.f32 %v2413, %v2337
      %v2446 = vadd.f32 %v2414, %v2339
      %v2447 = vadd.f32 %v2415, %v2342
      %v2448 = vadd.f32 %v2416, %v2344
      %v2449 = vadd.f32 %v2417, %v2347
      %v2450 = vadd.f32 %v2418, %v2349
      %v2451 = vadd.f32 %v2419, %v2352
      %v2452 = vadd.f32 %v2420, %v2354
      %v2453 = vadd.f32 %v2421, %v2357
      %v2454 = vadd.f32 %v2422, %v2359
      %v2455 = vadd.f32 %v2423, %v2362
      %v2456 = vadd.f32 %v2424, %v2364
      %v2457 = vadd.f32 %v2425, %v2367
      %v2458 = vadd.f32 %v2426, %v2369
      %v2459 = vadd.f32 %v2427, %v2372
      %v2460 = vadd.f32 %v2428, %v2374
      %v2461 = vadd.f32 %v2429, %v2377
      %v2462 = vadd.f32 %v2430, %v2379
      %v2463 = vadd.f32 %v2431, %v2382
      %v2464 = vadd.f32 %v2432, %v2384
      %v2465 = vadd.f32 %v2433, %v2387
      %v2466 = vadd.f32 %v2434, %v2389
      %v2467 = vadd.f32 %v2435, %v2392
      %v2468 = vadd.f32 %v2436, %v2394
      %v2469 = vadd.f32 %v2437, %v2397
      %v2470 = vadd.f32 %v2438, %v2399
      %v2471 = vadd.f32 %v2439, %v2402
      %v2472 = vadd.f32 %v2440, %v2404
      %v2473 = vadd.f32 %v2441, %v2407
      %v2474 = vadd.f32 %v2442, %v2409
      %2475 = vst.msk [vmem:[#allocation4] sm:$0xff] %vm334, %v2443
      %2476 = vst.msk [vmem:[#allocation4 + $0x8] sm:$0xff] %vm334, %v2444
      %2477 = vst.msk [vmem:[#allocation4 + $0x10] sm:$0xff] %vm334, %v2445
      %2478 = vst.msk [vmem:[#allocation4 + $0x18] sm:$0xff] %vm334, %v2446
      %2479 = vst.msk [vmem:[#allocation4 + $0x20] sm:$0xff] %vm334, %v2447
      %2480 = vst.msk [vmem:[#allocation4 + $0x28] sm:$0xff] %vm334, %v2448
      %2481 = vst.msk [vmem:[#allocation4 + $0x30] sm:$0xff] %vm334, %v2449
      %2482 = vst.msk [vmem:[#allocation4 + $0x38] sm:$0xff] %vm334, %v2450
      %2483 = vst.msk [vmem:[#allocation4 + $0x40] sm:$0xff] %vm334, %v2451
      %2484 = vst.msk [vmem:[#allocation4 + $0x48] sm:$0xff] %vm334, %v2452
      %2485 = vst.msk [vmem:[#allocation4 + $0x50] sm:$0xff] %vm334, %v2453
      %2486 = vst.msk [vmem:[#allocation4 + $0x58] sm:$0xff] %vm334, %v2454
      %2487 = vst.msk [vmem:[#allocation4 + $0x60] sm:$0xff] %vm334, %v2455
      %2488 = vst.msk [vmem:[#allocation4 + $0x68] sm:$0xff] %vm334, %v2456
      %2489 = vst.msk [vmem:[#allocation4 + $0x70] sm:$0xff] %vm334, %v2457
      %2490 = vst.msk [vmem:[#allocation4 + $0x78] sm:$0xff] %vm334, %v2458
      %2491 = vst.msk [vmem:[#allocation4 + $0x80] sm:$0xff] %vm334, %v2459
      %2492 = vst.msk [vmem:[#allocation4 + $0x88] sm:$0xff] %vm334, %v2460
      %2493 = vst.msk [vmem:[#allocation4 + $0x90] sm:$0xff] %vm334, %v2461
      %2494 = vst.msk [vmem:[#allocation4 + $0x98] sm:$0xff] %vm334, %v2462
      %2495 = vst.msk [vmem:[#allocation4 + $0xa0] sm:$0xff] %vm334, %v2463
      %2496 = vst.msk [vmem:[#allocation4 + $0xa8] sm:$0xff] %vm334, %v2464
      %2497 = vst.msk [vmem:[#allocation4 + $0xb0] sm:$0xff] %vm334, %v2465
      %2498 = vst.msk [vmem:[#allocation4 + $0xb8] sm:$0xff] %vm334, %v2466
      %2499 = vst.msk [vmem:[#allocation4 + $0xc0] sm:$0xff] %vm334, %v2467
      %2500 = vst.msk [vmem:[#allocation4 + $0xc8] sm:$0xff] %vm334, %v2468
      %2501 = vst.msk [vmem:[#allocation4 + $0xd0] sm:$0xff] %vm334, %v2469
      %2502 = vst.msk [vmem:[#allocation4 + $0xd8] sm:$0xff] %vm334, %v2470
      %2503 = vst.msk [vmem:[#allocation4 + $0xe0] sm:$0xff] %vm334, %v2471
      %2504 = vst.msk [vmem:[#allocation4 + $0xe8] sm:$0xff] %vm334, %v2472
      %2505 = vst.msk [vmem:[#allocation4 + $0xf0] sm:$0xff] %vm334, %v2473
      %2506 = vst.msk [vmem:[#allocation4 + $0xf8] sm:$0xff] %vm334, %v2474
      %v2507 = vld [vmem:[%s1967 + $0x1] sm:$0xff]
      %v2508 = vld [vmem:[%s1967 + $0x9] sm:$0xff]
      %v2509 = vld [vmem:[%s1967 + $0x19] sm:$0xff]
      %v2510 = vld [vmem:[%s1967 + $0x21] sm:$0xff]
      %v2511 = vld [vmem:[%s1967 + $0x31] sm:$0xff]
      %v2512 = vld [vmem:[%s1967 + $0x39] sm:$0xff]
      %v2513 = vld [vmem:[%s1967 + $0x49] sm:$0xff]
      %v2514 = vld [vmem:[%s1967 + $0x51] sm:$0xff]
      %v2515 = vld [vmem:[%s1967 + $0x61] sm:$0xff]
      %v2516 = vld [vmem:[%s1967 + $0x69] sm:$0xff]
      %v2517 = vld [vmem:[%s1967 + $0x79] sm:$0xff]
      %v2518 = vld [vmem:[%s1967 + $0x81] sm:$0xff]
      %v2519 = vld [vmem:[%s1967 + $0x91] sm:$0xff]
      %v2520 = vld [vmem:[%s1967 + $0x99] sm:$0xff]
      %v2521 = vld [vmem:[%s1967 + $0xa9] sm:$0xff]
      %v2522 = vld [vmem:[%s1967 + $0xb1] sm:$0xff]
      %v2523 = vld [vmem:[%s1967 + $0xc1] sm:$0xff]
      %v2524 = vld [vmem:[%s1967 + $0xc9] sm:$0xff]
      %v2525 = vld [vmem:[%s1967 + $0xd9] sm:$0xff]
      %v2526 = vld [vmem:[%s1967 + $0xe1] sm:$0xff]
      %v2527 = vld [vmem:[%s1967 + $0xf1] sm:$0xff]
      %v2528 = vld [vmem:[%s1967 + $0xf9] sm:$0xff]
      %v2529 = vld [vmem:[%s1967 + $0x109] sm:$0xff]
      %v2530 = vld [vmem:[%s1967 + $0x111] sm:$0xff]
      %v2531 = vld [vmem:[%s1967 + $0x121] sm:$0xff]
      %v2532 = vld [vmem:[%s1967 + $0x129] sm:$0xff]
      %v2533 = vld [vmem:[%s1967 + $0x139] sm:$0xff]
      %v2534 = vld [vmem:[%s1967 + $0x141] sm:$0xff]
      %v2535 = vld [vmem:[%s1967 + $0x151] sm:$0xff]
      %v2536 = vld [vmem:[%s1967 + $0x159] sm:$0xff]
      %v2537 = vld [vmem:[%s1967 + $0x169] sm:$0xff]
      %v2538 = vld [vmem:[%s1967 + $0x171] sm:$0xff]
      %v2539 = vpack.c.bf16 %v2508, %v2507
      %v2540 = vpack.c.bf16 %v2510, %v2509
      %v2541 = vpack.c.bf16 %v2512, %v2511
      %v2542 = vpack.c.bf16 %v2514, %v2513
      %v2543 = vpack.c.bf16 %v2516, %v2515
      %v2544 = vpack.c.bf16 %v2518, %v2517
      %v2545 = vpack.c.bf16 %v2520, %v2519
      %v2546 = vpack.c.bf16 %v2522, %v2521
      %v2547 = vpack.c.bf16 %v2524, %v2523
      %v2548 = vpack.c.bf16 %v2526, %v2525
      %v2549 = vpack.c.bf16 %v2528, %v2527
      %v2550 = vpack.c.bf16 %v2530, %v2529
      %v2551 = vpack.c.bf16 %v2532, %v2531
      %v2552 = vpack.c.bf16 %v2534, %v2533
      %v2553 = vpack.c.bf16 %v2536, %v2535
      %v2554 = vpack.c.bf16 %v2538, %v2537
      %s2555 = scalar_lea.vmem %s3, 4
      %v2556 = vld [vmem:[%s2555] sm:$0x3]
      %v2558 = vsel %vm334, %v2539, 0
      %v2561 = vsel %vm334, %v2540, 0
      %v2564 = vsel %vm334, %v2541, 0
      %v2567 = vsel %vm334, %v2542, 0
      %v2570 = vsel %vm334, %v2543, 0
      %v2573 = vsel %vm334, %v2544, 0
      %v2576 = vsel %vm334, %v2545, 0
      %v2579 = vsel %vm334, %v2546, 0
      %v2582 = vsel %vm334, %v2547, 0
      %v2585 = vsel %vm334, %v2548, 0
      %v2588 = vsel %vm334, %v2549, 0
      %v2591 = vsel %vm334, %v2550, 0
      %v2594 = vsel %vm334, %v2551, 0
      %v2597 = vsel %vm334, %v2552, 0
      %v2600 = vsel %vm334, %v2553, 0
      %v2603 = vsel %vm334, %v2554, 0
      %v2606 = vsel %vm597, %v2556, 0
      %2608 = vmatpush.bf16.msra.mxu0 0
      %2609 = vmatpush.bf16.msra.mxu0 0
      %2610 = vmatpush.bf16.msra.mxu0 0
      %2611 = vmatpush.bf16.msra.mxu0 0
      %2612 = vmatpush.bf16.msra.mxu0 0
      %2613 = vmatpush.bf16.msra.mxu0 0
      %2614 = vmatpush.bf16.msra.mxu0 0
      %2615 = vmatpush.bf16.msra.mxu0 %v2606
      %2616 = vmatmul.bf16.gmra.mxu0 %v2558
      %v2617 = vpop.f32.mrf.mxu0
      %v2618 = vadd.f32 0.0, %v2617
      %v2619 = vpop.f32.mrf.mxu0
      %v2620 = vadd.f32 0.0, %v2619
      %2621 = vmatmul.bf16.gmra.mxu0 %v2561
      %v2622 = vpop.f32.mrf.mxu0
      %v2623 = vadd.f32 0.0, %v2622
      %v2624 = vpop.f32.mrf.mxu0
      %v2625 = vadd.f32 0.0, %v2624
      %2626 = vmatmul.bf16.gmra.mxu0 %v2564
      %v2627 = vpop.f32.mrf.mxu0
      %v2628 = vadd.f32 0.0, %v2627
      %v2629 = vpop.f32.mrf.mxu0
      %v2630 = vadd.f32 0.0, %v2629
      %2631 = vmatmul.bf16.gmra.mxu0 %v2567
      %v2632 = vpop.f32.mrf.mxu0
      %v2633 = vadd.f32 0.0, %v2632
      %v2634 = vpop.f32.mrf.mxu0
      %v2635 = vadd.f32 0.0, %v2634
      %2636 = vmatmul.bf16.gmra.mxu0 %v2570
      %v2637 = vpop.f32.mrf.mxu0
      %v2638 = vadd.f32 0.0, %v2637
      %v2639 = vpop.f32.mrf.mxu0
      %v2640 = vadd.f32 0.0, %v2639
      %2641 = vmatmul.bf16.gmra.mxu0 %v2573
      %v2642 = vpop.f32.mrf.mxu0
      %v2643 = vadd.f32 0.0, %v2642
      %v2644 = vpop.f32.mrf.mxu0
      %v2645 = vadd.f32 0.0, %v2644
      %2646 = vmatmul.bf16.gmra.mxu0 %v2576
      %v2647 = vpop.f32.mrf.mxu0
      %v2648 = vadd.f32 0.0, %v2647
      %v2649 = vpop.f32.mrf.mxu0
      %v2650 = vadd.f32 0.0, %v2649
      %2651 = vmatmul.bf16.gmra.mxu0 %v2579
      %v2652 = vpop.f32.mrf.mxu0
      %v2653 = vadd.f32 0.0, %v2652
      %v2654 = vpop.f32.mrf.mxu0
      %v2655 = vadd.f32 0.0, %v2654
      %2656 = vmatmul.bf16.gmra.mxu0 %v2582
      %v2657 = vpop.f32.mrf.mxu0
      %v2658 = vadd.f32 0.0, %v2657
      %v2659 = vpop.f32.mrf.mxu0
      %v2660 = vadd.f32 0.0, %v2659
      %2661 = vmatmul.bf16.gmra.mxu0 %v2585
      %v2662 = vpop.f32.mrf.mxu0
      %v2663 = vadd.f32 0.0, %v2662
      %v2664 = vpop.f32.mrf.mxu0
      %v2665 = vadd.f32 0.0, %v2664
      %2666 = vmatmul.bf16.gmra.mxu0 %v2588
      %v2667 = vpop.f32.mrf.mxu0
      %v2668 = vadd.f32 0.0, %v2667
      %v2669 = vpop.f32.mrf.mxu0
      %v2670 = vadd.f32 0.0, %v2669
      %2671 = vmatmul.bf16.gmra.mxu0 %v2591
      %v2672 = vpop.f32.mrf.mxu0
      %v2673 = vadd.f32 0.0, %v2672
      %v2674 = vpop.f32.mrf.mxu0
      %v2675 = vadd.f32 0.0, %v2674
      %2676 = vmatmul.bf16.gmra.mxu0 %v2594
      %v2677 = vpop.f32.mrf.mxu0
      %v2678 = vadd.f32 0.0, %v2677
      %v2679 = vpop.f32.mrf.mxu0
      %v2680 = vadd.f32 0.0, %v2679
      %2681 = vmatmul.bf16.gmra.mxu0 %v2597
      %v2682 = vpop.f32.mrf.mxu0
      %v2683 = vadd.f32 0.0, %v2682
      %v2684 = vpop.f32.mrf.mxu0
      %v2685 = vadd.f32 0.0, %v2684
      %2686 = vmatmul.bf16.gmra.mxu0 %v2600
      %v2687 = vpop.f32.mrf.mxu0
      %v2688 = vadd.f32 0.0, %v2687
      %v2689 = vpop.f32.mrf.mxu0
      %v2690 = vadd.f32 0.0, %v2689
      %2691 = vmatmul.bf16.gmra.mxu0 %v2603
      %v2692 = vpop.f32.mrf.mxu0
      %v2693 = vadd.f32 0.0, %v2692
      %v2694 = vpop.f32.mrf.mxu0
      %v2695 = vadd.f32 0.0, %v2694
      %2696 = vdwg.mxu0
      %v2697 = vld [vmem:[#allocation4] sm:$0xff]
      %v2698 = vld [vmem:[#allocation4 + $0x8] sm:$0xff]
      %v2699 = vld [vmem:[#allocation4 + $0x10] sm:$0xff]
      %v2700 = vld [vmem:[#allocation4 + $0x18] sm:$0xff]
      %v2701 = vld [vmem:[#allocation4 + $0x20] sm:$0xff]
      %v2702 = vld [vmem:[#allocation4 + $0x28] sm:$0xff]
      %v2703 = vld [vmem:[#allocation4 + $0x30] sm:$0xff]
      %v2704 = vld [vmem:[#allocation4 + $0x38] sm:$0xff]
      %v2705 = vld [vmem:[#allocation4 + $0x40] sm:$0xff]
      %v2706 = vld [vmem:[#allocation4 + $0x48] sm:$0xff]
      %v2707 = vld [vmem:[#allocation4 + $0x50] sm:$0xff]
      %v2708 = vld [vmem:[#allocation4 + $0x58] sm:$0xff]
      %v2709 = vld [vmem:[#allocation4 + $0x60] sm:$0xff]
      %v2710 = vld [vmem:[#allocation4 + $0x68] sm:$0xff]
      %v2711 = vld [vmem:[#allocation4 + $0x70] sm:$0xff]
      %v2712 = vld [vmem:[#allocation4 + $0x78] sm:$0xff]
      %v2713 = vld [vmem:[#allocation4 + $0x80] sm:$0xff]
      %v2714 = vld [vmem:[#allocation4 + $0x88] sm:$0xff]
      %v2715 = vld [vmem:[#allocation4 + $0x90] sm:$0xff]
      %v2716 = vld [vmem:[#allocation4 + $0x98] sm:$0xff]
      %v2717 = vld [vmem:[#allocation4 + $0xa0] sm:$0xff]
      %v2718 = vld [vmem:[#allocation4 + $0xa8] sm:$0xff]
      %v2719 = vld [vmem:[#allocation4 + $0xb0] sm:$0xff]
      %v2720 = vld [vmem:[#allocation4 + $0xb8] sm:$0xff]
      %v2721 = vld [vmem:[#allocation4 + $0xc0] sm:$0xff]
      %v2722 = vld [vmem:[#allocation4 + $0xc8] sm:$0xff]
      %v2723 = vld [vmem:[#allocation4 + $0xd0] sm:$0xff]
      %v2724 = vld [vmem:[#allocation4 + $0xd8] sm:$0xff]
      %v2725 = vld [vmem:[#allocation4 + $0xe0] sm:$0xff]
      %v2726 = vld [vmem:[#allocation4 + $0xe8] sm:$0xff]
      %v2727 = vld [vmem:[#allocation4 + $0xf0] sm:$0xff]
      %v2728 = vld [vmem:[#allocation4 + $0xf8] sm:$0xff]
      %v2729 = vadd.f32 %v2697, %v2618
      %v2730 = vadd.f32 %v2698, %v2620
      %v2731 = vadd.f32 %v2699, %v2623
      %v2732 = vadd.f32 %v2700, %v2625
      %v2733 = vadd.f32 %v2701, %v2628
      %v2734 = vadd.f32 %v2702, %v2630
      %v2735 = vadd.f32 %v2703, %v2633
      %v2736 = vadd.f32 %v2704, %v2635
      %v2737 = vadd.f32 %v2705, %v2638
      %v2738 = vadd.f32 %v2706, %v2640
      %v2739 = vadd.f32 %v2707, %v2643
      %v2740 = vadd.f32 %v2708, %v2645
      %v2741 = vadd.f32 %v2709, %v2648
      %v2742 = vadd.f32 %v2710, %v2650
      %v2743 = vadd.f32 %v2711, %v2653
      %v2744 = vadd.f32 %v2712, %v2655
      %v2745 = vadd.f32 %v2713, %v2658
      %v2746 = vadd.f32 %v2714, %v2660
      %v2747 = vadd.f32 %v2715, %v2663
      %v2748 = vadd.f32 %v2716, %v2665
      %v2749 = vadd.f32 %v2717, %v2668
      %v2750 = vadd.f32 %v2718, %v2670
      %v2751 = vadd.f32 %v2719, %v2673
      %v2752 = vadd.f32 %v2720, %v2675
      %v2753 = vadd.f32 %v2721, %v2678
      %v2754 = vadd.f32 %v2722, %v2680
      %v2755 = vadd.f32 %v2723, %v2683
      %v2756 = vadd.f32 %v2724, %v2685
      %v2757 = vadd.f32 %v2725, %v2688
      %v2758 = vadd.f32 %v2726, %v2690
      %v2759 = vadd.f32 %v2727, %v2693
      %v2760 = vadd.f32 %v2728, %v2695
      %2761 = vst.msk [vmem:[#allocation4] sm:$0xff] %vm334, %v2729
      %2762 = vst.msk [vmem:[#allocation4 + $0x8] sm:$0xff] %vm334, %v2730
      %2763 = vst.msk [vmem:[#allocation4 + $0x10] sm:$0xff] %vm334, %v2731
      %2764 = vst.msk [vmem:[#allocation4 + $0x18] sm:$0xff] %vm334, %v2732
      %2765 = vst.msk [vmem:[#allocation4 + $0x20] sm:$0xff] %vm334, %v2733
      %2766 = vst.msk [vmem:[#allocation4 + $0x28] sm:$0xff] %vm334, %v2734
      %2767 = vst.msk [vmem:[#allocation4 + $0x30] sm:$0xff] %vm334, %v2735
      %2768 = vst.msk [vmem:[#allocation4 + $0x38] sm:$0xff] %vm334, %v2736
      %2769 = vst.msk [vmem:[#allocation4 + $0x40] sm:$0xff] %vm334, %v2737
      %2770 = vst.msk [vmem:[#allocation4 + $0x48] sm:$0xff] %vm334, %v2738
      %2771 = vst.msk [vmem:[#allocation4 + $0x50] sm:$0xff] %vm334, %v2739
      %2772 = vst.msk [vmem:[#allocation4 + $0x58] sm:$0xff] %vm334, %v2740
      %2773 = vst.msk [vmem:[#allocation4 + $0x60] sm:$0xff] %vm334, %v2741
      %2774 = vst.msk [vmem:[#allocation4 + $0x68] sm:$0xff] %vm334, %v2742
      %2775 = vst.msk [vmem:[#allocation4 + $0x70] sm:$0xff] %vm334, %v2743
      %2776 = vst.msk [vmem:[#allocation4 + $0x78] sm:$0xff] %vm334, %v2744
      %2777 = vst.msk [vmem:[#allocation4 + $0x80] sm:$0xff] %vm334, %v2745
      %2778 = vst.msk [vmem:[#allocation4 + $0x88] sm:$0xff] %vm334, %v2746
      %2779 = vst.msk [vmem:[#allocation4 + $0x90] sm:$0xff] %vm334, %v2747
      %2780 = vst.msk [vmem:[#allocation4 + $0x98] sm:$0xff] %vm334, %v2748
      %2781 = vst.msk [vmem:[#allocation4 + $0xa0] sm:$0xff] %vm334, %v2749
      %2782 = vst.msk [vmem:[#allocation4 + $0xa8] sm:$0xff] %vm334, %v2750
      %2783 = vst.msk [vmem:[#allocation4 + $0xb0] sm:$0xff] %vm334, %v2751
      %2784 = vst.msk [vmem:[#allocation4 + $0xb8] sm:$0xff] %vm334, %v2752
      %2785 = vst.msk [vmem:[#allocation4 + $0xc0] sm:$0xff] %vm334, %v2753
      %2786 = vst.msk [vmem:[#allocation4 + $0xc8] sm:$0xff] %vm334, %v2754
      %2787 = vst.msk [vmem:[#allocation4 + $0xd0] sm:$0xff] %vm334, %v2755
      %2788 = vst.msk [vmem:[#allocation4 + $0xd8] sm:$0xff] %vm334, %v2756
      %2789 = vst.msk [vmem:[#allocation4 + $0xe0] sm:$0xff] %vm334, %v2757
      %2790 = vst.msk [vmem:[#allocation4 + $0xe8] sm:$0xff] %vm334, %v2758
      %2791 = vst.msk [vmem:[#allocation4 + $0xf0] sm:$0xff] %vm334, %v2759
      %2792 = vst.msk [vmem:[#allocation4 + $0xf8] sm:$0xff] %vm334, %v2760
      %v2793 = vld [vmem:[%s1967 + $0x2] sm:$0xff]
      %v2794 = vld [vmem:[%s1967 + $0xa] sm:$0xff]
      %v2795 = vld [vmem:[%s1967 + $0x1a] sm:$0xff]
      %v2796 = vld [vmem:[%s1967 + $0x22] sm:$0xff]
      %v2797 = vld [vmem:[%s1967 + $0x32] sm:$0xff]
      %v2798 = vld [vmem:[%s1967 + $0x3a] sm:$0xff]
      %v2799 = vld [vmem:[%s1967 + $0x4a] sm:$0xff]
      %v2800 = vld [vmem:[%s1967 + $0x52] sm:$0xff]
      %v2801 = vld [vmem:[%s1967 + $0x62] sm:$0xff]
      %v2802 = vld [vmem:[%s1967 + $0x6a] sm:$0xff]
      %v2803 = vld [vmem:[%s1967 + $0x7a] sm:$0xff]
      %v2804 = vld [vmem:[%s1967 + $0x82] sm:$0xff]
      %v2805 = vld [vmem:[%s1967 + $0x92] sm:$0xff]
      %v2806 = vld [vmem:[%s1967 + $0x9a] sm:$0xff]
      %v2807 = vld [vmem:[%s1967 + $0xaa] sm:$0xff]
      %v2808 = vld [vmem:[%s1967 + $0xb2] sm:$0xff]
      %v2809 = vld [vmem:[%s1967 + $0xc2] sm:$0xff]
      %v2810 = vld [vmem:[%s1967 + $0xca] sm:$0xff]
      %v2811 = vld [vmem:[%s1967 + $0xda] sm:$0xff]
      %v2812 = vld [vmem:[%s1967 + $0xe2] sm:$0xff]
      %v2813 = vld [vmem:[%s1967 + $0xf2] sm:$0xff]
      %v2814 = vld [vmem:[%s1967 + $0xfa] sm:$0xff]
      %v2815 = vld [vmem:[%s1967 + $0x10a] sm:$0xff]
      %v2816 = vld [vmem:[%s1967 + $0x112] sm:$0xff]
      %v2817 = vld [vmem:[%s1967 + $0x122] sm:$0xff]
      %v2818 = vld [vmem:[%s1967 + $0x12a] sm:$0xff]
      %v2819 = vld [vmem:[%s1967 + $0x13a] sm:$0xff]
      %v2820 = vld [vmem:[%s1967 + $0x142] sm:$0xff]
      %v2821 = vld [vmem:[%s1967 + $0x152] sm:$0xff]
      %v2822 = vld [vmem:[%s1967 + $0x15a] sm:$0xff]
      %v2823 = vld [vmem:[%s1967 + $0x16a] sm:$0xff]
      %v2824 = vld [vmem:[%s1967 + $0x172] sm:$0xff]
      %v2825 = vpack.c.bf16 %v2794, %v2793
      %v2826 = vpack.c.bf16 %v2796, %v2795
      %v2827 = vpack.c.bf16 %v2798, %v2797
      %v2828 = vpack.c.bf16 %v2800, %v2799
      %v2829 = vpack.c.bf16 %v2802, %v2801
      %v2830 = vpack.c.bf16 %v2804, %v2803
      %v2831 = vpack.c.bf16 %v2806, %v2805
      %v2832 = vpack.c.bf16 %v2808, %v2807
      %v2833 = vpack.c.bf16 %v2810, %v2809
      %v2834 = vpack.c.bf16 %v2812, %v2811
      %v2835 = vpack.c.bf16 %v2814, %v2813
      %v2836 = vpack.c.bf16 %v2816, %v2815
      %v2837 = vpack.c.bf16 %v2818, %v2817
      %v2838 = vpack.c.bf16 %v2820, %v2819
      %v2839 = vpack.c.bf16 %v2822, %v2821
      %v2840 = vpack.c.bf16 %v2824, %v2823
      %s2841 = scalar_lea.vmem %s3, 6
      %v2842 = vld [vmem:[%s2841] sm:$0x3]
      %v2844 = vsel %vm334, %v2825, 0
      %v2847 = vsel %vm334, %v2826, 0
      %v2850 = vsel %vm334, %v2827, 0
      %v2853 = vsel %vm334, %v2828, 0
      %v2856 = vsel %vm334, %v2829, 0
      %v2859 = vsel %vm334, %v2830, 0
      %v2862 = vsel %vm334, %v2831, 0
      %v2865 = vsel %vm334, %v2832, 0
      %v2868 = vsel %vm334, %v2833, 0
      %v2871 = vsel %vm334, %v2834, 0
      %v2874 = vsel %vm334, %v2835, 0
      %v2877 = vsel %vm334, %v2836, 0
      %v2880 = vsel %vm334, %v2837, 0
      %v2883 = vsel %vm334, %v2838, 0
      %v2886 = vsel %vm334, %v2839, 0
      %v2889 = vsel %vm334, %v2840, 0
      %v2892 = vsel %vm597, %v2842, 0
      %2894 = vmatpush.bf16.msra.mxu0 0
      %2895 = vmatpush.bf16.msra.mxu0 0
      %2896 = vmatpush.bf16.msra.mxu0 0
      %2897 = vmatpush.bf16.msra.mxu0 0
      %2898 = vmatpush.bf16.msra.mxu0 0
      %2899 = vmatpush.bf16.msra.mxu0 0
      %2900 = vmatpush.bf16.msra.mxu0 0
      %2901 = vmatpush.bf16.msra.mxu0 %v2892
      %2902 = vmatmul.bf16.gmra.mxu0 %v2844
      %v2903 = vpop.f32.mrf.mxu0
      %v2904 = vadd.f32 0.0, %v2903
      %v2905 = vpop.f32.mrf.mxu0
      %v2906 = vadd.f32 0.0, %v2905
      %2907 = vmatmul.bf16.gmra.mxu0 %v2847
      %v2908 = vpop.f32.mrf.mxu0
      %v2909 = vadd.f32 0.0, %v2908
      %v2910 = vpop.f32.mrf.mxu0
      %v2911 = vadd.f32 0.0, %v2910
      %2912 = vmatmul.bf16.gmra.mxu0 %v2850
      %v2913 = vpop.f32.mrf.mxu0
      %v2914 = vadd.f32 0.0, %v2913
      %v2915 = vpop.f32.mrf.mxu0
      %v2916 = vadd.f32 0.0, %v2915
      %2917 = vmatmul.bf16.gmra.mxu0 %v2853
      %v2918 = vpop.f32.mrf.mxu0
      %v2919 = vadd.f32 0.0, %v2918
      %v2920 = vpop.f32.mrf.mxu0
      %v2921 = vadd.f32 0.0, %v2920
      %2922 = vmatmul.bf16.gmra.mxu0 %v2856
      %v2923 = vpop.f32.mrf.mxu0
      %v2924 = vadd.f32 0.0, %v2923
      %v2925 = vpop.f32.mrf.mxu0
      %v2926 = vadd.f32 0.0, %v2925
      %2927 = vmatmul.bf16.gmra.mxu0 %v2859
      %v2928 = vpop.f32.mrf.mxu0
      %v2929 = vadd.f32 0.0, %v2928
      %v2930 = vpop.f32.mrf.mxu0
      %v2931 = vadd.f32 0.0, %v2930
      %2932 = vmatmul.bf16.gmra.mxu0 %v2862
      %v2933 = vpop.f32.mrf.mxu0
      %v2934 = vadd.f32 0.0, %v2933
      %v2935 = vpop.f32.mrf.mxu0
      %v2936 = vadd.f32 0.0, %v2935
      %2937 = vmatmul.bf16.gmra.mxu0 %v2865
      %v2938 = vpop.f32.mrf.mxu0
      %v2939 = vadd.f32 0.0, %v2938
      %v2940 = vpop.f32.mrf.mxu0
      %v2941 = vadd.f32 0.0, %v2940
      %2942 = vmatmul.bf16.gmra.mxu0 %v2868
      %v2943 = vpop.f32.mrf.mxu0
      %v2944 = vadd.f32 0.0, %v2943
      %v2945 = vpop.f32.mrf.mxu0
      %v2946 = vadd.f32 0.0, %v2945
      %2947 = vmatmul.bf16.gmra.mxu0 %v2871
      %v2948 = vpop.f32.mrf.mxu0
      %v2949 = vadd.f32 0.0, %v2948
      %v2950 = vpop.f32.mrf.mxu0
      %v2951 = vadd.f32 0.0, %v2950
      %2952 = vmatmul.bf16.gmra.mxu0 %v2874
      %v2953 = vpop.f32.mrf.mxu0
      %v2954 = vadd.f32 0.0, %v2953
      %v2955 = vpop.f32.mrf.mxu0
      %v2956 = vadd.f32 0.0, %v2955
      %2957 = vmatmul.bf16.gmra.mxu0 %v2877
      %v2958 = vpop.f32.mrf.mxu0
      %v2959 = vadd.f32 0.0, %v2958
      %v2960 = vpop.f32.mrf.mxu0
      %v2961 = vadd.f32 0.0, %v2960
      %2962 = vmatmul.bf16.gmra.mxu0 %v2880
      %v2963 = vpop.f32.mrf.mxu0
      %v2964 = vadd.f32 0.0, %v2963
      %v2965 = vpop.f32.mrf.mxu0
      %v2966 = vadd.f32 0.0, %v2965
      %2967 = vmatmul.bf16.gmra.mxu0 %v2883
      %v2968 = vpop.f32.mrf.mxu0
      %v2969 = vadd.f32 0.0, %v2968
      %v2970 = vpop.f32.mrf.mxu0
      %v2971 = vadd.f32 0.0, %v2970
      %2972 = vmatmul.bf16.gmra.mxu0 %v2886
      %v2973 = vpop.f32.mrf.mxu0
      %v2974 = vadd.f32 0.0, %v2973
      %v2975 = vpop.f32.mrf.mxu0
      %v2976 = vadd.f32 0.0, %v2975
      %2977 = vmatmul.bf16.gmra.mxu0 %v2889
      %v2978 = vpop.f32.mrf.mxu0
      %v2979 = vadd.f32 0.0, %v2978
      %v2980 = vpop.f32.mrf.mxu0
      %v2981 = vadd.f32 0.0, %v2980
      %2982 = vdwg.mxu0
      %v2983 = vld [vmem:[#allocation4] sm:$0xff]
      %v2984 = vld [vmem:[#allocation4 + $0x8] sm:$0xff]
      %v2985 = vld [vmem:[#allocation4 + $0x10] sm:$0xff]
      %v2986 = vld [vmem:[#allocation4 + $0x18] sm:$0xff]
      %v2987 = vld [vmem:[#allocation4 + $0x20] sm:$0xff]
      %v2988 = vld [vmem:[#allocation4 + $0x28] sm:$0xff]
      %v2989 = vld [vmem:[#allocation4 + $0x30] sm:$0xff]
      %v2990 = vld [vmem:[#allocation4 + $0x38] sm:$0xff]
      %v2991 = vld [vmem:[#allocation4 + $0x40] sm:$0xff]
      %v2992 = vld [vmem:[#allocation4 + $0x48] sm:$0xff]
      %v2993 = vld [vmem:[#allocation4 + $0x50] sm:$0xff]
      %v2994 = vld [vmem:[#allocation4 + $0x58] sm:$0xff]
      %v2995 = vld [vmem:[#allocation4 + $0x60] sm:$0xff]
      %v2996 = vld [vmem:[#allocation4 + $0x68] sm:$0xff]
      %v2997 = vld [vmem:[#allocation4 + $0x70] sm:$0xff]
      %v2998 = vld [vmem:[#allocation4 + $0x78] sm:$0xff]
      %v2999 = vld [vmem:[#allocation4 + $0x80] sm:$0xff]
      %v3000 = vld [vmem:[#allocation4 + $0x88] sm:$0xff]
      %v3001 = vld [vmem:[#allocation4 + $0x90] sm:$0xff]
      %v3002 = vld [vmem:[#allocation4 + $0x98] sm:$0xff]
      %v3003 = vld [vmem:[#allocation4 + $0xa0] sm:$0xff]
      %v3004 = vld [vmem:[#allocation4 + $0xa8] sm:$0xff]
      %v3005 = vld [vmem:[#allocation4 + $0xb0] sm:$0xff]
      %v3006 = vld [vmem:[#allocation4 + $0xb8] sm:$0xff]
      %v3007 = vld [vmem:[#allocation4 + $0xc0] sm:$0xff]
      %v3008 = vld [vmem:[#allocation4 + $0xc8] sm:$0xff]
      %v3009 = vld [vmem:[#allocation4 + $0xd0] sm:$0xff]
      %v3010 = vld [vmem:[#allocation4 + $0xd8] sm:$0xff]
      %v3011 = vld [vmem:[#allocation4 + $0xe0] sm:$0xff]
      %v3012 = vld [vmem:[#allocation4 + $0xe8] sm:$0xff]
      %v3013 = vld [vmem:[#allocation4 + $0xf0] sm:$0xff]
      %v3014 = vld [vmem:[#allocation4 + $0xf8] sm:$0xff]
      %v3015 = vadd.f32 %v2983, %v2904
      %v3016 = vadd.f32 %v2984, %v2906
      %v3017 = vadd.f32 %v2985, %v2909
      %v3018 = vadd.f32 %v2986, %v2911
      %v3019 = vadd.f32 %v2987, %v2914
      %v3020 = vadd.f32 %v2988, %v2916
      %v3021 = vadd.f32 %v2989, %v2919
      %v3022 = vadd.f32 %v2990, %v2921
      %v3023 = vadd.f32 %v2991, %v2924
      %v3024 = vadd.f32 %v2992, %v2926
      %v3025 = vadd.f32 %v2993, %v2929
      %v3026 = vadd.f32 %v2994, %v2931
      %v3027 = vadd.f32 %v2995, %v2934
      %v3028 = vadd.f32 %v2996, %v2936
      %v3029 = vadd.f32 %v2997, %v2939
      %v3030 = vadd.f32 %v2998, %v2941
      %v3031 = vadd.f32 %v2999, %v2944
      %v3032 = vadd.f32 %v3000, %v2946
      %v3033 = vadd.f32 %v3001, %v2949
      %v3034 = vadd.f32 %v3002, %v2951
      %v3035 = vadd.f32 %v3003, %v2954
      %v3036 = vadd.f32 %v3004, %v2956
      %v3037 = vadd.f32 %v3005, %v2959
      %v3038 = vadd.f32 %v3006, %v2961
      %v3039 = vadd.f32 %v3007, %v2964
      %v3040 = vadd.f32 %v3008, %v2966
      %v3041 = vadd.f32 %v3009, %v2969
      %v3042 = vadd.f32 %v3010, %v2971
      %v3043 = vadd.f32 %v3011, %v2974
      %v3044 = vadd.f32 %v3012, %v2976
      %v3045 = vadd.f32 %v3013, %v2979
      %v3046 = vadd.f32 %v3014, %v2981
      %3047 = vst.msk [vmem:[#allocation4] sm:$0xff] %vm334, %v3015
      %3048 = vst.msk [vmem:[#allocation4 + $0x8] sm:$0xff] %vm334, %v3016
      %3049 = vst.msk [vmem:[#allocation4 + $0x10] sm:$0xff] %vm334, %v3017
      %3050 = vst.msk [vmem:[#allocation4 + $0x18] sm:$0xff] %vm334, %v3018
      %3051 = vst.msk [vmem:[#allocation4 + $0x20] sm:$0xff] %vm334, %v3019
      %3052 = vst.msk [vmem:[#allocation4 + $0x28] sm:$0xff] %vm334, %v3020
      %3053 = vst.msk [vmem:[#allocation4 + $0x30] sm:$0xff] %vm334, %v3021
      %3054 = vst.msk [vmem:[#allocation4 + $0x38] sm:$0xff] %vm334, %v3022
      %3055 = vst.msk [vmem:[#allocation4 + $0x40] sm:$0xff] %vm334, %v3023
      %3056 = vst.msk [vmem:[#allocation4 + $0x48] sm:$0xff] %vm334, %v3024
      %3057 = vst.msk [vmem:[#allocation4 + $0x50] sm:$0xff] %vm334, %v3025
      %3058 = vst.msk [vmem:[#allocation4 + $0x58] sm:$0xff] %vm334, %v3026
      %3059 = vst.msk [vmem:[#allocation4 + $0x60] sm:$0xff] %vm334, %v3027
      %3060 = vst.msk [vmem:[#allocation4 + $0x68] sm:$0xff] %vm334, %v3028
      %3061 = vst.msk [vmem:[#allocation4 + $0x70] sm:$0xff] %vm334, %v3029
      %3062 = vst.msk [vmem:[#allocation4 + $0x78] sm:$0xff] %vm334, %v3030
      %3063 = vst.msk [vmem:[#allocation4 + $0x80] sm:$0xff] %vm334, %v3031
      %3064 = vst.msk [vmem:[#allocation4 + $0x88] sm:$0xff] %vm334, %v3032
      %3065 = vst.msk [vmem:[#allocation4 + $0x90] sm:$0xff] %vm334, %v3033
      %3066 = vst.msk [vmem:[#allocation4 + $0x98] sm:$0xff] %vm334, %v3034
      %3067 = vst.msk [vmem:[#allocation4 + $0xa0] sm:$0xff] %vm334, %v3035
      %3068 = vst.msk [vmem:[#allocation4 + $0xa8] sm:$0xff] %vm334, %v3036
      %3069 = vst.msk [vmem:[#allocation4 + $0xb0] sm:$0xff] %vm334, %v3037
      %3070 = vst.msk [vmem:[#allocation4 + $0xb8] sm:$0xff] %vm334, %v3038
      %3071 = vst.msk [vmem:[#allocation4 + $0xc0] sm:$0xff] %vm334, %v3039
      %3072 = vst.msk [vmem:[#allocation4 + $0xc8] sm:$0xff] %vm334, %v3040
      %3073 = vst.msk [vmem:[#allocation4 + $0xd0] sm:$0xff] %vm334, %v3041
      %3074 = vst.msk [vmem:[#allocation4 + $0xd8] sm:$0xff] %vm334, %v3042
      %3075 = vst.msk [vmem:[#allocation4 + $0xe0] sm:$0xff] %vm334, %v3043
      %3076 = vst.msk [vmem:[#allocation4 + $0xe8] sm:$0xff] %vm334, %v3044
      %3077 = vst.msk [vmem:[#allocation4 + $0xf0] sm:$0xff] %vm334, %v3045
      %3078 = vst.msk [vmem:[#allocation4 + $0xf8] sm:$0xff] %vm334, %v3046
      %s3079 = scalar_lea.vmem [#allocation3], 48
      %v3080 = vld [vmem:[%s3079 + $0x1] sm:$0xff]
      %v3081 = vld [vmem:[%s3079 + $0x9] sm:$0xff]
      %v3082 = vld [vmem:[%s3079 + $0x19] sm:$0xff]
      %v3083 = vld [vmem:[%s3079 + $0x21] sm:$0xff]
      %v3084 = vld [vmem:[%s3079 + $0x31] sm:$0xff]
      %v3085 = vld [vmem:[%s3079 + $0x39] sm:$0xff]
      %v3086 = vld [vmem:[%s3079 + $0x49] sm:$0xff]
      %v3087 = vld [vmem:[%s3079 + $0x51] sm:$0xff]
      %v3088 = vld [vmem:[%s3079 + $0x61] sm:$0xff]
      %v3089 = vld [vmem:[%s3079 + $0x69] sm:$0xff]
      %v3090 = vld [vmem:[%s3079 + $0x79] sm:$0xff]
      %v3091 = vld [vmem:[%s3079 + $0x81] sm:$0xff]
      %v3092 = vld [vmem:[%s3079 + $0x91] sm:$0xff]
      %v3093 = vld [vmem:[%s3079 + $0x99] sm:$0xff]
      %v3094 = vld [vmem:[%s3079 + $0xa9] sm:$0xff]
      %v3095 = vld [vmem:[%s3079 + $0xb1] sm:$0xff]
      %v3096 = vld [vmem:[%s3079 + $0xc1] sm:$0xff]
      %v3097 = vld [vmem:[%s3079 + $0xc9] sm:$0xff]
      %v3098 = vld [vmem:[%s3079 + $0xd9] sm:$0xff]
      %v3099 = vld [vmem:[%s3079 + $0xe1] sm:$0xff]
      %v3100 = vld [vmem:[%s3079 + $0xf1] sm:$0xff]
      %v3101 = vld [vmem:[%s3079 + $0xf9] sm:$0xff]
      %v3102 = vld [vmem:[%s3079 + $0x109] sm:$0xff]
      %v3103 = vld [vmem:[%s3079 + $0x111] sm:$0xff]
      %v3104 = vld [vmem:[%s3079 + $0x121] sm:$0xff]
      %v3105 = vld [vmem:[%s3079 + $0x129] sm:$0xff]
      %v3106 = vld [vmem:[%s3079 + $0x139] sm:$0xff]
      %v3107 = vld [vmem:[%s3079 + $0x141] sm:$0xff]
      %v3108 = vld [vmem:[%s3079 + $0x151] sm:$0xff]
      %v3109 = vld [vmem:[%s3079 + $0x159] sm:$0xff]
      %v3110 = vld [vmem:[%s3079 + $0x169] sm:$0xff]
      %v3111 = vld [vmem:[%s3079 + $0x171] sm:$0xff]
      %v3112 = vpack.c.bf16 %v3081, %v3080
      %v3113 = vpack.c.bf16 %v3083, %v3082
      %v3114 = vpack.c.bf16 %v3085, %v3084
      %v3115 = vpack.c.bf16 %v3087, %v3086
      %v3116 = vpack.c.bf16 %v3089, %v3088
      %v3117 = vpack.c.bf16 %v3091, %v3090
      %v3118 = vpack.c.bf16 %v3093, %v3092
      %v3119 = vpack.c.bf16 %v3095, %v3094
      %v3120 = vpack.c.bf16 %v3097, %v3096
      %v3121 = vpack.c.bf16 %v3099, %v3098
      %v3122 = vpack.c.bf16 %v3101, %v3100
      %v3123 = vpack.c.bf16 %v3103, %v3102
      %v3124 = vpack.c.bf16 %v3105, %v3104
      %v3125 = vpack.c.bf16 %v3107, %v3106
      %v3126 = vpack.c.bf16 %v3109, %v3108
      %v3127 = vpack.c.bf16 %v3111, %v3110
      %s3128 = scalar_lea.vmem %s3, 8
      %v3129 = vld [vmem:[%s3128] sm:$0x3]
      %v3131 = vsel %vm334, %v3112, 0
      %v3134 = vsel %vm334, %v3113, 0
      %v3137 = vsel %vm334, %v3114, 0
      %v3140 = vsel %vm334, %v3115, 0
      %v3143 = vsel %vm334, %v3116, 0
      %v3146 = vsel %vm334, %v3117, 0
      %v3149 = vsel %vm334, %v3118, 0
      %v3152 = vsel %vm334, %v3119, 0
      %v3155 = vsel %vm334, %v3120, 0
      %v3158 = vsel %vm334, %v3121, 0
      %v3161 = vsel %vm334, %v3122, 0
      %v3164 = vsel %vm334, %v3123, 0
      %v3167 = vsel %vm334, %v3124, 0
      %v3170 = vsel %vm334, %v3125, 0
      %v3173 = vsel %vm334, %v3126, 0
      %v3176 = vsel %vm334, %v3127, 0
      %v3179 = vsel %vm597, %v3129, 0
      %3181 = vmatpush.bf16.msra.mxu0 0
      %3182 = vmatpush.bf16.msra.mxu0 0
      %3183 = vmatpush.bf16.msra.mxu0 0
      %3184 = vmatpush.bf16.msra.mxu0 0
      %3185 = vmatpush.bf16.msra.mxu0 0
      %3186 = vmatpush.bf16.msra.mxu0 0
      %3187 = vmatpush.bf16.msra.mxu0 0
      %3188 = vmatpush.bf16.msra.mxu0 %v3179
      %3189 = vmatmul.bf16.gmra.mxu0 %v3131
      %v3190 = vpop.f32.mrf.mxu0
      %v3191 = vadd.f32 0.0, %v3190
      %v3192 = vpop.f32.mrf.mxu0
      %v3193 = vadd.f32 0.0, %v3192
      %3194 = vmatmul.bf16.gmra.mxu0 %v3134
      %v3195 = vpop.f32.mrf.mxu0
      %v3196 = vadd.f32 0.0, %v3195
      %v3197 = vpop.f32.mrf.mxu0
      %v3198 = vadd.f32 0.0, %v3197
      %3199 = vmatmul.bf16.gmra.mxu0 %v3137
      %v3200 = vpop.f32.mrf.mxu0
      %v3201 = vadd.f32 0.0, %v3200
      %v3202 = vpop.f32.mrf.mxu0
      %v3203 = vadd.f32 0.0, %v3202
      %3204 = vmatmul.bf16.gmra.mxu0 %v3140
      %v3205 = vpop.f32.mrf.mxu0
      %v3206 = vadd.f32 0.0, %v3205
      %v3207 = vpop.f32.mrf.mxu0
      %v3208 = vadd.f32 0.0, %v3207
      %3209 = vmatmul.bf16.gmra.mxu0 %v3143
      %v3210 = vpop.f32.mrf.mxu0
      %v3211 = vadd.f32 0.0, %v3210
      %v3212 = vpop.f32.mrf.mxu0
      %v3213 = vadd.f32 0.0, %v3212
      %3214 = vmatmul.bf16.gmra.mxu0 %v3146
      %v3215 = vpop.f32.mrf.mxu0
      %v3216 = vadd.f32 0.0, %v3215
      %v3217 = vpop.f32.mrf.mxu0
      %v3218 = vadd.f32 0.0, %v3217
      %3219 = vmatmul.bf16.gmra.mxu0 %v3149
      %v3220 = vpop.f32.mrf.mxu0
      %v3221 = vadd.f32 0.0, %v3220
      %v3222 = vpop.f32.mrf.mxu0
      %v3223 = vadd.f32 0.0, %v3222
      %3224 = vmatmul.bf16.gmra.mxu0 %v3152
      %v3225 = vpop.f32.mrf.mxu0
      %v3226 = vadd.f32 0.0, %v3225
      %v3227 = vpop.f32.mrf.mxu0
      %v3228 = vadd.f32 0.0, %v3227
      %3229 = vmatmul.bf16.gmra.mxu0 %v3155
      %v3230 = vpop.f32.mrf.mxu0
      %v3231 = vadd.f32 0.0, %v3230
      %v3232 = vpop.f32.mrf.mxu0
      %v3233 = vadd.f32 0.0, %v3232
      %3234 = vmatmul.bf16.gmra.mxu0 %v3158
      %v3235 = vpop.f32.mrf.mxu0
      %v3236 = vadd.f32 0.0, %v3235
      %v3237 = vpop.f32.mrf.mxu0
      %v3238 = vadd.f32 0.0, %v3237
      %3239 = vmatmul.bf16.gmra.mxu0 %v3161
      %v3240 = vpop.f32.mrf.mxu0
      %v3241 = vadd.f32 0.0, %v3240
      %v3242 = vpop.f32.mrf.mxu0
      %v3243 = vadd.f32 0.0, %v3242
      %3244 = vmatmul.bf16.gmra.mxu0 %v3164
      %v3245 = vpop.f32.mrf.mxu0
      %v3246 = vadd.f32 0.0, %v3245
      %v3247 = vpop.f32.mrf.mxu0
      %v3248 = vadd.f32 0.0, %v3247
      %3249 = vmatmul.bf16.gmra.mxu0 %v3167
      %v3250 = vpop.f32.mrf.mxu0
      %v3251 = vadd.f32 0.0, %v3250
      %v3252 = vpop.f32.mrf.mxu0
      %v3253 = vadd.f32 0.0, %v3252
      %3254 = vmatmul.bf16.gmra.mxu0 %v3170
      %v3255 = vpop.f32.mrf.mxu0
      %v3256 = vadd.f32 0.0, %v3255
      %v3257 = vpop.f32.mrf.mxu0
      %v3258 = vadd.f32 0.0, %v3257
      %3259 = vmatmul.bf16.gmra.mxu0 %v3173
      %v3260 = vpop.f32.mrf.mxu0
      %v3261 = vadd.f32 0.0, %v3260
      %v3262 = vpop.f32.mrf.mxu0
      %v3263 = vadd.f32 0.0, %v3262
      %3264 = vmatmul.bf16.gmra.mxu0 %v3176
      %v3265 = vpop.f32.mrf.mxu0
      %v3266 = vadd.f32 0.0, %v3265
      %v3267 = vpop.f32.mrf.mxu0
      %v3268 = vadd.f32 0.0, %v3267
      %3269 = vdwg.mxu0
      %v3270 = vld [vmem:[#allocation4] sm:$0xff]
      %v3271 = vld [vmem:[#allocation4 + $0x8] sm:$0xff]
      %v3272 = vld [vmem:[#allocation4 + $0x10] sm:$0xff]
      %v3273 = vld [vmem:[#allocation4 + $0x18] sm:$0xff]
      %v3274 = vld [vmem:[#allocation4 + $0x20] sm:$0xff]
      %v3275 = vld [vmem:[#allocation4 + $0x28] sm:$0xff]
      %v3276 = vld [vmem:[#allocation4 + $0x30] sm:$0xff]
      %v3277 = vld [vmem:[#allocation4 + $0x38] sm:$0xff]
      %v3278 = vld [vmem:[#allocation4 + $0x40] sm:$0xff]
      %v3279 = vld [vmem:[#allocation4 + $0x48] sm:$0xff]
      %v3280 = vld [vmem:[#allocation4 + $0x50] sm:$0xff]
      %v3281 = vld [vmem:[#allocation4 + $0x58] sm:$0xff]
      %v3282 = vld [vmem:[#allocation4 + $0x60] sm:$0xff]
      %v3283 = vld [vmem:[#allocation4 + $0x68] sm:$0xff]
      %v3284 = vld [vmem:[#allocation4 + $0x70] sm:$0xff]
      %v3285 = vld [vmem:[#allocation4 + $0x78] sm:$0xff]
      %v3286 = vld [vmem:[#allocation4 + $0x80] sm:$0xff]
      %v3287 = vld [vmem:[#allocation4 + $0x88] sm:$0xff]
      %v3288 = vld [vmem:[#allocation4 + $0x90] sm:$0xff]
      %v3289 = vld [vmem:[#allocation4 + $0x98] sm:$0xff]
      %v3290 = vld [vmem:[#allocation4 + $0xa0] sm:$0xff]
      %v3291 = vld [vmem:[#allocation4 + $0xa8] sm:$0xff]
      %v3292 = vld [vmem:[#allocation4 + $0xb0] sm:$0xff]
      %v3293 = vld [vmem:[#allocation4 + $0xb8] sm:$0xff]
      %v3294 = vld [vmem:[#allocation4 + $0xc0] sm:$0xff]
      %v3295 = vld [vmem:[#allocation4 + $0xc8] sm:$0xff]
      %v3296 = vld [vmem:[#allocation4 + $0xd0] sm:$0xff]
      %v3297 = vld [vmem:[#allocation4 + $0xd8] sm:$0xff]
      %v3298 = vld [vmem:[#allocation4 + $0xe0] sm:$0xff]
      %v3299 = vld [vmem:[#allocation4 + $0xe8] sm:$0xff]
      %v3300 = vld [vmem:[#allocation4 + $0xf0] sm:$0xff]
      %v3301 = vld [vmem:[#allocation4 + $0xf8] sm:$0xff]
      %v3302 = vadd.f32 %v3270, %v3191
      %v3303 = vadd.f32 %v3271, %v3193
      %v3304 = vadd.f32 %v3272, %v3196
      %v3305 = vadd.f32 %v3273, %v3198
      %v3306 = vadd.f32 %v3274, %v3201
      %v3307 = vadd.f32 %v3275, %v3203
      %v3308 = vadd.f32 %v3276, %v3206
      %v3309 = vadd.f32 %v3277, %v3208
      %v3310 = vadd.f32 %v3278, %v3211
      %v3311 = vadd.f32 %v3279, %v3213
      %v3312 = vadd.f32 %v3280, %v3216
      %v3313 = vadd.f32 %v3281, %v3218
      %v3314 = vadd.f32 %v3282, %v3221
      %v3315 = vadd.f32 %v3283, %v3223
      %v3316 = vadd.f32 %v3284, %v3226
      %v3317 = vadd.f32 %v3285, %v3228
      %v3318 = vadd.f32 %v3286, %v3231
      %v3319 = vadd.f32 %v3287, %v3233
      %v3320 = vadd.f32 %v3288, %v3236
      %v3321 = vadd.f32 %v3289, %v3238
      %v3322 = vadd.f32 %v3290, %v3241
      %v3323 = vadd.f32 %v3291, %v3243
      %v3324 = vadd.f32 %v3292, %v3246
      %v3325 = vadd.f32 %v3293, %v3248
      %v3326 = vadd.f32 %v3294, %v3251
      %v3327 = vadd.f32 %v3295, %v3253
      %v3328 = vadd.f32 %v3296, %v3256
      %v3329 = vadd.f32 %v3297, %v3258
      %v3330 = vadd.f32 %v3298, %v3261
      %v3331 = vadd.f32 %v3299, %v3263
      %v3332 = vadd.f32 %v3300, %v3266
      %v3333 = vadd.f32 %v3301, %v3268
      %3334 = vst.msk [vmem:[#allocation4] sm:$0xff] %vm334, %v3302
      %3335 = vst.msk [vmem:[#allocation4 + $0x8] sm:$0xff] %vm334, %v3303
      %3336 = vst.msk [vmem:[#allocation4 + $0x10] sm:$0xff] %vm334, %v3304
      %3337 = vst.msk [vmem:[#allocation4 + $0x18] sm:$0xff] %vm334, %v3305
      %3338 = vst.msk [vmem:[#allocation4 + $0x20] sm:$0xff] %vm334, %v3306
      %3339 = vst.msk [vmem:[#allocation4 + $0x28] sm:$0xff] %vm334, %v3307
      %3340 = vst.msk [vmem:[#allocation4 + $0x30] sm:$0xff] %vm334, %v3308
      %3341 = vst.msk [vmem:[#allocation4 + $0x38] sm:$0xff] %vm334, %v3309
      %3342 = vst.msk [vmem:[#allocation4 + $0x40] sm:$0xff] %vm334, %v3310
      %3343 = vst.msk [vmem:[#allocation4 + $0x48] sm:$0xff] %vm334, %v3311
      %3344 = vst.msk [vmem:[#allocation4 + $0x50] sm:$0xff] %vm334, %v3312
      %3345 = vst.msk [vmem:[#allocation4 + $0x58] sm:$0xff] %vm334, %v3313
      %3346 = vst.msk [vmem:[#allocation4 + $0x60] sm:$0xff] %vm334, %v3314
      %3347 = vst.msk [vmem:[#allocation4 + $0x68] sm:$0xff] %vm334, %v3315
      %3348 = vst.msk [vmem:[#allocation4 + $0x70] sm:$0xff] %vm334, %v3316
      %3349 = vst.msk [vmem:[#allocation4 + $0x78] sm:$0xff] %vm334, %v3317
      %3350 = vst.msk [vmem:[#allocation4 + $0x80] sm:$0xff] %vm334, %v3318
      %3351 = vst.msk [vmem:[#allocation4 + $0x88] sm:$0xff] %vm334, %v3319
      %3352 = vst.msk [vmem:[#allocation4 + $0x90] sm:$0xff] %vm334, %v3320
      %3353 = vst.msk [vmem:[#allocation4 + $0x98] sm:$0xff] %vm334, %v3321
      %3354 = vst.msk [vmem:[#allocation4 + $0xa0] sm:$0xff] %vm334, %v3322
      %3355 = vst.msk [vmem:[#allocation4 + $0xa8] sm:$0xff] %vm334, %v3323
      %3356 = vst.msk [vmem:[#allocation4 + $0xb0] sm:$0xff] %vm334, %v3324
      %3357 = vst.msk [vmem:[#allocation4 + $0xb8] sm:$0xff] %vm334, %v3325
      %3358 = vst.msk [vmem:[#allocation4 + $0xc0] sm:$0xff] %vm334, %v3326
      %3359 = vst.msk [vmem:[#allocation4 + $0xc8] sm:$0xff] %vm334, %v3327
      %3360 = vst.msk [vmem:[#allocation4 + $0xd0] sm:$0xff] %vm334, %v3328
      %3361 = vst.msk [vmem:[#allocation4 + $0xd8] sm:$0xff] %vm334, %v3329
      %3362 = vst.msk [vmem:[#allocation4 + $0xe0] sm:$0xff] %vm334, %v3330
      %3363 = vst.msk [vmem:[#allocation4 + $0xe8] sm:$0xff] %vm334, %v3331
      %3364 = vst.msk [vmem:[#allocation4 + $0xf0] sm:$0xff] %vm334, %v3332
      %3365 = vst.msk [vmem:[#allocation4 + $0xf8] sm:$0xff] %vm334, %v3333
      %v3366 = vld [vmem:[#allocation4] sm:$0xff]
      %v3367 = vld [vmem:[#allocation4 + $0x8] sm:$0xff]
      %v3368 = vld [vmem:[#allocation4 + $0x10] sm:$0xff]
      %v3369 = vld [vmem:[#allocation4 + $0x18] sm:$0xff]
      %v3370 = vld [vmem:[#allocation4 + $0x20] sm:$0xff]
      %v3371 = vld [vmem:[#allocation4 + $0x28] sm:$0xff]
      %v3372 = vld [vmem:[#allocation4 + $0x30] sm:$0xff]
      %v3373 = vld [vmem:[#allocation4 + $0x38] sm:$0xff]
      %v3374 = vld [vmem:[#allocation4 + $0x40] sm:$0xff]
      %v3375 = vld [vmem:[#allocation4 + $0x48] sm:$0xff]
      %v3376 = vld [vmem:[#allocation4 + $0x50] sm:$0xff]
      %v3377 = vld [vmem:[#allocation4 + $0x58] sm:$0xff]
      %v3378 = vld [vmem:[#allocation4 + $0x60] sm:$0xff]
      %v3379 = vld [vmem:[#allocation4 + $0x68] sm:$0xff]
      %v3380 = vld [vmem:[#allocation4 + $0x70] sm:$0xff]
      %v3381 = vld [vmem:[#allocation4 + $0x78] sm:$0xff]
      %v3382 = vld [vmem:[#allocation4 + $0x80] sm:$0xff]
      %v3383 = vld [vmem:[#allocation4 + $0x88] sm:$0xff]
      %v3384 = vld [vmem:[#allocation4 + $0x90] sm:$0xff]
      %v3385 = vld [vmem:[#allocation4 + $0x98] sm:$0xff]
      %v3386 = vld [vmem:[#allocation4 + $0xa0] sm:$0xff]
      %v3387 = vld [vmem:[#allocation4 + $0xa8] sm:$0xff]
      %v3388 = vld [vmem:[#allocation4 + $0xb0] sm:$0xff]
      %v3389 = vld [vmem:[#allocation4 + $0xb8] sm:$0xff]
      %v3390 = vld [vmem:[#allocation4 + $0xc0] sm:$0xff]
      %v3391 = vld [vmem:[#allocation4 + $0xc8] sm:$0xff]
      %v3392 = vld [vmem:[#allocation4 + $0xd0] sm:$0xff]
      %v3393 = vld [vmem:[#allocation4 + $0xd8] sm:$0xff]
      %v3394 = vld [vmem:[#allocation4 + $0xe0] sm:$0xff]
      %v3395 = vld [vmem:[#allocation4 + $0xe8] sm:$0xff]
      %v3396 = vld [vmem:[#allocation4 + $0xf0] sm:$0xff]
      %v3397 = vld [vmem:[#allocation4 + $0xf8] sm:$0xff]
      %v3398 = vld [vmem:[%s4] sm:$0x1]
      %v3400 = vperm.slane %v3398, 0
      %v3402 = vadd.f32 %v3366, %v3400
      %v3403 = vadd.f32 %v3367, %v3400
      %v3404 = vadd.f32 %v3368, %v3400
      %v3405 = vadd.f32 %v3369, %v3400
      %v3406 = vadd.f32 %v3370, %v3400
      %v3407 = vadd.f32 %v3371, %v3400
      %v3408 = vadd.f32 %v3372, %v3400
      %v3409 = vadd.f32 %v3373, %v3400
      %v3410 = vadd.f32 %v3374, %v3400
      %v3411 = vadd.f32 %v3375, %v3400
      %v3412 = vadd.f32 %v3376, %v3400
      %v3413 = vadd.f32 %v3377, %v3400
      %v3414 = vadd.f32 %v3378, %v3400
      %v3415 = vadd.f32 %v3379, %v3400
      %v3416 = vadd.f32 %v3380, %v3400
      %v3417 = vadd.f32 %v3381, %v3400
      %v3418 = vadd.f32 %v3382, %v3400
      %v3419 = vadd.f32 %v3383, %v3400
      %v3420 = vadd.f32 %v3384, %v3400
      %v3421 = vadd.f32 %v3385, %v3400
      %v3422 = vadd.f32 %v3386, %v3400
      %v3423 = vadd.f32 %v3387, %v3400
      %v3424 = vadd.f32 %v3388, %v3400
      %v3425 = vadd.f32 %v3389, %v3400
      %v3426 = vadd.f32 %v3390, %v3400
      %v3427 = vadd.f32 %v3391, %v3400
      %v3428 = vadd.f32 %v3392, %v3400
      %v3429 = vadd.f32 %v3393, %v3400
      %v3430 = vadd.f32 %v3394, %v3400
      %v3431 = vadd.f32 %v3395, %v3400
      %v3432 = vadd.f32 %v3396, %v3400
      %v3433 = vadd.f32 %v3397, %v3400
      %v3434 = vmax.f32 %v3402, 0.0
      %v3435 = vmax.f32 %v3403, 0.0
      %v3436 = vmax.f32 %v3404, 0.0
      %v3437 = vmax.f32 %v3405, 0.0
      %v3438 = vmax.f32 %v3406, 0.0
      %v3439 = vmax.f32 %v3407, 0.0
      %v3440 = vmax.f32 %v3408, 0.0
      %v3441 = vmax.f32 %v3409, 0.0
      %v3442 = vmax.f32 %v3410, 0.0
      %v3443 = vmax.f32 %v3411, 0.0
      %v3444 = vmax.f32 %v3412, 0.0
      %v3445 = vmax.f32 %v3413, 0.0
      %v3446 = vmax.f32 %v3414, 0.0
      %v3447 = vmax.f32 %v3415, 0.0
      %v3448 = vmax.f32 %v3416, 0.0
      %v3449 = vmax.f32 %v3417, 0.0
      %v3450 = vmax.f32 %v3418, 0.0
      %v3451 = vmax.f32 %v3419, 0.0
      %v3452 = vmax.f32 %v3420, 0.0
      %v3453 = vmax.f32 %v3421, 0.0
      %v3454 = vmax.f32 %v3422, 0.0
      %v3455 = vmax.f32 %v3423, 0.0
      %v3456 = vmax.f32 %v3424, 0.0
      %v3457 = vmax.f32 %v3425, 0.0
      %v3458 = vmax.f32 %v3426, 0.0
      %v3459 = vmax.f32 %v3427, 0.0
      %v3460 = vmax.f32 %v3428, 0.0
      %v3461 = vmax.f32 %v3429, 0.0
      %v3462 = vmax.f32 %v3430, 0.0
      %v3463 = vmax.f32 %v3431, 0.0
      %v3464 = vmax.f32 %v3432, 0.0
      %v3465 = vmax.f32 %v3433, 0.0
      %3466 = vst.msk [vmem:[%s1967 + $0x1] sm:$0xff] %vm334, %v3434
      %3467 = vst.msk [vmem:[%s1967 + $0x9] sm:$0xff] %vm334, %v3435
      %3468 = vst.msk [vmem:[%s1967 + $0x19] sm:$0xff] %vm334, %v3436
      %3469 = vst.msk [vmem:[%s1967 + $0x21] sm:$0xff] %vm334, %v3437
      %3470 = vst.msk [vmem:[%s1967 + $0x31] sm:$0xff] %vm334, %v3438
      %3471 = vst.msk [vmem:[%s1967 + $0x39] sm:$0xff] %vm334, %v3439
      %3472 = vst.msk [vmem:[%s1967 + $0x49] sm:$0xff] %vm334, %v3440
      %3473 = vst.msk [vmem:[%s1967 + $0x51] sm:$0xff] %vm334, %v3441
      %3474 = vst.msk [vmem:[%s1967 + $0x61] sm:$0xff] %vm334, %v3442
      %3475 = vst.msk [vmem:[%s1967 + $0x69] sm:$0xff] %vm334, %v3443
      %3476 = vst.msk [vmem:[%s1967 + $0x79] sm:$0xff] %vm334, %v3444
      %3477 = vst.msk [vmem:[%s1967 + $0x81] sm:$0xff] %vm334, %v3445
      %3478 = vst.msk [vmem:[%s1967 + $0x91] sm:$0xff] %vm334, %v3446
      %3479 = vst.msk [vmem:[%s1967 + $0x99] sm:$0xff] %vm334, %v3447
      %3480 = vst.msk [vmem:[%s1967 + $0xa9] sm:$0xff] %vm334, %v3448
      %3481 = vst.msk [vmem:[%s1967 + $0xb1] sm:$0xff] %vm334, %v3449
      %3482 = vst.msk [vmem:[%s1967 + $0xc1] sm:$0xff] %vm334, %v3450
      %3483 = vst.msk [vmem:[%s1967 + $0xc9] sm:$0xff] %vm334, %v3451
      %3484 = vst.msk [vmem:[%s1967 + $0xd9] sm:$0xff] %vm334, %v3452
      %3485 = vst.msk [vmem:[%s1967 + $0xe1] sm:$0xff] %vm334, %v3453
      %3486 = vst.msk [vmem:[%s1967 + $0xf1] sm:$0xff] %vm334, %v3454
      %3487 = vst.msk [vmem:[%s1967 + $0xf9] sm:$0xff] %vm334, %v3455
      %3488 = vst.msk [vmem:[%s1967 + $0x109] sm:$0xff] %vm334, %v3456
      %3489 = vst.msk [vmem:[%s1967 + $0x111] sm:$0xff] %vm334, %v3457
      %3490 = vst.msk [vmem:[%s1967 + $0x121] sm:$0xff] %vm334, %v3458
      %3491 = vst.msk [vmem:[%s1967 + $0x129] sm:$0xff] %vm334, %v3459
      %3492 = vst.msk [vmem:[%s1967 + $0x139] sm:$0xff] %vm334, %v3460
      %3493 = vst.msk [vmem:[%s1967 + $0x141] sm:$0xff] %vm334, %v3461
      %3494 = vst.msk [vmem:[%s1967 + $0x151] sm:$0xff] %vm334, %v3462
      %3495 = vst.msk [vmem:[%s1967 + $0x159] sm:$0xff] %vm334, %v3463
      %3496 = vst.msk [vmem:[%s1967 + $0x169] sm:$0xff] %vm334, %v3464
      %3497 = vst.msk [vmem:[%s1967 + $0x171] sm:$0xff] %vm334, %v3465
      %v3498 = vld [vmem:[#allocation3] sm:$0xff]
      %v3499 = vld [vmem:[#allocation3 + $0x8] sm:$0xff]
      %v3500 = vld [vmem:[#allocation3 + $0x18] sm:$0xff]
      %v3501 = vld [vmem:[#allocation3 + $0x20] sm:$0xff]
      %v3502 = vld [vmem:[#allocation3 + $0x30] sm:$0xff]
      %v3503 = vld [vmem:[#allocation3 + $0x38] sm:$0xff]
      %v3504 = vld [vmem:[#allocation3 + $0x48] sm:$0xff]
      %v3505 = vld [vmem:[#allocation3 + $0x50] sm:$0xff]
      %v3506 = vld [vmem:[#allocation3 + $0x60] sm:$0xff]
      %v3507 = vld [vmem:[#allocation3 + $0x68] sm:$0xff]
      %v3508 = vld [vmem:[#allocation3 + $0x78] sm:$0xff]
      %v3509 = vld [vmem:[#allocation3 + $0x80] sm:$0xff]
      %v3510 = vld [vmem:[#allocation3 + $0x90] sm:$0xff]
      %v3511 = vld [vmem:[#allocation3 + $0x98] sm:$0xff]
      %v3512 = vld [vmem:[#allocation3 + $0xa8] sm:$0xff]
      %v3513 = vld [vmem:[#allocation3 + $0xb0] sm:$0xff]
      %v3514 = vld [vmem:[#allocation3 + $0xc0] sm:$0xff]
      %v3515 = vld [vmem:[#allocation3 + $0xc8] sm:$0xff]
      %v3516 = vld [vmem:[#allocation3 + $0xd8] sm:$0xff]
      %v3517 = vld [vmem:[#allocation3 + $0xe0] sm:$0xff]
      %v3518 = vld [vmem:[#allocation3 + $0xf0] sm:$0xff]
      %v3519 = vld [vmem:[#allocation3 + $0xf8] sm:$0xff]
      %v3520 = vld [vmem:[#allocation3 + $0x108] sm:$0xff]
      %v3521 = vld [vmem:[#allocation3 + $0x110] sm:$0xff]
      %v3522 = vld [vmem:[#allocation3 + $0x120] sm:$0xff]
      %v3523 = vld [vmem:[#allocation3 + $0x128] sm:$0xff]
      %v3524 = vld [vmem:[#allocation3 + $0x138] sm:$0xff]
      %v3525 = vld [vmem:[#allocation3 + $0x140] sm:$0xff]
      %v3526 = vld [vmem:[#allocation3 + $0x150] sm:$0xff]
      %v3527 = vld [vmem:[#allocation3 + $0x158] sm:$0xff]
      %v3528 = vld [vmem:[#allocation3 + $0x168] sm:$0xff]
      %v3529 = vld [vmem:[#allocation3 + $0x170] sm:$0xff]
      %v3530 = vpack.c.bf16 %v3499, %v3498
      %v3531 = vpack.c.bf16 %v3501, %v3500
      %v3532 = vpack.c.bf16 %v3503, %v3502
      %v3533 = vpack.c.bf16 %v3505, %v3504
      %v3534 = vpack.c.bf16 %v3507, %v3506
      %v3535 = vpack.c.bf16 %v3509, %v3508
      %v3536 = vpack.c.bf16 %v3511, %v3510
      %v3537 = vpack.c.bf16 %v3513, %v3512
      %v3538 = vpack.c.bf16 %v3515, %v3514
      %v3539 = vpack.c.bf16 %v3517, %v3516
      %v3540 = vpack.c.bf16 %v3519, %v3518
      %v3541 = vpack.c.bf16 %v3521, %v3520
      %v3542 = vpack.c.bf16 %v3523, %v3522
      %v3543 = vpack.c.bf16 %v3525, %v3524
      %v3544 = vpack.c.bf16 %v3527, %v3526
      %v3545 = vpack.c.bf16 %v3529, %v3528
      %v3546 = vld [vmem:[%s5] sm:$0x3]
      %v3548 = vsel %vm334, %v3530, 0
      %v3551 = vsel %vm334, %v3531, 0
      %v3554 = vsel %vm334, %v3532, 0
      %v3557 = vsel %vm334, %v3533, 0
      %v3560 = vsel %vm334, %v3534, 0
      %v3563 = vsel %vm334, %v3535, 0
      %v3566 = vsel %vm334, %v3536, 0
      %v3569 = vsel %vm334, %v3537, 0
      %v3572 = vsel %vm334, %v3538, 0
      %v3575 = vsel %vm334, %v3539, 0
      %v3578 = vsel %vm334, %v3540, 0
      %v3581 = vsel %vm334, %v3541, 0
      %v3584 = vsel %vm334, %v3542, 0
      %v3587 = vsel %vm334, %v3543, 0
      %v3590 = vsel %vm334, %v3544, 0
      %v3593 = vsel %vm334, %v3545, 0
      %v3596 = vsel %vm597, %v3546, 0
      %3598 = vmatpush.bf16.msra.mxu0 0
      %3599 = vmatpush.bf16.msra.mxu0 0
      %3600 = vmatpush.bf16.msra.mxu0 0
      %3601 = vmatpush.bf16.msra.mxu0 0
      %3602 = vmatpush.bf16.msra.mxu0 0
      %3603 = vmatpush.bf16.msra.mxu0 0
      %3604 = vmatpush.bf16.msra.mxu0 0
      %3605 = vmatpush.bf16.msra.mxu0 %v3596
      %3606 = vmatmul.bf16.gmra.mxu0 %v3548
      %v3607 = vpop.f32.mrf.mxu0
      %v3608 = vadd.f32 0.0, %v3607
      %v3609 = vpop.f32.mrf.mxu0
      %v3610 = vadd.f32 0.0, %v3609
      %3611 = vmatmul.bf16.gmra.mxu0 %v3551
      %v3612 = vpop.f32.mrf.mxu0
      %v3613 = vadd.f32 0.0, %v3612
      %v3614 = vpop.f32.mrf.mxu0
      %v3615 = vadd.f32 0.0, %v3614
      %3616 = vmatmul.bf16.gmra.mxu0 %v3554
      %v3617 = vpop.f32.mrf.mxu0
      %v3618 = vadd.f32 0.0, %v3617
      %v3619 = vpop.f32.mrf.mxu0
      %v3620 = vadd.f32 0.0, %v3619
      %3621 = vmatmul.bf16.gmra.mxu0 %v3557
      %v3622 = vpop.f32.mrf.mxu0
      %v3623 = vadd.f32 0.0, %v3622
      %v3624 = vpop.f32.mrf.mxu0
      %v3625 = vadd.f32 0.0, %v3624
      %3626 = vmatmul.bf16.gmra.mxu0 %v3560
      %v3627 = vpop.f32.mrf.mxu0
      %v3628 = vadd.f32 0.0, %v3627
      %v3629 = vpop.f32.mrf.mxu0
      %v3630 = vadd.f32 0.0, %v3629
      %3631 = vmatmul.bf16.gmra.mxu0 %v3563
      %v3632 = vpop.f32.mrf.mxu0
      %v3633 = vadd.f32 0.0, %v3632
      %v3634 = vpop.f32.mrf.mxu0
      %v3635 = vadd.f32 0.0, %v3634
      %3636 = vmatmul.bf16.gmra.mxu0 %v3566
      %v3637 = vpop.f32.mrf.mxu0
      %v3638 = vadd.f32 0.0, %v3637
      %v3639 = vpop.f32.mrf.mxu0
      %v3640 = vadd.f32 0.0, %v3639
      %3641 = vmatmul.bf16.gmra.mxu0 %v3569
      %v3642 = vpop.f32.mrf.mxu0
      %v3643 = vadd.f32 0.0, %v3642
      %v3644 = vpop.f32.mrf.mxu0
      %v3645 = vadd.f32 0.0, %v3644
      %3646 = vmatmul.bf16.gmra.mxu0 %v3572
      %v3647 = vpop.f32.mrf.mxu0
      %v3648 = vadd.f32 0.0, %v3647
      %v3649 = vpop.f32.mrf.mxu0
      %v3650 = vadd.f32 0.0, %v3649
      %3651 = vmatmul.bf16.gmra.mxu0 %v3575
      %v3652 = vpop.f32.mrf.mxu0
      %v3653 = vadd.f32 0.0, %v3652
      %v3654 = vpop.f32.mrf.mxu0
      %v3655 = vadd.f32 0.0, %v3654
      %3656 = vmatmul.bf16.gmra.mxu0 %v3578
      %v3657 = vpop.f32.mrf.mxu0
      %v3658 = vadd.f32 0.0, %v3657
      %v3659 = vpop.f32.mrf.mxu0
      %v3660 = vadd.f32 0.0, %v3659
      %3661 = vmatmul.bf16.gmra.mxu0 %v3581
      %v3662 = vpop.f32.mrf.mxu0
      %v3663 = vadd.f32 0.0, %v3662
      %v3664 = vpop.f32.mrf.mxu0
      %v3665 = vadd.f32 0.0, %v3664
      %3666 = vmatmul.bf16.gmra.mxu0 %v3584
      %v3667 = vpop.f32.mrf.mxu0
      %v3668 = vadd.f32 0.0, %v3667
      %v3669 = vpop.f32.mrf.mxu0
      %v3670 = vadd.f32 0.0, %v3669
      %3671 = vmatmul.bf16.gmra.mxu0 %v3587
      %v3672 = vpop.f32.mrf.mxu0
      %v3673 = vadd.f32 0.0, %v3672
      %v3674 = vpop.f32.mrf.mxu0
      %v3675 = vadd.f32 0.0, %v3674
      %3676 = vmatmul.bf16.gmra.mxu0 %v3590
      %v3677 = vpop.f32.mrf.mxu0
      %v3678 = vadd.f32 0.0, %v3677
      %v3679 = vpop.f32.mrf.mxu0
      %v3680 = vadd.f32 0.0, %v3679
      %3681 = vmatmul.bf16.gmra.mxu0 %v3593
      %v3682 = vpop.f32.mrf.mxu0
      %v3683 = vadd.f32 0.0, %v3682
      %v3684 = vpop.f32.mrf.mxu0
      %v3685 = vadd.f32 0.0, %v3684
      %3686 = vdwg.mxu0
      %3687 = vst.msk [vmem:[#allocation4] sm:$0xff] %vm334, %v3608
      %3688 = vst.msk [vmem:[#allocation4 + $0x8] sm:$0xff] %vm334, %v3610
      %3689 = vst.msk [vmem:[#allocation4 + $0x10] sm:$0xff] %vm334, %v3613
      %3690 = vst.msk [vmem:[#allocation4 + $0x18] sm:$0xff] %vm334, %v3615
      %3691 = vst.msk [vmem:[#allocation4 + $0x20] sm:$0xff] %vm334, %v3618
      %3692 = vst.msk [vmem:[#allocation4 + $0x28] sm:$0xff] %vm334, %v3620
      %3693 = vst.msk [vmem:[#allocation4 + $0x30] sm:$0xff] %vm334, %v3623
      %3694 = vst.msk [vmem:[#allocation4 + $0x38] sm:$0xff] %vm334, %v3625
      %3695 = vst.msk [vmem:[#allocation4 + $0x40] sm:$0xff] %vm334, %v3628
      %3696 = vst.msk [vmem:[#allocation4 + $0x48] sm:$0xff] %vm334, %v3630
      %3697 = vst.msk [vmem:[#allocation4 + $0x50] sm:$0xff] %vm334, %v3633
      %3698 = vst.msk [vmem:[#allocation4 + $0x58] sm:$0xff] %vm334, %v3635
      %3699 = vst.msk [vmem:[#allocation4 + $0x60] sm:$0xff] %vm334, %v3638
      %3700 = vst.msk [vmem:[#allocation4 + $0x68] sm:$0xff] %vm334, %v3640
      %3701 = vst.msk [vmem:[#allocation4 + $0x70] sm:$0xff] %vm334, %v3643
      %3702 = vst.msk [vmem:[#allocation4 + $0x78] sm:$0xff] %vm334, %v3645
      %3703 = vst.msk [vmem:[#allocation4 + $0x80] sm:$0xff] %vm334, %v3648
      %3704 = vst.msk [vmem:[#allocation4 + $0x88] sm:$0xff] %vm334, %v3650
      %3705 = vst.msk [vmem:[#allocation4 + $0x90] sm:$0xff] %vm334, %v3653
      %3706 = vst.msk [vmem:[#allocation4 + $0x98] sm:$0xff] %vm334, %v3655
      %3707 = vst.msk [vmem:[#allocation4 + $0xa0] sm:$0xff] %vm334, %v3658
      %3708 = vst.msk [vmem:[#allocation4 + $0xa8] sm:$0xff] %vm334, %v3660
      %3709 = vst.msk [vmem:[#allocation4 + $0xb0] sm:$0xff] %vm334, %v3663
      %3710 = vst.msk [vmem:[#allocation4 + $0xb8] sm:$0xff] %vm334, %v3665
      %3711 = vst.msk [vmem:[#allocation4 + $0xc0] sm:$0xff] %vm334, %v3668
      %3712 = vst.msk [vmem:[#allocation4 + $0xc8] sm:$0xff] %vm334, %v3670
      %3713 = vst.msk [vmem:[#allocation4 + $0xd0] sm:$0xff] %vm334, %v3673
      %3714 = vst.msk [vmem:[#allocation4 + $0xd8] sm:$0xff] %vm334, %v3675
      %3715 = vst.msk [vmem:[#allocation4 + $0xe0] sm:$0xff] %vm334, %v3678
      %3716 = vst.msk [vmem:[#allocation4 + $0xe8] sm:$0xff] %vm334, %v3680
      %3717 = vst.msk [vmem:[#allocation4 + $0xf0] sm:$0xff] %vm334, %v3683
      %3718 = vst.msk [vmem:[#allocation4 + $0xf8] sm:$0xff] %vm334, %v3685
      %v3719 = vld [vmem:[#allocation3 + $0x1] sm:$0xff]
      %v3720 = vld [vmem:[#allocation3 + $0x9] sm:$0xff]
      %v3721 = vld [vmem:[#allocation3 + $0x19] sm:$0xff]
      %v3722 = vld [vmem:[#allocation3 + $0x21] sm:$0xff]
      %v3723 = vld [vmem:[#allocation3 + $0x31] sm:$0xff]
      %v3724 = vld [vmem:[#allocation3 + $0x39] sm:$0xff]
      %v3725 = vld [vmem:[#allocation3 + $0x49] sm:$0xff]
      %v3726 = vld [vmem:[#allocation3 + $0x51] sm:$0xff]
      %v3727 = vld [vmem:[#allocation3 + $0x61] sm:$0xff]
      %v3728 = vld [vmem:[#allocation3 + $0x69] sm:$0xff]
      %v3729 = vld [vmem:[#allocation3 + $0x79] sm:$0xff]
      %v3730 = vld [vmem:[#allocation3 + $0x81] sm:$0xff]
      %v3731 = vld [vmem:[#allocation3 + $0x91] sm:$0xff]
      %v3732 = vld [vmem:[#allocation3 + $0x99] sm:$0xff]
      %v3733 = vld [vmem:[#allocation3 + $0xa9] sm:$0xff]
      %v3734 = vld [vmem:[#allocation3 + $0xb1] sm:$0xff]
      %v3735 = vld [vmem:[#allocation3 + $0xc1] sm:$0xff]
      %v3736 = vld [vmem:[#allocation3 + $0xc9] sm:$0xff]
      %v3737 = vld [vmem:[#allocation3 + $0xd9] sm:$0xff]
      %v3738 = vld [vmem:[#allocation3 + $0xe1] sm:$0xff]
      %v3739 = vld [vmem:[#allocation3 + $0xf1] sm:$0xff]
      %v3740 = vld [vmem:[#allocation3 + $0xf9] sm:$0xff]
      %v3741 = vld [vmem:[#allocation3 + $0x109] sm:$0xff]
      %v3742 = vld [vmem:[#allocation3 + $0x111] sm:$0xff]
      %v3743 = vld [vmem:[#allocation3 + $0x121] sm:$0xff]
      %v3744 = vld [vmem:[#allocation3 + $0x129] sm:$0xff]
      %v3745 = vld [vmem:[#allocation3 + $0x139] sm:$0xff]
      %v3746 = vld [vmem:[#allocation3 + $0x141] sm:$0xff]
      %v3747 = vld [vmem:[#allocation3 + $0x151] sm:$0xff]
      %v3748 = vld [vmem:[#allocation3 + $0x159] sm:$0xff]
      %v3749 = vld [vmem:[#allocation3 + $0x169] sm:$0xff]
      %v3750 = vld [vmem:[#allocation3 + $0x171] sm:$0xff]
      %v3751 = vpack.c.bf16 %v3720, %v3719
      %v3752 = vpack.c.bf16 %v3722, %v3721
      %v3753 = vpack.c.bf16 %v3724, %v3723
      %v3754 = vpack.c.bf16 %v3726, %v3725
      %v3755 = vpack.c.bf16 %v3728, %v3727
      %v3756 = vpack.c.bf16 %v3730, %v3729
      %v3757 = vpack.c.bf16 %v3732, %v3731
      %v3758 = vpack.c.bf16 %v3734, %v3733
      %v3759 = vpack.c.bf16 %v3736, %v3735
      %v3760 = vpack.c.bf16 %v3738, %v3737
      %v3761 = vpack.c.bf16 %v3740, %v3739
      %v3762 = vpack.c.bf16 %v3742, %v3741
      %v3763 = vpack.c.bf16 %v3744, %v3743
      %v3764 = vpack.c.bf16 %v3746, %v3745
      %v3765 = vpack.c.bf16 %v3748, %v3747
      %v3766 = vpack.c.bf16 %v3750, %v3749
      %s3767 = scalar_lea.vmem %s5, 2
      %v3768 = vld [vmem:[%s3767] sm:$0x3]
      %v3770 = vsel %vm334, %v3751, 0
      %v3773 = vsel %vm334, %v3752, 0
      %v3776 = vsel %vm334, %v3753, 0
      %v3779 = vsel %vm334, %v3754, 0
      %v3782 = vsel %vm334, %v3755, 0
      %v3785 = vsel %vm334, %v3756, 0
      %v3788 = vsel %vm334, %v3757, 0
      %v3791 = vsel %vm334, %v3758, 0
      %v3794 = vsel %vm334, %v3759, 0
      %v3797 = vsel %vm334, %v3760, 0
      %v3800 = vsel %vm334, %v3761, 0
      %v3803 = vsel %vm334, %v3762, 0
      %v3806 = vsel %vm334, %v3763, 0
      %v3809 = vsel %vm334, %v3764, 0
      %v3812 = vsel %vm334, %v3765, 0
      %v3815 = vsel %vm334, %v3766, 0
      %v3818 = vsel %vm597, %v3768, 0
      %3820 = vmatpush.bf16.msra.mxu0 0
      %3821 = vmatpush.bf16.msra.mxu0 0
      %3822 = vmatpush.bf16.msra.mxu0 0
      %3823 = vmatpush.bf16.msra.mxu0 0
      %3824 = vmatpush.bf16.msra.mxu0 0
      %3825 = vmatpush.bf16.msra.mxu0 0
      %3826 = vmatpush.bf16.msra.mxu0 0
      %3827 = vmatpush.bf16.msra.mxu0 %v3818
      %3828 = vmatmul.bf16.gmra.mxu0 %v3770
      %v3829 = vpop.f32.mrf.mxu0
      %v3830 = vadd.f32 0.0, %v3829
      %v3831 = vpop.f32.mrf.mxu0
      %v3832 = vadd.f32 0.0, %v3831
      %3833 = vmatmul.bf16.gmra.mxu0 %v3773
      %v3834 = vpop.f32.mrf.mxu0
      %v3835 = vadd.f32 0.0, %v3834
      %v3836 = vpop.f32.mrf.mxu0
      %v3837 = vadd.f32 0.0, %v3836
      %3838 = vmatmul.bf16.gmra.mxu0 %v3776
      %v3839 = vpop.f32.mrf.mxu0
      %v3840 = vadd.f32 0.0, %v3839
      %v3841 = vpop.f32.mrf.mxu0
      %v3842 = vadd.f32 0.0, %v3841
      %3843 = vmatmul.bf16.gmra.mxu0 %v3779
      %v3844 = vpop.f32.mrf.mxu0
      %v3845 = vadd.f32 0.0, %v3844
      %v3846 = vpop.f32.mrf.mxu0
      %v3847 = vadd.f32 0.0, %v3846
      %3848 = vmatmul.bf16.gmra.mxu0 %v3782
      %v3849 = vpop.f32.mrf.mxu0
      %v3850 = vadd.f32 0.0, %v3849
      %v3851 = vpop.f32.mrf.mxu0
      %v3852 = vadd.f32 0.0, %v3851
      %3853 = vmatmul.bf16.gmra.mxu0 %v3785
      %v3854 = vpop.f32.mrf.mxu0
      %v3855 = vadd.f32 0.0, %v3854
      %v3856 = vpop.f32.mrf.mxu0
      %v3857 = vadd.f32 0.0, %v3856
      %3858 = vmatmul.bf16.gmra.mxu0 %v3788
      %v3859 = vpop.f32.mrf.mxu0
      %v3860 = vadd.f32 0.0, %v3859
      %v3861 = vpop.f32.mrf.mxu0
      %v3862 = vadd.f32 0.0, %v3861
      %3863 = vmatmul.bf16.gmra.mxu0 %v3791
      %v3864 = vpop.f32.mrf.mxu0
      %v3865 = vadd.f32 0.0, %v3864
      %v3866 = vpop.f32.mrf.mxu0
      %v3867 = vadd.f32 0.0, %v3866
      %3868 = vmatmul.bf16.gmra.mxu0 %v3794
      %v3869 = vpop.f32.mrf.mxu0
      %v3870 = vadd.f32 0.0, %v3869
      %v3871 = vpop.f32.mrf.mxu0
      %v3872 = vadd.f32 0.0, %v3871
      %3873 = vmatmul.bf16.gmra.mxu0 %v3797
      %v3874 = vpop.f32.mrf.mxu0
      %v3875 = vadd.f32 0.0, %v3874
      %v3876 = vpop.f32.mrf.mxu0
      %v3877 = vadd.f32 0.0, %v3876
      %3878 = vmatmul.bf16.gmra.mxu0 %v3800
      %v3879 = vpop.f32.mrf.mxu0
      %v3880 = vadd.f32 0.0, %v3879
      %v3881 = vpop.f32.mrf.mxu0
      %v3882 = vadd.f32 0.0, %v3881
      %3883 = vmatmul.bf16.gmra.mxu0 %v3803
      %v3884 = vpop.f32.mrf.mxu0
      %v3885 = vadd.f32 0.0, %v3884
      %v3886 = vpop.f32.mrf.mxu0
      %v3887 = vadd.f32 0.0, %v3886
      %3888 = vmatmul.bf16.gmra.mxu0 %v3806
      %v3889 = vpop.f32.mrf.mxu0
      %v3890 = vadd.f32 0.0, %v3889
      %v3891 = vpop.f32.mrf.mxu0
      %v3892 = vadd.f32 0.0, %v3891
      %3893 = vmatmul.bf16.gmra.mxu0 %v3809
      %v3894 = vpop.f32.mrf.mxu0
      %v3895 = vadd.f32 0.0, %v3894
      %v3896 = vpop.f32.mrf.mxu0
      %v3897 = vadd.f32 0.0, %v3896
      %3898 = vmatmul.bf16.gmra.mxu0 %v3812
      %v3899 = vpop.f32.mrf.mxu0
      %v3900 = vadd.f32 0.0, %v3899
      %v3901 = vpop.f32.mrf.mxu0
      %v3902 = vadd.f32 0.0, %v3901
      %3903 = vmatmul.bf16.gmra.mxu0 %v3815
      %v3904 = vpop.f32.mrf.mxu0
      %v3905 = vadd.f32 0.0, %v3904
      %v3906 = vpop.f32.mrf.mxu0
      %v3907 = vadd.f32 0.0, %v3906
      %3908 = vdwg.mxu0
      %v3909 = vld [vmem:[#allocation4] sm:$0xff]
      %v3910 = vld [vmem:[#allocation4 + $0x8] sm:$0xff]
      %v3911 = vld [vmem:[#allocation4 + $0x10] sm:$0xff]
      %v3912 = vld [vmem:[#allocation4 + $0x18] sm:$0xff]
      %v3913 = vld [vmem:[#allocation4 + $0x20] sm:$0xff]
      %v3914 = vld [vmem:[#allocation4 + $0x28] sm:$0xff]
      %v3915 = vld [vmem:[#allocation4 + $0x30] sm:$0xff]
      %v3916 = vld [vmem:[#allocation4 + $0x38] sm:$0xff]
      %v3917 = vld [vmem:[#allocation4 + $0x40] sm:$0xff]
      %v3918 = vld [vmem:[#allocation4 + $0x48] sm:$0xff]
      %v3919 = vld [vmem:[#allocation4 + $0x50] sm:$0xff]
      %v3920 = vld [vmem:[#allocation4 + $0x58] sm:$0xff]
      %v3921 = vld [vmem:[#allocation4 + $0x60] sm:$0xff]
      %v3922 = vld [vmem:[#allocation4 + $0x68] sm:$0xff]
      %v3923 = vld [vmem:[#allocation4 + $0x70] sm:$0xff]
      %v3924 = vld [vmem:[#allocation4 + $0x78] sm:$0xff]
      %v3925 = vld [vmem:[#allocation4 + $0x80] sm:$0xff]
      %v3926 = vld [vmem:[#allocation4 + $0x88] sm:$0xff]
      %v3927 = vld [vmem:[#allocation4 + $0x90] sm:$0xff]
      %v3928 = vld [vmem:[#allocation4 + $0x98] sm:$0xff]
      %v3929 = vld [vmem:[#allocation4 + $0xa0] sm:$0xff]
      %v3930 = vld [vmem:[#allocation4 + $0xa8] sm:$0xff]
      %v3931 = vld [vmem:[#allocation4 + $0xb0] sm:$0xff]
      %v3932 = vld [vmem:[#allocation4 + $0xb8] sm:$0xff]
      %v3933 = vld [vmem:[#allocation4 + $0xc0] sm:$0xff]
      %v3934 = vld [vmem:[#allocation4 + $0xc8] sm:$0xff]
      %v3935 = vld [vmem:[#allocation4 + $0xd0] sm:$0xff]
      %v3936 = vld [vmem:[#allocation4 + $0xd8] sm:$0xff]
      %v3937 = vld [vmem:[#allocation4 + $0xe0] sm:$0xff]
      %v3938 = vld [vmem:[#allocation4 + $0xe8] sm:$0xff]
      %v3939 = vld [vmem:[#allocation4 + $0xf0] sm:$0xff]
      %v3940 = vld [vmem:[#allocation4 + $0xf8] sm:$0xff]
      %v3941 = vadd.f32 %v3909, %v3830
      %v3942 = vadd.f32 %v3910, %v3832
      %v3943 = vadd.f32 %v3911, %v3835
      %v3944 = vadd.f32 %v3912, %v3837
      %v3945 = vadd.f32 %v3913, %v3840
      %v3946 = vadd.f32 %v3914, %v3842
      %v3947 = vadd.f32 %v3915, %v3845
      %v3948 = vadd.f32 %v3916, %v3847
      %v3949 = vadd.f32 %v3917, %v3850
      %v3950 = vadd.f32 %v3918, %v3852
      %v3951 = vadd.f32 %v3919, %v3855
      %v3952 = vadd.f32 %v3920, %v3857
      %v3953 = vadd.f32 %v3921, %v3860
      %v3954 = vadd.f32 %v3922, %v3862
      %v3955 = vadd.f32 %v3923, %v3865
      %v3956 = vadd.f32 %v3924, %v3867
      %v3957 = vadd.f32 %v3925, %v3870
      %v3958 = vadd.f32 %v3926, %v3872
      %v3959 = vadd.f32 %v3927, %v3875
      %v3960 = vadd.f32 %v3928, %v3877
      %v3961 = vadd.f32 %v3929, %v3880
      %v3962 = vadd.f32 %v3930, %v3882
      %v3963 = vadd.f32 %v3931, %v3885
      %v3964 = vadd.f32 %v3932, %v3887
      %v3965 = vadd.f32 %v3933, %v3890
      %v3966 = vadd.f32 %v3934, %v3892
      %v3967 = vadd.f32 %v3935, %v3895
      %v3968 = vadd.f32 %v3936, %v3897
      %v3969 = vadd.f32 %v3937, %v3900
      %v3970 = vadd.f32 %v3938, %v3902
      %v3971 = vadd.f32 %v3939, %v3905
      %v3972 = vadd.f32 %v3940, %v3907
      %3973 = vst.msk [vmem:[#allocation4] sm:$0xff] %vm334, %v3941
      %3974 = vst.msk [vmem:[#allocation4 + $0x8] sm:$0xff] %vm334, %v3942
      %3975 = vst.msk [vmem:[#allocation4 + $0x10] sm:$0xff] %vm334, %v3943
      %3976 = vst.msk [vmem:[#allocation4 + $0x18] sm:$0xff] %vm334, %v3944
      %3977 = vst.msk [vmem:[#allocation4 + $0x20] sm:$0xff] %vm334, %v3945
      %3978 = vst.msk [vmem:[#allocation4 + $0x28] sm:$0xff] %vm334, %v3946
      %3979 = vst.msk [vmem:[#allocation4 + $0x30] sm:$0xff] %vm334, %v3947
      %3980 = vst.msk [vmem:[#allocation4 + $0x38] sm:$0xff] %vm334, %v3948
      %3981 = vst.msk [vmem:[#allocation4 + $0x40] sm:$0xff] %vm334, %v3949
      %3982 = vst.msk [vmem:[#allocation4 + $0x48] sm:$0xff] %vm334, %v3950
      %3983 = vst.msk [vmem:[#allocation4 + $0x50] sm:$0xff] %vm334, %v3951
      %3984 = vst.msk [vmem:[#allocation4 + $0x58] sm:$0xff] %vm334, %v3952
      %3985 = vst.msk [vmem:[#allocation4 + $0x60] sm:$0xff] %vm334, %v3953
      %3986 = vst.msk [vmem:[#allocation4 + $0x68] sm:$0xff] %vm334, %v3954
      %3987 = vst.msk [vmem:[#allocation4 + $0x70] sm:$0xff] %vm334, %v3955
      %3988 = vst.msk [vmem:[#allocation4 + $0x78] sm:$0xff] %vm334, %v3956
      %3989 = vst.msk [vmem:[#allocation4 + $0x80] sm:$0xff] %vm334, %v3957
      %3990 = vst.msk [vmem:[#allocation4 + $0x88] sm:$0xff] %vm334, %v3958
      %3991 = vst.msk [vmem:[#allocation4 + $0x90] sm:$0xff] %vm334, %v3959
      %3992 = vst.msk [vmem:[#allocation4 + $0x98] sm:$0xff] %vm334, %v3960
      %3993 = vst.msk [vmem:[#allocation4 + $0xa0] sm:$0xff] %vm334, %v3961
      %3994 = vst.msk [vmem:[#allocation4 + $0xa8] sm:$0xff] %vm334, %v3962
      %3995 = vst.msk [vmem:[#allocation4 + $0xb0] sm:$0xff] %vm334, %v3963
      %3996 = vst.msk [vmem:[#allocation4 + $0xb8] sm:$0xff] %vm334, %v3964
      %3997 = vst.msk [vmem:[#allocation4 + $0xc0] sm:$0xff] %vm334, %v3965
      %3998 = vst.msk [vmem:[#allocation4 + $0xc8] sm:$0xff] %vm334, %v3966
      %3999 = vst.msk [vmem:[#allocation4 + $0xd0] sm:$0xff] %vm334, %v3967
      %4000 = vst.msk [vmem:[#allocation4 + $0xd8] sm:$0xff] %vm334, %v3968
      %4001 = vst.msk [vmem:[#allocation4 + $0xe0] sm:$0xff] %vm334, %v3969
      %4002 = vst.msk [vmem:[#allocation4 + $0xe8] sm:$0xff] %vm334, %v3970
      %4003 = vst.msk [vmem:[#allocation4 + $0xf0] sm:$0xff] %vm334, %v3971
      %4004 = vst.msk [vmem:[#allocation4 + $0xf8] sm:$0xff] %vm334, %v3972
      %v4005 = vld [vmem:[#allocation3 + $0x2] sm:$0xff]
      %v4006 = vld [vmem:[#allocation3 + $0xa] sm:$0xff]
      %v4007 = vld [vmem:[#allocation3 + $0x1a] sm:$0xff]
      %v4008 = vld [vmem:[#allocation3 + $0x22] sm:$0xff]
      %v4009 = vld [vmem:[#allocation3 + $0x32] sm:$0xff]
      %v4010 = vld [vmem:[#allocation3 + $0x3a] sm:$0xff]
      %v4011 = vld [vmem:[#allocation3 + $0x4a] sm:$0xff]
      %v4012 = vld [vmem:[#allocation3 + $0x52] sm:$0xff]
      %v4013 = vld [vmem:[#allocation3 + $0x62] sm:$0xff]
      %v4014 = vld [vmem:[#allocation3 + $0x6a] sm:$0xff]
      %v4015 = vld [vmem:[#allocation3 + $0x7a] sm:$0xff]
      %v4016 = vld [vmem:[#allocation3 + $0x82] sm:$0xff]
      %v4017 = vld [vmem:[#allocation3 + $0x92] sm:$0xff]
      %v4018 = vld [vmem:[#allocation3 + $0x9a] sm:$0xff]
      %v4019 = vld [vmem:[#allocation3 + $0xaa] sm:$0xff]
      %v4020 = vld [vmem:[#allocation3 + $0xb2] sm:$0xff]
      %v4021 = vld [vmem:[#allocation3 + $0xc2] sm:$0xff]
      %v4022 = vld [vmem:[#allocation3 + $0xca] sm:$0xff]
      %v4023 = vld [vmem:[#allocation3 + $0xda] sm:$0xff]
      %v4024 = vld [vmem:[#allocation3 + $0xe2] sm:$0xff]
      %v4025 = vld [vmem:[#allocation3 + $0xf2] sm:$0xff]
      %v4026 = vld [vmem:[#allocation3 + $0xfa] sm:$0xff]
      %v4027 = vld [vmem:[#allocation3 + $0x10a] sm:$0xff]
      %v4028 = vld [vmem:[#allocation3 + $0x112] sm:$0xff]
      %v4029 = vld [vmem:[#allocation3 + $0x122] sm:$0xff]
      %v4030 = vld [vmem:[#allocation3 + $0x12a] sm:$0xff]
      %v4031 = vld [vmem:[#allocation3 + $0x13a] sm:$0xff]
      %v4032 = vld [vmem:[#allocation3 + $0x142] sm:$0xff]
      %v4033 = vld [vmem:[#allocation3 + $0x152] sm:$0xff]
      %v4034 = vld [vmem:[#allocation3 + $0x15a] sm:$0xff]
      %v4035 = vld [vmem:[#allocation3 + $0x16a] sm:$0xff]
      %v4036 = vld [vmem:[#allocation3 + $0x172] sm:$0xff]
      %v4037 = vpack.c.bf16 %v4006, %v4005
      %v4038 = vpack.c.bf16 %v4008, %v4007
      %v4039 = vpack.c.bf16 %v4010, %v4009
      %v4040 = vpack.c.bf16 %v4012, %v4011
      %v4041 = vpack.c.bf16 %v4014, %v4013
      %v4042 = vpack.c.bf16 %v4016, %v4015
      %v4043 = vpack.c.bf16 %v4018, %v4017
      %v4044 = vpack.c.bf16 %v4020, %v4019
      %v4045 = vpack.c.bf16 %v4022, %v4021
      %v4046 = vpack.c.bf16 %v4024, %v4023
      %v4047 = vpack.c.bf16 %v4026, %v4025
      %v4048 = vpack.c.bf16 %v4028, %v4027
      %v4049 = vpack.c.bf16 %v4030, %v4029
      %v4050 = vpack.c.bf16 %v4032, %v4031
      %v4051 = vpack.c.bf16 %v4034, %v4033
      %v4052 = vpack.c.bf16 %v4036, %v4035
      %s4053 = scalar_lea.vmem %s5, 4
      %v4054 = vld [vmem:[%s4053] sm:$0x3]
      %v4056 = vsel %vm334, %v4037, 0
      %v4059 = vsel %vm334, %v4038, 0
      %v4062 = vsel %vm334, %v4039, 0
      %v4065 = vsel %vm334, %v4040, 0
      %v4068 = vsel %vm334, %v4041, 0
      %v4071 = vsel %vm334, %v4042, 0
      %v4074 = vsel %vm334, %v4043, 0
      %v4077 = vsel %vm334, %v4044, 0
      %v4080 = vsel %vm334, %v4045, 0
      %v4083 = vsel %vm334, %v4046, 0
      %v4086 = vsel %vm334, %v4047, 0
      %v4089 = vsel %vm334, %v4048, 0
      %v4092 = vsel %vm334, %v4049, 0
      %v4095 = vsel %vm334, %v4050, 0
      %v4098 = vsel %vm334, %v4051, 0
      %v4101 = vsel %vm334, %v4052, 0
      %v4104 = vsel %vm597, %v4054, 0
      %4106 = vmatpush.bf16.msra.mxu0 0
      %4107 = vmatpush.bf16.msra.mxu0 0
      %4108 = vmatpush.bf16.msra.mxu0 0
      %4109 = vmatpush.bf16.msra.mxu0 0
      %4110 = vmatpush.bf16.msra.mxu0 0
      %4111 = vmatpush.bf16.msra.mxu0 0
      %4112 = vmatpush.bf16.msra.mxu0 0
      %4113 = vmatpush.bf16.msra.mxu0 %v4104
      %4114 = vmatmul.bf16.gmra.mxu0 %v4056
      %v4115 = vpop.f32.mrf.mxu0
      %v4116 = vadd.f32 0.0, %v4115
      %v4117 = vpop.f32.mrf.mxu0
      %v4118 = vadd.f32 0.0, %v4117
      %4119 = vmatmul.bf16.gmra.mxu0 %v4059
      %v4120 = vpop.f32.mrf.mxu0
      %v4121 = vadd.f32 0.0, %v4120
      %v4122 = vpop.f32.mrf.mxu0
      %v4123 = vadd.f32 0.0, %v4122
      %4124 = vmatmul.bf16.gmra.mxu0 %v4062
      %v4125 = vpop.f32.mrf.mxu0
      %v4126 = vadd.f32 0.0, %v4125
      %v4127 = vpop.f32.mrf.mxu0
      %v4128 = vadd.f32 0.0, %v4127
      %4129 = vmatmul.bf16.gmra.mxu0 %v4065
      %v4130 = vpop.f32.mrf.mxu0
      %v4131 = vadd.f32 0.0, %v4130
      %v4132 = vpop.f32.mrf.mxu0
      %v4133 = vadd.f32 0.0, %v4132
      %4134 = vmatmul.bf16.gmra.mxu0 %v4068
      %v4135 = vpop.f32.mrf.mxu0
      %v4136 = vadd.f32 0.0, %v4135
      %v4137 = vpop.f32.mrf.mxu0
      %v4138 = vadd.f32 0.0, %v4137
      %4139 = vmatmul.bf16.gmra.mxu0 %v4071
      %v4140 = vpop.f32.mrf.mxu0
      %v4141 = vadd.f32 0.0, %v4140
      %v4142 = vpop.f32.mrf.mxu0
      %v4143 = vadd.f32 0.0, %v4142
      %4144 = vmatmul.bf16.gmra.mxu0 %v4074
      %v4145 = vpop.f32.mrf.mxu0
      %v4146 = vadd.f32 0.0, %v4145
      %v4147 = vpop.f32.mrf.mxu0
      %v4148 = vadd.f32 0.0, %v4147
      %4149 = vmatmul.bf16.gmra.mxu0 %v4077
      %v4150 = vpop.f32.mrf.mxu0
      %v4151 = vadd.f32 0.0, %v4150
      %v4152 = vpop.f32.mrf.mxu0
      %v4153 = vadd.f32 0.0, %v4152
      %4154 = vmatmul.bf16.gmra.mxu0 %v4080
      %v4155 = vpop.f32.mrf.mxu0
      %v4156 = vadd.f32 0.0, %v4155
      %v4157 = vpop.f32.mrf.mxu0
      %v4158 = vadd.f32 0.0, %v4157
      %4159 = vmatmul.bf16.gmra.mxu0 %v4083
      %v4160 = vpop.f32.mrf.mxu0
      %v4161 = vadd.f32 0.0, %v4160
      %v4162 = vpop.f32.mrf.mxu0
      %v4163 = vadd.f32 0.0, %v4162
      %4164 = vmatmul.bf16.gmra.mxu0 %v4086
      %v4165 = vpop.f32.mrf.mxu0
      %v4166 = vadd.f32 0.0, %v4165
      %v4167 = vpop.f32.mrf.mxu0
      %v4168 = vadd.f32 0.0, %v4167
      %4169 = vmatmul.bf16.gmra.mxu0 %v4089
      %v4170 = vpop.f32.mrf.mxu0
      %v4171 = vadd.f32 0.0, %v4170
      %v4172 = vpop.f32.mrf.mxu0
      %v4173 = vadd.f32 0.0, %v4172
      %4174 = vmatmul.bf16.gmra.mxu0 %v4092
      %v4175 = vpop.f32.mrf.mxu0
      %v4176 = vadd.f32 0.0, %v4175
      %v4177 = vpop.f32.mrf.mxu0
      %v4178 = vadd.f32 0.0, %v4177
      %4179 = vmatmul.bf16.gmra.mxu0 %v4095
      %v4180 = vpop.f32.mrf.mxu0
      %v4181 = vadd.f32 0.0, %v4180
      %v4182 = vpop.f32.mrf.mxu0
      %v4183 = vadd.f32 0.0, %v4182
      %4184 = vmatmul.bf16.gmra.mxu0 %v4098
      %v4185 = vpop.f32.mrf.mxu0
      %v4186 = vadd.f32 0.0, %v4185
      %v4187 = vpop.f32.mrf.mxu0
      %v4188 = vadd.f32 0.0, %v4187
      %4189 = vmatmul.bf16.gmra.mxu0 %v4101
      %v4190 = vpop.f32.mrf.mxu0
      %v4191 = vadd.f32 0.0, %v4190
      %v4192 = vpop.f32.mrf.mxu0
      %v4193 = vadd.f32 0.0, %v4192
      %4194 = vdwg.mxu0
      %v4195 = vld [vmem:[#allocation4] sm:$0xff]
      %v4196 = vld [vmem:[#allocation4 + $0x8] sm:$0xff]
      %v4197 = vld [vmem:[#allocation4 + $0x10] sm:$0xff]
      %v4198 = vld [vmem:[#allocation4 + $0x18] sm:$0xff]
      %v4199 = vld [vmem:[#allocation4 + $0x20] sm:$0xff]
      %v4200 = vld [vmem:[#allocation4 + $0x28] sm:$0xff]
      %v4201 = vld [vmem:[#allocation4 + $0x30] sm:$0xff]
      %v4202 = vld [vmem:[#allocation4 + $0x38] sm:$0xff]
      %v4203 = vld [vmem:[#allocation4 + $0x40] sm:$0xff]
      %v4204 = vld [vmem:[#allocation4 + $0x48] sm:$0xff]
      %v4205 = vld [vmem:[#allocation4 + $0x50] sm:$0xff]
      %v4206 = vld [vmem:[#allocation4 + $0x58] sm:$0xff]
      %v4207 = vld [vmem:[#allocation4 + $0x60] sm:$0xff]
      %v4208 = vld [vmem:[#allocation4 + $0x68] sm:$0xff]
      %v4209 = vld [vmem:[#allocation4 + $0x70] sm:$0xff]
      %v4210 = vld [vmem:[#allocation4 + $0x78] sm:$0xff]
      %v4211 = vld [vmem:[#allocation4 + $0x80] sm:$0xff]
      %v4212 = vld [vmem:[#allocation4 + $0x88] sm:$0xff]
      %v4213 = vld [vmem:[#allocation4 + $0x90] sm:$0xff]
      %v4214 = vld [vmem:[#allocation4 + $0x98] sm:$0xff]
      %v4215 = vld [vmem:[#allocation4 + $0xa0] sm:$0xff]
      %v4216 = vld [vmem:[#allocation4 + $0xa8] sm:$0xff]
      %v4217 = vld [vmem:[#allocation4 + $0xb0] sm:$0xff]
      %v4218 = vld [vmem:[#allocation4 + $0xb8] sm:$0xff]
      %v4219 = vld [vmem:[#allocation4 + $0xc0] sm:$0xff]
      %v4220 = vld [vmem:[#allocation4 + $0xc8] sm:$0xff]
      %v4221 = vld [vmem:[#allocation4 + $0xd0] sm:$0xff]
      %v4222 = vld [vmem:[#allocation4 + $0xd8] sm:$0xff]
      %v4223 = vld [vmem:[#allocation4 + $0xe0] sm:$0xff]
      %v4224 = vld [vmem:[#allocation4 + $0xe8] sm:$0xff]
      %v4225 = vld [vmem:[#allocation4 + $0xf0] sm:$0xff]
      %v4226 = vld [vmem:[#allocation4 + $0xf8] sm:$0xff]
      %v4227 = vadd.f32 %v4195, %v4116
      %v4228 = vadd.f32 %v4196, %v4118
      %v4229 = vadd.f32 %v4197, %v4121
      %v4230 = vadd.f32 %v4198, %v4123
      %v4231 = vadd.f32 %v4199, %v4126
      %v4232 = vadd.f32 %v4200, %v4128
      %v4233 = vadd.f32 %v4201, %v4131
      %v4234 = vadd.f32 %v4202, %v4133
      %v4235 = vadd.f32 %v4203, %v4136
      %v4236 = vadd.f32 %v4204, %v4138
      %v4237 = vadd.f32 %v4205, %v4141
      %v4238 = vadd.f32 %v4206, %v4143
      %v4239 = vadd.f32 %v4207, %v4146
      %v4240 = vadd.f32 %v4208, %v4148
      %v4241 = vadd.f32 %v4209, %v4151
      %v4242 = vadd.f32 %v4210, %v4153
      %v4243 = vadd.f32 %v4211, %v4156
      %v4244 = vadd.f32 %v4212, %v4158
      %v4245 = vadd.f32 %v4213, %v4161
      %v4246 = vadd.f32 %v4214, %v4163
      %v4247 = vadd.f32 %v4215, %v4166
      %v4248 = vadd.f32 %v4216, %v4168
      %v4249 = vadd.f32 %v4217, %v4171
      %v4250 = vadd.f32 %v4218, %v4173
      %v4251 = vadd.f32 %v4219, %v4176
      %v4252 = vadd.f32 %v4220, %v4178
      %v4253 = vadd.f32 %v4221, %v4181
      %v4254 = vadd.f32 %v4222, %v4183
      %v4255 = vadd.f32 %v4223, %v4186
      %v4256 = vadd.f32 %v4224, %v4188
      %v4257 = vadd.f32 %v4225, %v4191
      %v4258 = vadd.f32 %v4226, %v4193
      %4259 = vst.msk [vmem:[#allocation4] sm:$0xff] %vm334, %v4227
      %4260 = vst.msk [vmem:[#allocation4 + $0x8] sm:$0xff] %vm334, %v4228
      %4261 = vst.msk [vmem:[#allocation4 + $0x10] sm:$0xff] %vm334, %v4229
      %4262 = vst.msk [vmem:[#allocation4 + $0x18] sm:$0xff] %vm334, %v4230
      %4263 = vst.msk [vmem:[#allocation4 + $0x20] sm:$0xff] %vm334, %v4231
      %4264 = vst.msk [vmem:[#allocation4 + $0x28] sm:$0xff] %vm334, %v4232
      %4265 = vst.msk [vmem:[#allocation4 + $0x30] sm:$0xff] %vm334, %v4233
      %4266 = vst.msk [vmem:[#allocation4 + $0x38] sm:$0xff] %vm334, %v4234
      %4267 = vst.msk [vmem:[#allocation4 + $0x40] sm:$0xff] %vm334, %v4235
      %4268 = vst.msk [vmem:[#allocation4 + $0x48] sm:$0xff] %vm334, %v4236
      %4269 = vst.msk [vmem:[#allocation4 + $0x50] sm:$0xff] %vm334, %v4237
      %4270 = vst.msk [vmem:[#allocation4 + $0x58] sm:$0xff] %vm334, %v4238
      %4271 = vst.msk [vmem:[#allocation4 + $0x60] sm:$0xff] %vm334, %v4239
      %4272 = vst.msk [vmem:[#allocation4 + $0x68] sm:$0xff] %vm334, %v4240
      %4273 = vst.msk [vmem:[#allocation4 + $0x70] sm:$0xff] %vm334, %v4241
      %4274 = vst.msk [vmem:[#allocation4 + $0x78] sm:$0xff] %vm334, %v4242
      %4275 = vst.msk [vmem:[#allocation4 + $0x80] sm:$0xff] %vm334, %v4243
      %4276 = vst.msk [vmem:[#allocation4 + $0x88] sm:$0xff] %vm334, %v4244
      %4277 = vst.msk [vmem:[#allocation4 + $0x90] sm:$0xff] %vm334, %v4245
      %4278 = vst.msk [vmem:[#allocation4 + $0x98] sm:$0xff] %vm334, %v4246
      %4279 = vst.msk [vmem:[#allocation4 + $0xa0] sm:$0xff] %vm334, %v4247
      %4280 = vst.msk [vmem:[#allocation4 + $0xa8] sm:$0xff] %vm334, %v4248
      %4281 = vst.msk [vmem:[#allocation4 + $0xb0] sm:$0xff] %vm334, %v4249
      %4282 = vst.msk [vmem:[#allocation4 + $0xb8] sm:$0xff] %vm334, %v4250
      %4283 = vst.msk [vmem:[#allocation4 + $0xc0] sm:$0xff] %vm334, %v4251
      %4284 = vst.msk [vmem:[#allocation4 + $0xc8] sm:$0xff] %vm334, %v4252
      %4285 = vst.msk [vmem:[#allocation4 + $0xd0] sm:$0xff] %vm334, %v4253
      %4286 = vst.msk [vmem:[#allocation4 + $0xd8] sm:$0xff] %vm334, %v4254
      %4287 = vst.msk [vmem:[#allocation4 + $0xe0] sm:$0xff] %vm334, %v4255
      %4288 = vst.msk [vmem:[#allocation4 + $0xe8] sm:$0xff] %vm334, %v4256
      %4289 = vst.msk [vmem:[#allocation4 + $0xf0] sm:$0xff] %vm334, %v4257
      %4290 = vst.msk [vmem:[#allocation4 + $0xf8] sm:$0xff] %vm334, %v4258
      %v4291 = vld [vmem:[%s1967] sm:$0xff]
      %v4292 = vld [vmem:[%s1967 + $0x8] sm:$0xff]
      %v4293 = vld [vmem:[%s1967 + $0x18] sm:$0xff]
      %v4294 = vld [vmem:[%s1967 + $0x20] sm:$0xff]
      %v4295 = vld [vmem:[%s1967 + $0x30] sm:$0xff]
      %v4296 = vld [vmem:[%s1967 + $0x38] sm:$0xff]
      %v4297 = vld [vmem:[%s1967 + $0x48] sm:$0xff]
      %v4298 = vld [vmem:[%s1967 + $0x50] sm:$0xff]
      %v4299 = vld [vmem:[%s1967 + $0x60] sm:$0xff]
      %v4300 = vld [vmem:[%s1967 + $0x68] sm:$0xff]
      %v4301 = vld [vmem:[%s1967 + $0x78] sm:$0xff]
      %v4302 = vld [vmem:[%s1967 + $0x80] sm:$0xff]
      %v4303 = vld [vmem:[%s1967 + $0x90] sm:$0xff]
      %v4304 = vld [vmem:[%s1967 + $0x98] sm:$0xff]
      %v4305 = vld [vmem:[%s1967 + $0xa8] sm:$0xff]
      %v4306 = vld [vmem:[%s1967 + $0xb0] sm:$0xff]
      %v4307 = vld [vmem:[%s1967 + $0xc0] sm:$0xff]
      %v4308 = vld [vmem:[%s1967 + $0xc8] sm:$0xff]
      %v4309 = vld [vmem:[%s1967 + $0xd8] sm:$0xff]
      %v4310 = vld [vmem:[%s1967 + $0xe0] sm:$0xff]
      %v4311 = vld [vmem:[%s1967 + $0xf0] sm:$0xff]
      %v4312 = vld [vmem:[%s1967 + $0xf8] sm:$0xff]
      %v4313 = vld [vmem:[%s1967 + $0x108] sm:$0xff]
      %v4314 = vld [vmem:[%s1967 + $0x110] sm:$0xff]
      %v4315 = vld [vmem:[%s1967 + $0x120] sm:$0xff]
      %v4316 = vld [vmem:[%s1967 + $0x128] sm:$0xff]
      %v4317 = vld [vmem:[%s1967 + $0x138] sm:$0xff]
      %v4318 = vld [vmem:[%s1967 + $0x140] sm:$0xff]
      %v4319 = vld [vmem:[%s1967 + $0x150] sm:$0xff]
      %v4320 = vld [vmem:[%s1967 + $0x158] sm:$0xff]
      %v4321 = vld [vmem:[%s1967 + $0x168] sm:$0xff]
      %v4322 = vld [vmem:[%s1967 + $0x170] sm:$0xff]
      %v4323 = vpack.c.bf16 %v4292, %v4291
      %v4324 = vpack.c.bf16 %v4294, %v4293
      %v4325 = vpack.c.bf16 %v4296, %v4295
      %v4326 = vpack.c.bf16 %v4298, %v4297
      %v4327 = vpack.c.bf16 %v4300, %v4299
      %v4328 = vpack.c.bf16 %v4302, %v4301
      %v4329 = vpack.c.bf16 %v4304, %v4303
      %v4330 = vpack.c.bf16 %v4306, %v4305
      %v4331 = vpack.c.bf16 %v4308, %v4307
      %v4332 = vpack.c.bf16 %v4310, %v4309
      %v4333 = vpack.c.bf16 %v4312, %v4311
      %v4334 = vpack.c.bf16 %v4314, %v4313
      %v4335 = vpack.c.bf16 %v4316, %v4315
      %v4336 = vpack.c.bf16 %v4318, %v4317
      %v4337 = vpack.c.bf16 %v4320, %v4319
      %v4338 = vpack.c.bf16 %v4322, %v4321
      %s4339 = scalar_lea.vmem %s5, 6
      %v4340 = vld [vmem:[%s4339] sm:$0x3]
      %v4342 = vsel %vm334, %v4323, 0
      %v4345 = vsel %vm334, %v4324, 0
      %v4348 = vsel %vm334, %v4325, 0
      %v4351 = vsel %vm334, %v4326, 0
      %v4354 = vsel %vm334, %v4327, 0
      %v4357 = vsel %vm334, %v4328, 0
      %v4360 = vsel %vm334, %v4329, 0
      %v4363 = vsel %vm334, %v4330, 0
      %v4366 = vsel %vm334, %v4331, 0
      %v4369 = vsel %vm334, %v4332, 0
      %v4372 = vsel %vm334, %v4333, 0
      %v4375 = vsel %vm334, %v4334, 0
      %v4378 = vsel %vm334, %v4335, 0
      %v4381 = vsel %vm334, %v4336, 0
      %v4384 = vsel %vm334, %v4337, 0
      %v4387 = vsel %vm334, %v4338, 0
      %v4390 = vsel %vm597, %v4340, 0
      %4392 = vmatpush.bf16.msra.mxu0 0
      %4393 = vmatpush.bf16.msra.mxu0 0
      %4394 = vmatpush.bf16.msra.mxu0 0
      %4395 = vmatpush.bf16.msra.mxu0 0
      %4396 = vmatpush.bf16.msra.mxu0 0
      %4397 = vmatpush.bf16.msra.mxu0 0
      %4398 = vmatpush.bf16.msra.mxu0 0
      %4399 = vmatpush.bf16.msra.mxu0 %v4390
      %4400 = vmatmul.bf16.gmra.mxu0 %v4342
      %v4401 = vpop.f32.mrf.mxu0
      %v4402 = vadd.f32 0.0, %v4401
      %v4403 = vpop.f32.mrf.mxu0
      %v4404 = vadd.f32 0.0, %v4403
      %4405 = vmatmul.bf16.gmra.mxu0 %v4345
      %v4406 = vpop.f32.mrf.mxu0
      %v4407 = vadd.f32 0.0, %v4406
      %v4408 = vpop.f32.mrf.mxu0
      %v4409 = vadd.f32 0.0, %v4408
      %4410 = vmatmul.bf16.gmra.mxu0 %v4348
      %v4411 = vpop.f32.mrf.mxu0
      %v4412 = vadd.f32 0.0, %v4411
      %v4413 = vpop.f32.mrf.mxu0
      %v4414 = vadd.f32 0.0, %v4413
      %4415 = vmatmul.bf16.gmra.mxu0 %v4351
      %v4416 = vpop.f32.mrf.mxu0
      %v4417 = vadd.f32 0.0, %v4416
      %v4418 = vpop.f32.mrf.mxu0
      %v4419 = vadd.f32 0.0, %v4418
      %4420 = vmatmul.bf16.gmra.mxu0 %v4354
      %v4421 = vpop.f32.mrf.mxu0
      %v4422 = vadd.f32 0.0, %v4421
      %v4423 = vpop.f32.mrf.mxu0
      %v4424 = vadd.f32 0.0, %v4423
      %4425 = vmatmul.bf16.gmra.mxu0 %v4357
      %v4426 = vpop.f32.mrf.mxu0
      %v4427 = vadd.f32 0.0, %v4426
      %v4428 = vpop.f32.mrf.mxu0
      %v4429 = vadd.f32 0.0, %v4428
      %4430 = vmatmul.bf16.gmra.mxu0 %v4360
      %v4431 = vpop.f32.mrf.mxu0
      %v4432 = vadd.f32 0.0, %v4431
      %v4433 = vpop.f32.mrf.mxu0
      %v4434 = vadd.f32 0.0, %v4433
      %4435 = vmatmul.bf16.gmra.mxu0 %v4363
      %v4436 = vpop.f32.mrf.mxu0
      %v4437 = vadd.f32 0.0, %v4436
      %v4438 = vpop.f32.mrf.mxu0
      %v4439 = vadd.f32 0.0, %v4438
      %4440 = vmatmul.bf16.gmra.mxu0 %v4366
      %v4441 = vpop.f32.mrf.mxu0
      %v4442 = vadd.f32 0.0, %v4441
      %v4443 = vpop.f32.mrf.mxu0
      %v4444 = vadd.f32 0.0, %v4443
      %4445 = vmatmul.bf16.gmra.mxu0 %v4369
      %v4446 = vpop.f32.mrf.mxu0
      %v4447 = vadd.f32 0.0, %v4446
      %v4448 = vpop.f32.mrf.mxu0
      %v4449 = vadd.f32 0.0, %v4448
      %4450 = vmatmul.bf16.gmra.mxu0 %v4372
      %v4451 = vpop.f32.mrf.mxu0
      %v4452 = vadd.f32 0.0, %v4451
      %v4453 = vpop.f32.mrf.mxu0
      %v4454 = vadd.f32 0.0, %v4453
      %4455 = vmatmul.bf16.gmra.mxu0 %v4375
      %v4456 = vpop.f32.mrf.mxu0
      %v4457 = vadd.f32 0.0, %v4456
      %v4458 = vpop.f32.mrf.mxu0
      %v4459 = vadd.f32 0.0, %v4458
      %4460 = vmatmul.bf16.gmra.mxu0 %v4378
      %v4461 = vpop.f32.mrf.mxu0
      %v4462 = vadd.f32 0.0, %v4461
      %v4463 = vpop.f32.mrf.mxu0
      %v4464 = vadd.f32 0.0, %v4463
      %4465 = vmatmul.bf16.gmra.mxu0 %v4381
      %v4466 = vpop.f32.mrf.mxu0
      %v4467 = vadd.f32 0.0, %v4466
      %v4468 = vpop.f32.mrf.mxu0
      %v4469 = vadd.f32 0.0, %v4468
      %4470 = vmatmul.bf16.gmra.mxu0 %v4384
      %v4471 = vpop.f32.mrf.mxu0
      %v4472 = vadd.f32 0.0, %v4471
      %v4473 = vpop.f32.mrf.mxu0
      %v4474 = vadd.f32 0.0, %v4473
      %4475 = vmatmul.bf16.gmra.mxu0 %v4387
      %v4476 = vpop.f32.mrf.mxu0
      %v4477 = vadd.f32 0.0, %v4476
      %v4478 = vpop.f32.mrf.mxu0
      %v4479 = vadd.f32 0.0, %v4478
      %4480 = vdwg.mxu0
      %v4481 = vld [vmem:[#allocation4] sm:$0xff]
      %v4482 = vld [vmem:[#allocation4 + $0x8] sm:$0xff]
      %v4483 = vld [vmem:[#allocation4 + $0x10] sm:$0xff]
      %v4484 = vld [vmem:[#allocation4 + $0x18] sm:$0xff]
      %v4485 = vld [vmem:[#allocation4 + $0x20] sm:$0xff]
      %v4486 = vld [vmem:[#allocation4 + $0x28] sm:$0xff]
      %v4487 = vld [vmem:[#allocation4 + $0x30] sm:$0xff]
      %v4488 = vld [vmem:[#allocation4 + $0x38] sm:$0xff]
      %v4489 = vld [vmem:[#allocation4 + $0x40] sm:$0xff]
      %v4490 = vld [vmem:[#allocation4 + $0x48] sm:$0xff]
      %v4491 = vld [vmem:[#allocation4 + $0x50] sm:$0xff]
      %v4492 = vld [vmem:[#allocation4 + $0x58] sm:$0xff]
      %v4493 = vld [vmem:[#allocation4 + $0x60] sm:$0xff]
      %v4494 = vld [vmem:[#allocation4 + $0x68] sm:$0xff]
      %v4495 = vld [vmem:[#allocation4 + $0x70] sm:$0xff]
      %v4496 = vld [vmem:[#allocation4 + $0x78] sm:$0xff]
      %v4497 = vld [vmem:[#allocation4 + $0x80] sm:$0xff]
      %v4498 = vld [vmem:[#allocation4 + $0x88] sm:$0xff]
      %v4499 = vld [vmem:[#allocation4 + $0x90] sm:$0xff]
      %v4500 = vld [vmem:[#allocation4 + $0x98] sm:$0xff]
      %v4501 = vld [vmem:[#allocation4 + $0xa0] sm:$0xff]
      %v4502 = vld [vmem:[#allocation4 + $0xa8] sm:$0xff]
      %v4503 = vld [vmem:[#allocation4 + $0xb0] sm:$0xff]
      %v4504 = vld [vmem:[#allocation4 + $0xb8] sm:$0xff]
      %v4505 = vld [vmem:[#allocation4 + $0xc0] sm:$0xff]
      %v4506 = vld [vmem:[#allocation4 + $0xc8] sm:$0xff]
      %v4507 = vld [vmem:[#allocation4 + $0xd0] sm:$0xff]
      %v4508 = vld [vmem:[#allocation4 + $0xd8] sm:$0xff]
      %v4509 = vld [vmem:[#allocation4 + $0xe0] sm:$0xff]
      %v4510 = vld [vmem:[#allocation4 + $0xe8] sm:$0xff]
      %v4511 = vld [vmem:[#allocation4 + $0xf0] sm:$0xff]
      %v4512 = vld [vmem:[#allocation4 + $0xf8] sm:$0xff]
      %v4513 = vadd.f32 %v4481, %v4402
      %v4514 = vadd.f32 %v4482, %v4404
      %v4515 = vadd.f32 %v4483, %v4407
      %v4516 = vadd.f32 %v4484, %v4409
      %v4517 = vadd.f32 %v4485, %v4412
      %v4518 = vadd.f32 %v4486, %v4414
      %v4519 = vadd.f32 %v4487, %v4417
      %v4520 = vadd.f32 %v4488, %v4419
      %v4521 = vadd.f32 %v4489, %v4422
      %v4522 = vadd.f32 %v4490, %v4424
      %v4523 = vadd.f32 %v4491, %v4427
      %v4524 = vadd.f32 %v4492, %v4429
      %v4525 = vadd.f32 %v4493, %v4432
      %v4526 = vadd.f32 %v4494, %v4434
      %v4527 = vadd.f32 %v4495, %v4437
      %v4528 = vadd.f32 %v4496, %v4439
      %v4529 = vadd.f32 %v4497, %v4442
      %v4530 = vadd.f32 %v4498, %v4444
      %v4531 = vadd.f32 %v4499, %v4447
      %v4532 = vadd.f32 %v4500, %v4449
      %v4533 = vadd.f32 %v4501, %v4452
      %v4534 = vadd.f32 %v4502, %v4454
      %v4535 = vadd.f32 %v4503, %v4457
      %v4536 = vadd.f32 %v4504, %v4459
      %v4537 = vadd.f32 %v4505, %v4462
      %v4538 = vadd.f32 %v4506, %v4464
      %v4539 = vadd.f32 %v4507, %v4467
      %v4540 = vadd.f32 %v4508, %v4469
      %v4541 = vadd.f32 %v4509, %v4472
      %v4542 = vadd.f32 %v4510, %v4474
      %v4543 = vadd.f32 %v4511, %v4477
      %v4544 = vadd.f32 %v4512, %v4479
      %4545 = vst.msk [vmem:[#allocation4] sm:$0xff] %vm334, %v4513
      %4546 = vst.msk [vmem:[#allocation4 + $0x8] sm:$0xff] %vm334, %v4514
      %4547 = vst.msk [vmem:[#allocation4 + $0x10] sm:$0xff] %vm334, %v4515
      %4548 = vst.msk [vmem:[#allocation4 + $0x18] sm:$0xff] %vm334, %v4516
      %4549 = vst.msk [vmem:[#allocation4 + $0x20] sm:$0xff] %vm334, %v4517
      %4550 = vst.msk [vmem:[#allocation4 + $0x28] sm:$0xff] %vm334, %v4518
      %4551 = vst.msk [vmem:[#allocation4 + $0x30] sm:$0xff] %vm334, %v4519
      %4552 = vst.msk [vmem:[#allocation4 + $0x38] sm:$0xff] %vm334, %v4520
      %4553 = vst.msk [vmem:[#allocation4 + $0x40] sm:$0xff] %vm334, %v4521
      %4554 = vst.msk [vmem:[#allocation4 + $0x48] sm:$0xff] %vm334, %v4522
      %4555 = vst.msk [vmem:[#allocation4 + $0x50] sm:$0xff] %vm334, %v4523
      %4556 = vst.msk [vmem:[#allocation4 + $0x58] sm:$0xff] %vm334, %v4524
      %4557 = vst.msk [vmem:[#allocation4 + $0x60] sm:$0xff] %vm334, %v4525
      %4558 = vst.msk [vmem:[#allocation4 + $0x68] sm:$0xff] %vm334, %v4526
      %4559 = vst.msk [vmem:[#allocation4 + $0x70] sm:$0xff] %vm334, %v4527
      %4560 = vst.msk [vmem:[#allocation4 + $0x78] sm:$0xff] %vm334, %v4528
      %4561 = vst.msk [vmem:[#allocation4 + $0x80] sm:$0xff] %vm334, %v4529
      %4562 = vst.msk [vmem:[#allocation4 + $0x88] sm:$0xff] %vm334, %v4530
      %4563 = vst.msk [vmem:[#allocation4 + $0x90] sm:$0xff] %vm334, %v4531
      %4564 = vst.msk [vmem:[#allocation4 + $0x98] sm:$0xff] %vm334, %v4532
      %4565 = vst.msk [vmem:[#allocation4 + $0xa0] sm:$0xff] %vm334, %v4533
      %4566 = vst.msk [vmem:[#allocation4 + $0xa8] sm:$0xff] %vm334, %v4534
      %4567 = vst.msk [vmem:[#allocation4 + $0xb0] sm:$0xff] %vm334, %v4535
      %4568 = vst.msk [vmem:[#allocation4 + $0xb8] sm:$0xff] %vm334, %v4536
      %4569 = vst.msk [vmem:[#allocation4 + $0xc0] sm:$0xff] %vm334, %v4537
      %4570 = vst.msk [vmem:[#allocation4 + $0xc8] sm:$0xff] %vm334, %v4538
      %4571 = vst.msk [vmem:[#allocation4 + $0xd0] sm:$0xff] %vm334, %v4539
      %4572 = vst.msk [vmem:[#allocation4 + $0xd8] sm:$0xff] %vm334, %v4540
      %4573 = vst.msk [vmem:[#allocation4 + $0xe0] sm:$0xff] %vm334, %v4541
      %4574 = vst.msk [vmem:[#allocation4 + $0xe8] sm:$0xff] %vm334, %v4542
      %4575 = vst.msk [vmem:[#allocation4 + $0xf0] sm:$0xff] %vm334, %v4543
      %4576 = vst.msk [vmem:[#allocation4 + $0xf8] sm:$0xff] %vm334, %v4544
      %v4577 = vld [vmem:[%s1967 + $0x1] sm:$0xff]
      %v4578 = vld [vmem:[%s1967 + $0x9] sm:$0xff]
      %v4579 = vld [vmem:[%s1967 + $0x19] sm:$0xff]
      %v4580 = vld [vmem:[%s1967 + $0x21] sm:$0xff]
      %v4581 = vld [vmem:[%s1967 + $0x31] sm:$0xff]
      %v4582 = vld [vmem:[%s1967 + $0x39] sm:$0xff]
      %v4583 = vld [vmem:[%s1967 + $0x49] sm:$0xff]
      %v4584 = vld [vmem:[%s1967 + $0x51] sm:$0xff]
      %v4585 = vld [vmem:[%s1967 + $0x61] sm:$0xff]
      %v4586 = vld [vmem:[%s1967 + $0x69] sm:$0xff]
      %v4587 = vld [vmem:[%s1967 + $0x79] sm:$0xff]
      %v4588 = vld [vmem:[%s1967 + $0x81] sm:$0xff]
      %v4589 = vld [vmem:[%s1967 + $0x91] sm:$0xff]
      %v4590 = vld [vmem:[%s1967 + $0x99] sm:$0xff]
      %v4591 = vld [vmem:[%s1967 + $0xa9] sm:$0xff]
      %v4592 = vld [vmem:[%s1967 + $0xb1] sm:$0xff]
      %v4593 = vld [vmem:[%s1967 + $0xc1] sm:$0xff]
      %v4594 = vld [vmem:[%s1967 + $0xc9] sm:$0xff]
      %v4595 = vld [vmem:[%s1967 + $0xd9] sm:$0xff]
      %v4596 = vld [vmem:[%s1967 + $0xe1] sm:$0xff]
      %v4597 = vld [vmem:[%s1967 + $0xf1] sm:$0xff]
      %v4598 = vld [vmem:[%s1967 + $0xf9] sm:$0xff]
      %v4599 = vld [vmem:[%s1967 + $0x109] sm:$0xff]
      %v4600 = vld [vmem:[%s1967 + $0x111] sm:$0xff]
      %v4601 = vld [vmem:[%s1967 + $0x121] sm:$0xff]
      %v4602 = vld [vmem:[%s1967 + $0x129] sm:$0xff]
      %v4603 = vld [vmem:[%s1967 + $0x139] sm:$0xff]
      %v4604 = vld [vmem:[%s1967 + $0x141] sm:$0xff]
      %v4605 = vld [vmem:[%s1967 + $0x151] sm:$0xff]
      %v4606 = vld [vmem:[%s1967 + $0x159] sm:$0xff]
      %v4607 = vld [vmem:[%s1967 + $0x169] sm:$0xff]
      %v4608 = vld [vmem:[%s1967 + $0x171] sm:$0xff]
      %v4609 = vpack.c.bf16 %v4578, %v4577
      %v4610 = vpack.c.bf16 %v4580, %v4579
      %v4611 = vpack.c.bf16 %v4582, %v4581
      %v4612 = vpack.c.bf16 %v4584, %v4583
      %v4613 = vpack.c.bf16 %v4586, %v4585
      %v4614 = vpack.c.bf16 %v4588, %v4587
      %v4615 = vpack.c.bf16 %v4590, %v4589
      %v4616 = vpack.c.bf16 %v4592, %v4591
      %v4617 = vpack.c.bf16 %v4594, %v4593
      %v4618 = vpack.c.bf16 %v4596, %v4595
      %v4619 = vpack.c.bf16 %v4598, %v4597
      %v4620 = vpack.c.bf16 %v4600, %v4599
      %v4621 = vpack.c.bf16 %v4602, %v4601
      %v4622 = vpack.c.bf16 %v4604, %v4603
      %v4623 = vpack.c.bf16 %v4606, %v4605
      %v4624 = vpack.c.bf16 %v4608, %v4607
      %s4625 = scalar_lea.vmem %s5, 8
      %v4626 = vld [vmem:[%s4625] sm:$0x3]
      %v4628 = vsel %vm334, %v4609, 0
      %v4631 = vsel %vm334, %v4610, 0
      %v4634 = vsel %vm334, %v4611, 0
      %v4637 = vsel %vm334, %v4612, 0
      %v4640 = vsel %vm334, %v4613, 0
      %v4643 = vsel %vm334, %v4614, 0
      %v4646 = vsel %vm334, %v4615, 0
      %v4649 = vsel %vm334, %v4616, 0
      %v4652 = vsel %vm334, %v4617, 0
      %v4655 = vsel %vm334, %v4618, 0
      %v4658 = vsel %vm334, %v4619, 0
      %v4661 = vsel %vm334, %v4620, 0
      %v4664 = vsel %vm334, %v4621, 0
      %v4667 = vsel %vm334, %v4622, 0
      %v4670 = vsel %vm334, %v4623, 0
      %v4673 = vsel %vm334, %v4624, 0
      %v4676 = vsel %vm597, %v4626, 0
      %4678 = vmatpush.bf16.msra.mxu0 0
      %4679 = vmatpush.bf16.msra.mxu0 0
      %4680 = vmatpush.bf16.msra.mxu0 0
      %4681 = vmatpush.bf16.msra.mxu0 0
      %4682 = vmatpush.bf16.msra.mxu0 0
      %4683 = vmatpush.bf16.msra.mxu0 0
      %4684 = vmatpush.bf16.msra.mxu0 0
      %4685 = vmatpush.bf16.msra.mxu0 %v4676
      %4686 = vmatmul.bf16.gmra.mxu0 %v4628
      %v4687 = vpop.f32.mrf.mxu0
      %v4688 = vadd.f32 0.0, %v4687
      %v4689 = vpop.f32.mrf.mxu0
      %v4690 = vadd.f32 0.0, %v4689
      %4691 = vmatmul.bf16.gmra.mxu0 %v4631
      %v4692 = vpop.f32.mrf.mxu0
      %v4693 = vadd.f32 0.0, %v4692
      %v4694 = vpop.f32.mrf.mxu0
      %v4695 = vadd.f32 0.0, %v4694
      %4696 = vmatmul.bf16.gmra.mxu0 %v4634
      %v4697 = vpop.f32.mrf.mxu0
      %v4698 = vadd.f32 0.0, %v4697
      %v4699 = vpop.f32.mrf.mxu0
      %v4700 = vadd.f32 0.0, %v4699
      %4701 = vmatmul.bf16.gmra.mxu0 %v4637
      %v4702 = vpop.f32.mrf.mxu0
      %v4703 = vadd.f32 0.0, %v4702
      %v4704 = vpop.f32.mrf.mxu0
      %v4705 = vadd.f32 0.0, %v4704
      %4706 = vmatmul.bf16.gmra.mxu0 %v4640
      %v4707 = vpop.f32.mrf.mxu0
      %v4708 = vadd.f32 0.0, %v4707
      %v4709 = vpop.f32.mrf.mxu0
      %v4710 = vadd.f32 0.0, %v4709
      %4711 = vmatmul.bf16.gmra.mxu0 %v4643
      %v4712 = vpop.f32.mrf.mxu0
      %v4713 = vadd.f32 0.0, %v4712
      %v4714 = vpop.f32.mrf.mxu0
      %v4715 = vadd.f32 0.0, %v4714
      %4716 = vmatmul.bf16.gmra.mxu0 %v4646
      %v4717 = vpop.f32.mrf.mxu0
      %v4718 = vadd.f32 0.0, %v4717
      %v4719 = vpop.f32.mrf.mxu0
      %v4720 = vadd.f32 0.0, %v4719
      %4721 = vmatmul.bf16.gmra.mxu0 %v4649
      %v4722 = vpop.f32.mrf.mxu0
      %v4723 = vadd.f32 0.0, %v4722
      %v4724 = vpop.f32.mrf.mxu0
      %v4725 = vadd.f32 0.0, %v4724
      %4726 = vmatmul.bf16.gmra.mxu0 %v4652
      %v4727 = vpop.f32.mrf.mxu0
      %v4728 = vadd.f32 0.0, %v4727
      %v4729 = vpop.f32.mrf.mxu0
      %v4730 = vadd.f32 0.0, %v4729
      %4731 = vmatmul.bf16.gmra.mxu0 %v4655
      %v4732 = vpop.f32.mrf.mxu0
      %v4733 = vadd.f32 0.0, %v4732
      %v4734 = vpop.f32.mrf.mxu0
      %v4735 = vadd.f32 0.0, %v4734
      %4736 = vmatmul.bf16.gmra.mxu0 %v4658
      %v4737 = vpop.f32.mrf.mxu0
      %v4738 = vadd.f32 0.0, %v4737
      %v4739 = vpop.f32.mrf.mxu0
      %v4740 = vadd.f32 0.0, %v4739
      %4741 = vmatmul.bf16.gmra.mxu0 %v4661
      %v4742 = vpop.f32.mrf.mxu0
      %v4743 = vadd.f32 0.0, %v4742
      %v4744 = vpop.f32.mrf.mxu0
      %v4745 = vadd.f32 0.0, %v4744
      %4746 = vmatmul.bf16.gmra.mxu0 %v4664
      %v4747 = vpop.f32.mrf.mxu0
      %v4748 = vadd.f32 0.0, %v4747
      %v4749 = vpop.f32.mrf.mxu0
      %v4750 = vadd.f32 0.0, %v4749
      %4751 = vmatmul.bf16.gmra.mxu0 %v4667
      %v4752 = vpop.f32.mrf.mxu0
      %v4753 = vadd.f32 0.0, %v4752
      %v4754 = vpop.f32.mrf.mxu0
      %v4755 = vadd.f32 0.0, %v4754
      %4756 = vmatmul.bf16.gmra.mxu0 %v4670
      %v4757 = vpop.f32.mrf.mxu0
      %v4758 = vadd.f32 0.0, %v4757
      %v4759 = vpop.f32.mrf.mxu0
      %v4760 = vadd.f32 0.0, %v4759
      %4761 = vmatmul.bf16.gmra.mxu0 %v4673
      %v4762 = vpop.f32.mrf.mxu0
      %v4763 = vadd.f32 0.0, %v4762
      %v4764 = vpop.f32.mrf.mxu0
      %v4765 = vadd.f32 0.0, %v4764
      %4766 = vdwg.mxu0
      %v4767 = vld [vmem:[#allocation4] sm:$0xff]
      %v4768 = vld [vmem:[#allocation4 + $0x8] sm:$0xff]
      %v4769 = vld [vmem:[#allocation4 + $0x10] sm:$0xff]
      %v4770 = vld [vmem:[#allocation4 + $0x18] sm:$0xff]
      %v4771 = vld [vmem:[#allocation4 + $0x20] sm:$0xff]
      %v4772 = vld [vmem:[#allocation4 + $0x28] sm:$0xff]
      %v4773 = vld [vmem:[#allocation4 + $0x30] sm:$0xff]
      %v4774 = vld [vmem:[#allocation4 + $0x38] sm:$0xff]
      %v4775 = vld [vmem:[#allocation4 + $0x40] sm:$0xff]
      %v4776 = vld [vmem:[#allocation4 + $0x48] sm:$0xff]
      %v4777 = vld [vmem:[#allocation4 + $0x50] sm:$0xff]
      %v4778 = vld [vmem:[#allocation4 + $0x58] sm:$0xff]
      %v4779 = vld [vmem:[#allocation4 + $0x60] sm:$0xff]
      %v4780 = vld [vmem:[#allocation4 + $0x68] sm:$0xff]
      %v4781 = vld [vmem:[#allocation4 + $0x70] sm:$0xff]
      %v4782 = vld [vmem:[#allocation4 + $0x78] sm:$0xff]
      %v4783 = vld [vmem:[#allocation4 + $0x80] sm:$0xff]
      %v4784 = vld [vmem:[#allocation4 + $0x88] sm:$0xff]
      %v4785 = vld [vmem:[#allocation4 + $0x90] sm:$0xff]
      %v4786 = vld [vmem:[#allocation4 + $0x98] sm:$0xff]
      %v4787 = vld [vmem:[#allocation4 + $0xa0] sm:$0xff]
      %v4788 = vld [vmem:[#allocation4 + $0xa8] sm:$0xff]
      %v4789 = vld [vmem:[#allocation4 + $0xb0] sm:$0xff]
      %v4790 = vld [vmem:[#allocation4 + $0xb8] sm:$0xff]
      %v4791 = vld [vmem:[#allocation4 + $0xc0] sm:$0xff]
      %v4792 = vld [vmem:[#allocation4 + $0xc8] sm:$0xff]
      %v4793 = vld [vmem:[#allocation4 + $0xd0] sm:$0xff]
      %v4794 = vld [vmem:[#allocation4 + $0xd8] sm:$0xff]
      %v4795 = vld [vmem:[#allocation4 + $0xe0] sm:$0xff]
      %v4796 = vld [vmem:[#allocation4 + $0xe8] sm:$0xff]
      %v4797 = vld [vmem:[#allocation4 + $0xf0] sm:$0xff]
      %v4798 = vld [vmem:[#allocation4 + $0xf8] sm:$0xff]
      %v4799 = vadd.f32 %v4767, %v4688
      %v4800 = vadd.f32 %v4768, %v4690
      %v4801 = vadd.f32 %v4769, %v4693
      %v4802 = vadd.f32 %v4770, %v4695
      %v4803 = vadd.f32 %v4771, %v4698
      %v4804 = vadd.f32 %v4772, %v4700
      %v4805 = vadd.f32 %v4773, %v4703
      %v4806 = vadd.f32 %v4774, %v4705
      %v4807 = vadd.f32 %v4775, %v4708
      %v4808 = vadd.f32 %v4776, %v4710
      %v4809 = vadd.f32 %v4777, %v4713
      %v4810 = vadd.f32 %v4778, %v4715
      %v4811 = vadd.f32 %v4779, %v4718
      %v4812 = vadd.f32 %v4780, %v4720
      %v4813 = vadd.f32 %v4781, %v4723
      %v4814 = vadd.f32 %v4782, %v4725
      %v4815 = vadd.f32 %v4783, %v4728
      %v4816 = vadd.f32 %v4784, %v4730
      %v4817 = vadd.f32 %v4785, %v4733
      %v4818 = vadd.f32 %v4786, %v4735
      %v4819 = vadd.f32 %v4787, %v4738
      %v4820 = vadd.f32 %v4788, %v4740
      %v4821 = vadd.f32 %v4789, %v4743
      %v4822 = vadd.f32 %v4790, %v4745
      %v4823 = vadd.f32 %v4791, %v4748
      %v4824 = vadd.f32 %v4792, %v4750
      %v4825 = vadd.f32 %v4793, %v4753
      %v4826 = vadd.f32 %v4794, %v4755
      %v4827 = vadd.f32 %v4795, %v4758
      %v4828 = vadd.f32 %v4796, %v4760
      %v4829 = vadd.f32 %v4797, %v4763
      %v4830 = vadd.f32 %v4798, %v4765
      %4831 = vst.msk [vmem:[#allocation4] sm:$0xff] %vm334, %v4799
      %4832 = vst.msk [vmem:[#allocation4 + $0x8] sm:$0xff] %vm334, %v4800
      %4833 = vst.msk [vmem:[#allocation4 + $0x10] sm:$0xff] %vm334, %v4801
      %4834 = vst.msk [vmem:[#allocation4 + $0x18] sm:$0xff] %vm334, %v4802
      %4835 = vst.msk [vmem:[#allocation4 + $0x20] sm:$0xff] %vm334, %v4803
      %4836 = vst.msk [vmem:[#allocation4 + $0x28] sm:$0xff] %vm334, %v4804
      %4837 = vst.msk [vmem:[#allocation4 + $0x30] sm:$0xff] %vm334, %v4805
      %4838 = vst.msk [vmem:[#allocation4 + $0x38] sm:$0xff] %vm334, %v4806
      %4839 = vst.msk [vmem:[#allocation4 + $0x40] sm:$0xff] %vm334, %v4807
      %4840 = vst.msk [vmem:[#allocation4 + $0x48] sm:$0xff] %vm334, %v4808
      %4841 = vst.msk [vmem:[#allocation4 + $0x50] sm:$0xff] %vm334, %v4809
      %4842 = vst.msk [vmem:[#allocation4 + $0x58] sm:$0xff] %vm334, %v4810
      %4843 = vst.msk [vmem:[#allocation4 + $0x60] sm:$0xff] %vm334, %v4811
      %4844 = vst.msk [vmem:[#allocation4 + $0x68] sm:$0xff] %vm334, %v4812
      %4845 = vst.msk [vmem:[#allocation4 + $0x70] sm:$0xff] %vm334, %v4813
      %4846 = vst.msk [vmem:[#allocation4 + $0x78] sm:$0xff] %vm334, %v4814
      %4847 = vst.msk [vmem:[#allocation4 + $0x80] sm:$0xff] %vm334, %v4815
      %4848 = vst.msk [vmem:[#allocation4 + $0x88] sm:$0xff] %vm334, %v4816
      %4849 = vst.msk [vmem:[#allocation4 + $0x90] sm:$0xff] %vm334, %v4817
      %4850 = vst.msk [vmem:[#allocation4 + $0x98] sm:$0xff] %vm334, %v4818
      %4851 = vst.msk [vmem:[#allocation4 + $0xa0] sm:$0xff] %vm334, %v4819
      %4852 = vst.msk [vmem:[#allocation4 + $0xa8] sm:$0xff] %vm334, %v4820
      %4853 = vst.msk [vmem:[#allocation4 + $0xb0] sm:$0xff] %vm334, %v4821
      %4854 = vst.msk [vmem:[#allocation4 + $0xb8] sm:$0xff] %vm334, %v4822
      %4855 = vst.msk [vmem:[#allocation4 + $0xc0] sm:$0xff] %vm334, %v4823
      %4856 = vst.msk [vmem:[#allocation4 + $0xc8] sm:$0xff] %vm334, %v4824
      %4857 = vst.msk [vmem:[#allocation4 + $0xd0] sm:$0xff] %vm334, %v4825
      %4858 = vst.msk [vmem:[#allocation4 + $0xd8] sm:$0xff] %vm334, %v4826
      %4859 = vst.msk [vmem:[#allocation4 + $0xe0] sm:$0xff] %vm334, %v4827
      %4860 = vst.msk [vmem:[#allocation4 + $0xe8] sm:$0xff] %vm334, %v4828
      %4861 = vst.msk [vmem:[#allocation4 + $0xf0] sm:$0xff] %vm334, %v4829
      %4862 = vst.msk [vmem:[#allocation4 + $0xf8] sm:$0xff] %vm334, %v4830
      %v4863 = vld [vmem:[%s1967 + $0x2] sm:$0xff]
      %v4864 = vld [vmem:[%s1967 + $0xa] sm:$0xff]
      %v4865 = vld [vmem:[%s1967 + $0x1a] sm:$0xff]
      %v4866 = vld [vmem:[%s1967 + $0x22] sm:$0xff]
      %v4867 = vld [vmem:[%s1967 + $0x32] sm:$0xff]
      %v4868 = vld [vmem:[%s1967 + $0x3a] sm:$0xff]
      %v4869 = vld [vmem:[%s1967 + $0x4a] sm:$0xff]
      %v4870 = vld [vmem:[%s1967 + $0x52] sm:$0xff]
      %v4871 = vld [vmem:[%s1967 + $0x62] sm:$0xff]
      %v4872 = vld [vmem:[%s1967 + $0x6a] sm:$0xff]
      %v4873 = vld [vmem:[%s1967 + $0x7a] sm:$0xff]
      %v4874 = vld [vmem:[%s1967 + $0x82] sm:$0xff]
      %v4875 = vld [vmem:[%s1967 + $0x92] sm:$0xff]
      %v4876 = vld [vmem:[%s1967 + $0x9a] sm:$0xff]
      %v4877 = vld [vmem:[%s1967 + $0xaa] sm:$0xff]
      %v4878 = vld [vmem:[%s1967 + $0xb2] sm:$0xff]
      %v4879 = vld [vmem:[%s1967 + $0xc2] sm:$0xff]
      %v4880 = vld [vmem:[%s1967 + $0xca] sm:$0xff]
      %v4881 = vld [vmem:[%s1967 + $0xda] sm:$0xff]
      %v4882 = vld [vmem:[%s1967 + $0xe2] sm:$0xff]
      %v4883 = vld [vmem:[%s1967 + $0xf2] sm:$0xff]
      %v4884 = vld [vmem:[%s1967 + $0xfa] sm:$0xff]
      %v4885 = vld [vmem:[%s1967 + $0x10a] sm:$0xff]
      %v4886 = vld [vmem:[%s1967 + $0x112] sm:$0xff]
      %v4887 = vld [vmem:[%s1967 + $0x122] sm:$0xff]
      %v4888 = vld [vmem:[%s1967 + $0x12a] sm:$0xff]
      %v4889 = vld [vmem:[%s1967 + $0x13a] sm:$0xff]
      %v4890 = vld [vmem:[%s1967 + $0x142] sm:$0xff]
      %v4891 = vld [vmem:[%s1967 + $0x152] sm:$0xff]
      %v4892 = vld [vmem:[%s1967 + $0x15a] sm:$0xff]
      %v4893 = vld [vmem:[%s1967 + $0x16a] sm:$0xff]
      %v4894 = vld [vmem:[%s1967 + $0x172] sm:$0xff]
      %v4895 = vpack.c.bf16 %v4864, %v4863
      %v4896 = vpack.c.bf16 %v4866, %v4865
      %v4897 = vpack.c.bf16 %v4868, %v4867
      %v4898 = vpack.c.bf16 %v4870, %v4869
      %v4899 = vpack.c.bf16 %v4872, %v4871
      %v4900 = vpack.c.bf16 %v4874, %v4873
      %v4901 = vpack.c.bf16 %v4876, %v4875
      %v4902 = vpack.c.bf16 %v4878, %v4877
      %v4903 = vpack.c.bf16 %v4880, %v4879
      %v4904 = vpack.c.bf16 %v4882, %v4881
      %v4905 = vpack.c.bf16 %v4884, %v4883
      %v4906 = vpack.c.bf16 %v4886, %v4885
      %v4907 = vpack.c.bf16 %v4888, %v4887
      %v4908 = vpack.c.bf16 %v4890, %v4889
      %v4909 = vpack.c.bf16 %v4892, %v4891
      %v4910 = vpack.c.bf16 %v4894, %v4893
      %s4911 = scalar_lea.vmem %s5, 10
      %v4912 = vld [vmem:[%s4911] sm:$0x3]
      %v4914 = vsel %vm334, %v4895, 0
      %v4917 = vsel %vm334, %v4896, 0
      %v4920 = vsel %vm334, %v4897, 0
      %v4923 = vsel %vm334, %v4898, 0
      %v4926 = vsel %vm334, %v4899, 0
      %v4929 = vsel %vm334, %v4900, 0
      %v4932 = vsel %vm334, %v4901, 0
      %v4935 = vsel %vm334, %v4902, 0
      %v4938 = vsel %vm334, %v4903, 0
      %v4941 = vsel %vm334, %v4904, 0
      %v4944 = vsel %vm334, %v4905, 0
      %v4947 = vsel %vm334, %v4906, 0
      %v4950 = vsel %vm334, %v4907, 0
      %v4953 = vsel %vm334, %v4908, 0
      %v4956 = vsel %vm334, %v4909, 0
      %v4959 = vsel %vm334, %v4910, 0
      %v4962 = vsel %vm597, %v4912, 0
      %4964 = vmatpush.bf16.msra.mxu0 0
      %4965 = vmatpush.bf16.msra.mxu0 0
      %4966 = vmatpush.bf16.msra.mxu0 0
      %4967 = vmatpush.bf16.msra.mxu0 0
      %4968 = vmatpush.bf16.msra.mxu0 0
      %4969 = vmatpush.bf16.msra.mxu0 0
      %4970 = vmatpush.bf16.msra.mxu0 0
      %4971 = vmatpush.bf16.msra.mxu0 %v4962
      %4972 = vmatmul.bf16.gmra.mxu0 %v4914
      %v4973 = vpop.f32.mrf.mxu0
      %v4974 = vadd.f32 0.0, %v4973
      %v4975 = vpop.f32.mrf.mxu0
      %v4976 = vadd.f32 0.0, %v4975
      %4977 = vmatmul.bf16.gmra.mxu0 %v4917
      %v4978 = vpop.f32.mrf.mxu0
      %v4979 = vadd.f32 0.0, %v4978
      %v4980 = vpop.f32.mrf.mxu0
      %v4981 = vadd.f32 0.0, %v4980
      %4982 = vmatmul.bf16.gmra.mxu0 %v4920
      %v4983 = vpop.f32.mrf.mxu0
      %v4984 = vadd.f32 0.0, %v4983
      %v4985 = vpop.f32.mrf.mxu0
      %v4986 = vadd.f32 0.0, %v4985
      %4987 = vmatmul.bf16.gmra.mxu0 %v4923
      %v4988 = vpop.f32.mrf.mxu0
      %v4989 = vadd.f32 0.0, %v4988
      %v4990 = vpop.f32.mrf.mxu0
      %v4991 = vadd.f32 0.0, %v4990
      %4992 = vmatmul.bf16.gmra.mxu0 %v4926
      %v4993 = vpop.f32.mrf.mxu0
      %v4994 = vadd.f32 0.0, %v4993
      %v4995 = vpop.f32.mrf.mxu0
      %v4996 = vadd.f32 0.0, %v4995
      %4997 = vmatmul.bf16.gmra.mxu0 %v4929
      %v4998 = vpop.f32.mrf.mxu0
      %v4999 = vadd.f32 0.0, %v4998
      %v5000 = vpop.f32.mrf.mxu0
      %v5001 = vadd.f32 0.0, %v5000
      %5002 = vmatmul.bf16.gmra.mxu0 %v4932
      %v5003 = vpop.f32.mrf.mxu0
      %v5004 = vadd.f32 0.0, %v5003
      %v5005 = vpop.f32.mrf.mxu0
      %v5006 = vadd.f32 0.0, %v5005
      %5007 = vmatmul.bf16.gmra.mxu0 %v4935
      %v5008 = vpop.f32.mrf.mxu0
      %v5009 = vadd.f32 0.0, %v5008
      %v5010 = vpop.f32.mrf.mxu0
      %v5011 = vadd.f32 0.0, %v5010
      %5012 = vmatmul.bf16.gmra.mxu0 %v4938
      %v5013 = vpop.f32.mrf.mxu0
      %v5014 = vadd.f32 0.0, %v5013
      %v5015 = vpop.f32.mrf.mxu0
      %v5016 = vadd.f32 0.0, %v5015
      %5017 = vmatmul.bf16.gmra.mxu0 %v4941
      %v5018 = vpop.f32.mrf.mxu0
      %v5019 = vadd.f32 0.0, %v5018
      %v5020 = vpop.f32.mrf.mxu0
      %v5021 = vadd.f32 0.0, %v5020
      %5022 = vmatmul.bf16.gmra.mxu0 %v4944
      %v5023 = vpop.f32.mrf.mxu0
      %v5024 = vadd.f32 0.0, %v5023
      %v5025 = vpop.f32.mrf.mxu0
      %v5026 = vadd.f32 0.0, %v5025
      %5027 = vmatmul.bf16.gmra.mxu0 %v4947
      %v5028 = vpop.f32.mrf.mxu0
      %v5029 = vadd.f32 0.0, %v5028
      %v5030 = vpop.f32.mrf.mxu0
      %v5031 = vadd.f32 0.0, %v5030
      %5032 = vmatmul.bf16.gmra.mxu0 %v4950
      %v5033 = vpop.f32.mrf.mxu0
      %v5034 = vadd.f32 0.0, %v5033
      %v5035 = vpop.f32.mrf.mxu0
      %v5036 = vadd.f32 0.0, %v5035
      %5037 = vmatmul.bf16.gmra.mxu0 %v4953
      %v5038 = vpop.f32.mrf.mxu0
      %v5039 = vadd.f32 0.0, %v5038
      %v5040 = vpop.f32.mrf.mxu0
      %v5041 = vadd.f32 0.0, %v5040
      %5042 = vmatmul.bf16.gmra.mxu0 %v4956
      %v5043 = vpop.f32.mrf.mxu0
      %v5044 = vadd.f32 0.0, %v5043
      %v5045 = vpop.f32.mrf.mxu0
      %v5046 = vadd.f32 0.0, %v5045
      %5047 = vmatmul.bf16.gmra.mxu0 %v4959
      %v5048 = vpop.f32.mrf.mxu0
      %v5049 = vadd.f32 0.0, %v5048
      %v5050 = vpop.f32.mrf.mxu0
      %v5051 = vadd.f32 0.0, %v5050
      %5052 = vdwg.mxu0
      %v5053 = vld [vmem:[#allocation4] sm:$0xff]
      %v5054 = vld [vmem:[#allocation4 + $0x8] sm:$0xff]
      %v5055 = vld [vmem:[#allocation4 + $0x10] sm:$0xff]
      %v5056 = vld [vmem:[#allocation4 + $0x18] sm:$0xff]
      %v5057 = vld [vmem:[#allocation4 + $0x20] sm:$0xff]
      %v5058 = vld [vmem:[#allocation4 + $0x28] sm:$0xff]
      %v5059 = vld [vmem:[#allocation4 + $0x30] sm:$0xff]
      %v5060 = vld [vmem:[#allocation4 + $0x38] sm:$0xff]
      %v5061 = vld [vmem:[#allocation4 + $0x40] sm:$0xff]
      %v5062 = vld [vmem:[#allocation4 + $0x48] sm:$0xff]
      %v5063 = vld [vmem:[#allocation4 + $0x50] sm:$0xff]
      %v5064 = vld [vmem:[#allocation4 + $0x58] sm:$0xff]
      %v5065 = vld [vmem:[#allocation4 + $0x60] sm:$0xff]
      %v5066 = vld [vmem:[#allocation4 + $0x68] sm:$0xff]
      %v5067 = vld [vmem:[#allocation4 + $0x70] sm:$0xff]
      %v5068 = vld [vmem:[#allocation4 + $0x78] sm:$0xff]
      %v5069 = vld [vmem:[#allocation4 + $0x80] sm:$0xff]
      %v5070 = vld [vmem:[#allocation4 + $0x88] sm:$0xff]
      %v5071 = vld [vmem:[#allocation4 + $0x90] sm:$0xff]
      %v5072 = vld [vmem:[#allocation4 + $0x98] sm:$0xff]
      %v5073 = vld [vmem:[#allocation4 + $0xa0] sm:$0xff]
      %v5074 = vld [vmem:[#allocation4 + $0xa8] sm:$0xff]
      %v5075 = vld [vmem:[#allocation4 + $0xb0] sm:$0xff]
      %v5076 = vld [vmem:[#allocation4 + $0xb8] sm:$0xff]
      %v5077 = vld [vmem:[#allocation4 + $0xc0] sm:$0xff]
      %v5078 = vld [vmem:[#allocation4 + $0xc8] sm:$0xff]
      %v5079 = vld [vmem:[#allocation4 + $0xd0] sm:$0xff]
      %v5080 = vld [vmem:[#allocation4 + $0xd8] sm:$0xff]
      %v5081 = vld [vmem:[#allocation4 + $0xe0] sm:$0xff]
      %v5082 = vld [vmem:[#allocation4 + $0xe8] sm:$0xff]
      %v5083 = vld [vmem:[#allocation4 + $0xf0] sm:$0xff]
      %v5084 = vld [vmem:[#allocation4 + $0xf8] sm:$0xff]
      %v5085 = vadd.f32 %v5053, %v4974
      %v5086 = vadd.f32 %v5054, %v4976
      %v5087 = vadd.f32 %v5055, %v4979
      %v5088 = vadd.f32 %v5056, %v4981
      %v5089 = vadd.f32 %v5057, %v4984
      %v5090 = vadd.f32 %v5058, %v4986
      %v5091 = vadd.f32 %v5059, %v4989
      %v5092 = vadd.f32 %v5060, %v4991
      %v5093 = vadd.f32 %v5061, %v4994
      %v5094 = vadd.f32 %v5062, %v4996
      %v5095 = vadd.f32 %v5063, %v4999
      %v5096 = vadd.f32 %v5064, %v5001
      %v5097 = vadd.f32 %v5065, %v5004
      %v5098 = vadd.f32 %v5066, %v5006
      %v5099 = vadd.f32 %v5067, %v5009
      %v5100 = vadd.f32 %v5068, %v5011
      %v5101 = vadd.f32 %v5069, %v5014
      %v5102 = vadd.f32 %v5070, %v5016
      %v5103 = vadd.f32 %v5071, %v5019
      %v5104 = vadd.f32 %v5072, %v5021
      %v5105 = vadd.f32 %v5073, %v5024
      %v5106 = vadd.f32 %v5074, %v5026
      %v5107 = vadd.f32 %v5075, %v5029
      %v5108 = vadd.f32 %v5076, %v5031
      %v5109 = vadd.f32 %v5077, %v5034
      %v5110 = vadd.f32 %v5078, %v5036
      %v5111 = vadd.f32 %v5079, %v5039
      %v5112 = vadd.f32 %v5080, %v5041
      %v5113 = vadd.f32 %v5081, %v5044
      %v5114 = vadd.f32 %v5082, %v5046
      %v5115 = vadd.f32 %v5083, %v5049
      %v5116 = vadd.f32 %v5084, %v5051
      %5117 = vst.msk [vmem:[#allocation4] sm:$0xff] %vm334, %v5085
      %5118 = vst.msk [vmem:[#allocation4 + $0x8] sm:$0xff] %vm334, %v5086
      %5119 = vst.msk [vmem:[#allocation4 + $0x10] sm:$0xff] %vm334, %v5087
      %5120 = vst.msk [vmem:[#allocation4 + $0x18] sm:$0xff] %vm334, %v5088
      %5121 = vst.msk [vmem:[#allocation4 + $0x20] sm:$0xff] %vm334, %v5089
      %5122 = vst.msk [vmem:[#allocation4 + $0x28] sm:$0xff] %vm334, %v5090
      %5123 = vst.msk [vmem:[#allocation4 + $0x30] sm:$0xff] %vm334, %v5091
      %5124 = vst.msk [vmem:[#allocation4 + $0x38] sm:$0xff] %vm334, %v5092
      %5125 = vst.msk [vmem:[#allocation4 + $0x40] sm:$0xff] %vm334, %v5093
      %5126 = vst.msk [vmem:[#allocation4 + $0x48] sm:$0xff] %vm334, %v5094
      %5127 = vst.msk [vmem:[#allocation4 + $0x50] sm:$0xff] %vm334, %v5095
      %5128 = vst.msk [vmem:[#allocation4 + $0x58] sm:$0xff] %vm334, %v5096
      %5129 = vst.msk [vmem:[#allocation4 + $0x60] sm:$0xff] %vm334, %v5097
      %5130 = vst.msk [vmem:[#allocation4 + $0x68] sm:$0xff] %vm334, %v5098
      %5131 = vst.msk [vmem:[#allocation4 + $0x70] sm:$0xff] %vm334, %v5099
      %5132 = vst.msk [vmem:[#allocation4 + $0x78] sm:$0xff] %vm334, %v5100
      %5133 = vst.msk [vmem:[#allocation4 + $0x80] sm:$0xff] %vm334, %v5101
      %5134 = vst.msk [vmem:[#allocation4 + $0x88] sm:$0xff] %vm334, %v5102
      %5135 = vst.msk [vmem:[#allocation4 + $0x90] sm:$0xff] %vm334, %v5103
      %5136 = vst.msk [vmem:[#allocation4 + $0x98] sm:$0xff] %vm334, %v5104
      %5137 = vst.msk [vmem:[#allocation4 + $0xa0] sm:$0xff] %vm334, %v5105
      %5138 = vst.msk [vmem:[#allocation4 + $0xa8] sm:$0xff] %vm334, %v5106
      %5139 = vst.msk [vmem:[#allocation4 + $0xb0] sm:$0xff] %vm334, %v5107
      %5140 = vst.msk [vmem:[#allocation4 + $0xb8] sm:$0xff] %vm334, %v5108
      %5141 = vst.msk [vmem:[#allocation4 + $0xc0] sm:$0xff] %vm334, %v5109
      %5142 = vst.msk [vmem:[#allocation4 + $0xc8] sm:$0xff] %vm334, %v5110
      %5143 = vst.msk [vmem:[#allocation4 + $0xd0] sm:$0xff] %vm334, %v5111
      %5144 = vst.msk [vmem:[#allocation4 + $0xd8] sm:$0xff] %vm334, %v5112
      %5145 = vst.msk [vmem:[#allocation4 + $0xe0] sm:$0xff] %vm334, %v5113
      %5146 = vst.msk [vmem:[#allocation4 + $0xe8] sm:$0xff] %vm334, %v5114
      %5147 = vst.msk [vmem:[#allocation4 + $0xf0] sm:$0xff] %vm334, %v5115
      %5148 = vst.msk [vmem:[#allocation4 + $0xf8] sm:$0xff] %vm334, %v5116
      %v5149 = vld [vmem:[%s3079] sm:$0xff]
      %v5150 = vld [vmem:[%s3079 + $0x8] sm:$0xff]
      %v5151 = vld [vmem:[%s3079 + $0x18] sm:$0xff]
      %v5152 = vld [vmem:[%s3079 + $0x20] sm:$0xff]
      %v5153 = vld [vmem:[%s3079 + $0x30] sm:$0xff]
      %v5154 = vld [vmem:[%s3079 + $0x38] sm:$0xff]
      %v5155 = vld [vmem:[%s3079 + $0x48] sm:$0xff]
      %v5156 = vld [vmem:[%s3079 + $0x50] sm:$0xff]
      %v5157 = vld [vmem:[%s3079 + $0x60] sm:$0xff]
      %v5158 = vld [vmem:[%s3079 + $0x68] sm:$0xff]
      %v5159 = vld [vmem:[%s3079 + $0x78] sm:$0xff]
      %v5160 = vld [vmem:[%s3079 + $0x80] sm:$0xff]
      %v5161 = vld [vmem:[%s3079 + $0x90] sm:$0xff]
      %v5162 = vld [vmem:[%s3079 + $0x98] sm:$0xff]
      %v5163 = vld [vmem:[%s3079 + $0xa8] sm:$0xff]
      %v5164 = vld [vmem:[%s3079 + $0xb0] sm:$0xff]
      %v5165 = vld [vmem:[%s3079 + $0xc0] sm:$0xff]
      %v5166 = vld [vmem:[%s3079 + $0xc8] sm:$0xff]
      %v5167 = vld [vmem:[%s3079 + $0xd8] sm:$0xff]
      %v5168 = vld [vmem:[%s3079 + $0xe0] sm:$0xff]
      %v5169 = vld [vmem:[%s3079 + $0xf0] sm:$0xff]
      %v5170 = vld [vmem:[%s3079 + $0xf8] sm:$0xff]
      %v5171 = vld [vmem:[%s3079 + $0x108] sm:$0xff]
      %v5172 = vld [vmem:[%s3079 + $0x110] sm:$0xff]
      %v5173 = vld [vmem:[%s3079 + $0x120] sm:$0xff]
      %v5174 = vld [vmem:[%s3079 + $0x128] sm:$0xff]
      %v5175 = vld [vmem:[%s3079 + $0x138] sm:$0xff]
      %v5176 = vld [vmem:[%s3079 + $0x140] sm:$0xff]
      %v5177 = vld [vmem:[%s3079 + $0x150] sm:$0xff]
      %v5178 = vld [vmem:[%s3079 + $0x158] sm:$0xff]
      %v5179 = vld [vmem:[%s3079 + $0x168] sm:$0xff]
      %v5180 = vld [vmem:[%s3079 + $0x170] sm:$0xff]
      %v5181 = vpack.c.bf16 %v5150, %v5149
      %v5182 = vpack.c.bf16 %v5152, %v5151
      %v5183 = vpack.c.bf16 %v5154, %v5153
      %v5184 = vpack.c.bf16 %v5156, %v5155
      %v5185 = vpack.c.bf16 %v5158, %v5157
      %v5186 = vpack.c.bf16 %v5160, %v5159
      %v5187 = vpack.c.bf16 %v5162, %v5161
      %v5188 = vpack.c.bf16 %v5164, %v5163
      %v5189 = vpack.c.bf16 %v5166, %v5165
      %v5190 = vpack.c.bf16 %v5168, %v5167
      %v5191 = vpack.c.bf16 %v5170, %v5169
      %v5192 = vpack.c.bf16 %v5172, %v5171
      %v5193 = vpack.c.bf16 %v5174, %v5173
      %v5194 = vpack.c.bf16 %v5176, %v5175
      %v5195 = vpack.c.bf16 %v5178, %v5177
      %v5196 = vpack.c.bf16 %v5180, %v5179
      %s5197 = scalar_lea.vmem %s5, 12
      %v5198 = vld [vmem:[%s5197] sm:$0x3]
      %v5200 = vsel %vm334, %v5181, 0
      %v5203 = vsel %vm334, %v5182, 0
      %v5206 = vsel %vm334, %v5183, 0
      %v5209 = vsel %vm334, %v5184, 0
      %v5212 = vsel %vm334, %v5185, 0
      %v5215 = vsel %vm334, %v5186, 0
      %v5218 = vsel %vm334, %v5187, 0
      %v5221 = vsel %vm334, %v5188, 0
      %v5224 = vsel %vm334, %v5189, 0
      %v5227 = vsel %vm334, %v5190, 0
      %v5230 = vsel %vm334, %v5191, 0
      %v5233 = vsel %vm334, %v5192, 0
      %v5236 = vsel %vm334, %v5193, 0
      %v5239 = vsel %vm334, %v5194, 0
      %v5242 = vsel %vm334, %v5195, 0
      %v5245 = vsel %vm334, %v5196, 0
      %v5248 = vsel %vm597, %v5198, 0
      %5250 = vmatpush.bf16.msra.mxu0 0
      %5251 = vmatpush.bf16.msra.mxu0 0
      %5252 = vmatpush.bf16.msra.mxu0 0
      %5253 = vmatpush.bf16.msra.mxu0 0
      %5254 = vmatpush.bf16.msra.mxu0 0
      %5255 = vmatpush.bf16.msra.mxu0 0
      %5256 = vmatpush.bf16.msra.mxu0 0
      %5257 = vmatpush.bf16.msra.mxu0 %v5248
      %5258 = vmatmul.bf16.gmra.mxu0 %v5200
      %v5259 = vpop.f32.mrf.mxu0
      %v5260 = vadd.f32 0.0, %v5259
      %v5261 = vpop.f32.mrf.mxu0
      %v5262 = vadd.f32 0.0, %v5261
      %5263 = vmatmul.bf16.gmra.mxu0 %v5203
      %v5264 = vpop.f32.mrf.mxu0
      %v5265 = vadd.f32 0.0, %v5264
      %v5266 = vpop.f32.mrf.mxu0
      %v5267 = vadd.f32 0.0, %v5266
      %5268 = vmatmul.bf16.gmra.mxu0 %v5206
      %v5269 = vpop.f32.mrf.mxu0
      %v5270 = vadd.f32 0.0, %v5269
      %v5271 = vpop.f32.mrf.mxu0
      %v5272 = vadd.f32 0.0, %v5271
      %5273 = vmatmul.bf16.gmra.mxu0 %v5209
      %v5274 = vpop.f32.mrf.mxu0
      %v5275 = vadd.f32 0.0, %v5274
      %v5276 = vpop.f32.mrf.mxu0
      %v5277 = vadd.f32 0.0, %v5276
      %5278 = vmatmul.bf16.gmra.mxu0 %v5212
      %v5279 = vpop.f32.mrf.mxu0
      %v5280 = vadd.f32 0.0, %v5279
      %v5281 = vpop.f32.mrf.mxu0
      %v5282 = vadd.f32 0.0, %v5281
      %5283 = vmatmul.bf16.gmra.mxu0 %v5215
      %v5284 = vpop.f32.mrf.mxu0
      %v5285 = vadd.f32 0.0, %v5284
      %v5286 = vpop.f32.mrf.mxu0
      %v5287 = vadd.f32 0.0, %v5286
      %5288 = vmatmul.bf16.gmra.mxu0 %v5218
      %v5289 = vpop.f32.mrf.mxu0
      %v5290 = vadd.f32 0.0, %v5289
      %v5291 = vpop.f32.mrf.mxu0
      %v5292 = vadd.f32 0.0, %v5291
      %5293 = vmatmul.bf16.gmra.mxu0 %v5221
      %v5294 = vpop.f32.mrf.mxu0
      %v5295 = vadd.f32 0.0, %v5294
      %v5296 = vpop.f32.mrf.mxu0
      %v5297 = vadd.f32 0.0, %v5296
      %5298 = vmatmul.bf16.gmra.mxu0 %v5224
      %v5299 = vpop.f32.mrf.mxu0
      %v5300 = vadd.f32 0.0, %v5299
      %v5301 = vpop.f32.mrf.mxu0
      %v5302 = vadd.f32 0.0, %v5301
      %5303 = vmatmul.bf16.gmra.mxu0 %v5227
      %v5304 = vpop.f32.mrf.mxu0
      %v5305 = vadd.f32 0.0, %v5304
      %v5306 = vpop.f32.mrf.mxu0
      %v5307 = vadd.f32 0.0, %v5306
      %5308 = vmatmul.bf16.gmra.mxu0 %v5230
      %v5309 = vpop.f32.mrf.mxu0
      %v5310 = vadd.f32 0.0, %v5309
      %v5311 = vpop.f32.mrf.mxu0
      %v5312 = vadd.f32 0.0, %v5311
      %5313 = vmatmul.bf16.gmra.mxu0 %v5233
      %v5314 = vpop.f32.mrf.mxu0
      %v5315 = vadd.f32 0.0, %v5314
      %v5316 = vpop.f32.mrf.mxu0
      %v5317 = vadd.f32 0.0, %v5316
      %5318 = vmatmul.bf16.gmra.mxu0 %v5236
      %v5319 = vpop.f32.mrf.mxu0
      %v5320 = vadd.f32 0.0, %v5319
      %v5321 = vpop.f32.mrf.mxu0
      %v5322 = vadd.f32 0.0, %v5321
      %5323 = vmatmul.bf16.gmra.mxu0 %v5239
      %v5324 = vpop.f32.mrf.mxu0
      %v5325 = vadd.f32 0.0, %v5324
      %v5326 = vpop.f32.mrf.mxu0
      %v5327 = vadd.f32 0.0, %v5326
      %5328 = vmatmul.bf16.gmra.mxu0 %v5242
      %v5329 = vpop.f32.mrf.mxu0
      %v5330 = vadd.f32 0.0, %v5329
      %v5331 = vpop.f32.mrf.mxu0
      %v5332 = vadd.f32 0.0, %v5331
      %5333 = vmatmul.bf16.gmra.mxu0 %v5245
      %v5334 = vpop.f32.mrf.mxu0
      %v5335 = vadd.f32 0.0, %v5334
      %v5336 = vpop.f32.mrf.mxu0
      %v5337 = vadd.f32 0.0, %v5336
      %5338 = vdwg.mxu0
      %v5339 = vld [vmem:[#allocation4] sm:$0xff]
      %v5340 = vld [vmem:[#allocation4 + $0x8] sm:$0xff]
      %v5341 = vld [vmem:[#allocation4 + $0x10] sm:$0xff]
      %v5342 = vld [vmem:[#allocation4 + $0x18] sm:$0xff]
      %v5343 = vld [vmem:[#allocation4 + $0x20] sm:$0xff]
      %v5344 = vld [vmem:[#allocation4 + $0x28] sm:$0xff]
      %v5345 = vld [vmem:[#allocation4 + $0x30] sm:$0xff]
      %v5346 = vld [vmem:[#allocation4 + $0x38] sm:$0xff]
      %v5347 = vld [vmem:[#allocation4 + $0x40] sm:$0xff]
      %v5348 = vld [vmem:[#allocation4 + $0x48] sm:$0xff]
      %v5349 = vld [vmem:[#allocation4 + $0x50] sm:$0xff]
      %v5350 = vld [vmem:[#allocation4 + $0x58] sm:$0xff]
      %v5351 = vld [vmem:[#allocation4 + $0x60] sm:$0xff]
      %v5352 = vld [vmem:[#allocation4 + $0x68] sm:$0xff]
      %v5353 = vld [vmem:[#allocation4 + $0x70] sm:$0xff]
      %v5354 = vld [vmem:[#allocation4 + $0x78] sm:$0xff]
      %v5355 = vld [vmem:[#allocation4 + $0x80] sm:$0xff]
      %v5356 = vld [vmem:[#allocation4 + $0x88] sm:$0xff]
      %v5357 = vld [vmem:[#allocation4 + $0x90] sm:$0xff]
      %v5358 = vld [vmem:[#allocation4 + $0x98] sm:$0xff]
      %v5359 = vld [vmem:[#allocation4 + $0xa0] sm:$0xff]
      %v5360 = vld [vmem:[#allocation4 + $0xa8] sm:$0xff]
      %v5361 = vld [vmem:[#allocation4 + $0xb0] sm:$0xff]
      %v5362 = vld [vmem:[#allocation4 + $0xb8] sm:$0xff]
      %v5363 = vld [vmem:[#allocation4 + $0xc0] sm:$0xff]
      %v5364 = vld [vmem:[#allocation4 + $0xc8] sm:$0xff]
      %v5365 = vld [vmem:[#allocation4 + $0xd0] sm:$0xff]
      %v5366 = vld [vmem:[#allocation4 + $0xd8] sm:$0xff]
      %v5367 = vld [vmem:[#allocation4 + $0xe0] sm:$0xff]
      %v5368 = vld [vmem:[#allocation4 + $0xe8] sm:$0xff]
      %v5369 = vld [vmem:[#allocation4 + $0xf0] sm:$0xff]
      %v5370 = vld [vmem:[#allocation4 + $0xf8] sm:$0xff]
      %v5371 = vadd.f32 %v5339, %v5260
      %v5372 = vadd.f32 %v5340, %v5262
      %v5373 = vadd.f32 %v5341, %v5265
      %v5374 = vadd.f32 %v5342, %v5267
      %v5375 = vadd.f32 %v5343, %v5270
      %v5376 = vadd.f32 %v5344, %v5272
      %v5377 = vadd.f32 %v5345, %v5275
      %v5378 = vadd.f32 %v5346, %v5277
      %v5379 = vadd.f32 %v5347, %v5280
      %v5380 = vadd.f32 %v5348, %v5282
      %v5381 = vadd.f32 %v5349, %v5285
      %v5382 = vadd.f32 %v5350, %v5287
      %v5383 = vadd.f32 %v5351, %v5290
      %v5384 = vadd.f32 %v5352, %v5292
      %v5385 = vadd.f32 %v5353, %v5295
      %v5386 = vadd.f32 %v5354, %v5297
      %v5387 = vadd.f32 %v5355, %v5300
      %v5388 = vadd.f32 %v5356, %v5302
      %v5389 = vadd.f32 %v5357, %v5305
      %v5390 = vadd.f32 %v5358, %v5307
      %v5391 = vadd.f32 %v5359, %v5310
      %v5392 = vadd.f32 %v5360, %v5312
      %v5393 = vadd.f32 %v5361, %v5315
      %v5394 = vadd.f32 %v5362, %v5317
      %v5395 = vadd.f32 %v5363, %v5320
      %v5396 = vadd.f32 %v5364, %v5322
      %v5397 = vadd.f32 %v5365, %v5325
      %v5398 = vadd.f32 %v5366, %v5327
      %v5399 = vadd.f32 %v5367, %v5330
      %v5400 = vadd.f32 %v5368, %v5332
      %v5401 = vadd.f32 %v5369, %v5335
      %v5402 = vadd.f32 %v5370, %v5337
      %5403 = vst.msk [vmem:[#allocation4] sm:$0xff] %vm334, %v5371
      %5404 = vst.msk [vmem:[#allocation4 + $0x8] sm:$0xff] %vm334, %v5372
      %5405 = vst.msk [vmem:[#allocation4 + $0x10] sm:$0xff] %vm334, %v5373
      %5406 = vst.msk [vmem:[#allocation4 + $0x18] sm:$0xff] %vm334, %v5374
      %5407 = vst.msk [vmem:[#allocation4 + $0x20] sm:$0xff] %vm334, %v5375
      %5408 = vst.msk [vmem:[#allocation4 + $0x28] sm:$0xff] %vm334, %v5376
      %5409 = vst.msk [vmem:[#allocation4 + $0x30] sm:$0xff] %vm334, %v5377
      %5410 = vst.msk [vmem:[#allocation4 + $0x38] sm:$0xff] %vm334, %v5378
      %5411 = vst.msk [vmem:[#allocation4 + $0x40] sm:$0xff] %vm334, %v5379
      %5412 = vst.msk [vmem:[#allocation4 + $0x48] sm:$0xff] %vm334, %v5380
      %5413 = vst.msk [vmem:[#allocation4 + $0x50] sm:$0xff] %vm334, %v5381
      %5414 = vst.msk [vmem:[#allocation4 + $0x58] sm:$0xff] %vm334, %v5382
      %5415 = vst.msk [vmem:[#allocation4 + $0x60] sm:$0xff] %vm334, %v5383
      %5416 = vst.msk [vmem:[#allocation4 + $0x68] sm:$0xff] %vm334, %v5384
      %5417 = vst.msk [vmem:[#allocation4 + $0x70] sm:$0xff] %vm334, %v5385
      %5418 = vst.msk [vmem:[#allocation4 + $0x78] sm:$0xff] %vm334, %v5386
      %5419 = vst.msk [vmem:[#allocation4 + $0x80] sm:$0xff] %vm334, %v5387
      %5420 = vst.msk [vmem:[#allocation4 + $0x88] sm:$0xff] %vm334, %v5388
      %5421 = vst.msk [vmem:[#allocation4 + $0x90] sm:$0xff] %vm334, %v5389
      %5422 = vst.msk [vmem:[#allocation4 + $0x98] sm:$0xff] %vm334, %v5390
      %5423 = vst.msk [vmem:[#allocation4 + $0xa0] sm:$0xff] %vm334, %v5391
      %5424 = vst.msk [vmem:[#allocation4 + $0xa8] sm:$0xff] %vm334, %v5392
      %5425 = vst.msk [vmem:[#allocation4 + $0xb0] sm:$0xff] %vm334, %v5393
      %5426 = vst.msk [vmem:[#allocation4 + $0xb8] sm:$0xff] %vm334, %v5394
      %5427 = vst.msk [vmem:[#allocation4 + $0xc0] sm:$0xff] %vm334, %v5395
      %5428 = vst.msk [vmem:[#allocation4 + $0xc8] sm:$0xff] %vm334, %v5396
      %5429 = vst.msk [vmem:[#allocation4 + $0xd0] sm:$0xff] %vm334, %v5397
      %5430 = vst.msk [vmem:[#allocation4 + $0xd8] sm:$0xff] %vm334, %v5398
      %5431 = vst.msk [vmem:[#allocation4 + $0xe0] sm:$0xff] %vm334, %v5399
      %5432 = vst.msk [vmem:[#allocation4 + $0xe8] sm:$0xff] %vm334, %v5400
      %5433 = vst.msk [vmem:[#allocation4 + $0xf0] sm:$0xff] %vm334, %v5401
      %5434 = vst.msk [vmem:[#allocation4 + $0xf8] sm:$0xff] %vm334, %v5402
      %v5435 = vld [vmem:[%s3079 + $0x1] sm:$0xff]
      %v5436 = vld [vmem:[%s3079 + $0x9] sm:$0xff]
      %v5437 = vld [vmem:[%s3079 + $0x19] sm:$0xff]
      %v5438 = vld [vmem:[%s3079 + $0x21] sm:$0xff]
      %v5439 = vld [vmem:[%s3079 + $0x31] sm:$0xff]
      %v5440 = vld [vmem:[%s3079 + $0x39] sm:$0xff]
      %v5441 = vld [vmem:[%s3079 + $0x49] sm:$0xff]
      %v5442 = vld [vmem:[%s3079 + $0x51] sm:$0xff]
      %v5443 = vld [vmem:[%s3079 + $0x61] sm:$0xff]
      %v5444 = vld [vmem:[%s3079 + $0x69] sm:$0xff]
      %v5445 = vld [vmem:[%s3079 + $0x79] sm:$0xff]
      %v5446 = vld [vmem:[%s3079 + $0x81] sm:$0xff]
      %v5447 = vld [vmem:[%s3079 + $0x91] sm:$0xff]
      %v5448 = vld [vmem:[%s3079 + $0x99] sm:$0xff]
      %v5449 = vld [vmem:[%s3079 + $0xa9] sm:$0xff]
      %v5450 = vld [vmem:[%s3079 + $0xb1] sm:$0xff]
      %v5451 = vld [vmem:[%s3079 + $0xc1] sm:$0xff]
      %v5452 = vld [vmem:[%s3079 + $0xc9] sm:$0xff]
      %v5453 = vld [vmem:[%s3079 + $0xd9] sm:$0xff]
      %v5454 = vld [vmem:[%s3079 + $0xe1] sm:$0xff]
      %v5455 = vld [vmem:[%s3079 + $0xf1] sm:$0xff]
      %v5456 = vld [vmem:[%s3079 + $0xf9] sm:$0xff]
      %v5457 = vld [vmem:[%s3079 + $0x109] sm:$0xff]
      %v5458 = vld [vmem:[%s3079 + $0x111] sm:$0xff]
      %v5459 = vld [vmem:[%s3079 + $0x121] sm:$0xff]
      %v5460 = vld [vmem:[%s3079 + $0x129] sm:$0xff]
      %v5461 = vld [vmem:[%s3079 + $0x139] sm:$0xff]
      %v5462 = vld [vmem:[%s3079 + $0x141] sm:$0xff]
      %v5463 = vld [vmem:[%s3079 + $0x151] sm:$0xff]
      %v5464 = vld [vmem:[%s3079 + $0x159] sm:$0xff]
      %v5465 = vld [vmem:[%s3079 + $0x169] sm:$0xff]
      %v5466 = vld [vmem:[%s3079 + $0x171] sm:$0xff]
      %v5467 = vpack.c.bf16 %v5436, %v5435
      %v5468 = vpack.c.bf16 %v5438, %v5437
      %v5469 = vpack.c.bf16 %v5440, %v5439
      %v5470 = vpack.c.bf16 %v5442, %v5441
      %v5471 = vpack.c.bf16 %v5444, %v5443
      %v5472 = vpack.c.bf16 %v5446, %v5445
      %v5473 = vpack.c.bf16 %v5448, %v5447
      %v5474 = vpack.c.bf16 %v5450, %v5449
      %v5475 = vpack.c.bf16 %v5452, %v5451
      %v5476 = vpack.c.bf16 %v5454, %v5453
      %v5477 = vpack.c.bf16 %v5456, %v5455
      %v5478 = vpack.c.bf16 %v5458, %v5457
      %v5479 = vpack.c.bf16 %v5460, %v5459
      %v5480 = vpack.c.bf16 %v5462, %v5461
      %v5481 = vpack.c.bf16 %v5464, %v5463
      %v5482 = vpack.c.bf16 %v5466, %v5465
      %s5483 = scalar_lea.vmem %s5, 14
      %v5484 = vld [vmem:[%s5483] sm:$0x3]
      %v5486 = vsel %vm334, %v5467, 0
      %v5489 = vsel %vm334, %v5468, 0
      %v5492 = vsel %vm334, %v5469, 0
      %v5495 = vsel %vm334, %v5470, 0
      %v5498 = vsel %vm334, %v5471, 0
      %v5501 = vsel %vm334, %v5472, 0
      %v5504 = vsel %vm334, %v5473, 0
      %v5507 = vsel %vm334, %v5474, 0
      %v5510 = vsel %vm334, %v5475, 0
      %v5513 = vsel %vm334, %v5476, 0
      %v5516 = vsel %vm334, %v5477, 0
      %v5519 = vsel %vm334, %v5478, 0
      %v5522 = vsel %vm334, %v5479, 0
      %v5525 = vsel %vm334, %v5480, 0
      %v5528 = vsel %vm334, %v5481, 0
      %v5531 = vsel %vm334, %v5482, 0
      %v5534 = vsel %vm597, %v5484, 0
      %5536 = vmatpush.bf16.msra.mxu0 0
      %5537 = vmatpush.bf16.msra.mxu0 0
      %5538 = vmatpush.bf16.msra.mxu0 0
      %5539 = vmatpush.bf16.msra.mxu0 0
      %5540 = vmatpush.bf16.msra.mxu0 0
      %5541 = vmatpush.bf16.msra.mxu0 0
      %5542 = vmatpush.bf16.msra.mxu0 0
      %5543 = vmatpush.bf16.msra.mxu0 %v5534
      %5544 = vmatmul.bf16.gmra.mxu0 %v5486
      %v5545 = vpop.f32.mrf.mxu0
      %v5546 = vadd.f32 0.0, %v5545
      %v5547 = vpop.f32.mrf.mxu0
      %v5548 = vadd.f32 0.0, %v5547
      %5549 = vmatmul.bf16.gmra.mxu0 %v5489
      %v5550 = vpop.f32.mrf.mxu0
      %v5551 = vadd.f32 0.0, %v5550
      %v5552 = vpop.f32.mrf.mxu0
      %v5553 = vadd.f32 0.0, %v5552
      %5554 = vmatmul.bf16.gmra.mxu0 %v5492
      %v5555 = vpop.f32.mrf.mxu0
      %v5556 = vadd.f32 0.0, %v5555
      %v5557 = vpop.f32.mrf.mxu0
      %v5558 = vadd.f32 0.0, %v5557
      %5559 = vmatmul.bf16.gmra.mxu0 %v5495
      %v5560 = vpop.f32.mrf.mxu0
      %v5561 = vadd.f32 0.0, %v5560
      %v5562 = vpop.f32.mrf.mxu0
      %v5563 = vadd.f32 0.0, %v5562
      %5564 = vmatmul.bf16.gmra.mxu0 %v5498
      %v5565 = vpop.f32.mrf.mxu0
      %v5566 = vadd.f32 0.0, %v5565
      %v5567 = vpop.f32.mrf.mxu0
      %v5568 = vadd.f32 0.0, %v5567
      %5569 = vmatmul.bf16.gmra.mxu0 %v5501
      %v5570 = vpop.f32.mrf.mxu0
      %v5571 = vadd.f32 0.0, %v5570
      %v5572 = vpop.f32.mrf.mxu0
      %v5573 = vadd.f32 0.0, %v5572
      %5574 = vmatmul.bf16.gmra.mxu0 %v5504
      %v5575 = vpop.f32.mrf.mxu0
      %v5576 = vadd.f32 0.0, %v5575
      %v5577 = vpop.f32.mrf.mxu0
      %v5578 = vadd.f32 0.0, %v5577
      %5579 = vmatmul.bf16.gmra.mxu0 %v5507
      %v5580 = vpop.f32.mrf.mxu0
      %v5581 = vadd.f32 0.0, %v5580
      %v5582 = vpop.f32.mrf.mxu0
      %v5583 = vadd.f32 0.0, %v5582
      %5584 = vmatmul.bf16.gmra.mxu0 %v5510
      %v5585 = vpop.f32.mrf.mxu0
      %v5586 = vadd.f32 0.0, %v5585
      %v5587 = vpop.f32.mrf.mxu0
      %v5588 = vadd.f32 0.0, %v5587
      %5589 = vmatmul.bf16.gmra.mxu0 %v5513
      %v5590 = vpop.f32.mrf.mxu0
      %v5591 = vadd.f32 0.0, %v5590
      %v5592 = vpop.f32.mrf.mxu0
      %v5593 = vadd.f32 0.0, %v5592
      %5594 = vmatmul.bf16.gmra.mxu0 %v5516
      %v5595 = vpop.f32.mrf.mxu0
      %v5596 = vadd.f32 0.0, %v5595
      %v5597 = vpop.f32.mrf.mxu0
      %v5598 = vadd.f32 0.0, %v5597
      %5599 = vmatmul.bf16.gmra.mxu0 %v5519
      %v5600 = vpop.f32.mrf.mxu0
      %v5601 = vadd.f32 0.0, %v5600
      %v5602 = vpop.f32.mrf.mxu0
      %v5603 = vadd.f32 0.0, %v5602
      %5604 = vmatmul.bf16.gmra.mxu0 %v5522
      %v5605 = vpop.f32.mrf.mxu0
      %v5606 = vadd.f32 0.0, %v5605
      %v5607 = vpop.f32.mrf.mxu0
      %v5608 = vadd.f32 0.0, %v5607
      %5609 = vmatmul.bf16.gmra.mxu0 %v5525
      %v5610 = vpop.f32.mrf.mxu0
      %v5611 = vadd.f32 0.0, %v5610
      %v5612 = vpop.f32.mrf.mxu0
      %v5613 = vadd.f32 0.0, %v5612
      %5614 = vmatmul.bf16.gmra.mxu0 %v5528
      %v5615 = vpop.f32.mrf.mxu0
      %v5616 = vadd.f32 0.0, %v5615
      %v5617 = vpop.f32.mrf.mxu0
      %v5618 = vadd.f32 0.0, %v5617
      %5619 = vmatmul.bf16.gmra.mxu0 %v5531
      %v5620 = vpop.f32.mrf.mxu0
      %v5621 = vadd.f32 0.0, %v5620
      %v5622 = vpop.f32.mrf.mxu0
      %v5623 = vadd.f32 0.0, %v5622
      %5624 = vdwg.mxu0
      %v5625 = vld [vmem:[#allocation4] sm:$0xff]
      %v5626 = vld [vmem:[#allocation4 + $0x8] sm:$0xff]
      %v5627 = vld [vmem:[#allocation4 + $0x10] sm:$0xff]
      %v5628 = vld [vmem:[#allocation4 + $0x18] sm:$0xff]
      %v5629 = vld [vmem:[#allocation4 + $0x20] sm:$0xff]
      %v5630 = vld [vmem:[#allocation4 + $0x28] sm:$0xff]
      %v5631 = vld [vmem:[#allocation4 + $0x30] sm:$0xff]
      %v5632 = vld [vmem:[#allocation4 + $0x38] sm:$0xff]
      %v5633 = vld [vmem:[#allocation4 + $0x40] sm:$0xff]
      %v5634 = vld [vmem:[#allocation4 + $0x48] sm:$0xff]
      %v5635 = vld [vmem:[#allocation4 + $0x50] sm:$0xff]
      %v5636 = vld [vmem:[#allocation4 + $0x58] sm:$0xff]
      %v5637 = vld [vmem:[#allocation4 + $0x60] sm:$0xff]
      %v5638 = vld [vmem:[#allocation4 + $0x68] sm:$0xff]
      %v5639 = vld [vmem:[#allocation4 + $0x70] sm:$0xff]
      %v5640 = vld [vmem:[#allocation4 + $0x78] sm:$0xff]
      %v5641 = vld [vmem:[#allocation4 + $0x80] sm:$0xff]
      %v5642 = vld [vmem:[#allocation4 + $0x88] sm:$0xff]
      %v5643 = vld [vmem:[#allocation4 + $0x90] sm:$0xff]
      %v5644 = vld [vmem:[#allocation4 + $0x98] sm:$0xff]
      %v5645 = vld [vmem:[#allocation4 + $0xa0] sm:$0xff]
      %v5646 = vld [vmem:[#allocation4 + $0xa8] sm:$0xff]
      %v5647 = vld [vmem:[#allocation4 + $0xb0] sm:$0xff]
      %v5648 = vld [vmem:[#allocation4 + $0xb8] sm:$0xff]
      %v5649 = vld [vmem:[#allocation4 + $0xc0] sm:$0xff]
      %v5650 = vld [vmem:[#allocation4 + $0xc8] sm:$0xff]
      %v5651 = vld [vmem:[#allocation4 + $0xd0] sm:$0xff]
      %v5652 = vld [vmem:[#allocation4 + $0xd8] sm:$0xff]
      %v5653 = vld [vmem:[#allocation4 + $0xe0] sm:$0xff]
      %v5654 = vld [vmem:[#allocation4 + $0xe8] sm:$0xff]
      %v5655 = vld [vmem:[#allocation4 + $0xf0] sm:$0xff]
      %v5656 = vld [vmem:[#allocation4 + $0xf8] sm:$0xff]
      %v5657 = vadd.f32 %v5625, %v5546
      %v5658 = vadd.f32 %v5626, %v5548
      %v5659 = vadd.f32 %v5627, %v5551
      %v5660 = vadd.f32 %v5628, %v5553
      %v5661 = vadd.f32 %v5629, %v5556
      %v5662 = vadd.f32 %v5630, %v5558
      %v5663 = vadd.f32 %v5631, %v5561
      %v5664 = vadd.f32 %v5632, %v5563
      %v5665 = vadd.f32 %v5633, %v5566
      %v5666 = vadd.f32 %v5634, %v5568
      %v5667 = vadd.f32 %v5635, %v5571
      %v5668 = vadd.f32 %v5636, %v5573
      %v5669 = vadd.f32 %v5637, %v5576
      %v5670 = vadd.f32 %v5638, %v5578
      %v5671 = vadd.f32 %v5639, %v5581
      %v5672 = vadd.f32 %v5640, %v5583
      %v5673 = vadd.f32 %v5641, %v5586
      %v5674 = vadd.f32 %v5642, %v5588
      %v5675 = vadd.f32 %v5643, %v5591
      %v5676 = vadd.f32 %v5644, %v5593
      %v5677 = vadd.f32 %v5645, %v5596
      %v5678 = vadd.f32 %v5646, %v5598
      %v5679 = vadd.f32 %v5647, %v5601
      %v5680 = vadd.f32 %v5648, %v5603
      %v5681 = vadd.f32 %v5649, %v5606
      %v5682 = vadd.f32 %v5650, %v5608
      %v5683 = vadd.f32 %v5651, %v5611
      %v5684 = vadd.f32 %v5652, %v5613
      %v5685 = vadd.f32 %v5653, %v5616
      %v5686 = vadd.f32 %v5654, %v5618
      %v5687 = vadd.f32 %v5655, %v5621
      %v5688 = vadd.f32 %v5656, %v5623
      %5689 = vst.msk [vmem:[#allocation4] sm:$0xff] %vm334, %v5657
      %5690 = vst.msk [vmem:[#allocation4 + $0x8] sm:$0xff] %vm334, %v5658
      %5691 = vst.msk [vmem:[#allocation4 + $0x10] sm:$0xff] %vm334, %v5659
      %5692 = vst.msk [vmem:[#allocation4 + $0x18] sm:$0xff] %vm334, %v5660
      %5693 = vst.msk [vmem:[#allocation4 + $0x20] sm:$0xff] %vm334, %v5661
      %5694 = vst.msk [vmem:[#allocation4 + $0x28] sm:$0xff] %vm334, %v5662
      %5695 = vst.msk [vmem:[#allocation4 + $0x30] sm:$0xff] %vm334, %v5663
      %5696 = vst.msk [vmem:[#allocation4 + $0x38] sm:$0xff] %vm334, %v5664
      %5697 = vst.msk [vmem:[#allocation4 + $0x40] sm:$0xff] %vm334, %v5665
      %5698 = vst.msk [vmem:[#allocation4 + $0x48] sm:$0xff] %vm334, %v5666
      %5699 = vst.msk [vmem:[#allocation4 + $0x50] sm:$0xff] %vm334, %v5667
      %5700 = vst.msk [vmem:[#allocation4 + $0x58] sm:$0xff] %vm334, %v5668
      %5701 = vst.msk [vmem:[#allocation4 + $0x60] sm:$0xff] %vm334, %v5669
      %5702 = vst.msk [vmem:[#allocation4 + $0x68] sm:$0xff] %vm334, %v5670
      %5703 = vst.msk [vmem:[#allocation4 + $0x70] sm:$0xff] %vm334, %v5671
      %5704 = vst.msk [vmem:[#allocation4 + $0x78] sm:$0xff] %vm334, %v5672
      %5705 = vst.msk [vmem:[#allocation4 + $0x80] sm:$0xff] %vm334, %v5673
      %5706 = vst.msk [vmem:[#allocation4 + $0x88] sm:$0xff] %vm334, %v5674
      %5707 = vst.msk [vmem:[#allocation4 + $0x90] sm:$0xff] %vm334, %v5675
      %5708 = vst.msk [vmem:[#allocation4 + $0x98] sm:$0xff] %vm334, %v5676
      %5709 = vst.msk [vmem:[#allocation4 + $0xa0] sm:$0xff] %vm334, %v5677
      %5710 = vst.msk [vmem:[#allocation4 + $0xa8] sm:$0xff] %vm334, %v5678
      %5711 = vst.msk [vmem:[#allocation4 + $0xb0] sm:$0xff] %vm334, %v5679
      %5712 = vst.msk [vmem:[#allocation4 + $0xb8] sm:$0xff] %vm334, %v5680
      %5713 = vst.msk [vmem:[#allocation4 + $0xc0] sm:$0xff] %vm334, %v5681
      %5714 = vst.msk [vmem:[#allocation4 + $0xc8] sm:$0xff] %vm334, %v5682
      %5715 = vst.msk [vmem:[#allocation4 + $0xd0] sm:$0xff] %vm334, %v5683
      %5716 = vst.msk [vmem:[#allocation4 + $0xd8] sm:$0xff] %vm334, %v5684
      %5717 = vst.msk [vmem:[#allocation4 + $0xe0] sm:$0xff] %vm334, %v5685
      %5718 = vst.msk [vmem:[#allocation4 + $0xe8] sm:$0xff] %vm334, %v5686
      %5719 = vst.msk [vmem:[#allocation4 + $0xf0] sm:$0xff] %vm334, %v5687
      %5720 = vst.msk [vmem:[#allocation4 + $0xf8] sm:$0xff] %vm334, %v5688
      %v5721 = vld [vmem:[%s3079 + $0x2] sm:$0xff]
      %v5722 = vld [vmem:[%s3079 + $0xa] sm:$0xff]
      %v5723 = vld [vmem:[%s3079 + $0x1a] sm:$0xff]
      %v5724 = vld [vmem:[%s3079 + $0x22] sm:$0xff]
      %v5725 = vld [vmem:[%s3079 + $0x32] sm:$0xff]
      %v5726 = vld [vmem:[%s3079 + $0x3a] sm:$0xff]
      %v5727 = vld [vmem:[%s3079 + $0x4a] sm:$0xff]
      %v5728 = vld [vmem:[%s3079 + $0x52] sm:$0xff]
      %v5729 = vld [vmem:[%s3079 + $0x62] sm:$0xff]
      %v5730 = vld [vmem:[%s3079 + $0x6a] sm:$0xff]
      %v5731 = vld [vmem:[%s3079 + $0x7a] sm:$0xff]
      %v5732 = vld [vmem:[%s3079 + $0x82] sm:$0xff]
      %v5733 = vld [vmem:[%s3079 + $0x92] sm:$0xff]
      %v5734 = vld [vmem:[%s3079 + $0x9a] sm:$0xff]
      %v5735 = vld [vmem:[%s3079 + $0xaa] sm:$0xff]
      %v5736 = vld [vmem:[%s3079 + $0xb2] sm:$0xff]
      %v5737 = vld [vmem:[%s3079 + $0xc2] sm:$0xff]
      %v5738 = vld [vmem:[%s3079 + $0xca] sm:$0xff]
      %v5739 = vld [vmem:[%s3079 + $0xda] sm:$0xff]
      %v5740 = vld [vmem:[%s3079 + $0xe2] sm:$0xff]
      %v5741 = vld [vmem:[%s3079 + $0xf2] sm:$0xff]
      %v5742 = vld [vmem:[%s3079 + $0xfa] sm:$0xff]
      %v5743 = vld [vmem:[%s3079 + $0x10a] sm:$0xff]
      %v5744 = vld [vmem:[%s3079 + $0x112] sm:$0xff]
      %v5745 = vld [vmem:[%s3079 + $0x122] sm:$0xff]
      %v5746 = vld [vmem:[%s3079 + $0x12a] sm:$0xff]
      %v5747 = vld [vmem:[%s3079 + $0x13a] sm:$0xff]
      %v5748 = vld [vmem:[%s3079 + $0x142] sm:$0xff]
      %v5749 = vld [vmem:[%s3079 + $0x152] sm:$0xff]
      %v5750 = vld [vmem:[%s3079 + $0x15a] sm:$0xff]
      %v5751 = vld [vmem:[%s3079 + $0x16a] sm:$0xff]
      %v5752 = vld [vmem:[%s3079 + $0x172] sm:$0xff]
      %v5753 = vpack.c.bf16 %v5722, %v5721
      %v5754 = vpack.c.bf16 %v5724, %v5723
      %v5755 = vpack.c.bf16 %v5726, %v5725
      %v5756 = vpack.c.bf16 %v5728, %v5727
      %v5757 = vpack.c.bf16 %v5730, %v5729
      %v5758 = vpack.c.bf16 %v5732, %v5731
      %v5759 = vpack.c.bf16 %v5734, %v5733
      %v5760 = vpack.c.bf16 %v5736, %v5735
      %v5761 = vpack.c.bf16 %v5738, %v5737
      %v5762 = vpack.c.bf16 %v5740, %v5739
      %v5763 = vpack.c.bf16 %v5742, %v5741
      %v5764 = vpack.c.bf16 %v5744, %v5743
      %v5765 = vpack.c.bf16 %v5746, %v5745
      %v5766 = vpack.c.bf16 %v5748, %v5747
      %v5767 = vpack.c.bf16 %v5750, %v5749
      %v5768 = vpack.c.bf16 %v5752, %v5751
      %s5769 = scalar_lea.vmem %s5, 16
      %v5770 = vld [vmem:[%s5769] sm:$0x3]
      %v5772 = vsel %vm334, %v5753, 0
      %v5775 = vsel %vm334, %v5754, 0
      %v5778 = vsel %vm334, %v5755, 0
      %v5781 = vsel %vm334, %v5756, 0
      %v5784 = vsel %vm334, %v5757, 0
      %v5787 = vsel %vm334, %v5758, 0
      %v5790 = vsel %vm334, %v5759, 0
      %v5793 = vsel %vm334, %v5760, 0
      %v5796 = vsel %vm334, %v5761, 0
      %v5799 = vsel %vm334, %v5762, 0
      %v5802 = vsel %vm334, %v5763, 0
      %v5805 = vsel %vm334, %v5764, 0
      %v5808 = vsel %vm334, %v5765, 0
      %v5811 = vsel %vm334, %v5766, 0
      %v5814 = vsel %vm334, %v5767, 0
      %v5817 = vsel %vm334, %v5768, 0
      %v5820 = vsel %vm597, %v5770, 0
      %5822 = vmatpush.bf16.msra.mxu0 0
      %5823 = vmatpush.bf16.msra.mxu0 0
      %5824 = vmatpush.bf16.msra.mxu0 0
      %5825 = vmatpush.bf16.msra.mxu0 0
      %5826 = vmatpush.bf16.msra.mxu0 0
      %5827 = vmatpush.bf16.msra.mxu0 0
      %5828 = vmatpush.bf16.msra.mxu0 0
      %5829 = vmatpush.bf16.msra.mxu0 %v5820
      %5830 = vmatmul.bf16.gmra.mxu0 %v5772
      %v5831 = vpop.f32.mrf.mxu0
      %v5832 = vadd.f32 0.0, %v5831
      %v5833 = vpop.f32.mrf.mxu0
      %v5834 = vadd.f32 0.0, %v5833
      %5835 = vmatmul.bf16.gmra.mxu0 %v5775
      %v5836 = vpop.f32.mrf.mxu0
      %v5837 = vadd.f32 0.0, %v5836
      %v5838 = vpop.f32.mrf.mxu0
      %v5839 = vadd.f32 0.0, %v5838
      %5840 = vmatmul.bf16.gmra.mxu0 %v5778
      %v5841 = vpop.f32.mrf.mxu0
      %v5842 = vadd.f32 0.0, %v5841
      %v5843 = vpop.f32.mrf.mxu0
      %v5844 = vadd.f32 0.0, %v5843
      %5845 = vmatmul.bf16.gmra.mxu0 %v5781
      %v5846 = vpop.f32.mrf.mxu0
      %v5847 = vadd.f32 0.0, %v5846
      %v5848 = vpop.f32.mrf.mxu0
      %v5849 = vadd.f32 0.0, %v5848
      %5850 = vmatmul.bf16.gmra.mxu0 %v5784
      %v5851 = vpop.f32.mrf.mxu0
      %v5852 = vadd.f32 0.0, %v5851
      %v5853 = vpop.f32.mrf.mxu0
      %v5854 = vadd.f32 0.0, %v5853
      %5855 = vmatmul.bf16.gmra.mxu0 %v5787
      %v5856 = vpop.f32.mrf.mxu0
      %v5857 = vadd.f32 0.0, %v5856
      %v5858 = vpop.f32.mrf.mxu0
      %v5859 = vadd.f32 0.0, %v5858
      %5860 = vmatmul.bf16.gmra.mxu0 %v5790
      %v5861 = vpop.f32.mrf.mxu0
      %v5862 = vadd.f32 0.0, %v5861
      %v5863 = vpop.f32.mrf.mxu0
      %v5864 = vadd.f32 0.0, %v5863
      %5865 = vmatmul.bf16.gmra.mxu0 %v5793
      %v5866 = vpop.f32.mrf.mxu0
      %v5867 = vadd.f32 0.0, %v5866
      %v5868 = vpop.f32.mrf.mxu0
      %v5869 = vadd.f32 0.0, %v5868
      %5870 = vmatmul.bf16.gmra.mxu0 %v5796
      %v5871 = vpop.f32.mrf.mxu0
      %v5872 = vadd.f32 0.0, %v5871
      %v5873 = vpop.f32.mrf.mxu0
      %v5874 = vadd.f32 0.0, %v5873
      %5875 = vmatmul.bf16.gmra.mxu0 %v5799
      %v5876 = vpop.f32.mrf.mxu0
      %v5877 = vadd.f32 0.0, %v5876
      %v5878 = vpop.f32.mrf.mxu0
      %v5879 = vadd.f32 0.0, %v5878
      %5880 = vmatmul.bf16.gmra.mxu0 %v5802
      %v5881 = vpop.f32.mrf.mxu0
      %v5882 = vadd.f32 0.0, %v5881
      %v5883 = vpop.f32.mrf.mxu0
      %v5884 = vadd.f32 0.0, %v5883
      %5885 = vmatmul.bf16.gmra.mxu0 %v5805
      %v5886 = vpop.f32.mrf.mxu0
      %v5887 = vadd.f32 0.0, %v5886
      %v5888 = vpop.f32.mrf.mxu0
      %v5889 = vadd.f32 0.0, %v5888
      %5890 = vmatmul.bf16.gmra.mxu0 %v5808
      %v5891 = vpop.f32.mrf.mxu0
      %v5892 = vadd.f32 0.0, %v5891
      %v5893 = vpop.f32.mrf.mxu0
      %v5894 = vadd.f32 0.0, %v5893
      %5895 = vmatmul.bf16.gmra.mxu0 %v5811
      %v5896 = vpop.f32.mrf.mxu0
      %v5897 = vadd.f32 0.0, %v5896
      %v5898 = vpop.f32.mrf.mxu0
      %v5899 = vadd.f32 0.0, %v5898
      %5900 = vmatmul.bf16.gmra.mxu0 %v5814
      %v5901 = vpop.f32.mrf.mxu0
      %v5902 = vadd.f32 0.0, %v5901
      %v5903 = vpop.f32.mrf.mxu0
      %v5904 = vadd.f32 0.0, %v5903
      %5905 = vmatmul.bf16.gmra.mxu0 %v5817
      %v5906 = vpop.f32.mrf.mxu0
      %v5907 = vadd.f32 0.0, %v5906
      %v5908 = vpop.f32.mrf.mxu0
      %v5909 = vadd.f32 0.0, %v5908
      %5910 = vdwg.mxu0
      %v5911 = vld [vmem:[#allocation4] sm:$0xff]
      %v5912 = vld [vmem:[#allocation4 + $0x8] sm:$0xff]
      %v5913 = vld [vmem:[#allocation4 + $0x10] sm:$0xff]
      %v5914 = vld [vmem:[#allocation4 + $0x18] sm:$0xff]
      %v5915 = vld [vmem:[#allocation4 + $0x20] sm:$0xff]
      %v5916 = vld [vmem:[#allocation4 + $0x28] sm:$0xff]
      %v5917 = vld [vmem:[#allocation4 + $0x30] sm:$0xff]
      %v5918 = vld [vmem:[#allocation4 + $0x38] sm:$0xff]
      %v5919 = vld [vmem:[#allocation4 + $0x40] sm:$0xff]
      %v5920 = vld [vmem:[#allocation4 + $0x48] sm:$0xff]
      %v5921 = vld [vmem:[#allocation4 + $0x50] sm:$0xff]
      %v5922 = vld [vmem:[#allocation4 + $0x58] sm:$0xff]
      %v5923 = vld [vmem:[#allocation4 + $0x60] sm:$0xff]
      %v5924 = vld [vmem:[#allocation4 + $0x68] sm:$0xff]
      %v5925 = vld [vmem:[#allocation4 + $0x70] sm:$0xff]
      %v5926 = vld [vmem:[#allocation4 + $0x78] sm:$0xff]
      %v5927 = vld [vmem:[#allocation4 + $0x80] sm:$0xff]
      %v5928 = vld [vmem:[#allocation4 + $0x88] sm:$0xff]
      %v5929 = vld [vmem:[#allocation4 + $0x90] sm:$0xff]
      %v5930 = vld [vmem:[#allocation4 + $0x98] sm:$0xff]
      %v5931 = vld [vmem:[#allocation4 + $0xa0] sm:$0xff]
      %v5932 = vld [vmem:[#allocation4 + $0xa8] sm:$0xff]
      %v5933 = vld [vmem:[#allocation4 + $0xb0] sm:$0xff]
      %v5934 = vld [vmem:[#allocation4 + $0xb8] sm:$0xff]
      %v5935 = vld [vmem:[#allocation4 + $0xc0] sm:$0xff]
      %v5936 = vld [vmem:[#allocation4 + $0xc8] sm:$0xff]
      %v5937 = vld [vmem:[#allocation4 + $0xd0] sm:$0xff]
      %v5938 = vld [vmem:[#allocation4 + $0xd8] sm:$0xff]
      %v5939 = vld [vmem:[#allocation4 + $0xe0] sm:$0xff]
      %v5940 = vld [vmem:[#allocation4 + $0xe8] sm:$0xff]
      %v5941 = vld [vmem:[#allocation4 + $0xf0] sm:$0xff]
      %v5942 = vld [vmem:[#allocation4 + $0xf8] sm:$0xff]
      %v5943 = vadd.f32 %v5911, %v5832
      %v5944 = vadd.f32 %v5912, %v5834
      %v5945 = vadd.f32 %v5913, %v5837
      %v5946 = vadd.f32 %v5914, %v5839
      %v5947 = vadd.f32 %v5915, %v5842
      %v5948 = vadd.f32 %v5916, %v5844
      %v5949 = vadd.f32 %v5917, %v5847
      %v5950 = vadd.f32 %v5918, %v5849
      %v5951 = vadd.f32 %v5919, %v5852
      %v5952 = vadd.f32 %v5920, %v5854
      %v5953 = vadd.f32 %v5921, %v5857
      %v5954 = vadd.f32 %v5922, %v5859
      %v5955 = vadd.f32 %v5923, %v5862
      %v5956 = vadd.f32 %v5924, %v5864
      %v5957 = vadd.f32 %v5925, %v5867
      %v5958 = vadd.f32 %v5926, %v5869
      %v5959 = vadd.f32 %v5927, %v5872
      %v5960 = vadd.f32 %v5928, %v5874
      %v5961 = vadd.f32 %v5929, %v5877
      %v5962 = vadd.f32 %v5930, %v5879
      %v5963 = vadd.f32 %v5931, %v5882
      %v5964 = vadd.f32 %v5932, %v5884
      %v5965 = vadd.f32 %v5933, %v5887
      %v5966 = vadd.f32 %v5934, %v5889
      %v5967 = vadd.f32 %v5935, %v5892
      %v5968 = vadd.f32 %v5936, %v5894
      %v5969 = vadd.f32 %v5937, %v5897
      %v5970 = vadd.f32 %v5938, %v5899
      %v5971 = vadd.f32 %v5939, %v5902
      %v5972 = vadd.f32 %v5940, %v5904
      %v5973 = vadd.f32 %v5941, %v5907
      %v5974 = vadd.f32 %v5942, %v5909
      %5975 = vst.msk [vmem:[#allocation4] sm:$0xff] %vm334, %v5943
      %5976 = vst.msk [vmem:[#allocation4 + $0x8] sm:$0xff] %vm334, %v5944
      %5977 = vst.msk [vmem:[#allocation4 + $0x10] sm:$0xff] %vm334, %v5945
      %5978 = vst.msk [vmem:[#allocation4 + $0x18] sm:$0xff] %vm334, %v5946
      %5979 = vst.msk [vmem:[#allocation4 + $0x20] sm:$0xff] %vm334, %v5947
      %5980 = vst.msk [vmem:[#allocation4 + $0x28] sm:$0xff] %vm334, %v5948
      %5981 = vst.msk [vmem:[#allocation4 + $0x30] sm:$0xff] %vm334, %v5949
      %5982 = vst.msk [vmem:[#allocation4 + $0x38] sm:$0xff] %vm334, %v5950
      %5983 = vst.msk [vmem:[#allocation4 + $0x40] sm:$0xff] %vm334, %v5951
      %5984 = vst.msk [vmem:[#allocation4 + $0x48] sm:$0xff] %vm334, %v5952
      %5985 = vst.msk [vmem:[#allocation4 + $0x50] sm:$0xff] %vm334, %v5953
      %5986 = vst.msk [vmem:[#allocation4 + $0x58] sm:$0xff] %vm334, %v5954
      %5987 = vst.msk [vmem:[#allocation4 + $0x60] sm:$0xff] %vm334, %v5955
      %5988 = vst.msk [vmem:[#allocation4 + $0x68] sm:$0xff] %vm334, %v5956
      %5989 = vst.msk [vmem:[#allocation4 + $0x70] sm:$0xff] %vm334, %v5957
      %5990 = vst.msk [vmem:[#allocation4 + $0x78] sm:$0xff] %vm334, %v5958
      %5991 = vst.msk [vmem:[#allocation4 + $0x80] sm:$0xff] %vm334, %v5959
      %5992 = vst.msk [vmem:[#allocation4 + $0x88] sm:$0xff] %vm334, %v5960
      %5993 = vst.msk [vmem:[#allocation4 + $0x90] sm:$0xff] %vm334, %v5961
      %5994 = vst.msk [vmem:[#allocation4 + $0x98] sm:$0xff] %vm334, %v5962
      %5995 = vst.msk [vmem:[#allocation4 + $0xa0] sm:$0xff] %vm334, %v5963
      %5996 = vst.msk [vmem:[#allocation4 + $0xa8] sm:$0xff] %vm334, %v5964
      %5997 = vst.msk [vmem:[#allocation4 + $0xb0] sm:$0xff] %vm334, %v5965
      %5998 = vst.msk [vmem:[#allocation4 + $0xb8] sm:$0xff] %vm334, %v5966
      %5999 = vst.msk [vmem:[#allocation4 + $0xc0] sm:$0xff] %vm334, %v5967
      %6000 = vst.msk [vmem:[#allocation4 + $0xc8] sm:$0xff] %vm334, %v5968
      %6001 = vst.msk [vmem:[#allocation4 + $0xd0] sm:$0xff] %vm334, %v5969
      %6002 = vst.msk [vmem:[#allocation4 + $0xd8] sm:$0xff] %vm334, %v5970
      %6003 = vst.msk [vmem:[#allocation4 + $0xe0] sm:$0xff] %vm334, %v5971
      %6004 = vst.msk [vmem:[#allocation4 + $0xe8] sm:$0xff] %vm334, %v5972
      %6005 = vst.msk [vmem:[#allocation4 + $0xf0] sm:$0xff] %vm334, %v5973
      %6006 = vst.msk [vmem:[#allocation4 + $0xf8] sm:$0xff] %vm334, %v5974
      %v6007 = vld [vmem:[#allocation4] sm:$0xff]
      %v6008 = vld [vmem:[#allocation4 + $0x8] sm:$0xff]
      %v6009 = vld [vmem:[#allocation4 + $0x10] sm:$0xff]
      %v6010 = vld [vmem:[#allocation4 + $0x18] sm:$0xff]
      %v6011 = vld [vmem:[#allocation4 + $0x20] sm:$0xff]
      %v6012 = vld [vmem:[#allocation4 + $0x28] sm:$0xff]
      %v6013 = vld [vmem:[#allocation4 + $0x30] sm:$0xff]
      %v6014 = vld [vmem:[#allocation4 + $0x38] sm:$0xff]
      %v6015 = vld [vmem:[#allocation4 + $0x40] sm:$0xff]
      %v6016 = vld [vmem:[#allocation4 + $0x48] sm:$0xff]
      %v6017 = vld [vmem:[#allocation4 + $0x50] sm:$0xff]
      %v6018 = vld [vmem:[#allocation4 + $0x58] sm:$0xff]
      %v6019 = vld [vmem:[#allocation4 + $0x60] sm:$0xff]
      %v6020 = vld [vmem:[#allocation4 + $0x68] sm:$0xff]
      %v6021 = vld [vmem:[#allocation4 + $0x70] sm:$0xff]
      %v6022 = vld [vmem:[#allocation4 + $0x78] sm:$0xff]
      %v6023 = vld [vmem:[#allocation4 + $0x80] sm:$0xff]
      %v6024 = vld [vmem:[#allocation4 + $0x88] sm:$0xff]
      %v6025 = vld [vmem:[#allocation4 + $0x90] sm:$0xff]
      %v6026 = vld [vmem:[#allocation4 + $0x98] sm:$0xff]
      %v6027 = vld [vmem:[#allocation4 + $0xa0] sm:$0xff]
      %v6028 = vld [vmem:[#allocation4 + $0xa8] sm:$0xff]
      %v6029 = vld [vmem:[#allocation4 + $0xb0] sm:$0xff]
      %v6030 = vld [vmem:[#allocation4 + $0xb8] sm:$0xff]
      %v6031 = vld [vmem:[#allocation4 + $0xc0] sm:$0xff]
      %v6032 = vld [vmem:[#allocation4 + $0xc8] sm:$0xff]
      %v6033 = vld [vmem:[#allocation4 + $0xd0] sm:$0xff]
      %v6034 = vld [vmem:[#allocation4 + $0xd8] sm:$0xff]
      %v6035 = vld [vmem:[#allocation4 + $0xe0] sm:$0xff]
      %v6036 = vld [vmem:[#allocation4 + $0xe8] sm:$0xff]
      %v6037 = vld [vmem:[#allocation4 + $0xf0] sm:$0xff]
      %v6038 = vld [vmem:[#allocation4 + $0xf8] sm:$0xff]
      %v6039 = vld [vmem:[%s6] sm:$0x1]
      %v6041 = vperm.slane %v6039, 0
      %v6043 = vadd.f32 %v6007, %v6041
      %v6044 = vadd.f32 %v6008, %v6041
      %v6045 = vadd.f32 %v6009, %v6041
      %v6046 = vadd.f32 %v6010, %v6041
      %v6047 = vadd.f32 %v6011, %v6041
      %v6048 = vadd.f32 %v6012, %v6041
      %v6049 = vadd.f32 %v6013, %v6041
      %v6050 = vadd.f32 %v6014, %v6041
      %v6051 = vadd.f32 %v6015, %v6041
      %v6052 = vadd.f32 %v6016, %v6041
      %v6053 = vadd.f32 %v6017, %v6041
      %v6054 = vadd.f32 %v6018, %v6041
      %v6055 = vadd.f32 %v6019, %v6041
      %v6056 = vadd.f32 %v6020, %v6041
      %v6057 = vadd.f32 %v6021, %v6041
      %v6058 = vadd.f32 %v6022, %v6041
      %v6059 = vadd.f32 %v6023, %v6041
      %v6060 = vadd.f32 %v6024, %v6041
      %v6061 = vadd.f32 %v6025, %v6041
      %v6062 = vadd.f32 %v6026, %v6041
      %v6063 = vadd.f32 %v6027, %v6041
      %v6064 = vadd.f32 %v6028, %v6041
      %v6065 = vadd.f32 %v6029, %v6041
      %v6066 = vadd.f32 %v6030, %v6041
      %v6067 = vadd.f32 %v6031, %v6041
      %v6068 = vadd.f32 %v6032, %v6041
      %v6069 = vadd.f32 %v6033, %v6041
      %v6070 = vadd.f32 %v6034, %v6041
      %v6071 = vadd.f32 %v6035, %v6041
      %v6072 = vadd.f32 %v6036, %v6041
      %v6073 = vadd.f32 %v6037, %v6041
      %v6074 = vadd.f32 %v6038, %v6041
      %6075 = vst.msk [vmem:[%s466 + $0x2] sm:$0xff] %vm334, %v6043
      %6076 = vst.msk [vmem:[%s466 + $0xa] sm:$0xff] %vm334, %v6044
      %6077 = vst.msk [vmem:[%s466 + $0x1a] sm:$0xff] %vm334, %v6045
      %6078 = vst.msk [vmem:[%s466 + $0x22] sm:$0xff] %vm334, %v6046
      %6079 = vst.msk [vmem:[%s466 + $0x32] sm:$0xff] %vm334, %v6047
      %6080 = vst.msk [vmem:[%s466 + $0x3a] sm:$0xff] %vm334, %v6048
      %6081 = vst.msk [vmem:[%s466 + $0x4a] sm:$0xff] %vm334, %v6049
      %6082 = vst.msk [vmem:[%s466 + $0x52] sm:$0xff] %vm334, %v6050
      %6083 = vst.msk [vmem:[%s466 + $0x62] sm:$0xff] %vm334, %v6051
      %6084 = vst.msk [vmem:[%s466 + $0x6a] sm:$0xff] %vm334, %v6052
      %6085 = vst.msk [vmem:[%s466 + $0x7a] sm:$0xff] %vm334, %v6053
      %6086 = vst.msk [vmem:[%s466 + $0x82] sm:$0xff] %vm334, %v6054
      %6087 = vst.msk [vmem:[%s466 + $0x92] sm:$0xff] %vm334, %v6055
      %6088 = vst.msk [vmem:[%s466 + $0x9a] sm:$0xff] %vm334, %v6056
      %6089 = vst.msk [vmem:[%s466 + $0xaa] sm:$0xff] %vm334, %v6057
      %6090 = vst.msk [vmem:[%s466 + $0xb2] sm:$0xff] %vm334, %v6058
      %6091 = vst.msk [vmem:[%s466 + $0xc2] sm:$0xff] %vm334, %v6059
      %6092 = vst.msk [vmem:[%s466 + $0xca] sm:$0xff] %vm334, %v6060
      %6093 = vst.msk [vmem:[%s466 + $0xda] sm:$0xff] %vm334, %v6061
      %6094 = vst.msk [vmem:[%s466 + $0xe2] sm:$0xff] %vm334, %v6062
      %6095 = vst.msk [vmem:[%s466 + $0xf2] sm:$0xff] %vm334, %v6063
      %6096 = vst.msk [vmem:[%s466 + $0xfa] sm:$0xff] %vm334, %v6064
      %6097 = vst.msk [vmem:[%s466 + $0x10a] sm:$0xff] %vm334, %v6065
      %6098 = vst.msk [vmem:[%s466 + $0x112] sm:$0xff] %vm334, %v6066
      %6099 = vst.msk [vmem:[%s466 + $0x122] sm:$0xff] %vm334, %v6067
      %6100 = vst.msk [vmem:[%s466 + $0x12a] sm:$0xff] %vm334, %v6068
      %6101 = vst.msk [vmem:[%s466 + $0x13a] sm:$0xff] %vm334, %v6069
      %6102 = vst.msk [vmem:[%s466 + $0x142] sm:$0xff] %vm334, %v6070
      %6103 = vst.msk [vmem:[%s466 + $0x152] sm:$0xff] %vm334, %v6071
      %6104 = vst.msk [vmem:[%s466 + $0x15a] sm:$0xff] %vm334, %v6072
      %6105 = vst.msk [vmem:[%s466 + $0x16a] sm:$0xff] %vm334, %v6073
      %6106 = vst.msk [vmem:[%s466 + $0x172] sm:$0xff] %vm334, %v6074
      %v6107 = vld [vmem:[#allocation2] sm:$0xff]
      %v6108 = vld [vmem:[#allocation2 + $0x8] sm:$0xff]
      %v6109 = vld [vmem:[#allocation2 + $0x18] sm:$0xff]
      %v6110 = vld [vmem:[#allocation2 + $0x20] sm:$0xff]
      %v6111 = vld [vmem:[#allocation2 + $0x30] sm:$0xff]
      %v6112 = vld [vmem:[#allocation2 + $0x38] sm:$0xff]
      %v6113 = vld [vmem:[#allocation2 + $0x48] sm:$0xff]
      %v6114 = vld [vmem:[#allocation2 + $0x50] sm:$0xff]
      %v6115 = vld [vmem:[#allocation2 + $0x60] sm:$0xff]
      %v6116 = vld [vmem:[#allocation2 + $0x68] sm:$0xff]
      %v6117 = vld [vmem:[#allocation2 + $0x78] sm:$0xff]
      %v6118 = vld [vmem:[#allocation2 + $0x80] sm:$0xff]
      %v6119 = vld [vmem:[#allocation2 + $0x90] sm:$0xff]
      %v6120 = vld [vmem:[#allocation2 + $0x98] sm:$0xff]
      %v6121 = vld [vmem:[#allocation2 + $0xa8] sm:$0xff]
      %v6122 = vld [vmem:[#allocation2 + $0xb0] sm:$0xff]
      %v6123 = vld [vmem:[#allocation2 + $0xc0] sm:$0xff]
      %v6124 = vld [vmem:[#allocation2 + $0xc8] sm:$0xff]
      %v6125 = vld [vmem:[#allocation2 + $0xd8] sm:$0xff]
      %v6126 = vld [vmem:[#allocation2 + $0xe0] sm:$0xff]
      %v6127 = vld [vmem:[#allocation2 + $0xf0] sm:$0xff]
      %v6128 = vld [vmem:[#allocation2 + $0xf8] sm:$0xff]
      %v6129 = vld [vmem:[#allocation2 + $0x108] sm:$0xff]
      %v6130 = vld [vmem:[#allocation2 + $0x110] sm:$0xff]
      %v6131 = vld [vmem:[#allocation2 + $0x120] sm:$0xff]
      %v6132 = vld [vmem:[#allocation2 + $0x128] sm:$0xff]
      %v6133 = vld [vmem:[#allocation2 + $0x138] sm:$0xff]
      %v6134 = vld [vmem:[#allocation2 + $0x140] sm:$0xff]
      %v6135 = vld [vmem:[#allocation2 + $0x150] sm:$0xff]
      %v6136 = vld [vmem:[#allocation2 + $0x158] sm:$0xff]
      %v6137 = vld [vmem:[#allocation2 + $0x168] sm:$0xff]
      %v6138 = vld [vmem:[#allocation2 + $0x170] sm:$0xff]
      %v6139 = vpack.c.bf16 %v6108, %v6107
      %v6140 = vpack.c.bf16 %v6110, %v6109
      %v6141 = vpack.c.bf16 %v6112, %v6111
      %v6142 = vpack.c.bf16 %v6114, %v6113
      %v6143 = vpack.c.bf16 %v6116, %v6115
      %v6144 = vpack.c.bf16 %v6118, %v6117
      %v6145 = vpack.c.bf16 %v6120, %v6119
      %v6146 = vpack.c.bf16 %v6122, %v6121
      %v6147 = vpack.c.bf16 %v6124, %v6123
      %v6148 = vpack.c.bf16 %v6126, %v6125
      %v6149 = vpack.c.bf16 %v6128, %v6127
      %v6150 = vpack.c.bf16 %v6130, %v6129
      %v6151 = vpack.c.bf16 %v6132, %v6131
      %v6152 = vpack.c.bf16 %v6134, %v6133
      %v6153 = vpack.c.bf16 %v6136, %v6135
      %v6154 = vpack.c.bf16 %v6138, %v6137
      %v6155 = vld [vmem:[%s7] sm:$0x3]
      %v6157 = vsel %vm334, %v6139, 0
      %v6160 = vsel %vm334, %v6140, 0
      %v6163 = vsel %vm334, %v6141, 0
      %v6166 = vsel %vm334, %v6142, 0
      %v6169 = vsel %vm334, %v6143, 0
      %v6172 = vsel %vm334, %v6144, 0
      %v6175 = vsel %vm334, %v6145, 0
      %v6178 = vsel %vm334, %v6146, 0
      %v6181 = vsel %vm334, %v6147, 0
      %v6184 = vsel %vm334, %v6148, 0
      %v6187 = vsel %vm334, %v6149, 0
      %v6190 = vsel %vm334, %v6150, 0
      %v6193 = vsel %vm334, %v6151, 0
      %v6196 = vsel %vm334, %v6152, 0
      %v6199 = vsel %vm334, %v6153, 0
      %v6202 = vsel %vm334, %v6154, 0
      %v6205 = vsel %vm597, %v6155, 0
      %6207 = vmatpush.bf16.msra.mxu0 0
      %6208 = vmatpush.bf16.msra.mxu0 0
      %6209 = vmatpush.bf16.msra.mxu0 0
      %6210 = vmatpush.bf16.msra.mxu0 0
      %6211 = vmatpush.bf16.msra.mxu0 0
      %6212 = vmatpush.bf16.msra.mxu0 0
      %6213 = vmatpush.bf16.msra.mxu0 0
      %6214 = vmatpush.bf16.msra.mxu0 %v6205
      %6215 = vmatmul.bf16.gmra.mxu0 %v6157
      %v6216 = vpop.f32.mrf.mxu0
      %v6217 = vadd.f32 0.0, %v6216
      %v6218 = vpop.f32.mrf.mxu0
      %v6219 = vadd.f32 0.0, %v6218
      %6220 = vmatmul.bf16.gmra.mxu0 %v6160
      %v6221 = vpop.f32.mrf.mxu0
      %v6222 = vadd.f32 0.0, %v6221
      %v6223 = vpop.f32.mrf.mxu0
      %v6224 = vadd.f32 0.0, %v6223
      %6225 = vmatmul.bf16.gmra.mxu0 %v6163
      %v6226 = vpop.f32.mrf.mxu0
      %v6227 = vadd.f32 0.0, %v6226
      %v6228 = vpop.f32.mrf.mxu0
      %v6229 = vadd.f32 0.0, %v6228
      %6230 = vmatmul.bf16.gmra.mxu0 %v6166
      %v6231 = vpop.f32.mrf.mxu0
      %v6232 = vadd.f32 0.0, %v6231
      %v6233 = vpop.f32.mrf.mxu0
      %v6234 = vadd.f32 0.0, %v6233
      %6235 = vmatmul.bf16.gmra.mxu0 %v6169
      %v6236 = vpop.f32.mrf.mxu0
      %v6237 = vadd.f32 0.0, %v6236
      %v6238 = vpop.f32.mrf.mxu0
      %v6239 = vadd.f32 0.0, %v6238
      %6240 = vmatmul.bf16.gmra.mxu0 %v6172
      %v6241 = vpop.f32.mrf.mxu0
      %v6242 = vadd.f32 0.0, %v6241
      %v6243 = vpop.f32.mrf.mxu0
      %v6244 = vadd.f32 0.0, %v6243
      %6245 = vmatmul.bf16.gmra.mxu0 %v6175
      %v6246 = vpop.f32.mrf.mxu0
      %v6247 = vadd.f32 0.0, %v6246
      %v6248 = vpop.f32.mrf.mxu0
      %v6249 = vadd.f32 0.0, %v6248
      %6250 = vmatmul.bf16.gmra.mxu0 %v6178
      %v6251 = vpop.f32.mrf.mxu0
      %v6252 = vadd.f32 0.0, %v6251
      %v6253 = vpop.f32.mrf.mxu0
      %v6254 = vadd.f32 0.0, %v6253
      %6255 = vmatmul.bf16.gmra.mxu0 %v6181
      %v6256 = vpop.f32.mrf.mxu0
      %v6257 = vadd.f32 0.0, %v6256
      %v6258 = vpop.f32.mrf.mxu0
      %v6259 = vadd.f32 0.0, %v6258
      %6260 = vmatmul.bf16.gmra.mxu0 %v6184
      %v6261 = vpop.f32.mrf.mxu0
      %v6262 = vadd.f32 0.0, %v6261
      %v6263 = vpop.f32.mrf.mxu0
      %v6264 = vadd.f32 0.0, %v6263
      %6265 = vmatmul.bf16.gmra.mxu0 %v6187
      %v6266 = vpop.f32.mrf.mxu0
      %v6267 = vadd.f32 0.0, %v6266
      %v6268 = vpop.f32.mrf.mxu0
      %v6269 = vadd.f32 0.0, %v6268
      %6270 = vmatmul.bf16.gmra.mxu0 %v6190
      %v6271 = vpop.f32.mrf.mxu0
      %v6272 = vadd.f32 0.0, %v6271
      %v6273 = vpop.f32.mrf.mxu0
      %v6274 = vadd.f32 0.0, %v6273
      %6275 = vmatmul.bf16.gmra.mxu0 %v6193
      %v6276 = vpop.f32.mrf.mxu0
      %v6277 = vadd.f32 0.0, %v6276
      %v6278 = vpop.f32.mrf.mxu0
      %v6279 = vadd.f32 0.0, %v6278
      %6280 = vmatmul.bf16.gmra.mxu0 %v6196
      %v6281 = vpop.f32.mrf.mxu0
      %v6282 = vadd.f32 0.0, %v6281
      %v6283 = vpop.f32.mrf.mxu0
      %v6284 = vadd.f32 0.0, %v6283
      %6285 = vmatmul.bf16.gmra.mxu0 %v6199
      %v6286 = vpop.f32.mrf.mxu0
      %v6287 = vadd.f32 0.0, %v6286
      %v6288 = vpop.f32.mrf.mxu0
      %v6289 = vadd.f32 0.0, %v6288
      %6290 = vmatmul.bf16.gmra.mxu0 %v6202
      %v6291 = vpop.f32.mrf.mxu0
      %v6292 = vadd.f32 0.0, %v6291
      %v6293 = vpop.f32.mrf.mxu0
      %v6294 = vadd.f32 0.0, %v6293
      %6295 = vdwg.mxu0
      %6296 = vst.msk [vmem:[#allocation4] sm:$0xff] %vm334, %v6217
      %6297 = vst.msk [vmem:[#allocation4 + $0x8] sm:$0xff] %vm334, %v6219
      %6298 = vst.msk [vmem:[#allocation4 + $0x10] sm:$0xff] %vm334, %v6222
      %6299 = vst.msk [vmem:[#allocation4 + $0x18] sm:$0xff] %vm334, %v6224
      %6300 = vst.msk [vmem:[#allocation4 + $0x20] sm:$0xff] %vm334, %v6227
      %6301 = vst.msk [vmem:[#allocation4 + $0x28] sm:$0xff] %vm334, %v6229
      %6302 = vst.msk [vmem:[#allocation4 + $0x30] sm:$0xff] %vm334, %v6232
      %6303 = vst.msk [vmem:[#allocation4 + $0x38] sm:$0xff] %vm334, %v6234
      %6304 = vst.msk [vmem:[#allocation4 + $0x40] sm:$0xff] %vm334, %v6237
      %6305 = vst.msk [vmem:[#allocation4 + $0x48] sm:$0xff] %vm334, %v6239
      %6306 = vst.msk [vmem:[#allocation4 + $0x50] sm:$0xff] %vm334, %v6242
      %6307 = vst.msk [vmem:[#allocation4 + $0x58] sm:$0xff] %vm334, %v6244
      %6308 = vst.msk [vmem:[#allocation4 + $0x60] sm:$0xff] %vm334, %v6247
      %6309 = vst.msk [vmem:[#allocation4 + $0x68] sm:$0xff] %vm334, %v6249
      %6310 = vst.msk [vmem:[#allocation4 + $0x70] sm:$0xff] %vm334, %v6252
      %6311 = vst.msk [vmem:[#allocation4 + $0x78] sm:$0xff] %vm334, %v6254
      %6312 = vst.msk [vmem:[#allocation4 + $0x80] sm:$0xff] %vm334, %v6257
      %6313 = vst.msk [vmem:[#allocation4 + $0x88] sm:$0xff] %vm334, %v6259
      %6314 = vst.msk [vmem:[#allocation4 + $0x90] sm:$0xff] %vm334, %v6262
      %6315 = vst.msk [vmem:[#allocation4 + $0x98] sm:$0xff] %vm334, %v6264
      %6316 = vst.msk [vmem:[#allocation4 + $0xa0] sm:$0xff] %vm334, %v6267
      %6317 = vst.msk [vmem:[#allocation4 + $0xa8] sm:$0xff] %vm334, %v6269
      %6318 = vst.msk [vmem:[#allocation4 + $0xb0] sm:$0xff] %vm334, %v6272
      %6319 = vst.msk [vmem:[#allocation4 + $0xb8] sm:$0xff] %vm334, %v6274
      %6320 = vst.msk [vmem:[#allocation4 + $0xc0] sm:$0xff] %vm334, %v6277
      %6321 = vst.msk [vmem:[#allocation4 + $0xc8] sm:$0xff] %vm334, %v6279
      %6322 = vst.msk [vmem:[#allocation4 + $0xd0] sm:$0xff] %vm334, %v6282
      %6323 = vst.msk [vmem:[#allocation4 + $0xd8] sm:$0xff] %vm334, %v6284
      %6324 = vst.msk [vmem:[#allocation4 + $0xe0] sm:$0xff] %vm334, %v6287
      %6325 = vst.msk [vmem:[#allocation4 + $0xe8] sm:$0xff] %vm334, %v6289
      %6326 = vst.msk [vmem:[#allocation4 + $0xf0] sm:$0xff] %vm334, %v6292
      %6327 = vst.msk [vmem:[#allocation4 + $0xf8] sm:$0xff] %vm334, %v6294
      %v6328 = vld [vmem:[#allocation2 + $0x2] sm:$0xff]
      %v6329 = vld [vmem:[#allocation2 + $0xa] sm:$0xff]
      %v6330 = vld [vmem:[#allocation2 + $0x1a] sm:$0xff]
      %v6331 = vld [vmem:[#allocation2 + $0x22] sm:$0xff]
      %v6332 = vld [vmem:[#allocation2 + $0x32] sm:$0xff]
      %v6333 = vld [vmem:[#allocation2 + $0x3a] sm:$0xff]
      %v6334 = vld [vmem:[#allocation2 + $0x4a] sm:$0xff]
      %v6335 = vld [vmem:[#allocation2 + $0x52] sm:$0xff]
      %v6336 = vld [vmem:[#allocation2 + $0x62] sm:$0xff]
      %v6337 = vld [vmem:[#allocation2 + $0x6a] sm:$0xff]
      %v6338 = vld [vmem:[#allocation2 + $0x7a] sm:$0xff]
      %v6339 = vld [vmem:[#allocation2 + $0x82] sm:$0xff]
      %v6340 = vld [vmem:[#allocation2 + $0x92] sm:$0xff]
      %v6341 = vld [vmem:[#allocation2 + $0x9a] sm:$0xff]
      %v6342 = vld [vmem:[#allocation2 + $0xaa] sm:$0xff]
      %v6343 = vld [vmem:[#allocation2 + $0xb2] sm:$0xff]
      %v6344 = vld [vmem:[#allocation2 + $0xc2] sm:$0xff]
      %v6345 = vld [vmem:[#allocation2 + $0xca] sm:$0xff]
      %v6346 = vld [vmem:[#allocation2 + $0xda] sm:$0xff]
      %v6347 = vld [vmem:[#allocation2 + $0xe2] sm:$0xff]
      %v6348 = vld [vmem:[#allocation2 + $0xf2] sm:$0xff]
      %v6349 = vld [vmem:[#allocation2 + $0xfa] sm:$0xff]
      %v6350 = vld [vmem:[#allocation2 + $0x10a] sm:$0xff]
      %v6351 = vld [vmem:[#allocation2 + $0x112] sm:$0xff]
      %v6352 = vld [vmem:[#allocation2 + $0x122] sm:$0xff]
      %v6353 = vld [vmem:[#allocation2 + $0x12a] sm:$0xff]
      %v6354 = vld [vmem:[#allocation2 + $0x13a] sm:$0xff]
      %v6355 = vld [vmem:[#allocation2 + $0x142] sm:$0xff]
      %v6356 = vld [vmem:[#allocation2 + $0x152] sm:$0xff]
      %v6357 = vld [vmem:[#allocation2 + $0x15a] sm:$0xff]
      %v6358 = vld [vmem:[#allocation2 + $0x16a] sm:$0xff]
      %v6359 = vld [vmem:[#allocation2 + $0x172] sm:$0xff]
      %v6360 = vpack.c.bf16 %v6329, %v6328
      %v6361 = vpack.c.bf16 %v6331, %v6330
      %v6362 = vpack.c.bf16 %v6333, %v6332
      %v6363 = vpack.c.bf16 %v6335, %v6334
      %v6364 = vpack.c.bf16 %v6337, %v6336
      %v6365 = vpack.c.bf16 %v6339, %v6338
      %v6366 = vpack.c.bf16 %v6341, %v6340
      %v6367 = vpack.c.bf16 %v6343, %v6342
      %v6368 = vpack.c.bf16 %v6345, %v6344
      %v6369 = vpack.c.bf16 %v6347, %v6346
      %v6370 = vpack.c.bf16 %v6349, %v6348
      %v6371 = vpack.c.bf16 %v6351, %v6350
      %v6372 = vpack.c.bf16 %v6353, %v6352
      %v6373 = vpack.c.bf16 %v6355, %v6354
      %v6374 = vpack.c.bf16 %v6357, %v6356
      %v6375 = vpack.c.bf16 %v6359, %v6358
      %s6376 = scalar_lea.vmem %s7, 2
      %v6377 = vld [vmem:[%s6376] sm:$0x3]
      %v6379 = vsel %vm334, %v6360, 0
      %v6382 = vsel %vm334, %v6361, 0
      %v6385 = vsel %vm334, %v6362, 0
      %v6388 = vsel %vm334, %v6363, 0
      %v6391 = vsel %vm334, %v6364, 0
      %v6394 = vsel %vm334, %v6365, 0
      %v6397 = vsel %vm334, %v6366, 0
      %v6400 = vsel %vm334, %v6367, 0
      %v6403 = vsel %vm334, %v6368, 0
      %v6406 = vsel %vm334, %v6369, 0
      %v6409 = vsel %vm334, %v6370, 0
      %v6412 = vsel %vm334, %v6371, 0
      %v6415 = vsel %vm334, %v6372, 0
      %v6418 = vsel %vm334, %v6373, 0
      %v6421 = vsel %vm334, %v6374, 0
      %v6424 = vsel %vm334, %v6375, 0
      %v6427 = vsel %vm597, %v6377, 0
      %6429 = vmatpush.bf16.msra.mxu0 0
      %6430 = vmatpush.bf16.msra.mxu0 0
      %6431 = vmatpush.bf16.msra.mxu0 0
      %6432 = vmatpush.bf16.msra.mxu0 0
      %6433 = vmatpush.bf16.msra.mxu0 0
      %6434 = vmatpush.bf16.msra.mxu0 0
      %6435 = vmatpush.bf16.msra.mxu0 0
      %6436 = vmatpush.bf16.msra.mxu0 %v6427
      %6437 = vmatmul.bf16.gmra.mxu0 %v6379
      %v6438 = vpop.f32.mrf.mxu0
      %v6439 = vadd.f32 0.0, %v6438
      %v6440 = vpop.f32.mrf.mxu0
      %v6441 = vadd.f32 0.0, %v6440
      %6442 = vmatmul.bf16.gmra.mxu0 %v6382
      %v6443 = vpop.f32.mrf.mxu0
      %v6444 = vadd.f32 0.0, %v6443
      %v6445 = vpop.f32.mrf.mxu0
      %v6446 = vadd.f32 0.0, %v6445
      %6447 = vmatmul.bf16.gmra.mxu0 %v6385
      %v6448 = vpop.f32.mrf.mxu0
      %v6449 = vadd.f32 0.0, %v6448
      %v6450 = vpop.f32.mrf.mxu0
      %v6451 = vadd.f32 0.0, %v6450
      %6452 = vmatmul.bf16.gmra.mxu0 %v6388
      %v6453 = vpop.f32.mrf.mxu0
      %v6454 = vadd.f32 0.0, %v6453
      %v6455 = vpop.f32.mrf.mxu0
      %v6456 = vadd.f32 0.0, %v6455
      %6457 = vmatmul.bf16.gmra.mxu0 %v6391
      %v6458 = vpop.f32.mrf.mxu0
      %v6459 = vadd.f32 0.0, %v6458
      %v6460 = vpop.f32.mrf.mxu0
      %v6461 = vadd.f32 0.0, %v6460
      %6462 = vmatmul.bf16.gmra.mxu0 %v6394
      %v6463 = vpop.f32.mrf.mxu0
      %v6464 = vadd.f32 0.0, %v6463
      %v6465 = vpop.f32.mrf.mxu0
      %v6466 = vadd.f32 0.0, %v6465
      %6467 = vmatmul.bf16.gmra.mxu0 %v6397
      %v6468 = vpop.f32.mrf.mxu0
      %v6469 = vadd.f32 0.0, %v6468
      %v6470 = vpop.f32.mrf.mxu0
      %v6471 = vadd.f32 0.0, %v6470
      %6472 = vmatmul.bf16.gmra.mxu0 %v6400
      %v6473 = vpop.f32.mrf.mxu0
      %v6474 = vadd.f32 0.0, %v6473
      %v6475 = vpop.f32.mrf.mxu0
      %v6476 = vadd.f32 0.0, %v6475
      %6477 = vmatmul.bf16.gmra.mxu0 %v6403
      %v6478 = vpop.f32.mrf.mxu0
      %v6479 = vadd.f32 0.0, %v6478
      %v6480 = vpop.f32.mrf.mxu0
      %v6481 = vadd.f32 0.0, %v6480
      %6482 = vmatmul.bf16.gmra.mxu0 %v6406
      %v6483 = vpop.f32.mrf.mxu0
      %v6484 = vadd.f32 0.0, %v6483
      %v6485 = vpop.f32.mrf.mxu0
      %v6486 = vadd.f32 0.0, %v6485
      %6487 = vmatmul.bf16.gmra.mxu0 %v6409
      %v6488 = vpop.f32.mrf.mxu0
      %v6489 = vadd.f32 0.0, %v6488
      %v6490 = vpop.f32.mrf.mxu0
      %v6491 = vadd.f32 0.0, %v6490
      %6492 = vmatmul.bf16.gmra.mxu0 %v6412
      %v6493 = vpop.f32.mrf.mxu0
      %v6494 = vadd.f32 0.0, %v6493
      %v6495 = vpop.f32.mrf.mxu0
      %v6496 = vadd.f32 0.0, %v6495
      %6497 = vmatmul.bf16.gmra.mxu0 %v6415
      %v6498 = vpop.f32.mrf.mxu0
      %v6499 = vadd.f32 0.0, %v6498
      %v6500 = vpop.f32.mrf.mxu0
      %v6501 = vadd.f32 0.0, %v6500
      %6502 = vmatmul.bf16.gmra.mxu0 %v6418
      %v6503 = vpop.f32.mrf.mxu0
      %v6504 = vadd.f32 0.0, %v6503
      %v6505 = vpop.f32.mrf.mxu0
      %v6506 = vadd.f32 0.0, %v6505
      %6507 = vmatmul.bf16.gmra.mxu0 %v6421
      %v6508 = vpop.f32.mrf.mxu0
      %v6509 = vadd.f32 0.0, %v6508
      %v6510 = vpop.f32.mrf.mxu0
      %v6511 = vadd.f32 0.0, %v6510
      %6512 = vmatmul.bf16.gmra.mxu0 %v6424
      %v6513 = vpop.f32.mrf.mxu0
      %v6514 = vadd.f32 0.0, %v6513
      %v6515 = vpop.f32.mrf.mxu0
      %v6516 = vadd.f32 0.0, %v6515
      %6517 = vdwg.mxu0
      %v6518 = vld [vmem:[#allocation4] sm:$0xff]
      %v6519 = vld [vmem:[#allocation4 + $0x8] sm:$0xff]
      %v6520 = vld [vmem:[#allocation4 + $0x10] sm:$0xff]
      %v6521 = vld [vmem:[#allocation4 + $0x18] sm:$0xff]
      %v6522 = vld [vmem:[#allocation4 + $0x20] sm:$0xff]
      %v6523 = vld [vmem:[#allocation4 + $0x28] sm:$0xff]
      %v6524 = vld [vmem:[#allocation4 + $0x30] sm:$0xff]
      %v6525 = vld [vmem:[#allocation4 + $0x38] sm:$0xff]
      %v6526 = vld [vmem:[#allocation4 + $0x40] sm:$0xff]
      %v6527 = vld [vmem:[#allocation4 + $0x48] sm:$0xff]
      %v6528 = vld [vmem:[#allocation4 + $0x50] sm:$0xff]
      %v6529 = vld [vmem:[#allocation4 + $0x58] sm:$0xff]
      %v6530 = vld [vmem:[#allocation4 + $0x60] sm:$0xff]
      %v6531 = vld [vmem:[#allocation4 + $0x68] sm:$0xff]
      %v6532 = vld [vmem:[#allocation4 + $0x70] sm:$0xff]
      %v6533 = vld [vmem:[#allocation4 + $0x78] sm:$0xff]
      %v6534 = vld [vmem:[#allocation4 + $0x80] sm:$0xff]
      %v6535 = vld [vmem:[#allocation4 + $0x88] sm:$0xff]
      %v6536 = vld [vmem:[#allocation4 + $0x90] sm:$0xff]
      %v6537 = vld [vmem:[#allocation4 + $0x98] sm:$0xff]
      %v6538 = vld [vmem:[#allocation4 + $0xa0] sm:$0xff]
      %v6539 = vld [vmem:[#allocation4 + $0xa8] sm:$0xff]
      %v6540 = vld [vmem:[#allocation4 + $0xb0] sm:$0xff]
      %v6541 = vld [vmem:[#allocation4 + $0xb8] sm:$0xff]
      %v6542 = vld [vmem:[#allocation4 + $0xc0] sm:$0xff]
      %v6543 = vld [vmem:[#allocation4 + $0xc8] sm:$0xff]
      %v6544 = vld [vmem:[#allocation4 + $0xd0] sm:$0xff]
      %v6545 = vld [vmem:[#allocation4 + $0xd8] sm:$0xff]
      %v6546 = vld [vmem:[#allocation4 + $0xe0] sm:$0xff]
      %v6547 = vld [vmem:[#allocation4 + $0xe8] sm:$0xff]
      %v6548 = vld [vmem:[#allocation4 + $0xf0] sm:$0xff]
      %v6549 = vld [vmem:[#allocation4 + $0xf8] sm:$0xff]
      %v6550 = vadd.f32 %v6518, %v6439
      %v6551 = vadd.f32 %v6519, %v6441
      %v6552 = vadd.f32 %v6520, %v6444
      %v6553 = vadd.f32 %v6521, %v6446
      %v6554 = vadd.f32 %v6522, %v6449
      %v6555 = vadd.f32 %v6523, %v6451
      %v6556 = vadd.f32 %v6524, %v6454
      %v6557 = vadd.f32 %v6525, %v6456
      %v6558 = vadd.f32 %v6526, %v6459
      %v6559 = vadd.f32 %v6527, %v6461
      %v6560 = vadd.f32 %v6528, %v6464
      %v6561 = vadd.f32 %v6529, %v6466
      %v6562 = vadd.f32 %v6530, %v6469
      %v6563 = vadd.f32 %v6531, %v6471
      %v6564 = vadd.f32 %v6532, %v6474
      %v6565 = vadd.f32 %v6533, %v6476
      %v6566 = vadd.f32 %v6534, %v6479
      %v6567 = vadd.f32 %v6535, %v6481
      %v6568 = vadd.f32 %v6536, %v6484
      %v6569 = vadd.f32 %v6537, %v6486
      %v6570 = vadd.f32 %v6538, %v6489
      %v6571 = vadd.f32 %v6539, %v6491
      %v6572 = vadd.f32 %v6540, %v6494
      %v6573 = vadd.f32 %v6541, %v6496
      %v6574 = vadd.f32 %v6542, %v6499
      %v6575 = vadd.f32 %v6543, %v6501
      %v6576 = vadd.f32 %v6544, %v6504
      %v6577 = vadd.f32 %v6545, %v6506
      %v6578 = vadd.f32 %v6546, %v6509
      %v6579 = vadd.f32 %v6547, %v6511
      %v6580 = vadd.f32 %v6548, %v6514
      %v6581 = vadd.f32 %v6549, %v6516
      %6582 = vst.msk [vmem:[#allocation4] sm:$0xff] %vm334, %v6550
      %6583 = vst.msk [vmem:[#allocation4 + $0x8] sm:$0xff] %vm334, %v6551
      %6584 = vst.msk [vmem:[#allocation4 + $0x10] sm:$0xff] %vm334, %v6552
      %6585 = vst.msk [vmem:[#allocation4 + $0x18] sm:$0xff] %vm334, %v6553
      %6586 = vst.msk [vmem:[#allocation4 + $0x20] sm:$0xff] %vm334, %v6554
      %6587 = vst.msk [vmem:[#allocation4 + $0x28] sm:$0xff] %vm334, %v6555
      %6588 = vst.msk [vmem:[#allocation4 + $0x30] sm:$0xff] %vm334, %v6556
      %6589 = vst.msk [vmem:[#allocation4 + $0x38] sm:$0xff] %vm334, %v6557
      %6590 = vst.msk [vmem:[#allocation4 + $0x40] sm:$0xff] %vm334, %v6558
      %6591 = vst.msk [vmem:[#allocation4 + $0x48] sm:$0xff] %vm334, %v6559
      %6592 = vst.msk [vmem:[#allocation4 + $0x50] sm:$0xff] %vm334, %v6560
      %6593 = vst.msk [vmem:[#allocation4 + $0x58] sm:$0xff] %vm334, %v6561
      %6594 = vst.msk [vmem:[#allocation4 + $0x60] sm:$0xff] %vm334, %v6562
      %6595 = vst.msk [vmem:[#allocation4 + $0x68] sm:$0xff] %vm334, %v6563
      %6596 = vst.msk [vmem:[#allocation4 + $0x70] sm:$0xff] %vm334, %v6564
      %6597 = vst.msk [vmem:[#allocation4 + $0x78] sm:$0xff] %vm334, %v6565
      %6598 = vst.msk [vmem:[#allocation4 + $0x80] sm:$0xff] %vm334, %v6566
      %6599 = vst.msk [vmem:[#allocation4 + $0x88] sm:$0xff] %vm334, %v6567
      %6600 = vst.msk [vmem:[#allocation4 + $0x90] sm:$0xff] %vm334, %v6568
      %6601 = vst.msk [vmem:[#allocation4 + $0x98] sm:$0xff] %vm334, %v6569
      %6602 = vst.msk [vmem:[#allocation4 + $0xa0] sm:$0xff] %vm334, %v6570
      %6603 = vst.msk [vmem:[#allocation4 + $0xa8] sm:$0xff] %vm334, %v6571
      %6604 = vst.msk [vmem:[#allocation4 + $0xb0] sm:$0xff] %vm334, %v6572
      %6605 = vst.msk [vmem:[#allocation4 + $0xb8] sm:$0xff] %vm334, %v6573
      %6606 = vst.msk [vmem:[#allocation4 + $0xc0] sm:$0xff] %vm334, %v6574
      %6607 = vst.msk [vmem:[#allocation4 + $0xc8] sm:$0xff] %vm334, %v6575
      %6608 = vst.msk [vmem:[#allocation4 + $0xd0] sm:$0xff] %vm334, %v6576
      %6609 = vst.msk [vmem:[#allocation4 + $0xd8] sm:$0xff] %vm334, %v6577
      %6610 = vst.msk [vmem:[#allocation4 + $0xe0] sm:$0xff] %vm334, %v6578
      %6611 = vst.msk [vmem:[#allocation4 + $0xe8] sm:$0xff] %vm334, %v6579
      %6612 = vst.msk [vmem:[#allocation4 + $0xf0] sm:$0xff] %vm334, %v6580
      %6613 = vst.msk [vmem:[#allocation4 + $0xf8] sm:$0xff] %vm334, %v6581
      %v6614 = vld [vmem:[#allocation2 + $0x4] sm:$0xff]
      %v6615 = vld [vmem:[#allocation2 + $0xc] sm:$0xff]
      %v6616 = vld [vmem:[#allocation2 + $0x1c] sm:$0xff]
      %v6617 = vld [vmem:[#allocation2 + $0x24] sm:$0xff]
      %v6618 = vld [vmem:[#allocation2 + $0x34] sm:$0xff]
      %v6619 = vld [vmem:[#allocation2 + $0x3c] sm:$0xff]
      %v6620 = vld [vmem:[#allocation2 + $0x4c] sm:$0xff]
      %v6621 = vld [vmem:[#allocation2 + $0x54] sm:$0xff]
      %v6622 = vld [vmem:[#allocation2 + $0x64] sm:$0xff]
      %v6623 = vld [vmem:[#allocation2 + $0x6c] sm:$0xff]
      %v6624 = vld [vmem:[#allocation2 + $0x7c] sm:$0xff]
      %v6625 = vld [vmem:[#allocation2 + $0x84] sm:$0xff]
      %v6626 = vld [vmem:[#allocation2 + $0x94] sm:$0xff]
      %v6627 = vld [vmem:[#allocation2 + $0x9c] sm:$0xff]
      %v6628 = vld [vmem:[#allocation2 + $0xac] sm:$0xff]
      %v6629 = vld [vmem:[#allocation2 + $0xb4] sm:$0xff]
      %v6630 = vld [vmem:[#allocation2 + $0xc4] sm:$0xff]
      %v6631 = vld [vmem:[#allocation2 + $0xcc] sm:$0xff]
      %v6632 = vld [vmem:[#allocation2 + $0xdc] sm:$0xff]
      %v6633 = vld [vmem:[#allocation2 + $0xe4] sm:$0xff]
      %v6634 = vld [vmem:[#allocation2 + $0xf4] sm:$0xff]
      %v6635 = vld [vmem:[#allocation2 + $0xfc] sm:$0xff]
      %v6636 = vld [vmem:[#allocation2 + $0x10c] sm:$0xff]
      %v6637 = vld [vmem:[#allocation2 + $0x114] sm:$0xff]
      %v6638 = vld [vmem:[#allocation2 + $0x124] sm:$0xff]
      %v6639 = vld [vmem:[#allocation2 + $0x12c] sm:$0xff]
      %v6640 = vld [vmem:[#allocation2 + $0x13c] sm:$0xff]
      %v6641 = vld [vmem:[#allocation2 + $0x144] sm:$0xff]
      %v6642 = vld [vmem:[#allocation2 + $0x154] sm:$0xff]
      %v6643 = vld [vmem:[#allocation2 + $0x15c] sm:$0xff]
      %v6644 = vld [vmem:[#allocation2 + $0x16c] sm:$0xff]
      %v6645 = vld [vmem:[#allocation2 + $0x174] sm:$0xff]
      %v6646 = vpack.c.bf16 %v6615, %v6614
      %v6647 = vpack.c.bf16 %v6617, %v6616
      %v6648 = vpack.c.bf16 %v6619, %v6618
      %v6649 = vpack.c.bf16 %v6621, %v6620
      %v6650 = vpack.c.bf16 %v6623, %v6622
      %v6651 = vpack.c.bf16 %v6625, %v6624
      %v6652 = vpack.c.bf16 %v6627, %v6626
      %v6653 = vpack.c.bf16 %v6629, %v6628
      %v6654 = vpack.c.bf16 %v6631, %v6630
      %v6655 = vpack.c.bf16 %v6633, %v6632
      %v6656 = vpack.c.bf16 %v6635, %v6634
      %v6657 = vpack.c.bf16 %v6637, %v6636
      %v6658 = vpack.c.bf16 %v6639, %v6638
      %v6659 = vpack.c.bf16 %v6641, %v6640
      %v6660 = vpack.c.bf16 %v6643, %v6642
      %v6661 = vpack.c.bf16 %v6645, %v6644
      %s6662 = scalar_lea.vmem %s7, 4
      %v6663 = vld [vmem:[%s6662] sm:$0x3]
      %v6665 = vsel %vm334, %v6646, 0
      %v6668 = vsel %vm334, %v6647, 0
      %v6671 = vsel %vm334, %v6648, 0
      %v6674 = vsel %vm334, %v6649, 0
      %v6677 = vsel %vm334, %v6650, 0
      %v6680 = vsel %vm334, %v6651, 0
      %v6683 = vsel %vm334, %v6652, 0
      %v6686 = vsel %vm334, %v6653, 0
      %v6689 = vsel %vm334, %v6654, 0
      %v6692 = vsel %vm334, %v6655, 0
      %v6695 = vsel %vm334, %v6656, 0
      %v6698 = vsel %vm334, %v6657, 0
      %v6701 = vsel %vm334, %v6658, 0
      %v6704 = vsel %vm334, %v6659, 0
      %v6707 = vsel %vm334, %v6660, 0
      %v6710 = vsel %vm334, %v6661, 0
      %v6713 = vsel %vm597, %v6663, 0
      %6715 = vmatpush.bf16.msra.mxu0 0
      %6716 = vmatpush.bf16.msra.mxu0 0
      %6717 = vmatpush.bf16.msra.mxu0 0
      %6718 = vmatpush.bf16.msra.mxu0 0
      %6719 = vmatpush.bf16.msra.mxu0 0
      %6720 = vmatpush.bf16.msra.mxu0 0
      %6721 = vmatpush.bf16.msra.mxu0 0
      %6722 = vmatpush.bf16.msra.mxu0 %v6713
      %6723 = vmatmul.bf16.gmra.mxu0 %v6665
      %v6724 = vpop.f32.mrf.mxu0
      %v6725 = vadd.f32 0.0, %v6724
      %v6726 = vpop.f32.mrf.mxu0
      %v6727 = vadd.f32 0.0, %v6726
      %6728 = vmatmul.bf16.gmra.mxu0 %v6668
      %v6729 = vpop.f32.mrf.mxu0
      %v6730 = vadd.f32 0.0, %v6729
      %v6731 = vpop.f32.mrf.mxu0
      %v6732 = vadd.f32 0.0, %v6731
      %6733 = vmatmul.bf16.gmra.mxu0 %v6671
      %v6734 = vpop.f32.mrf.mxu0
      %v6735 = vadd.f32 0.0, %v6734
      %v6736 = vpop.f32.mrf.mxu0
      %v6737 = vadd.f32 0.0, %v6736
      %6738 = vmatmul.bf16.gmra.mxu0 %v6674
      %v6739 = vpop.f32.mrf.mxu0
      %v6740 = vadd.f32 0.0, %v6739
      %v6741 = vpop.f32.mrf.mxu0
      %v6742 = vadd.f32 0.0, %v6741
      %6743 = vmatmul.bf16.gmra.mxu0 %v6677
      %v6744 = vpop.f32.mrf.mxu0
      %v6745 = vadd.f32 0.0, %v6744
      %v6746 = vpop.f32.mrf.mxu0
      %v6747 = vadd.f32 0.0, %v6746
      %6748 = vmatmul.bf16.gmra.mxu0 %v6680
      %v6749 = vpop.f32.mrf.mxu0
      %v6750 = vadd.f32 0.0, %v6749
      %v6751 = vpop.f32.mrf.mxu0
      %v6752 = vadd.f32 0.0, %v6751
      %6753 = vmatmul.bf16.gmra.mxu0 %v6683
      %v6754 = vpop.f32.mrf.mxu0
      %v6755 = vadd.f32 0.0, %v6754
      %v6756 = vpop.f32.mrf.mxu0
      %v6757 = vadd.f32 0.0, %v6756
      %6758 = vmatmul.bf16.gmra.mxu0 %v6686
      %v6759 = vpop.f32.mrf.mxu0
      %v6760 = vadd.f32 0.0, %v6759
      %v6761 = vpop.f32.mrf.mxu0
      %v6762 = vadd.f32 0.0, %v6761
      %6763 = vmatmul.bf16.gmra.mxu0 %v6689
      %v6764 = vpop.f32.mrf.mxu0
      %v6765 = vadd.f32 0.0, %v6764
      %v6766 = vpop.f32.mrf.mxu0
      %v6767 = vadd.f32 0.0, %v6766
      %6768 = vmatmul.bf16.gmra.mxu0 %v6692
      %v6769 = vpop.f32.mrf.mxu0
      %v6770 = vadd.f32 0.0, %v6769
      %v6771 = vpop.f32.mrf.mxu0
      %v6772 = vadd.f32 0.0, %v6771
      %6773 = vmatmul.bf16.gmra.mxu0 %v6695
      %v6774 = vpop.f32.mrf.mxu0
      %v6775 = vadd.f32 0.0, %v6774
      %v6776 = vpop.f32.mrf.mxu0
      %v6777 = vadd.f32 0.0, %v6776
      %6778 = vmatmul.bf16.gmra.mxu0 %v6698
      %v6779 = vpop.f32.mrf.mxu0
      %v6780 = vadd.f32 0.0, %v6779
      %v6781 = vpop.f32.mrf.mxu0
      %v6782 = vadd.f32 0.0, %v6781
      %6783 = vmatmul.bf16.gmra.mxu0 %v6701
      %v6784 = vpop.f32.mrf.mxu0
      %v6785 = vadd.f32 0.0, %v6784
      %v6786 = vpop.f32.mrf.mxu0
      %v6787 = vadd.f32 0.0, %v6786
      %6788 = vmatmul.bf16.gmra.mxu0 %v6704
      %v6789 = vpop.f32.mrf.mxu0
      %v6790 = vadd.f32 0.0, %v6789
      %v6791 = vpop.f32.mrf.mxu0
      %v6792 = vadd.f32 0.0, %v6791
      %6793 = vmatmul.bf16.gmra.mxu0 %v6707
      %v6794 = vpop.f32.mrf.mxu0
      %v6795 = vadd.f32 0.0, %v6794
      %v6796 = vpop.f32.mrf.mxu0
      %v6797 = vadd.f32 0.0, %v6796
      %6798 = vmatmul.bf16.gmra.mxu0 %v6710
      %v6799 = vpop.f32.mrf.mxu0
      %v6800 = vadd.f32 0.0, %v6799
      %v6801 = vpop.f32.mrf.mxu0
      %v6802 = vadd.f32 0.0, %v6801
      %6803 = vdwg.mxu0
      %v6804 = vld [vmem:[#allocation4] sm:$0xff]
      %v6805 = vld [vmem:[#allocation4 + $0x8] sm:$0xff]
      %v6806 = vld [vmem:[#allocation4 + $0x10] sm:$0xff]
      %v6807 = vld [vmem:[#allocation4 + $0x18] sm:$0xff]
      %v6808 = vld [vmem:[#allocation4 + $0x20] sm:$0xff]
      %v6809 = vld [vmem:[#allocation4 + $0x28] sm:$0xff]
      %v6810 = vld [vmem:[#allocation4 + $0x30] sm:$0xff]
      %v6811 = vld [vmem:[#allocation4 + $0x38] sm:$0xff]
      %v6812 = vld [vmem:[#allocation4 + $0x40] sm:$0xff]
      %v6813 = vld [vmem:[#allocation4 + $0x48] sm:$0xff]
      %v6814 = vld [vmem:[#allocation4 + $0x50] sm:$0xff]
      %v6815 = vld [vmem:[#allocation4 + $0x58] sm:$0xff]
      %v6816 = vld [vmem:[#allocation4 + $0x60] sm:$0xff]
      %v6817 = vld [vmem:[#allocation4 + $0x68] sm:$0xff]
      %v6818 = vld [vmem:[#allocation4 + $0x70] sm:$0xff]
      %v6819 = vld [vmem:[#allocation4 + $0x78] sm:$0xff]
      %v6820 = vld [vmem:[#allocation4 + $0x80] sm:$0xff]
      %v6821 = vld [vmem:[#allocation4 + $0x88] sm:$0xff]
      %v6822 = vld [vmem:[#allocation4 + $0x90] sm:$0xff]
      %v6823 = vld [vmem:[#allocation4 + $0x98] sm:$0xff]
      %v6824 = vld [vmem:[#allocation4 + $0xa0] sm:$0xff]
      %v6825 = vld [vmem:[#allocation4 + $0xa8] sm:$0xff]
      %v6826 = vld [vmem:[#allocation4 + $0xb0] sm:$0xff]
      %v6827 = vld [vmem:[#allocation4 + $0xb8] sm:$0xff]
      %v6828 = vld [vmem:[#allocation4 + $0xc0] sm:$0xff]
      %v6829 = vld [vmem:[#allocation4 + $0xc8] sm:$0xff]
      %v6830 = vld [vmem:[#allocation4 + $0xd0] sm:$0xff]
      %v6831 = vld [vmem:[#allocation4 + $0xd8] sm:$0xff]
      %v6832 = vld [vmem:[#allocation4 + $0xe0] sm:$0xff]
      %v6833 = vld [vmem:[#allocation4 + $0xe8] sm:$0xff]
      %v6834 = vld [vmem:[#allocation4 + $0xf0] sm:$0xff]
      %v6835 = vld [vmem:[#allocation4 + $0xf8] sm:$0xff]
      %v6836 = vadd.f32 %v6804, %v6725
      %v6837 = vadd.f32 %v6805, %v6727
      %v6838 = vadd.f32 %v6806, %v6730
      %v6839 = vadd.f32 %v6807, %v6732
      %v6840 = vadd.f32 %v6808, %v6735
      %v6841 = vadd.f32 %v6809, %v6737
      %v6842 = vadd.f32 %v6810, %v6740
      %v6843 = vadd.f32 %v6811, %v6742
      %v6844 = vadd.f32 %v6812, %v6745
      %v6845 = vadd.f32 %v6813, %v6747
      %v6846 = vadd.f32 %v6814, %v6750
      %v6847 = vadd.f32 %v6815, %v6752
      %v6848 = vadd.f32 %v6816, %v6755
      %v6849 = vadd.f32 %v6817, %v6757
      %v6850 = vadd.f32 %v6818, %v6760
      %v6851 = vadd.f32 %v6819, %v6762
      %v6852 = vadd.f32 %v6820, %v6765
      %v6853 = vadd.f32 %v6821, %v6767
      %v6854 = vadd.f32 %v6822, %v6770
      %v6855 = vadd.f32 %v6823, %v6772
      %v6856 = vadd.f32 %v6824, %v6775
      %v6857 = vadd.f32 %v6825, %v6777
      %v6858 = vadd.f32 %v6826, %v6780
      %v6859 = vadd.f32 %v6827, %v6782
      %v6860 = vadd.f32 %v6828, %v6785
      %v6861 = vadd.f32 %v6829, %v6787
      %v6862 = vadd.f32 %v6830, %v6790
      %v6863 = vadd.f32 %v6831, %v6792
      %v6864 = vadd.f32 %v6832, %v6795
      %v6865 = vadd.f32 %v6833, %v6797
      %v6866 = vadd.f32 %v6834, %v6800
      %v6867 = vadd.f32 %v6835, %v6802
      %6868 = vst.msk [vmem:[#allocation4] sm:$0xff] %vm334, %v6836
      %6869 = vst.msk [vmem:[#allocation4 + $0x8] sm:$0xff] %vm334, %v6837
      %6870 = vst.msk [vmem:[#allocation4 + $0x10] sm:$0xff] %vm334, %v6838
      %6871 = vst.msk [vmem:[#allocation4 + $0x18] sm:$0xff] %vm334, %v6839
      %6872 = vst.msk [vmem:[#allocation4 + $0x20] sm:$0xff] %vm334, %v6840
      %6873 = vst.msk [vmem:[#allocation4 + $0x28] sm:$0xff] %vm334, %v6841
      %6874 = vst.msk [vmem:[#allocation4 + $0x30] sm:$0xff] %vm334, %v6842
      %6875 = vst.msk [vmem:[#allocation4 + $0x38] sm:$0xff] %vm334, %v6843
      %6876 = vst.msk [vmem:[#allocation4 + $0x40] sm:$0xff] %vm334, %v6844
      %6877 = vst.msk [vmem:[#allocation4 + $0x48] sm:$0xff] %vm334, %v6845
      %6878 = vst.msk [vmem:[#allocation4 + $0x50] sm:$0xff] %vm334, %v6846
      %6879 = vst.msk [vmem:[#allocation4 + $0x58] sm:$0xff] %vm334, %v6847
      %6880 = vst.msk [vmem:[#allocation4 + $0x60] sm:$0xff] %vm334, %v6848
      %6881 = vst.msk [vmem:[#allocation4 + $0x68] sm:$0xff] %vm334, %v6849
      %6882 = vst.msk [vmem:[#allocation4 + $0x70] sm:$0xff] %vm334, %v6850
      %6883 = vst.msk [vmem:[#allocation4 + $0x78] sm:$0xff] %vm334, %v6851
      %6884 = vst.msk [vmem:[#allocation4 + $0x80] sm:$0xff] %vm334, %v6852
      %6885 = vst.msk [vmem:[#allocation4 + $0x88] sm:$0xff] %vm334, %v6853
      %6886 = vst.msk [vmem:[#allocation4 + $0x90] sm:$0xff] %vm334, %v6854
      %6887 = vst.msk [vmem:[#allocation4 + $0x98] sm:$0xff] %vm334, %v6855
      %6888 = vst.msk [vmem:[#allocation4 + $0xa0] sm:$0xff] %vm334, %v6856
      %6889 = vst.msk [vmem:[#allocation4 + $0xa8] sm:$0xff] %vm334, %v6857
      %6890 = vst.msk [vmem:[#allocation4 + $0xb0] sm:$0xff] %vm334, %v6858
      %6891 = vst.msk [vmem:[#allocation4 + $0xb8] sm:$0xff] %vm334, %v6859
      %6892 = vst.msk [vmem:[#allocation4 + $0xc0] sm:$0xff] %vm334, %v6860
      %6893 = vst.msk [vmem:[#allocation4 + $0xc8] sm:$0xff] %vm334, %v6861
      %6894 = vst.msk [vmem:[#allocation4 + $0xd0] sm:$0xff] %vm334, %v6862
      %6895 = vst.msk [vmem:[#allocation4 + $0xd8] sm:$0xff] %vm334, %v6863
      %6896 = vst.msk [vmem:[#allocation4 + $0xe0] sm:$0xff] %vm334, %v6864
      %6897 = vst.msk [vmem:[#allocation4 + $0xe8] sm:$0xff] %vm334, %v6865
      %6898 = vst.msk [vmem:[#allocation4 + $0xf0] sm:$0xff] %vm334, %v6866
      %6899 = vst.msk [vmem:[#allocation4 + $0xf8] sm:$0xff] %vm334, %v6867
      %v6900 = vld [vmem:[%s466] sm:$0xff]
      %v6901 = vld [vmem:[%s466 + $0x8] sm:$0xff]
      %v6902 = vld [vmem:[%s466 + $0x18] sm:$0xff]
      %v6903 = vld [vmem:[%s466 + $0x20] sm:$0xff]
      %v6904 = vld [vmem:[%s466 + $0x30] sm:$0xff]
      %v6905 = vld [vmem:[%s466 + $0x38] sm:$0xff]
      %v6906 = vld [vmem:[%s466 + $0x48] sm:$0xff]
      %v6907 = vld [vmem:[%s466 + $0x50] sm:$0xff]
      %v6908 = vld [vmem:[%s466 + $0x60] sm:$0xff]
      %v6909 = vld [vmem:[%s466 + $0x68] sm:$0xff]
      %v6910 = vld [vmem:[%s466 + $0x78] sm:$0xff]
      %v6911 = vld [vmem:[%s466 + $0x80] sm:$0xff]
      %v6912 = vld [vmem:[%s466 + $0x90] sm:$0xff]
      %v6913 = vld [vmem:[%s466 + $0x98] sm:$0xff]
      %v6914 = vld [vmem:[%s466 + $0xa8] sm:$0xff]
      %v6915 = vld [vmem:[%s466 + $0xb0] sm:$0xff]
      %v6916 = vld [vmem:[%s466 + $0xc0] sm:$0xff]
      %v6917 = vld [vmem:[%s466 + $0xc8] sm:$0xff]
      %v6918 = vld [vmem:[%s466 + $0xd8] sm:$0xff]
      %v6919 = vld [vmem:[%s466 + $0xe0] sm:$0xff]
      %v6920 = vld [vmem:[%s466 + $0xf0] sm:$0xff]
      %v6921 = vld [vmem:[%s466 + $0xf8] sm:$0xff]
      %v6922 = vld [vmem:[%s466 + $0x108] sm:$0xff]
      %v6923 = vld [vmem:[%s466 + $0x110] sm:$0xff]
      %v6924 = vld [vmem:[%s466 + $0x120] sm:$0xff]
      %v6925 = vld [vmem:[%s466 + $0x128] sm:$0xff]
      %v6926 = vld [vmem:[%s466 + $0x138] sm:$0xff]
      %v6927 = vld [vmem:[%s466 + $0x140] sm:$0xff]
      %v6928 = vld [vmem:[%s466 + $0x150] sm:$0xff]
      %v6929 = vld [vmem:[%s466 + $0x158] sm:$0xff]
      %v6930 = vld [vmem:[%s466 + $0x168] sm:$0xff]
      %v6931 = vld [vmem:[%s466 + $0x170] sm:$0xff]
      %v6932 = vpack.c.bf16 %v6901, %v6900
      %v6933 = vpack.c.bf16 %v6903, %v6902
      %v6934 = vpack.c.bf16 %v6905, %v6904
      %v6935 = vpack.c.bf16 %v6907, %v6906
      %v6936 = vpack.c.bf16 %v6909, %v6908
      %v6937 = vpack.c.bf16 %v6911, %v6910
      %v6938 = vpack.c.bf16 %v6913, %v6912
      %v6939 = vpack.c.bf16 %v6915, %v6914
      %v6940 = vpack.c.bf16 %v6917, %v6916
      %v6941 = vpack.c.bf16 %v6919, %v6918
      %v6942 = vpack.c.bf16 %v6921, %v6920
      %v6943 = vpack.c.bf16 %v6923, %v6922
      %v6944 = vpack.c.bf16 %v6925, %v6924
      %v6945 = vpack.c.bf16 %v6927, %v6926
      %v6946 = vpack.c.bf16 %v6929, %v6928
      %v6947 = vpack.c.bf16 %v6931, %v6930
      %s6948 = scalar_lea.vmem %s7, 6
      %v6949 = vld [vmem:[%s6948] sm:$0x3]
      %v6951 = vsel %vm334, %v6932, 0
      %v6954 = vsel %vm334, %v6933, 0
      %v6957 = vsel %vm334, %v6934, 0
      %v6960 = vsel %vm334, %v6935, 0
      %v6963 = vsel %vm334, %v6936, 0
      %v6966 = vsel %vm334, %v6937, 0
      %v6969 = vsel %vm334, %v6938, 0
      %v6972 = vsel %vm334, %v6939, 0
      %v6975 = vsel %vm334, %v6940, 0
      %v6978 = vsel %vm334, %v6941, 0
      %v6981 = vsel %vm334, %v6942, 0
      %v6984 = vsel %vm334, %v6943, 0
      %v6987 = vsel %vm334, %v6944, 0
      %v6990 = vsel %vm334, %v6945, 0
      %v6993 = vsel %vm334, %v6946, 0
      %v6996 = vsel %vm334, %v6947, 0
      %v6999 = vsel %vm597, %v6949, 0
      %7001 = vmatpush.bf16.msra.mxu0 0
      %7002 = vmatpush.bf16.msra.mxu0 0
      %7003 = vmatpush.bf16.msra.mxu0 0
      %7004 = vmatpush.bf16.msra.mxu0 0
      %7005 = vmatpush.bf16.msra.mxu0 0
      %7006 = vmatpush.bf16.msra.mxu0 0
      %7007 = vmatpush.bf16.msra.mxu0 0
      %7008 = vmatpush.bf16.msra.mxu0 %v6999
      %7009 = vmatmul.bf16.gmra.mxu0 %v6951
      %v7010 = vpop.f32.mrf.mxu0
      %v7011 = vadd.f32 0.0, %v7010
      %v7012 = vpop.f32.mrf.mxu0
      %v7013 = vadd.f32 0.0, %v7012
      %7014 = vmatmul.bf16.gmra.mxu0 %v6954
      %v7015 = vpop.f32.mrf.mxu0
      %v7016 = vadd.f32 0.0, %v7015
      %v7017 = vpop.f32.mrf.mxu0
      %v7018 = vadd.f32 0.0, %v7017
      %7019 = vmatmul.bf16.gmra.mxu0 %v6957
      %v7020 = vpop.f32.mrf.mxu0
      %v7021 = vadd.f32 0.0, %v7020
      %v7022 = vpop.f32.mrf.mxu0
      %v7023 = vadd.f32 0.0, %v7022
      %7024 = vmatmul.bf16.gmra.mxu0 %v6960
      %v7025 = vpop.f32.mrf.mxu0
      %v7026 = vadd.f32 0.0, %v7025
      %v7027 = vpop.f32.mrf.mxu0
      %v7028 = vadd.f32 0.0, %v7027
      %7029 = vmatmul.bf16.gmra.mxu0 %v6963
      %v7030 = vpop.f32.mrf.mxu0
      %v7031 = vadd.f32 0.0, %v7030
      %v7032 = vpop.f32.mrf.mxu0
      %v7033 = vadd.f32 0.0, %v7032
      %7034 = vmatmul.bf16.gmra.mxu0 %v6966
      %v7035 = vpop.f32.mrf.mxu0
      %v7036 = vadd.f32 0.0, %v7035
      %v7037 = vpop.f32.mrf.mxu0
      %v7038 = vadd.f32 0.0, %v7037
      %7039 = vmatmul.bf16.gmra.mxu0 %v6969
      %v7040 = vpop.f32.mrf.mxu0
      %v7041 = vadd.f32 0.0, %v7040
      %v7042 = vpop.f32.mrf.mxu0
      %v7043 = vadd.f32 0.0, %v7042
      %7044 = vmatmul.bf16.gmra.mxu0 %v6972
      %v7045 = vpop.f32.mrf.mxu0
      %v7046 = vadd.f32 0.0, %v7045
      %v7047 = vpop.f32.mrf.mxu0
      %v7048 = vadd.f32 0.0, %v7047
      %7049 = vmatmul.bf16.gmra.mxu0 %v6975
      %v7050 = vpop.f32.mrf.mxu0
      %v7051 = vadd.f32 0.0, %v7050
      %v7052 = vpop.f32.mrf.mxu0
      %v7053 = vadd.f32 0.0, %v7052
      %7054 = vmatmul.bf16.gmra.mxu0 %v6978
      %v7055 = vpop.f32.mrf.mxu0
      %v7056 = vadd.f32 0.0, %v7055
      %v7057 = vpop.f32.mrf.mxu0
      %v7058 = vadd.f32 0.0, %v7057
      %7059 = vmatmul.bf16.gmra.mxu0 %v6981
      %v7060 = vpop.f32.mrf.mxu0
      %v7061 = vadd.f32 0.0, %v7060
      %v7062 = vpop.f32.mrf.mxu0
      %v7063 = vadd.f32 0.0, %v7062
      %7064 = vmatmul.bf16.gmra.mxu0 %v6984
      %v7065 = vpop.f32.mrf.mxu0
      %v7066 = vadd.f32 0.0, %v7065
      %v7067 = vpop.f32.mrf.mxu0
      %v7068 = vadd.f32 0.0, %v7067
      %7069 = vmatmul.bf16.gmra.mxu0 %v6987
      %v7070 = vpop.f32.mrf.mxu0
      %v7071 = vadd.f32 0.0, %v7070
      %v7072 = vpop.f32.mrf.mxu0
      %v7073 = vadd.f32 0.0, %v7072
      %7074 = vmatmul.bf16.gmra.mxu0 %v6990
      %v7075 = vpop.f32.mrf.mxu0
      %v7076 = vadd.f32 0.0, %v7075
      %v7077 = vpop.f32.mrf.mxu0
      %v7078 = vadd.f32 0.0, %v7077
      %7079 = vmatmul.bf16.gmra.mxu0 %v6993
      %v7080 = vpop.f32.mrf.mxu0
      %v7081 = vadd.f32 0.0, %v7080
      %v7082 = vpop.f32.mrf.mxu0
      %v7083 = vadd.f32 0.0, %v7082
      %7084 = vmatmul.bf16.gmra.mxu0 %v6996
      %v7085 = vpop.f32.mrf.mxu0
      %v7086 = vadd.f32 0.0, %v7085
      %v7087 = vpop.f32.mrf.mxu0
      %v7088 = vadd.f32 0.0, %v7087
      %7089 = vdwg.mxu0
      %v7090 = vld [vmem:[#allocation4] sm:$0xff]
      %v7091 = vld [vmem:[#allocation4 + $0x8] sm:$0xff]
      %v7092 = vld [vmem:[#allocation4 + $0x10] sm:$0xff]
      %v7093 = vld [vmem:[#allocation4 + $0x18] sm:$0xff]
      %v7094 = vld [vmem:[#allocation4 + $0x20] sm:$0xff]
      %v7095 = vld [vmem:[#allocation4 + $0x28] sm:$0xff]
      %v7096 = vld [vmem:[#allocation4 + $0x30] sm:$0xff]
      %v7097 = vld [vmem:[#allocation4 + $0x38] sm:$0xff]
      %v7098 = vld [vmem:[#allocation4 + $0x40] sm:$0xff]
      %v7099 = vld [vmem:[#allocation4 + $0x48] sm:$0xff]
      %v7100 = vld [vmem:[#allocation4 + $0x50] sm:$0xff]
      %v7101 = vld [vmem:[#allocation4 + $0x58] sm:$0xff]
      %v7102 = vld [vmem:[#allocation4 + $0x60] sm:$0xff]
      %v7103 = vld [vmem:[#allocation4 + $0x68] sm:$0xff]
      %v7104 = vld [vmem:[#allocation4 + $0x70] sm:$0xff]
      %v7105 = vld [vmem:[#allocation4 + $0x78] sm:$0xff]
      %v7106 = vld [vmem:[#allocation4 + $0x80] sm:$0xff]
      %v7107 = vld [vmem:[#allocation4 + $0x88] sm:$0xff]
      %v7108 = vld [vmem:[#allocation4 + $0x90] sm:$0xff]
      %v7109 = vld [vmem:[#allocation4 + $0x98] sm:$0xff]
      %v7110 = vld [vmem:[#allocation4 + $0xa0] sm:$0xff]
      %v7111 = vld [vmem:[#allocation4 + $0xa8] sm:$0xff]
      %v7112 = vld [vmem:[#allocation4 + $0xb0] sm:$0xff]
      %v7113 = vld [vmem:[#allocation4 + $0xb8] sm:$0xff]
      %v7114 = vld [vmem:[#allocation4 + $0xc0] sm:$0xff]
      %v7115 = vld [vmem:[#allocation4 + $0xc8] sm:$0xff]
      %v7116 = vld [vmem:[#allocation4 + $0xd0] sm:$0xff]
      %v7117 = vld [vmem:[#allocation4 + $0xd8] sm:$0xff]
      %v7118 = vld [vmem:[#allocation4 + $0xe0] sm:$0xff]
      %v7119 = vld [vmem:[#allocation4 + $0xe8] sm:$0xff]
      %v7120 = vld [vmem:[#allocation4 + $0xf0] sm:$0xff]
      %v7121 = vld [vmem:[#allocation4 + $0xf8] sm:$0xff]
      %v7122 = vadd.f32 %v7090, %v7011
      %v7123 = vadd.f32 %v7091, %v7013
      %v7124 = vadd.f32 %v7092, %v7016
      %v7125 = vadd.f32 %v7093, %v7018
      %v7126 = vadd.f32 %v7094, %v7021
      %v7127 = vadd.f32 %v7095, %v7023
      %v7128 = vadd.f32 %v7096, %v7026
      %v7129 = vadd.f32 %v7097, %v7028
      %v7130 = vadd.f32 %v7098, %v7031
      %v7131 = vadd.f32 %v7099, %v7033
      %v7132 = vadd.f32 %v7100, %v7036
      %v7133 = vadd.f32 %v7101, %v7038
      %v7134 = vadd.f32 %v7102, %v7041
      %v7135 = vadd.f32 %v7103, %v7043
      %v7136 = vadd.f32 %v7104, %v7046
      %v7137 = vadd.f32 %v7105, %v7048
      %v7138 = vadd.f32 %v7106, %v7051
      %v7139 = vadd.f32 %v7107, %v7053
      %v7140 = vadd.f32 %v7108, %v7056
      %v7141 = vadd.f32 %v7109, %v7058
      %v7142 = vadd.f32 %v7110, %v7061
      %v7143 = vadd.f32 %v7111, %v7063
      %v7144 = vadd.f32 %v7112, %v7066
      %v7145 = vadd.f32 %v7113, %v7068
      %v7146 = vadd.f32 %v7114, %v7071
      %v7147 = vadd.f32 %v7115, %v7073
      %v7148 = vadd.f32 %v7116, %v7076
      %v7149 = vadd.f32 %v7117, %v7078
      %v7150 = vadd.f32 %v7118, %v7081
      %v7151 = vadd.f32 %v7119, %v7083
      %v7152 = vadd.f32 %v7120, %v7086
      %v7153 = vadd.f32 %v7121, %v7088
      %7154 = vst.msk [vmem:[#allocation4] sm:$0xff] %vm334, %v7122
      %7155 = vst.msk [vmem:[#allocation4 + $0x8] sm:$0xff] %vm334, %v7123
      %7156 = vst.msk [vmem:[#allocation4 + $0x10] sm:$0xff] %vm334, %v7124
      %7157 = vst.msk [vmem:[#allocation4 + $0x18] sm:$0xff] %vm334, %v7125
      %7158 = vst.msk [vmem:[#allocation4 + $0x20] sm:$0xff] %vm334, %v7126
      %7159 = vst.msk [vmem:[#allocation4 + $0x28] sm:$0xff] %vm334, %v7127
      %7160 = vst.msk [vmem:[#allocation4 + $0x30] sm:$0xff] %vm334, %v7128
      %7161 = vst.msk [vmem:[#allocation4 + $0x38] sm:$0xff] %vm334, %v7129
      %7162 = vst.msk [vmem:[#allocation4 + $0x40] sm:$0xff] %vm334, %v7130
      %7163 = vst.msk [vmem:[#allocation4 + $0x48] sm:$0xff] %vm334, %v7131
      %7164 = vst.msk [vmem:[#allocation4 + $0x50] sm:$0xff] %vm334, %v7132
      %7165 = vst.msk [vmem:[#allocation4 + $0x58] sm:$0xff] %vm334, %v7133
      %7166 = vst.msk [vmem:[#allocation4 + $0x60] sm:$0xff] %vm334, %v7134
      %7167 = vst.msk [vmem:[#allocation4 + $0x68] sm:$0xff] %vm334, %v7135
      %7168 = vst.msk [vmem:[#allocation4 + $0x70] sm:$0xff] %vm334, %v7136
      %7169 = vst.msk [vmem:[#allocation4 + $0x78] sm:$0xff] %vm334, %v7137
      %7170 = vst.msk [vmem:[#allocation4 + $0x80] sm:$0xff] %vm334, %v7138
      %7171 = vst.msk [vmem:[#allocation4 + $0x88] sm:$0xff] %vm334, %v7139
      %7172 = vst.msk [vmem:[#allocation4 + $0x90] sm:$0xff] %vm334, %v7140
      %7173 = vst.msk [vmem:[#allocation4 + $0x98] sm:$0xff] %vm334, %v7141
      %7174 = vst.msk [vmem:[#allocation4 + $0xa0] sm:$0xff] %vm334, %v7142
      %7175 = vst.msk [vmem:[#allocation4 + $0xa8] sm:$0xff] %vm334, %v7143
      %7176 = vst.msk [vmem:[#allocation4 + $0xb0] sm:$0xff] %vm334, %v7144
      %7177 = vst.msk [vmem:[#allocation4 + $0xb8] sm:$0xff] %vm334, %v7145
      %7178 = vst.msk [vmem:[#allocation4 + $0xc0] sm:$0xff] %vm334, %v7146
      %7179 = vst.msk [vmem:[#allocation4 + $0xc8] sm:$0xff] %vm334, %v7147
      %7180 = vst.msk [vmem:[#allocation4 + $0xd0] sm:$0xff] %vm334, %v7148
      %7181 = vst.msk [vmem:[#allocation4 + $0xd8] sm:$0xff] %vm334, %v7149
      %7182 = vst.msk [vmem:[#allocation4 + $0xe0] sm:$0xff] %vm334, %v7150
      %7183 = vst.msk [vmem:[#allocation4 + $0xe8] sm:$0xff] %vm334, %v7151
      %7184 = vst.msk [vmem:[#allocation4 + $0xf0] sm:$0xff] %vm334, %v7152
      %7185 = vst.msk [vmem:[#allocation4 + $0xf8] sm:$0xff] %vm334, %v7153
      %v7186 = vld [vmem:[%s466 + $0x2] sm:$0xff]
      %v7187 = vld [vmem:[%s466 + $0xa] sm:$0xff]
      %v7188 = vld [vmem:[%s466 + $0x1a] sm:$0xff]
      %v7189 = vld [vmem:[%s466 + $0x22] sm:$0xff]
      %v7190 = vld [vmem:[%s466 + $0x32] sm:$0xff]
      %v7191 = vld [vmem:[%s466 + $0x3a] sm:$0xff]
      %v7192 = vld [vmem:[%s466 + $0x4a] sm:$0xff]
      %v7193 = vld [vmem:[%s466 + $0x52] sm:$0xff]
      %v7194 = vld [vmem:[%s466 + $0x62] sm:$0xff]
      %v7195 = vld [vmem:[%s466 + $0x6a] sm:$0xff]
      %v7196 = vld [vmem:[%s466 + $0x7a] sm:$0xff]
      %v7197 = vld [vmem:[%s466 + $0x82] sm:$0xff]
      %v7198 = vld [vmem:[%s466 + $0x92] sm:$0xff]
      %v7199 = vld [vmem:[%s466 + $0x9a] sm:$0xff]
      %v7200 = vld [vmem:[%s466 + $0xaa] sm:$0xff]
      %v7201 = vld [vmem:[%s466 + $0xb2] sm:$0xff]
      %v7202 = vld [vmem:[%s466 + $0xc2] sm:$0xff]
      %v7203 = vld [vmem:[%s466 + $0xca] sm:$0xff]
      %v7204 = vld [vmem:[%s466 + $0xda] sm:$0xff]
      %v7205 = vld [vmem:[%s466 + $0xe2] sm:$0xff]
      %v7206 = vld [vmem:[%s466 + $0xf2] sm:$0xff]
      %v7207 = vld [vmem:[%s466 + $0xfa] sm:$0xff]
      %v7208 = vld [vmem:[%s466 + $0x10a] sm:$0xff]
      %v7209 = vld [vmem:[%s466 + $0x112] sm:$0xff]
      %v7210 = vld [vmem:[%s466 + $0x122] sm:$0xff]
      %v7211 = vld [vmem:[%s466 + $0x12a] sm:$0xff]
      %v7212 = vld [vmem:[%s466 + $0x13a] sm:$0xff]
      %v7213 = vld [vmem:[%s466 + $0x142] sm:$0xff]
      %v7214 = vld [vmem:[%s466 + $0x152] sm:$0xff]
      %v7215 = vld [vmem:[%s466 + $0x15a] sm:$0xff]
      %v7216 = vld [vmem:[%s466 + $0x16a] sm:$0xff]
      %v7217 = vld [vmem:[%s466 + $0x172] sm:$0xff]
      %v7218 = vpack.c.bf16 %v7187, %v7186
      %v7219 = vpack.c.bf16 %v7189, %v7188
      %v7220 = vpack.c.bf16 %v7191, %v7190
      %v7221 = vpack.c.bf16 %v7193, %v7192
      %v7222 = vpack.c.bf16 %v7195, %v7194
      %v7223 = vpack.c.bf16 %v7197, %v7196
      %v7224 = vpack.c.bf16 %v7199, %v7198
      %v7225 = vpack.c.bf16 %v7201, %v7200
      %v7226 = vpack.c.bf16 %v7203, %v7202
      %v7227 = vpack.c.bf16 %v7205, %v7204
      %v7228 = vpack.c.bf16 %v7207, %v7206
      %v7229 = vpack.c.bf16 %v7209, %v7208
      %v7230 = vpack.c.bf16 %v7211, %v7210
      %v7231 = vpack.c.bf16 %v7213, %v7212
      %v7232 = vpack.c.bf16 %v7215, %v7214
      %v7233 = vpack.c.bf16 %v7217, %v7216
      %s7234 = scalar_lea.vmem %s7, 8
      %v7235 = vld [vmem:[%s7234] sm:$0x3]
      %v7237 = vsel %vm334, %v7218, 0
      %v7240 = vsel %vm334, %v7219, 0
      %v7243 = vsel %vm334, %v7220, 0
      %v7246 = vsel %vm334, %v7221, 0
      %v7249 = vsel %vm334, %v7222, 0
      %v7252 = vsel %vm334, %v7223, 0
      %v7255 = vsel %vm334, %v7224, 0
      %v7258 = vsel %vm334, %v7225, 0
      %v7261 = vsel %vm334, %v7226, 0
      %v7264 = vsel %vm334, %v7227, 0
      %v7267 = vsel %vm334, %v7228, 0
      %v7270 = vsel %vm334, %v7229, 0
      %v7273 = vsel %vm334, %v7230, 0
      %v7276 = vsel %vm334, %v7231, 0
      %v7279 = vsel %vm334, %v7232, 0
      %v7282 = vsel %vm334, %v7233, 0
      %v7285 = vsel %vm597, %v7235, 0
      %7287 = vmatpush.bf16.msra.mxu0 0
      %7288 = vmatpush.bf16.msra.mxu0 0
      %7289 = vmatpush.bf16.msra.mxu0 0
      %7290 = vmatpush.bf16.msra.mxu0 0
      %7291 = vmatpush.bf16.msra.mxu0 0
      %7292 = vmatpush.bf16.msra.mxu0 0
      %7293 = vmatpush.bf16.msra.mxu0 0
      %7294 = vmatpush.bf16.msra.mxu0 %v7285
      %7295 = vmatmul.bf16.gmra.mxu0 %v7237
      %v7296 = vpop.f32.mrf.mxu0
      %v7297 = vadd.f32 0.0, %v7296
      %v7298 = vpop.f32.mrf.mxu0
      %v7299 = vadd.f32 0.0, %v7298
      %7300 = vmatmul.bf16.gmra.mxu0 %v7240
      %v7301 = vpop.f32.mrf.mxu0
      %v7302 = vadd.f32 0.0, %v7301
      %v7303 = vpop.f32.mrf.mxu0
      %v7304 = vadd.f32 0.0, %v7303
      %7305 = vmatmul.bf16.gmra.mxu0 %v7243
      %v7306 = vpop.f32.mrf.mxu0
      %v7307 = vadd.f32 0.0, %v7306
      %v7308 = vpop.f32.mrf.mxu0
      %v7309 = vadd.f32 0.0, %v7308
      %7310 = vmatmul.bf16.gmra.mxu0 %v7246
      %v7311 = vpop.f32.mrf.mxu0
      %v7312 = vadd.f32 0.0, %v7311
      %v7313 = vpop.f32.mrf.mxu0
      %v7314 = vadd.f32 0.0, %v7313
      %7315 = vmatmul.bf16.gmra.mxu0 %v7249
      %v7316 = vpop.f32.mrf.mxu0
      %v7317 = vadd.f32 0.0, %v7316
      %v7318 = vpop.f32.mrf.mxu0
      %v7319 = vadd.f32 0.0, %v7318
      %7320 = vmatmul.bf16.gmra.mxu0 %v7252
      %v7321 = vpop.f32.mrf.mxu0
      %v7322 = vadd.f32 0.0, %v7321
      %v7323 = vpop.f32.mrf.mxu0
      %v7324 = vadd.f32 0.0, %v7323
      %7325 = vmatmul.bf16.gmra.mxu0 %v7255
      %v7326 = vpop.f32.mrf.mxu0
      %v7327 = vadd.f32 0.0, %v7326
      %v7328 = vpop.f32.mrf.mxu0
      %v7329 = vadd.f32 0.0, %v7328
      %7330 = vmatmul.bf16.gmra.mxu0 %v7258
      %v7331 = vpop.f32.mrf.mxu0
      %v7332 = vadd.f32 0.0, %v7331
      %v7333 = vpop.f32.mrf.mxu0
      %v7334 = vadd.f32 0.0, %v7333
      %7335 = vmatmul.bf16.gmra.mxu0 %v7261
      %v7336 = vpop.f32.mrf.mxu0
      %v7337 = vadd.f32 0.0, %v7336
      %v7338 = vpop.f32.mrf.mxu0
      %v7339 = vadd.f32 0.0, %v7338
      %7340 = vmatmul.bf16.gmra.mxu0 %v7264
      %v7341 = vpop.f32.mrf.mxu0
      %v7342 = vadd.f32 0.0, %v7341
      %v7343 = vpop.f32.mrf.mxu0
      %v7344 = vadd.f32 0.0, %v7343
      %7345 = vmatmul.bf16.gmra.mxu0 %v7267
      %v7346 = vpop.f32.mrf.mxu0
      %v7347 = vadd.f32 0.0, %v7346
      %v7348 = vpop.f32.mrf.mxu0
      %v7349 = vadd.f32 0.0, %v7348
      %7350 = vmatmul.bf16.gmra.mxu0 %v7270
      %v7351 = vpop.f32.mrf.mxu0
      %v7352 = vadd.f32 0.0, %v7351
      %v7353 = vpop.f32.mrf.mxu0
      %v7354 = vadd.f32 0.0, %v7353
      %7355 = vmatmul.bf16.gmra.mxu0 %v7273
      %v7356 = vpop.f32.mrf.mxu0
      %v7357 = vadd.f32 0.0, %v7356
      %v7358 = vpop.f32.mrf.mxu0
      %v7359 = vadd.f32 0.0, %v7358
      %7360 = vmatmul.bf16.gmra.mxu0 %v7276
      %v7361 = vpop.f32.mrf.mxu0
      %v7362 = vadd.f32 0.0, %v7361
      %v7363 = vpop.f32.mrf.mxu0
      %v7364 = vadd.f32 0.0, %v7363
      %7365 = vmatmul.bf16.gmra.mxu0 %v7279
      %v7366 = vpop.f32.mrf.mxu0
      %v7367 = vadd.f32 0.0, %v7366
      %v7368 = vpop.f32.mrf.mxu0
      %v7369 = vadd.f32 0.0, %v7368
      %7370 = vmatmul.bf16.gmra.mxu0 %v7282
      %v7371 = vpop.f32.mrf.mxu0
      %v7372 = vadd.f32 0.0, %v7371
      %v7373 = vpop.f32.mrf.mxu0
      %v7374 = vadd.f32 0.0, %v7373
      %7375 = vdwg.mxu0
      %v7376 = vld [vmem:[#allocation4] sm:$0xff]
      %v7377 = vld [vmem:[#allocation4 + $0x8] sm:$0xff]
      %v7378 = vld [vmem:[#allocation4 + $0x10] sm:$0xff]
      %v7379 = vld [vmem:[#allocation4 + $0x18] sm:$0xff]
      %v7380 = vld [vmem:[#allocation4 + $0x20] sm:$0xff]
      %v7381 = vld [vmem:[#allocation4 + $0x28] sm:$0xff]
      %v7382 = vld [vmem:[#allocation4 + $0x30] sm:$0xff]
      %v7383 = vld [vmem:[#allocation4 + $0x38] sm:$0xff]
      %v7384 = vld [vmem:[#allocation4 + $0x40] sm:$0xff]
      %v7385 = vld [vmem:[#allocation4 + $0x48] sm:$0xff]
      %v7386 = vld [vmem:[#allocation4 + $0x50] sm:$0xff]
      %v7387 = vld [vmem:[#allocation4 + $0x58] sm:$0xff]
      %v7388 = vld [vmem:[#allocation4 + $0x60] sm:$0xff]
      %v7389 = vld [vmem:[#allocation4 + $0x68] sm:$0xff]
      %v7390 = vld [vmem:[#allocation4 + $0x70] sm:$0xff]
      %v7391 = vld [vmem:[#allocation4 + $0x78] sm:$0xff]
      %v7392 = vld [vmem:[#allocation4 + $0x80] sm:$0xff]
      %v7393 = vld [vmem:[#allocation4 + $0x88] sm:$0xff]
      %v7394 = vld [vmem:[#allocation4 + $0x90] sm:$0xff]
      %v7395 = vld [vmem:[#allocation4 + $0x98] sm:$0xff]
      %v7396 = vld [vmem:[#allocation4 + $0xa0] sm:$0xff]
      %v7397 = vld [vmem:[#allocation4 + $0xa8] sm:$0xff]
      %v7398 = vld [vmem:[#allocation4 + $0xb0] sm:$0xff]
      %v7399 = vld [vmem:[#allocation4 + $0xb8] sm:$0xff]
      %v7400 = vld [vmem:[#allocation4 + $0xc0] sm:$0xff]
      %v7401 = vld [vmem:[#allocation4 + $0xc8] sm:$0xff]
      %v7402 = vld [vmem:[#allocation4 + $0xd0] sm:$0xff]
      %v7403 = vld [vmem:[#allocation4 + $0xd8] sm:$0xff]
      %v7404 = vld [vmem:[#allocation4 + $0xe0] sm:$0xff]
      %v7405 = vld [vmem:[#allocation4 + $0xe8] sm:$0xff]
      %v7406 = vld [vmem:[#allocation4 + $0xf0] sm:$0xff]
      %v7407 = vld [vmem:[#allocation4 + $0xf8] sm:$0xff]
      %v7408 = vadd.f32 %v7376, %v7297
      %v7409 = vadd.f32 %v7377, %v7299
      %v7410 = vadd.f32 %v7378, %v7302
      %v7411 = vadd.f32 %v7379, %v7304
      %v7412 = vadd.f32 %v7380, %v7307
      %v7413 = vadd.f32 %v7381, %v7309
      %v7414 = vadd.f32 %v7382, %v7312
      %v7415 = vadd.f32 %v7383, %v7314
      %v7416 = vadd.f32 %v7384, %v7317
      %v7417 = vadd.f32 %v7385, %v7319
      %v7418 = vadd.f32 %v7386, %v7322
      %v7419 = vadd.f32 %v7387, %v7324
      %v7420 = vadd.f32 %v7388, %v7327
      %v7421 = vadd.f32 %v7389, %v7329
      %v7422 = vadd.f32 %v7390, %v7332
      %v7423 = vadd.f32 %v7391, %v7334
      %v7424 = vadd.f32 %v7392, %v7337
      %v7425 = vadd.f32 %v7393, %v7339
      %v7426 = vadd.f32 %v7394, %v7342
      %v7427 = vadd.f32 %v7395, %v7344
      %v7428 = vadd.f32 %v7396, %v7347
      %v7429 = vadd.f32 %v7397, %v7349
      %v7430 = vadd.f32 %v7398, %v7352
      %v7431 = vadd.f32 %v7399, %v7354
      %v7432 = vadd.f32 %v7400, %v7357
      %v7433 = vadd.f32 %v7401, %v7359
      %v7434 = vadd.f32 %v7402, %v7362
      %v7435 = vadd.f32 %v7403, %v7364
      %v7436 = vadd.f32 %v7404, %v7367
      %v7437 = vadd.f32 %v7405, %v7369
      %v7438 = vadd.f32 %v7406, %v7372
      %v7439 = vadd.f32 %v7407, %v7374
      %7440 = vst.msk [vmem:[#allocation4] sm:$0xff] %vm334, %v7408
      %7441 = vst.msk [vmem:[#allocation4 + $0x8] sm:$0xff] %vm334, %v7409
      %7442 = vst.msk [vmem:[#allocation4 + $0x10] sm:$0xff] %vm334, %v7410
      %7443 = vst.msk [vmem:[#allocation4 + $0x18] sm:$0xff] %vm334, %v7411
      %7444 = vst.msk [vmem:[#allocation4 + $0x20] sm:$0xff] %vm334, %v7412
      %7445 = vst.msk [vmem:[#allocation4 + $0x28] sm:$0xff] %vm334, %v7413
      %7446 = vst.msk [vmem:[#allocation4 + $0x30] sm:$0xff] %vm334, %v7414
      %7447 = vst.msk [vmem:[#allocation4 + $0x38] sm:$0xff] %vm334, %v7415
      %7448 = vst.msk [vmem:[#allocation4 + $0x40] sm:$0xff] %vm334, %v7416
      %7449 = vst.msk [vmem:[#allocation4 + $0x48] sm:$0xff] %vm334, %v7417
      %7450 = vst.msk [vmem:[#allocation4 + $0x50] sm:$0xff] %vm334, %v7418
      %7451 = vst.msk [vmem:[#allocation4 + $0x58] sm:$0xff] %vm334, %v7419
      %7452 = vst.msk [vmem:[#allocation4 + $0x60] sm:$0xff] %vm334, %v7420
      %7453 = vst.msk [vmem:[#allocation4 + $0x68] sm:$0xff] %vm334, %v7421
      %7454 = vst.msk [vmem:[#allocation4 + $0x70] sm:$0xff] %vm334, %v7422
      %7455 = vst.msk [vmem:[#allocation4 + $0x78] sm:$0xff] %vm334, %v7423
      %7456 = vst.msk [vmem:[#allocation4 + $0x80] sm:$0xff] %vm334, %v7424
      %7457 = vst.msk [vmem:[#allocation4 + $0x88] sm:$0xff] %vm334, %v7425
      %7458 = vst.msk [vmem:[#allocation4 + $0x90] sm:$0xff] %vm334, %v7426
      %7459 = vst.msk [vmem:[#allocation4 + $0x98] sm:$0xff] %vm334, %v7427
      %7460 = vst.msk [vmem:[#allocation4 + $0xa0] sm:$0xff] %vm334, %v7428
      %7461 = vst.msk [vmem:[#allocation4 + $0xa8] sm:$0xff] %vm334, %v7429
      %7462 = vst.msk [vmem:[#allocation4 + $0xb0] sm:$0xff] %vm334, %v7430
      %7463 = vst.msk [vmem:[#allocation4 + $0xb8] sm:$0xff] %vm334, %v7431
      %7464 = vst.msk [vmem:[#allocation4 + $0xc0] sm:$0xff] %vm334, %v7432
      %7465 = vst.msk [vmem:[#allocation4 + $0xc8] sm:$0xff] %vm334, %v7433
      %7466 = vst.msk [vmem:[#allocation4 + $0xd0] sm:$0xff] %vm334, %v7434
      %7467 = vst.msk [vmem:[#allocation4 + $0xd8] sm:$0xff] %vm334, %v7435
      %7468 = vst.msk [vmem:[#allocation4 + $0xe0] sm:$0xff] %vm334, %v7436
      %7469 = vst.msk [vmem:[#allocation4 + $0xe8] sm:$0xff] %vm334, %v7437
      %7470 = vst.msk [vmem:[#allocation4 + $0xf0] sm:$0xff] %vm334, %v7438
      %7471 = vst.msk [vmem:[#allocation4 + $0xf8] sm:$0xff] %vm334, %v7439
      %v7472 = vld [vmem:[%s466 + $0x4] sm:$0xff]
      %v7473 = vld [vmem:[%s466 + $0xc] sm:$0xff]
      %v7474 = vld [vmem:[%s466 + $0x1c] sm:$0xff]
      %v7475 = vld [vmem:[%s466 + $0x24] sm:$0xff]
      %v7476 = vld [vmem:[%s466 + $0x34] sm:$0xff]
      %v7477 = vld [vmem:[%s466 + $0x3c] sm:$0xff]
      %v7478 = vld [vmem:[%s466 + $0x4c] sm:$0xff]
      %v7479 = vld [vmem:[%s466 + $0x54] sm:$0xff]
      %v7480 = vld [vmem:[%s466 + $0x64] sm:$0xff]
      %v7481 = vld [vmem:[%s466 + $0x6c] sm:$0xff]
      %v7482 = vld [vmem:[%s466 + $0x7c] sm:$0xff]
      %v7483 = vld [vmem:[%s466 + $0x84] sm:$0xff]
      %v7484 = vld [vmem:[%s466 + $0x94] sm:$0xff]
      %v7485 = vld [vmem:[%s466 + $0x9c] sm:$0xff]
      %v7486 = vld [vmem:[%s466 + $0xac] sm:$0xff]
      %v7487 = vld [vmem:[%s466 + $0xb4] sm:$0xff]
      %v7488 = vld [vmem:[%s466 + $0xc4] sm:$0xff]
      %v7489 = vld [vmem:[%s466 + $0xcc] sm:$0xff]
      %v7490 = vld [vmem:[%s466 + $0xdc] sm:$0xff]
      %v7491 = vld [vmem:[%s466 + $0xe4] sm:$0xff]
      %v7492 = vld [vmem:[%s466 + $0xf4] sm:$0xff]
      %v7493 = vld [vmem:[%s466 + $0xfc] sm:$0xff]
      %v7494 = vld [vmem:[%s466 + $0x10c] sm:$0xff]
      %v7495 = vld [vmem:[%s466 + $0x114] sm:$0xff]
      %v7496 = vld [vmem:[%s466 + $0x124] sm:$0xff]
      %v7497 = vld [vmem:[%s466 + $0x12c] sm:$0xff]
      %v7498 = vld [vmem:[%s466 + $0x13c] sm:$0xff]
      %v7499 = vld [vmem:[%s466 + $0x144] sm:$0xff]
      %v7500 = vld [vmem:[%s466 + $0x154] sm:$0xff]
      %v7501 = vld [vmem:[%s466 + $0x15c] sm:$0xff]
      %v7502 = vld [vmem:[%s466 + $0x16c] sm:$0xff]
      %v7503 = vld [vmem:[%s466 + $0x174] sm:$0xff]
      %v7504 = vpack.c.bf16 %v7473, %v7472
      %v7505 = vpack.c.bf16 %v7475, %v7474
      %v7506 = vpack.c.bf16 %v7477, %v7476
      %v7507 = vpack.c.bf16 %v7479, %v7478
      %v7508 = vpack.c.bf16 %v7481, %v7480
      %v7509 = vpack.c.bf16 %v7483, %v7482
      %v7510 = vpack.c.bf16 %v7485, %v7484
      %v7511 = vpack.c.bf16 %v7487, %v7486
      %v7512 = vpack.c.bf16 %v7489, %v7488
      %v7513 = vpack.c.bf16 %v7491, %v7490
      %v7514 = vpack.c.bf16 %v7493, %v7492
      %v7515 = vpack.c.bf16 %v7495, %v7494
      %v7516 = vpack.c.bf16 %v7497, %v7496
      %v7517 = vpack.c.bf16 %v7499, %v7498
      %v7518 = vpack.c.bf16 %v7501, %v7500
      %v7519 = vpack.c.bf16 %v7503, %v7502
      %s7520 = scalar_lea.vmem %s7, 10
      %v7521 = vld [vmem:[%s7520] sm:$0x3]
      %v7523 = vsel %vm334, %v7504, 0
      %v7526 = vsel %vm334, %v7505, 0
      %v7529 = vsel %vm334, %v7506, 0
      %v7532 = vsel %vm334, %v7507, 0
      %v7535 = vsel %vm334, %v7508, 0
      %v7538 = vsel %vm334, %v7509, 0
      %v7541 = vsel %vm334, %v7510, 0
      %v7544 = vsel %vm334, %v7511, 0
      %v7547 = vsel %vm334, %v7512, 0
      %v7550 = vsel %vm334, %v7513, 0
      %v7553 = vsel %vm334, %v7514, 0
      %v7556 = vsel %vm334, %v7515, 0
      %v7559 = vsel %vm334, %v7516, 0
      %v7562 = vsel %vm334, %v7517, 0
      %v7565 = vsel %vm334, %v7518, 0
      %v7568 = vsel %vm334, %v7519, 0
      %v7571 = vsel %vm597, %v7521, 0
      %7573 = vmatpush.bf16.msra.mxu0 0
      %7574 = vmatpush.bf16.msra.mxu0 0
      %7575 = vmatpush.bf16.msra.mxu0 0
      %7576 = vmatpush.bf16.msra.mxu0 0
      %7577 = vmatpush.bf16.msra.mxu0 0
      %7578 = vmatpush.bf16.msra.mxu0 0
      %7579 = vmatpush.bf16.msra.mxu0 0
      %7580 = vmatpush.bf16.msra.mxu0 %v7571
      %7581 = vmatmul.bf16.gmra.mxu0 %v7523
      %v7582 = vpop.f32.mrf.mxu0
      %v7583 = vadd.f32 0.0, %v7582
      %v7584 = vpop.f32.mrf.mxu0
      %v7585 = vadd.f32 0.0, %v7584
      %7586 = vmatmul.bf16.gmra.mxu0 %v7526
      %v7587 = vpop.f32.mrf.mxu0
      %v7588 = vadd.f32 0.0, %v7587
      %v7589 = vpop.f32.mrf.mxu0
      %v7590 = vadd.f32 0.0, %v7589
      %7591 = vmatmul.bf16.gmra.mxu0 %v7529
      %v7592 = vpop.f32.mrf.mxu0
      %v7593 = vadd.f32 0.0, %v7592
      %v7594 = vpop.f32.mrf.mxu0
      %v7595 = vadd.f32 0.0, %v7594
      %7596 = vmatmul.bf16.gmra.mxu0 %v7532
      %v7597 = vpop.f32.mrf.mxu0
      %v7598 = vadd.f32 0.0, %v7597
      %v7599 = vpop.f32.mrf.mxu0
      %v7600 = vadd.f32 0.0, %v7599
      %7601 = vmatmul.bf16.gmra.mxu0 %v7535
      %v7602 = vpop.f32.mrf.mxu0
      %v7603 = vadd.f32 0.0, %v7602
      %v7604 = vpop.f32.mrf.mxu0
      %v7605 = vadd.f32 0.0, %v7604
      %7606 = vmatmul.bf16.gmra.mxu0 %v7538
      %v7607 = vpop.f32.mrf.mxu0
      %v7608 = vadd.f32 0.0, %v7607
      %v7609 = vpop.f32.mrf.mxu0
      %v7610 = vadd.f32 0.0, %v7609
      %7611 = vmatmul.bf16.gmra.mxu0 %v7541
      %v7612 = vpop.f32.mrf.mxu0
      %v7613 = vadd.f32 0.0, %v7612
      %v7614 = vpop.f32.mrf.mxu0
      %v7615 = vadd.f32 0.0, %v7614
      %7616 = vmatmul.bf16.gmra.mxu0 %v7544
      %v7617 = vpop.f32.mrf.mxu0
      %v7618 = vadd.f32 0.0, %v7617
      %v7619 = vpop.f32.mrf.mxu0
      %v7620 = vadd.f32 0.0, %v7619
      %7621 = vmatmul.bf16.gmra.mxu0 %v7547
      %v7622 = vpop.f32.mrf.mxu0
      %v7623 = vadd.f32 0.0, %v7622
      %v7624 = vpop.f32.mrf.mxu0
      %v7625 = vadd.f32 0.0, %v7624
      %7626 = vmatmul.bf16.gmra.mxu0 %v7550
      %v7627 = vpop.f32.mrf.mxu0
      %v7628 = vadd.f32 0.0, %v7627
      %v7629 = vpop.f32.mrf.mxu0
      %v7630 = vadd.f32 0.0, %v7629
      %7631 = vmatmul.bf16.gmra.mxu0 %v7553
      %v7632 = vpop.f32.mrf.mxu0
      %v7633 = vadd.f32 0.0, %v7632
      %v7634 = vpop.f32.mrf.mxu0
      %v7635 = vadd.f32 0.0, %v7634
      %7636 = vmatmul.bf16.gmra.mxu0 %v7556
      %v7637 = vpop.f32.mrf.mxu0
      %v7638 = vadd.f32 0.0, %v7637
      %v7639 = vpop.f32.mrf.mxu0
      %v7640 = vadd.f32 0.0, %v7639
      %7641 = vmatmul.bf16.gmra.mxu0 %v7559
      %v7642 = vpop.f32.mrf.mxu0
      %v7643 = vadd.f32 0.0, %v7642
      %v7644 = vpop.f32.mrf.mxu0
      %v7645 = vadd.f32 0.0, %v7644
      %7646 = vmatmul.bf16.gmra.mxu0 %v7562
      %v7647 = vpop.f32.mrf.mxu0
      %v7648 = vadd.f32 0.0, %v7647
      %v7649 = vpop.f32.mrf.mxu0
      %v7650 = vadd.f32 0.0, %v7649
      %7651 = vmatmul.bf16.gmra.mxu0 %v7565
      %v7652 = vpop.f32.mrf.mxu0
      %v7653 = vadd.f32 0.0, %v7652
      %v7654 = vpop.f32.mrf.mxu0
      %v7655 = vadd.f32 0.0, %v7654
      %7656 = vmatmul.bf16.gmra.mxu0 %v7568
      %v7657 = vpop.f32.mrf.mxu0
      %v7658 = vadd.f32 0.0, %v7657
      %v7659 = vpop.f32.mrf.mxu0
      %v7660 = vadd.f32 0.0, %v7659
      %7661 = vdwg.mxu0
      %v7662 = vld [vmem:[#allocation4] sm:$0xff]
      %v7663 = vld [vmem:[#allocation4 + $0x8] sm:$0xff]
      %v7664 = vld [vmem:[#allocation4 + $0x10] sm:$0xff]
      %v7665 = vld [vmem:[#allocation4 + $0x18] sm:$0xff]
      %v7666 = vld [vmem:[#allocation4 + $0x20] sm:$0xff]
      %v7667 = vld [vmem:[#allocation4 + $0x28] sm:$0xff]
      %v7668 = vld [vmem:[#allocation4 + $0x30] sm:$0xff]
      %v7669 = vld [vmem:[#allocation4 + $0x38] sm:$0xff]
      %v7670 = vld [vmem:[#allocation4 + $0x40] sm:$0xff]
      %v7671 = vld [vmem:[#allocation4 + $0x48] sm:$0xff]
      %v7672 = vld [vmem:[#allocation4 + $0x50] sm:$0xff]
      %v7673 = vld [vmem:[#allocation4 + $0x58] sm:$0xff]
      %v7674 = vld [vmem:[#allocation4 + $0x60] sm:$0xff]
      %v7675 = vld [vmem:[#allocation4 + $0x68] sm:$0xff]
      %v7676 = vld [vmem:[#allocation4 + $0x70] sm:$0xff]
      %v7677 = vld [vmem:[#allocation4 + $0x78] sm:$0xff]
      %v7678 = vld [vmem:[#allocation4 + $0x80] sm:$0xff]
      %v7679 = vld [vmem:[#allocation4 + $0x88] sm:$0xff]
      %v7680 = vld [vmem:[#allocation4 + $0x90] sm:$0xff]
      %v7681 = vld [vmem:[#allocation4 + $0x98] sm:$0xff]
      %v7682 = vld [vmem:[#allocation4 + $0xa0] sm:$0xff]
      %v7683 = vld [vmem:[#allocation4 + $0xa8] sm:$0xff]
      %v7684 = vld [vmem:[#allocation4 + $0xb0] sm:$0xff]
      %v7685 = vld [vmem:[#allocation4 + $0xb8] sm:$0xff]
      %v7686 = vld [vmem:[#allocation4 + $0xc0] sm:$0xff]
      %v7687 = vld [vmem:[#allocation4 + $0xc8] sm:$0xff]
      %v7688 = vld [vmem:[#allocation4 + $0xd0] sm:$0xff]
      %v7689 = vld [vmem:[#allocation4 + $0xd8] sm:$0xff]
      %v7690 = vld [vmem:[#allocation4 + $0xe0] sm:$0xff]
      %v7691 = vld [vmem:[#allocation4 + $0xe8] sm:$0xff]
      %v7692 = vld [vmem:[#allocation4 + $0xf0] sm:$0xff]
      %v7693 = vld [vmem:[#allocation4 + $0xf8] sm:$0xff]
      %v7694 = vadd.f32 %v7662, %v7583
      %v7695 = vadd.f32 %v7663, %v7585
      %v7696 = vadd.f32 %v7664, %v7588
      %v7697 = vadd.f32 %v7665, %v7590
      %v7698 = vadd.f32 %v7666, %v7593
      %v7699 = vadd.f32 %v7667, %v7595
      %v7700 = vadd.f32 %v7668, %v7598
      %v7701 = vadd.f32 %v7669, %v7600
      %v7702 = vadd.f32 %v7670, %v7603
      %v7703 = vadd.f32 %v7671, %v7605
      %v7704 = vadd.f32 %v7672, %v7608
      %v7705 = vadd.f32 %v7673, %v7610
      %v7706 = vadd.f32 %v7674, %v7613
      %v7707 = vadd.f32 %v7675, %v7615
      %v7708 = vadd.f32 %v7676, %v7618
      %v7709 = vadd.f32 %v7677, %v7620
      %v7710 = vadd.f32 %v7678, %v7623
      %v7711 = vadd.f32 %v7679, %v7625
      %v7712 = vadd.f32 %v7680, %v7628
      %v7713 = vadd.f32 %v7681, %v7630
      %v7714 = vadd.f32 %v7682, %v7633
      %v7715 = vadd.f32 %v7683, %v7635
      %v7716 = vadd.f32 %v7684, %v7638
      %v7717 = vadd.f32 %v7685, %v7640
      %v7718 = vadd.f32 %v7686, %v7643
      %v7719 = vadd.f32 %v7687, %v7645
      %v7720 = vadd.f32 %v7688, %v7648
      %v7721 = vadd.f32 %v7689, %v7650
      %v7722 = vadd.f32 %v7690, %v7653
      %v7723 = vadd.f32 %v7691, %v7655
      %v7724 = vadd.f32 %v7692, %v7658
      %v7725 = vadd.f32 %v7693, %v7660
      %7726 = vst.msk [vmem:[#allocation4] sm:$0xff] %vm334, %v7694
      %7727 = vst.msk [vmem:[#allocation4 + $0x8] sm:$0xff] %vm334, %v7695
      %7728 = vst.msk [vmem:[#allocation4 + $0x10] sm:$0xff] %vm334, %v7696
      %7729 = vst.msk [vmem:[#allocation4 + $0x18] sm:$0xff] %vm334, %v7697
      %7730 = vst.msk [vmem:[#allocation4 + $0x20] sm:$0xff] %vm334, %v7698
      %7731 = vst.msk [vmem:[#allocation4 + $0x28] sm:$0xff] %vm334, %v7699
      %7732 = vst.msk [vmem:[#allocation4 + $0x30] sm:$0xff] %vm334, %v7700
      %7733 = vst.msk [vmem:[#allocation4 + $0x38] sm:$0xff] %vm334, %v7701
      %7734 = vst.msk [vmem:[#allocation4 + $0x40] sm:$0xff] %vm334, %v7702
      %7735 = vst.msk [vmem:[#allocation4 + $0x48] sm:$0xff] %vm334, %v7703
      %7736 = vst.msk [vmem:[#allocation4 + $0x50] sm:$0xff] %vm334, %v7704
      %7737 = vst.msk [vmem:[#allocation4 + $0x58] sm:$0xff] %vm334, %v7705
      %7738 = vst.msk [vmem:[#allocation4 + $0x60] sm:$0xff] %vm334, %v7706
      %7739 = vst.msk [vmem:[#allocation4 + $0x68] sm:$0xff] %vm334, %v7707
      %7740 = vst.msk [vmem:[#allocation4 + $0x70] sm:$0xff] %vm334, %v7708
      %7741 = vst.msk [vmem:[#allocation4 + $0x78] sm:$0xff] %vm334, %v7709
      %7742 = vst.msk [vmem:[#allocation4 + $0x80] sm:$0xff] %vm334, %v7710
      %7743 = vst.msk [vmem:[#allocation4 + $0x88] sm:$0xff] %vm334, %v7711
      %7744 = vst.msk [vmem:[#allocation4 + $0x90] sm:$0xff] %vm334, %v7712
      %7745 = vst.msk [vmem:[#allocation4 + $0x98] sm:$0xff] %vm334, %v7713
      %7746 = vst.msk [vmem:[#allocation4 + $0xa0] sm:$0xff] %vm334, %v7714
      %7747 = vst.msk [vmem:[#allocation4 + $0xa8] sm:$0xff] %vm334, %v7715
      %7748 = vst.msk [vmem:[#allocation4 + $0xb0] sm:$0xff] %vm334, %v7716
      %7749 = vst.msk [vmem:[#allocation4 + $0xb8] sm:$0xff] %vm334, %v7717
      %7750 = vst.msk [vmem:[#allocation4 + $0xc0] sm:$0xff] %vm334, %v7718
      %7751 = vst.msk [vmem:[#allocation4 + $0xc8] sm:$0xff] %vm334, %v7719
      %7752 = vst.msk [vmem:[#allocation4 + $0xd0] sm:$0xff] %vm334, %v7720
      %7753 = vst.msk [vmem:[#allocation4 + $0xd8] sm:$0xff] %vm334, %v7721
      %7754 = vst.msk [vmem:[#allocation4 + $0xe0] sm:$0xff] %vm334, %v7722
      %7755 = vst.msk [vmem:[#allocation4 + $0xe8] sm:$0xff] %vm334, %v7723
      %7756 = vst.msk [vmem:[#allocation4 + $0xf0] sm:$0xff] %vm334, %v7724
      %7757 = vst.msk [vmem:[#allocation4 + $0xf8] sm:$0xff] %vm334, %v7725
      %s7758 = scalar_lea.vmem [#allocation2], 96
      %v7759 = vld [vmem:[%s7758] sm:$0xff]
      %v7760 = vld [vmem:[%s7758 + $0x8] sm:$0xff]
      %v7761 = vld [vmem:[%s7758 + $0x18] sm:$0xff]
      %v7762 = vld [vmem:[%s7758 + $0x20] sm:$0xff]
      %v7763 = vld [vmem:[%s7758 + $0x30] sm:$0xff]
      %v7764 = vld [vmem:[%s7758 + $0x38] sm:$0xff]
      %v7765 = vld [vmem:[%s7758 + $0x48] sm:$0xff]
      %v7766 = vld [vmem:[%s7758 + $0x50] sm:$0xff]
      %v7767 = vld [vmem:[%s7758 + $0x60] sm:$0xff]
      %v7768 = vld [vmem:[%s7758 + $0x68] sm:$0xff]
      %v7769 = vld [vmem:[%s7758 + $0x78] sm:$0xff]
      %v7770 = vld [vmem:[%s7758 + $0x80] sm:$0xff]
      %v7771 = vld [vmem:[%s7758 + $0x90] sm:$0xff]
      %v7772 = vld [vmem:[%s7758 + $0x98] sm:$0xff]
      %v7773 = vld [vmem:[%s7758 + $0xa8] sm:$0xff]
      %v7774 = vld [vmem:[%s7758 + $0xb0] sm:$0xff]
      %v7775 = vld [vmem:[%s7758 + $0xc0] sm:$0xff]
      %v7776 = vld [vmem:[%s7758 + $0xc8] sm:$0xff]
      %v7777 = vld [vmem:[%s7758 + $0xd8] sm:$0xff]
      %v7778 = vld [vmem:[%s7758 + $0xe0] sm:$0xff]
      %v7779 = vld [vmem:[%s7758 + $0xf0] sm:$0xff]
      %v7780 = vld [vmem:[%s7758 + $0xf8] sm:$0xff]
      %v7781 = vld [vmem:[%s7758 + $0x108] sm:$0xff]
      %v7782 = vld [vmem:[%s7758 + $0x110] sm:$0xff]
      %v7783 = vld [vmem:[%s7758 + $0x120] sm:$0xff]
      %v7784 = vld [vmem:[%s7758 + $0x128] sm:$0xff]
      %v7785 = vld [vmem:[%s7758 + $0x138] sm:$0xff]
      %v7786 = vld [vmem:[%s7758 + $0x140] sm:$0xff]
      %v7787 = vld [vmem:[%s7758 + $0x150] sm:$0xff]
      %v7788 = vld [vmem:[%s7758 + $0x158] sm:$0xff]
      %v7789 = vld [vmem:[%s7758 + $0x168] sm:$0xff]
      %v7790 = vld [vmem:[%s7758 + $0x170] sm:$0xff]
      %v7791 = vpack.c.bf16 %v7760, %v7759
      %v7792 = vpack.c.bf16 %v7762, %v7761
      %v7793 = vpack.c.bf16 %v7764, %v7763
      %v7794 = vpack.c.bf16 %v7766, %v7765
      %v7795 = vpack.c.bf16 %v7768, %v7767
      %v7796 = vpack.c.bf16 %v7770, %v7769
      %v7797 = vpack.c.bf16 %v7772, %v7771
      %v7798 = vpack.c.bf16 %v7774, %v7773
      %v7799 = vpack.c.bf16 %v7776, %v7775
      %v7800 = vpack.c.bf16 %v7778, %v7777
      %v7801 = vpack.c.bf16 %v7780, %v7779
      %v7802 = vpack.c.bf16 %v7782, %v7781
      %v7803 = vpack.c.bf16 %v7784, %v7783
      %v7804 = vpack.c.bf16 %v7786, %v7785
      %v7805 = vpack.c.bf16 %v7788, %v7787
      %v7806 = vpack.c.bf16 %v7790, %v7789
      %s7807 = scalar_lea.vmem %s7, 12
      %v7808 = vld [vmem:[%s7807] sm:$0x3]
      %v7810 = vsel %vm334, %v7791, 0
      %v7813 = vsel %vm334, %v7792, 0
      %v7816 = vsel %vm334, %v7793, 0
      %v7819 = vsel %vm334, %v7794, 0
      %v7822 = vsel %vm334, %v7795, 0
      %v7825 = vsel %vm334, %v7796, 0
      %v7828 = vsel %vm334, %v7797, 0
      %v7831 = vsel %vm334, %v7798, 0
      %v7834 = vsel %vm334, %v7799, 0
      %v7837 = vsel %vm334, %v7800, 0
      %v7840 = vsel %vm334, %v7801, 0
      %v7843 = vsel %vm334, %v7802, 0
      %v7846 = vsel %vm334, %v7803, 0
      %v7849 = vsel %vm334, %v7804, 0
      %v7852 = vsel %vm334, %v7805, 0
      %v7855 = vsel %vm334, %v7806, 0
      %v7858 = vsel %vm597, %v7808, 0
      %7860 = vmatpush.bf16.msra.mxu0 0
      %7861 = vmatpush.bf16.msra.mxu0 0
      %7862 = vmatpush.bf16.msra.mxu0 0
      %7863 = vmatpush.bf16.msra.mxu0 0
      %7864 = vmatpush.bf16.msra.mxu0 0
      %7865 = vmatpush.bf16.msra.mxu0 0
      %7866 = vmatpush.bf16.msra.mxu0 0
      %7867 = vmatpush.bf16.msra.mxu0 %v7858
      %7868 = vmatmul.bf16.gmra.mxu0 %v7810
      %v7869 = vpop.f32.mrf.mxu0
      %v7870 = vadd.f32 0.0, %v7869
      %v7871 = vpop.f32.mrf.mxu0
      %v7872 = vadd.f32 0.0, %v7871
      %7873 = vmatmul.bf16.gmra.mxu0 %v7813
      %v7874 = vpop.f32.mrf.mxu0
      %v7875 = vadd.f32 0.0, %v7874
      %v7876 = vpop.f32.mrf.mxu0
      %v7877 = vadd.f32 0.0, %v7876
      %7878 = vmatmul.bf16.gmra.mxu0 %v7816
      %v7879 = vpop.f32.mrf.mxu0
      %v7880 = vadd.f32 0.0, %v7879
      %v7881 = vpop.f32.mrf.mxu0
      %v7882 = vadd.f32 0.0, %v7881
      %7883 = vmatmul.bf16.gmra.mxu0 %v7819
      %v7884 = vpop.f32.mrf.mxu0
      %v7885 = vadd.f32 0.0, %v7884
      %v7886 = vpop.f32.mrf.mxu0
      %v7887 = vadd.f32 0.0, %v7886
      %7888 = vmatmul.bf16.gmra.mxu0 %v7822
      %v7889 = vpop.f32.mrf.mxu0
      %v7890 = vadd.f32 0.0, %v7889
      %v7891 = vpop.f32.mrf.mxu0
      %v7892 = vadd.f32 0.0, %v7891
      %7893 = vmatmul.bf16.gmra.mxu0 %v7825
      %v7894 = vpop.f32.mrf.mxu0
      %v7895 = vadd.f32 0.0, %v7894
      %v7896 = vpop.f32.mrf.mxu0
      %v7897 = vadd.f32 0.0, %v7896
      %7898 = vmatmul.bf16.gmra.mxu0 %v7828
      %v7899 = vpop.f32.mrf.mxu0
      %v7900 = vadd.f32 0.0, %v7899
      %v7901 = vpop.f32.mrf.mxu0
      %v7902 = vadd.f32 0.0, %v7901
      %7903 = vmatmul.bf16.gmra.mxu0 %v7831
      %v7904 = vpop.f32.mrf.mxu0
      %v7905 = vadd.f32 0.0, %v7904
      %v7906 = vpop.f32.mrf.mxu0
      %v7907 = vadd.f32 0.0, %v7906
      %7908 = vmatmul.bf16.gmra.mxu0 %v7834
      %v7909 = vpop.f32.mrf.mxu0
      %v7910 = vadd.f32 0.0, %v7909
      %v7911 = vpop.f32.mrf.mxu0
      %v7912 = vadd.f32 0.0, %v7911
      %7913 = vmatmul.bf16.gmra.mxu0 %v7837
      %v7914 = vpop.f32.mrf.mxu0
      %v7915 = vadd.f32 0.0, %v7914
      %v7916 = vpop.f32.mrf.mxu0
      %v7917 = vadd.f32 0.0, %v7916
      %7918 = vmatmul.bf16.gmra.mxu0 %v7840
      %v7919 = vpop.f32.mrf.mxu0
      %v7920 = vadd.f32 0.0, %v7919
      %v7921 = vpop.f32.mrf.mxu0
      %v7922 = vadd.f32 0.0, %v7921
      %7923 = vmatmul.bf16.gmra.mxu0 %v7843
      %v7924 = vpop.f32.mrf.mxu0
      %v7925 = vadd.f32 0.0, %v7924
      %v7926 = vpop.f32.mrf.mxu0
      %v7927 = vadd.f32 0.0, %v7926
      %7928 = vmatmul.bf16.gmra.mxu0 %v7846
      %v7929 = vpop.f32.mrf.mxu0
      %v7930 = vadd.f32 0.0, %v7929
      %v7931 = vpop.f32.mrf.mxu0
      %v7932 = vadd.f32 0.0, %v7931
      %7933 = vmatmul.bf16.gmra.mxu0 %v7849
      %v7934 = vpop.f32.mrf.mxu0
      %v7935 = vadd.f32 0.0, %v7934
      %v7936 = vpop.f32.mrf.mxu0
      %v7937 = vadd.f32 0.0, %v7936
      %7938 = vmatmul.bf16.gmra.mxu0 %v7852
      %v7939 = vpop.f32.mrf.mxu0
      %v7940 = vadd.f32 0.0, %v7939
      %v7941 = vpop.f32.mrf.mxu0
      %v7942 = vadd.f32 0.0, %v7941
      %7943 = vmatmul.bf16.gmra.mxu0 %v7855
      %v7944 = vpop.f32.mrf.mxu0
      %v7945 = vadd.f32 0.0, %v7944
      %v7946 = vpop.f32.mrf.mxu0
      %v7947 = vadd.f32 0.0, %v7946
      %7948 = vdwg.mxu0
      %v7949 = vld [vmem:[#allocation4] sm:$0xff]
      %v7950 = vld [vmem:[#allocation4 + $0x8] sm:$0xff]
      %v7951 = vld [vmem:[#allocation4 + $0x10] sm:$0xff]
      %v7952 = vld [vmem:[#allocation4 + $0x18] sm:$0xff]
      %v7953 = vld [vmem:[#allocation4 + $0x20] sm:$0xff]
      %v7954 = vld [vmem:[#allocation4 + $0x28] sm:$0xff]
      %v7955 = vld [vmem:[#allocation4 + $0x30] sm:$0xff]
      %v7956 = vld [vmem:[#allocation4 + $0x38] sm:$0xff]
      %v7957 = vld [vmem:[#allocation4 + $0x40] sm:$0xff]
      %v7958 = vld [vmem:[#allocation4 + $0x48] sm:$0xff]
      %v7959 = vld [vmem:[#allocation4 + $0x50] sm:$0xff]
      %v7960 = vld [vmem:[#allocation4 + $0x58] sm:$0xff]
      %v7961 = vld [vmem:[#allocation4 + $0x60] sm:$0xff]
      %v7962 = vld [vmem:[#allocation4 + $0x68] sm:$0xff]
      %v7963 = vld [vmem:[#allocation4 + $0x70] sm:$0xff]
      %v7964 = vld [vmem:[#allocation4 + $0x78] sm:$0xff]
      %v7965 = vld [vmem:[#allocation4 + $0x80] sm:$0xff]
      %v7966 = vld [vmem:[#allocation4 + $0x88] sm:$0xff]
      %v7967 = vld [vmem:[#allocation4 + $0x90] sm:$0xff]
      %v7968 = vld [vmem:[#allocation4 + $0x98] sm:$0xff]
      %v7969 = vld [vmem:[#allocation4 + $0xa0] sm:$0xff]
      %v7970 = vld [vmem:[#allocation4 + $0xa8] sm:$0xff]
      %v7971 = vld [vmem:[#allocation4 + $0xb0] sm:$0xff]
      %v7972 = vld [vmem:[#allocation4 + $0xb8] sm:$0xff]
      %v7973 = vld [vmem:[#allocation4 + $0xc0] sm:$0xff]
      %v7974 = vld [vmem:[#allocation4 + $0xc8] sm:$0xff]
      %v7975 = vld [vmem:[#allocation4 + $0xd0] sm:$0xff]
      %v7976 = vld [vmem:[#allocation4 + $0xd8] sm:$0xff]
      %v7977 = vld [vmem:[#allocation4 + $0xe0] sm:$0xff]
      %v7978 = vld [vmem:[#allocation4 + $0xe8] sm:$0xff]
      %v7979 = vld [vmem:[#allocation4 + $0xf0] sm:$0xff]
      %v7980 = vld [vmem:[#allocation4 + $0xf8] sm:$0xff]
      %v7981 = vadd.f32 %v7949, %v7870
      %v7982 = vadd.f32 %v7950, %v7872
      %v7983 = vadd.f32 %v7951, %v7875
      %v7984 = vadd.f32 %v7952, %v7877
      %v7985 = vadd.f32 %v7953, %v7880
      %v7986 = vadd.f32 %v7954, %v7882
      %v7987 = vadd.f32 %v7955, %v7885
      %v7988 = vadd.f32 %v7956, %v7887
      %v7989 = vadd.f32 %v7957, %v7890
      %v7990 = vadd.f32 %v7958, %v7892
      %v7991 = vadd.f32 %v7959, %v7895
      %v7992 = vadd.f32 %v7960, %v7897
      %v7993 = vadd.f32 %v7961, %v7900
      %v7994 = vadd.f32 %v7962, %v7902
      %v7995 = vadd.f32 %v7963, %v7905
      %v7996 = vadd.f32 %v7964, %v7907
      %v7997 = vadd.f32 %v7965, %v7910
      %v7998 = vadd.f32 %v7966, %v7912
      %v7999 = vadd.f32 %v7967, %v7915
      %v8000 = vadd.f32 %v7968, %v7917
      %v8001 = vadd.f32 %v7969, %v7920
      %v8002 = vadd.f32 %v7970, %v7922
      %v8003 = vadd.f32 %v7971, %v7925
      %v8004 = vadd.f32 %v7972, %v7927
      %v8005 = vadd.f32 %v7973, %v7930
      %v8006 = vadd.f32 %v7974, %v7932
      %v8007 = vadd.f32 %v7975, %v7935
      %v8008 = vadd.f32 %v7976, %v7937
      %v8009 = vadd.f32 %v7977, %v7940
      %v8010 = vadd.f32 %v7978, %v7942
      %v8011 = vadd.f32 %v7979, %v7945
      %v8012 = vadd.f32 %v7980, %v7947
      %8013 = vst.msk [vmem:[#allocation4] sm:$0xff] %vm334, %v7981
      %8014 = vst.msk [vmem:[#allocation4 + $0x8] sm:$0xff] %vm334, %v7982
      %8015 = vst.msk [vmem:[#allocation4 + $0x10] sm:$0xff] %vm334, %v7983
      %8016 = vst.msk [vmem:[#allocation4 + $0x18] sm:$0xff] %vm334, %v7984
      %8017 = vst.msk [vmem:[#allocation4 + $0x20] sm:$0xff] %vm334, %v7985
      %8018 = vst.msk [vmem:[#allocation4 + $0x28] sm:$0xff] %vm334, %v7986
      %8019 = vst.msk [vmem:[#allocation4 + $0x30] sm:$0xff] %vm334, %v7987
      %8020 = vst.msk [vmem:[#allocation4 + $0x38] sm:$0xff] %vm334, %v7988
      %8021 = vst.msk [vmem:[#allocation4 + $0x40] sm:$0xff] %vm334, %v7989
      %8022 = vst.msk [vmem:[#allocation4 + $0x48] sm:$0xff] %vm334, %v7990
      %8023 = vst.msk [vmem:[#allocation4 + $0x50] sm:$0xff] %vm334, %v7991
      %8024 = vst.msk [vmem:[#allocation4 + $0x58] sm:$0xff] %vm334, %v7992
      %8025 = vst.msk [vmem:[#allocation4 + $0x60] sm:$0xff] %vm334, %v7993
      %8026 = vst.msk [vmem:[#allocation4 + $0x68] sm:$0xff] %vm334, %v7994
      %8027 = vst.msk [vmem:[#allocation4 + $0x70] sm:$0xff] %vm334, %v7995
      %8028 = vst.msk [vmem:[#allocation4 + $0x78] sm:$0xff] %vm334, %v7996
      %8029 = vst.msk [vmem:[#allocation4 + $0x80] sm:$0xff] %vm334, %v7997
      %8030 = vst.msk [vmem:[#allocation4 + $0x88] sm:$0xff] %vm334, %v7998
      %8031 = vst.msk [vmem:[#allocation4 + $0x90] sm:$0xff] %vm334, %v7999
      %8032 = vst.msk [vmem:[#allocation4 + $0x98] sm:$0xff] %vm334, %v8000
      %8033 = vst.msk [vmem:[#allocation4 + $0xa0] sm:$0xff] %vm334, %v8001
      %8034 = vst.msk [vmem:[#allocation4 + $0xa8] sm:$0xff] %vm334, %v8002
      %8035 = vst.msk [vmem:[#allocation4 + $0xb0] sm:$0xff] %vm334, %v8003
      %8036 = vst.msk [vmem:[#allocation4 + $0xb8] sm:$0xff] %vm334, %v8004
      %8037 = vst.msk [vmem:[#allocation4 + $0xc0] sm:$0xff] %vm334, %v8005
      %8038 = vst.msk [vmem:[#allocation4 + $0xc8] sm:$0xff] %vm334, %v8006
      %8039 = vst.msk [vmem:[#allocation4 + $0xd0] sm:$0xff] %vm334, %v8007
      %8040 = vst.msk [vmem:[#allocation4 + $0xd8] sm:$0xff] %vm334, %v8008
      %8041 = vst.msk [vmem:[#allocation4 + $0xe0] sm:$0xff] %vm334, %v8009
      %8042 = vst.msk [vmem:[#allocation4 + $0xe8] sm:$0xff] %vm334, %v8010
      %8043 = vst.msk [vmem:[#allocation4 + $0xf0] sm:$0xff] %vm334, %v8011
      %8044 = vst.msk [vmem:[#allocation4 + $0xf8] sm:$0xff] %vm334, %v8012
      %v8045 = vld [vmem:[%s7758 + $0x2] sm:$0xff]
      %v8046 = vld [vmem:[%s7758 + $0xa] sm:$0xff]
      %v8047 = vld [vmem:[%s7758 + $0x1a] sm:$0xff]
      %v8048 = vld [vmem:[%s7758 + $0x22] sm:$0xff]
      %v8049 = vld [vmem:[%s7758 + $0x32] sm:$0xff]
      %v8050 = vld [vmem:[%s7758 + $0x3a] sm:$0xff]
      %v8051 = vld [vmem:[%s7758 + $0x4a] sm:$0xff]
      %v8052 = vld [vmem:[%s7758 + $0x52] sm:$0xff]
      %v8053 = vld [vmem:[%s7758 + $0x62] sm:$0xff]
      %v8054 = vld [vmem:[%s7758 + $0x6a] sm:$0xff]
      %v8055 = vld [vmem:[%s7758 + $0x7a] sm:$0xff]
      %v8056 = vld [vmem:[%s7758 + $0x82] sm:$0xff]
      %v8057 = vld [vmem:[%s7758 + $0x92] sm:$0xff]
      %v8058 = vld [vmem:[%s7758 + $0x9a] sm:$0xff]
      %v8059 = vld [vmem:[%s7758 + $0xaa] sm:$0xff]
      %v8060 = vld [vmem:[%s7758 + $0xb2] sm:$0xff]
      %v8061 = vld [vmem:[%s7758 + $0xc2] sm:$0xff]
      %v8062 = vld [vmem:[%s7758 + $0xca] sm:$0xff]
      %v8063 = vld [vmem:[%s7758 + $0xda] sm:$0xff]
      %v8064 = vld [vmem:[%s7758 + $0xe2] sm:$0xff]
      %v8065 = vld [vmem:[%s7758 + $0xf2] sm:$0xff]
      %v8066 = vld [vmem:[%s7758 + $0xfa] sm:$0xff]
      %v8067 = vld [vmem:[%s7758 + $0x10a] sm:$0xff]
      %v8068 = vld [vmem:[%s7758 + $0x112] sm:$0xff]
      %v8069 = vld [vmem:[%s7758 + $0x122] sm:$0xff]
      %v8070 = vld [vmem:[%s7758 + $0x12a] sm:$0xff]
      %v8071 = vld [vmem:[%s7758 + $0x13a] sm:$0xff]
      %v8072 = vld [vmem:[%s7758 + $0x142] sm:$0xff]
      %v8073 = vld [vmem:[%s7758 + $0x152] sm:$0xff]
      %v8074 = vld [vmem:[%s7758 + $0x15a] sm:$0xff]
      %v8075 = vld [vmem:[%s7758 + $0x16a] sm:$0xff]
      %v8076 = vld [vmem:[%s7758 + $0x172] sm:$0xff]
      %v8077 = vpack.c.bf16 %v8046, %v8045
      %v8078 = vpack.c.bf16 %v8048, %v8047
      %v8079 = vpack.c.bf16 %v8050, %v8049
      %v8080 = vpack.c.bf16 %v8052, %v8051
      %v8081 = vpack.c.bf16 %v8054, %v8053
      %v8082 = vpack.c.bf16 %v8056, %v8055
      %v8083 = vpack.c.bf16 %v8058, %v8057
      %v8084 = vpack.c.bf16 %v8060, %v8059
      %v8085 = vpack.c.bf16 %v8062, %v8061
      %v8086 = vpack.c.bf16 %v8064, %v8063
      %v8087 = vpack.c.bf16 %v8066, %v8065
      %v8088 = vpack.c.bf16 %v8068, %v8067
      %v8089 = vpack.c.bf16 %v8070, %v8069
      %v8090 = vpack.c.bf16 %v8072, %v8071
      %v8091 = vpack.c.bf16 %v8074, %v8073
      %v8092 = vpack.c.bf16 %v8076, %v8075
      %s8093 = scalar_lea.vmem %s7, 14
      %v8094 = vld [vmem:[%s8093] sm:$0x3]
      %v8096 = vsel %vm334, %v8077, 0
      %v8099 = vsel %vm334, %v8078, 0
      %v8102 = vsel %vm334, %v8079, 0
      %v8105 = vsel %vm334, %v8080, 0
      %v8108 = vsel %vm334, %v8081, 0
      %v8111 = vsel %vm334, %v8082, 0
      %v8114 = vsel %vm334, %v8083, 0
      %v8117 = vsel %vm334, %v8084, 0
      %v8120 = vsel %vm334, %v8085, 0
      %v8123 = vsel %vm334, %v8086, 0
      %v8126 = vsel %vm334, %v8087, 0
      %v8129 = vsel %vm334, %v8088, 0
      %v8132 = vsel %vm334, %v8089, 0
      %v8135 = vsel %vm334, %v8090, 0
      %v8138 = vsel %vm334, %v8091, 0
      %v8141 = vsel %vm334, %v8092, 0
      %v8144 = vsel %vm597, %v8094, 0
      %8146 = vmatpush.bf16.msra.mxu0 0
      %8147 = vmatpush.bf16.msra.mxu0 0
      %8148 = vmatpush.bf16.msra.mxu0 0
      %8149 = vmatpush.bf16.msra.mxu0 0
      %8150 = vmatpush.bf16.msra.mxu0 0
      %8151 = vmatpush.bf16.msra.mxu0 0
      %8152 = vmatpush.bf16.msra.mxu0 0
      %8153 = vmatpush.bf16.msra.mxu0 %v8144
      %8154 = vmatmul.bf16.gmra.mxu0 %v8096
      %v8155 = vpop.f32.mrf.mxu0
      %v8156 = vadd.f32 0.0, %v8155
      %v8157 = vpop.f32.mrf.mxu0
      %v8158 = vadd.f32 0.0, %v8157
      %8159 = vmatmul.bf16.gmra.mxu0 %v8099
      %v8160 = vpop.f32.mrf.mxu0
      %v8161 = vadd.f32 0.0, %v8160
      %v8162 = vpop.f32.mrf.mxu0
      %v8163 = vadd.f32 0.0, %v8162
      %8164 = vmatmul.bf16.gmra.mxu0 %v8102
      %v8165 = vpop.f32.mrf.mxu0
      %v8166 = vadd.f32 0.0, %v8165
      %v8167 = vpop.f32.mrf.mxu0
      %v8168 = vadd.f32 0.0, %v8167
      %8169 = vmatmul.bf16.gmra.mxu0 %v8105
      %v8170 = vpop.f32.mrf.mxu0
      %v8171 = vadd.f32 0.0, %v8170
      %v8172 = vpop.f32.mrf.mxu0
      %v8173 = vadd.f32 0.0, %v8172
      %8174 = vmatmul.bf16.gmra.mxu0 %v8108
      %v8175 = vpop.f32.mrf.mxu0
      %v8176 = vadd.f32 0.0, %v8175
      %v8177 = vpop.f32.mrf.mxu0
      %v8178 = vadd.f32 0.0, %v8177
      %8179 = vmatmul.bf16.gmra.mxu0 %v8111
      %v8180 = vpop.f32.mrf.mxu0
      %v8181 = vadd.f32 0.0, %v8180
      %v8182 = vpop.f32.mrf.mxu0
      %v8183 = vadd.f32 0.0, %v8182
      %8184 = vmatmul.bf16.gmra.mxu0 %v8114
      %v8185 = vpop.f32.mrf.mxu0
      %v8186 = vadd.f32 0.0, %v8185
      %v8187 = vpop.f32.mrf.mxu0
      %v8188 = vadd.f32 0.0, %v8187
      %8189 = vmatmul.bf16.gmra.mxu0 %v8117
      %v8190 = vpop.f32.mrf.mxu0
      %v8191 = vadd.f32 0.0, %v8190
      %v8192 = vpop.f32.mrf.mxu0
      %v8193 = vadd.f32 0.0, %v8192
      %8194 = vmatmul.bf16.gmra.mxu0 %v8120
      %v8195 = vpop.f32.mrf.mxu0
      %v8196 = vadd.f32 0.0, %v8195
      %v8197 = vpop.f32.mrf.mxu0
      %v8198 = vadd.f32 0.0, %v8197
      %8199 = vmatmul.bf16.gmra.mxu0 %v8123
      %v8200 = vpop.f32.mrf.mxu0
      %v8201 = vadd.f32 0.0, %v8200
      %v8202 = vpop.f32.mrf.mxu0
      %v8203 = vadd.f32 0.0, %v8202
      %8204 = vmatmul.bf16.gmra.mxu0 %v8126
      %v8205 = vpop.f32.mrf.mxu0
      %v8206 = vadd.f32 0.0, %v8205
      %v8207 = vpop.f32.mrf.mxu0
      %v8208 = vadd.f32 0.0, %v8207
      %8209 = vmatmul.bf16.gmra.mxu0 %v8129
      %v8210 = vpop.f32.mrf.mxu0
      %v8211 = vadd.f32 0.0, %v8210
      %v8212 = vpop.f32.mrf.mxu0
      %v8213 = vadd.f32 0.0, %v8212
      %8214 = vmatmul.bf16.gmra.mxu0 %v8132
      %v8215 = vpop.f32.mrf.mxu0
      %v8216 = vadd.f32 0.0, %v8215
      %v8217 = vpop.f32.mrf.mxu0
      %v8218 = vadd.f32 0.0, %v8217
      %8219 = vmatmul.bf16.gmra.mxu0 %v8135
      %v8220 = vpop.f32.mrf.mxu0
      %v8221 = vadd.f32 0.0, %v8220
      %v8222 = vpop.f32.mrf.mxu0
      %v8223 = vadd.f32 0.0, %v8222
      %8224 = vmatmul.bf16.gmra.mxu0 %v8138
      %v8225 = vpop.f32.mrf.mxu0
      %v8226 = vadd.f32 0.0, %v8225
      %v8227 = vpop.f32.mrf.mxu0
      %v8228 = vadd.f32 0.0, %v8227
      %8229 = vmatmul.bf16.gmra.mxu0 %v8141
      %v8230 = vpop.f32.mrf.mxu0
      %v8231 = vadd.f32 0.0, %v8230
      %v8232 = vpop.f32.mrf.mxu0
      %v8233 = vadd.f32 0.0, %v8232
      %8234 = vdwg.mxu0
      %v8235 = vld [vmem:[#allocation4] sm:$0xff]
      %v8236 = vld [vmem:[#allocation4 + $0x8] sm:$0xff]
      %v8237 = vld [vmem:[#allocation4 + $0x10] sm:$0xff]
      %v8238 = vld [vmem:[#allocation4 + $0x18] sm:$0xff]
      %v8239 = vld [vmem:[#allocation4 + $0x20] sm:$0xff]
      %v8240 = vld [vmem:[#allocation4 + $0x28] sm:$0xff]
      %v8241 = vld [vmem:[#allocation4 + $0x30] sm:$0xff]
      %v8242 = vld [vmem:[#allocation4 + $0x38] sm:$0xff]
      %v8243 = vld [vmem:[#allocation4 + $0x40] sm:$0xff]
      %v8244 = vld [vmem:[#allocation4 + $0x48] sm:$0xff]
      %v8245 = vld [vmem:[#allocation4 + $0x50] sm:$0xff]
      %v8246 = vld [vmem:[#allocation4 + $0x58] sm:$0xff]
      %v8247 = vld [vmem:[#allocation4 + $0x60] sm:$0xff]
      %v8248 = vld [vmem:[#allocation4 + $0x68] sm:$0xff]
      %v8249 = vld [vmem:[#allocation4 + $0x70] sm:$0xff]
      %v8250 = vld [vmem:[#allocation4 + $0x78] sm:$0xff]
      %v8251 = vld [vmem:[#allocation4 + $0x80] sm:$0xff]
      %v8252 = vld [vmem:[#allocation4 + $0x88] sm:$0xff]
      %v8253 = vld [vmem:[#allocation4 + $0x90] sm:$0xff]
      %v8254 = vld [vmem:[#allocation4 + $0x98] sm:$0xff]
      %v8255 = vld [vmem:[#allocation4 + $0xa0] sm:$0xff]
      %v8256 = vld [vmem:[#allocation4 + $0xa8] sm:$0xff]
      %v8257 = vld [vmem:[#allocation4 + $0xb0] sm:$0xff]
      %v8258 = vld [vmem:[#allocation4 + $0xb8] sm:$0xff]
      %v8259 = vld [vmem:[#allocation4 + $0xc0] sm:$0xff]
      %v8260 = vld [vmem:[#allocation4 + $0xc8] sm:$0xff]
      %v8261 = vld [vmem:[#allocation4 + $0xd0] sm:$0xff]
      %v8262 = vld [vmem:[#allocation4 + $0xd8] sm:$0xff]
      %v8263 = vld [vmem:[#allocation4 + $0xe0] sm:$0xff]
      %v8264 = vld [vmem:[#allocation4 + $0xe8] sm:$0xff]
      %v8265 = vld [vmem:[#allocation4 + $0xf0] sm:$0xff]
      %v8266 = vld [vmem:[#allocation4 + $0xf8] sm:$0xff]
      %v8267 = vadd.f32 %v8235, %v8156
      %v8268 = vadd.f32 %v8236, %v8158
      %v8269 = vadd.f32 %v8237, %v8161
      %v8270 = vadd.f32 %v8238, %v8163
      %v8271 = vadd.f32 %v8239, %v8166
      %v8272 = vadd.f32 %v8240, %v8168
      %v8273 = vadd.f32 %v8241, %v8171
      %v8274 = vadd.f32 %v8242, %v8173
      %v8275 = vadd.f32 %v8243, %v8176
      %v8276 = vadd.f32 %v8244, %v8178
      %v8277 = vadd.f32 %v8245, %v8181
      %v8278 = vadd.f32 %v8246, %v8183
      %v8279 = vadd.f32 %v8247, %v8186
      %v8280 = vadd.f32 %v8248, %v8188
      %v8281 = vadd.f32 %v8249, %v8191
      %v8282 = vadd.f32 %v8250, %v8193
      %v8283 = vadd.f32 %v8251, %v8196
      %v8284 = vadd.f32 %v8252, %v8198
      %v8285 = vadd.f32 %v8253, %v8201
      %v8286 = vadd.f32 %v8254, %v8203
      %v8287 = vadd.f32 %v8255, %v8206
      %v8288 = vadd.f32 %v8256, %v8208
      %v8289 = vadd.f32 %v8257, %v8211
      %v8290 = vadd.f32 %v8258, %v8213
      %v8291 = vadd.f32 %v8259, %v8216
      %v8292 = vadd.f32 %v8260, %v8218
      %v8293 = vadd.f32 %v8261, %v8221
      %v8294 = vadd.f32 %v8262, %v8223
      %v8295 = vadd.f32 %v8263, %v8226
      %v8296 = vadd.f32 %v8264, %v8228
      %v8297 = vadd.f32 %v8265, %v8231
      %v8298 = vadd.f32 %v8266, %v8233
      %8299 = vst.msk [vmem:[#allocation4] sm:$0xff] %vm334, %v8267
      %8300 = vst.msk [vmem:[#allocation4 + $0x8] sm:$0xff] %vm334, %v8268
      %8301 = vst.msk [vmem:[#allocation4 + $0x10] sm:$0xff] %vm334, %v8269
      %8302 = vst.msk [vmem:[#allocation4 + $0x18] sm:$0xff] %vm334, %v8270
      %8303 = vst.msk [vmem:[#allocation4 + $0x20] sm:$0xff] %vm334, %v8271
      %8304 = vst.msk [vmem:[#allocation4 + $0x28] sm:$0xff] %vm334, %v8272
      %8305 = vst.msk [vmem:[#allocation4 + $0x30] sm:$0xff] %vm334, %v8273
      %8306 = vst.msk [vmem:[#allocation4 + $0x38] sm:$0xff] %vm334, %v8274
      %8307 = vst.msk [vmem:[#allocation4 + $0x40] sm:$0xff] %vm334, %v8275
      %8308 = vst.msk [vmem:[#allocation4 + $0x48] sm:$0xff] %vm334, %v8276
      %8309 = vst.msk [vmem:[#allocation4 + $0x50] sm:$0xff] %vm334, %v8277
      %8310 = vst.msk [vmem:[#allocation4 + $0x58] sm:$0xff] %vm334, %v8278
      %8311 = vst.msk [vmem:[#allocation4 + $0x60] sm:$0xff] %vm334, %v8279
      %8312 = vst.msk [vmem:[#allocation4 + $0x68] sm:$0xff] %vm334, %v8280
      %8313 = vst.msk [vmem:[#allocation4 + $0x70] sm:$0xff] %vm334, %v8281
      %8314 = vst.msk [vmem:[#allocation4 + $0x78] sm:$0xff] %vm334, %v8282
      %8315 = vst.msk [vmem:[#allocation4 + $0x80] sm:$0xff] %vm334, %v8283
      %8316 = vst.msk [vmem:[#allocation4 + $0x88] sm:$0xff] %vm334, %v8284
      %8317 = vst.msk [vmem:[#allocation4 + $0x90] sm:$0xff] %vm334, %v8285
      %8318 = vst.msk [vmem:[#allocation4 + $0x98] sm:$0xff] %vm334, %v8286
      %8319 = vst.msk [vmem:[#allocation4 + $0xa0] sm:$0xff] %vm334, %v8287
      %8320 = vst.msk [vmem:[#allocation4 + $0xa8] sm:$0xff] %vm334, %v8288
      %8321 = vst.msk [vmem:[#allocation4 + $0xb0] sm:$0xff] %vm334, %v8289
      %8322 = vst.msk [vmem:[#allocation4 + $0xb8] sm:$0xff] %vm334, %v8290
      %8323 = vst.msk [vmem:[#allocation4 + $0xc0] sm:$0xff] %vm334, %v8291
      %8324 = vst.msk [vmem:[#allocation4 + $0xc8] sm:$0xff] %vm334, %v8292
      %8325 = vst.msk [vmem:[#allocation4 + $0xd0] sm:$0xff] %vm334, %v8293
      %8326 = vst.msk [vmem:[#allocation4 + $0xd8] sm:$0xff] %vm334, %v8294
      %8327 = vst.msk [vmem:[#allocation4 + $0xe0] sm:$0xff] %vm334, %v8295
      %8328 = vst.msk [vmem:[#allocation4 + $0xe8] sm:$0xff] %vm334, %v8296
      %8329 = vst.msk [vmem:[#allocation4 + $0xf0] sm:$0xff] %vm334, %v8297
      %8330 = vst.msk [vmem:[#allocation4 + $0xf8] sm:$0xff] %vm334, %v8298
      %v8331 = vld [vmem:[%s7758 + $0x4] sm:$0xff]
      %v8332 = vld [vmem:[%s7758 + $0xc] sm:$0xff]
      %v8333 = vld [vmem:[%s7758 + $0x1c] sm:$0xff]
      %v8334 = vld [vmem:[%s7758 + $0x24] sm:$0xff]
      %v8335 = vld [vmem:[%s7758 + $0x34] sm:$0xff]
      %v8336 = vld [vmem:[%s7758 + $0x3c] sm:$0xff]
      %v8337 = vld [vmem:[%s7758 + $0x4c] sm:$0xff]
      %v8338 = vld [vmem:[%s7758 + $0x54] sm:$0xff]
      %v8339 = vld [vmem:[%s7758 + $0x64] sm:$0xff]
      %v8340 = vld [vmem:[%s7758 + $0x6c] sm:$0xff]
      %v8341 = vld [vmem:[%s7758 + $0x7c] sm:$0xff]
      %v8342 = vld [vmem:[%s7758 + $0x84] sm:$0xff]
      %v8343 = vld [vmem:[%s7758 + $0x94] sm:$0xff]
      %v8344 = vld [vmem:[%s7758 + $0x9c] sm:$0xff]
      %v8345 = vld [vmem:[%s7758 + $0xac] sm:$0xff]
      %v8346 = vld [vmem:[%s7758 + $0xb4] sm:$0xff]
      %v8347 = vld [vmem:[%s7758 + $0xc4] sm:$0xff]
      %v8348 = vld [vmem:[%s7758 + $0xcc] sm:$0xff]
      %v8349 = vld [vmem:[%s7758 + $0xdc] sm:$0xff]
      %v8350 = vld [vmem:[%s7758 + $0xe4] sm:$0xff]
      %v8351 = vld [vmem:[%s7758 + $0xf4] sm:$0xff]
      %v8352 = vld [vmem:[%s7758 + $0xfc] sm:$0xff]
      %v8353 = vld [vmem:[%s7758 + $0x10c] sm:$0xff]
      %v8354 = vld [vmem:[%s7758 + $0x114] sm:$0xff]
      %v8355 = vld [vmem:[%s7758 + $0x124] sm:$0xff]
      %v8356 = vld [vmem:[%s7758 + $0x12c] sm:$0xff]
      %v8357 = vld [vmem:[%s7758 + $0x13c] sm:$0xff]
      %v8358 = vld [vmem:[%s7758 + $0x144] sm:$0xff]
      %v8359 = vld [vmem:[%s7758 + $0x154] sm:$0xff]
      %v8360 = vld [vmem:[%s7758 + $0x15c] sm:$0xff]
      %v8361 = vld [vmem:[%s7758 + $0x16c] sm:$0xff]
      %v8362 = vld [vmem:[%s7758 + $0x174] sm:$0xff]
      %v8363 = vpack.c.bf16 %v8332, %v8331
      %v8364 = vpack.c.bf16 %v8334, %v8333
      %v8365 = vpack.c.bf16 %v8336, %v8335
      %v8366 = vpack.c.bf16 %v8338, %v8337
      %v8367 = vpack.c.bf16 %v8340, %v8339
      %v8368 = vpack.c.bf16 %v8342, %v8341
      %v8369 = vpack.c.bf16 %v8344, %v8343
      %v8370 = vpack.c.bf16 %v8346, %v8345
      %v8371 = vpack.c.bf16 %v8348, %v8347
      %v8372 = vpack.c.bf16 %v8350, %v8349
      %v8373 = vpack.c.bf16 %v8352, %v8351
      %v8374 = vpack.c.bf16 %v8354, %v8353
      %v8375 = vpack.c.bf16 %v8356, %v8355
      %v8376 = vpack.c.bf16 %v8358, %v8357
      %v8377 = vpack.c.bf16 %v8360, %v8359
      %v8378 = vpack.c.bf16 %v8362, %v8361
      %s8379 = scalar_lea.vmem %s7, 16
      %v8380 = vld [vmem:[%s8379] sm:$0x3]
      %v8382 = vsel %vm334, %v8363, 0
      %v8385 = vsel %vm334, %v8364, 0
      %v8388 = vsel %vm334, %v8365, 0
      %v8391 = vsel %vm334, %v8366, 0
      %v8394 = vsel %vm334, %v8367, 0
      %v8397 = vsel %vm334, %v8368, 0
      %v8400 = vsel %vm334, %v8369, 0
      %v8403 = vsel %vm334, %v8370, 0
      %v8406 = vsel %vm334, %v8371, 0
      %v8409 = vsel %vm334, %v8372, 0
      %v8412 = vsel %vm334, %v8373, 0
      %v8415 = vsel %vm334, %v8374, 0
      %v8418 = vsel %vm334, %v8375, 0
      %v8421 = vsel %vm334, %v8376, 0
      %v8424 = vsel %vm334, %v8377, 0
      %v8427 = vsel %vm334, %v8378, 0
      %v8430 = vsel %vm597, %v8380, 0
      %8432 = vmatpush.bf16.msra.mxu0 0
      %8433 = vmatpush.bf16.msra.mxu0 0
      %8434 = vmatpush.bf16.msra.mxu0 0
      %8435 = vmatpush.bf16.msra.mxu0 0
      %8436 = vmatpush.bf16.msra.mxu0 0
      %8437 = vmatpush.bf16.msra.mxu0 0
      %8438 = vmatpush.bf16.msra.mxu0 0
      %8439 = vmatpush.bf16.msra.mxu0 %v8430
      %8440 = vmatmul.bf16.gmra.mxu0 %v8382
      %v8441 = vpop.f32.mrf.mxu0
      %v8442 = vadd.f32 0.0, %v8441
      %v8443 = vpop.f32.mrf.mxu0
      %v8444 = vadd.f32 0.0, %v8443
      %8445 = vmatmul.bf16.gmra.mxu0 %v8385
      %v8446 = vpop.f32.mrf.mxu0
      %v8447 = vadd.f32 0.0, %v8446
      %v8448 = vpop.f32.mrf.mxu0
      %v8449 = vadd.f32 0.0, %v8448
      %8450 = vmatmul.bf16.gmra.mxu0 %v8388
      %v8451 = vpop.f32.mrf.mxu0
      %v8452 = vadd.f32 0.0, %v8451
      %v8453 = vpop.f32.mrf.mxu0
      %v8454 = vadd.f32 0.0, %v8453
      %8455 = vmatmul.bf16.gmra.mxu0 %v8391
      %v8456 = vpop.f32.mrf.mxu0
      %v8457 = vadd.f32 0.0, %v8456
      %v8458 = vpop.f32.mrf.mxu0
      %v8459 = vadd.f32 0.0, %v8458
      %8460 = vmatmul.bf16.gmra.mxu0 %v8394
      %v8461 = vpop.f32.mrf.mxu0
      %v8462 = vadd.f32 0.0, %v8461
      %v8463 = vpop.f32.mrf.mxu0
      %v8464 = vadd.f32 0.0, %v8463
      %8465 = vmatmul.bf16.gmra.mxu0 %v8397
      %v8466 = vpop.f32.mrf.mxu0
      %v8467 = vadd.f32 0.0, %v8466
      %v8468 = vpop.f32.mrf.mxu0
      %v8469 = vadd.f32 0.0, %v8468
      %8470 = vmatmul.bf16.gmra.mxu0 %v8400
      %v8471 = vpop.f32.mrf.mxu0
      %v8472 = vadd.f32 0.0, %v8471
      %v8473 = vpop.f32.mrf.mxu0
      %v8474 = vadd.f32 0.0, %v8473
      %8475 = vmatmul.bf16.gmra.mxu0 %v8403
      %v8476 = vpop.f32.mrf.mxu0
      %v8477 = vadd.f32 0.0, %v8476
      %v8478 = vpop.f32.mrf.mxu0
      %v8479 = vadd.f32 0.0, %v8478
      %8480 = vmatmul.bf16.gmra.mxu0 %v8406
      %v8481 = vpop.f32.mrf.mxu0
      %v8482 = vadd.f32 0.0, %v8481
      %v8483 = vpop.f32.mrf.mxu0
      %v8484 = vadd.f32 0.0, %v8483
      %8485 = vmatmul.bf16.gmra.mxu0 %v8409
      %v8486 = vpop.f32.mrf.mxu0
      %v8487 = vadd.f32 0.0, %v8486
      %v8488 = vpop.f32.mrf.mxu0
      %v8489 = vadd.f32 0.0, %v8488
      %8490 = vmatmul.bf16.gmra.mxu0 %v8412
      %v8491 = vpop.f32.mrf.mxu0
      %v8492 = vadd.f32 0.0, %v8491
      %v8493 = vpop.f32.mrf.mxu0
      %v8494 = vadd.f32 0.0, %v8493
      %8495 = vmatmul.bf16.gmra.mxu0 %v8415
      %v8496 = vpop.f32.mrf.mxu0
      %v8497 = vadd.f32 0.0, %v8496
      %v8498 = vpop.f32.mrf.mxu0
      %v8499 = vadd.f32 0.0, %v8498
      %8500 = vmatmul.bf16.gmra.mxu0 %v8418
      %v8501 = vpop.f32.mrf.mxu0
      %v8502 = vadd.f32 0.0, %v8501
      %v8503 = vpop.f32.mrf.mxu0
      %v8504 = vadd.f32 0.0, %v8503
      %8505 = vmatmul.bf16.gmra.mxu0 %v8421
      %v8506 = vpop.f32.mrf.mxu0
      %v8507 = vadd.f32 0.0, %v8506
      %v8508 = vpop.f32.mrf.mxu0
      %v8509 = vadd.f32 0.0, %v8508
      %8510 = vmatmul.bf16.gmra.mxu0 %v8424
      %v8511 = vpop.f32.mrf.mxu0
      %v8512 = vadd.f32 0.0, %v8511
      %v8513 = vpop.f32.mrf.mxu0
      %v8514 = vadd.f32 0.0, %v8513
      %8515 = vmatmul.bf16.gmra.mxu0 %v8427
      %v8516 = vpop.f32.mrf.mxu0
      %v8517 = vadd.f32 0.0, %v8516
      %v8518 = vpop.f32.mrf.mxu0
      %v8519 = vadd.f32 0.0, %v8518
      %8520 = vdwg.mxu0
      %v8521 = vld [vmem:[#allocation4] sm:$0xff]
      %v8522 = vld [vmem:[#allocation4 + $0x8] sm:$0xff]
      %v8523 = vld [vmem:[#allocation4 + $0x10] sm:$0xff]
      %v8524 = vld [vmem:[#allocation4 + $0x18] sm:$0xff]
      %v8525 = vld [vmem:[#allocation4 + $0x20] sm:$0xff]
      %v8526 = vld [vmem:[#allocation4 + $0x28] sm:$0xff]
      %v8527 = vld [vmem:[#allocation4 + $0x30] sm:$0xff]
      %v8528 = vld [vmem:[#allocation4 + $0x38] sm:$0xff]
      %v8529 = vld [vmem:[#allocation4 + $0x40] sm:$0xff]
      %v8530 = vld [vmem:[#allocation4 + $0x48] sm:$0xff]
      %v8531 = vld [vmem:[#allocation4 + $0x50] sm:$0xff]
      %v8532 = vld [vmem:[#allocation4 + $0x58] sm:$0xff]
      %v8533 = vld [vmem:[#allocation4 + $0x60] sm:$0xff]
      %v8534 = vld [vmem:[#allocation4 + $0x68] sm:$0xff]
      %v8535 = vld [vmem:[#allocation4 + $0x70] sm:$0xff]
      %v8536 = vld [vmem:[#allocation4 + $0x78] sm:$0xff]
      %v8537 = vld [vmem:[#allocation4 + $0x80] sm:$0xff]
      %v8538 = vld [vmem:[#allocation4 + $0x88] sm:$0xff]
      %v8539 = vld [vmem:[#allocation4 + $0x90] sm:$0xff]
      %v8540 = vld [vmem:[#allocation4 + $0x98] sm:$0xff]
      %v8541 = vld [vmem:[#allocation4 + $0xa0] sm:$0xff]
      %v8542 = vld [vmem:[#allocation4 + $0xa8] sm:$0xff]
      %v8543 = vld [vmem:[#allocation4 + $0xb0] sm:$0xff]
      %v8544 = vld [vmem:[#allocation4 + $0xb8] sm:$0xff]
      %v8545 = vld [vmem:[#allocation4 + $0xc0] sm:$0xff]
      %v8546 = vld [vmem:[#allocation4 + $0xc8] sm:$0xff]
      %v8547 = vld [vmem:[#allocation4 + $0xd0] sm:$0xff]
      %v8548 = vld [vmem:[#allocation4 + $0xd8] sm:$0xff]
      %v8549 = vld [vmem:[#allocation4 + $0xe0] sm:$0xff]
      %v8550 = vld [vmem:[#allocation4 + $0xe8] sm:$0xff]
      %v8551 = vld [vmem:[#allocation4 + $0xf0] sm:$0xff]
      %v8552 = vld [vmem:[#allocation4 + $0xf8] sm:$0xff]
      %v8553 = vadd.f32 %v8521, %v8442
      %v8554 = vadd.f32 %v8522, %v8444
      %v8555 = vadd.f32 %v8523, %v8447
      %v8556 = vadd.f32 %v8524, %v8449
      %v8557 = vadd.f32 %v8525, %v8452
      %v8558 = vadd.f32 %v8526, %v8454
      %v8559 = vadd.f32 %v8527, %v8457
      %v8560 = vadd.f32 %v8528, %v8459
      %v8561 = vadd.f32 %v8529, %v8462
      %v8562 = vadd.f32 %v8530, %v8464
      %v8563 = vadd.f32 %v8531, %v8467
      %v8564 = vadd.f32 %v8532, %v8469
      %v8565 = vadd.f32 %v8533, %v8472
      %v8566 = vadd.f32 %v8534, %v8474
      %v8567 = vadd.f32 %v8535, %v8477
      %v8568 = vadd.f32 %v8536, %v8479
      %v8569 = vadd.f32 %v8537, %v8482
      %v8570 = vadd.f32 %v8538, %v8484
      %v8571 = vadd.f32 %v8539, %v8487
      %v8572 = vadd.f32 %v8540, %v8489
      %v8573 = vadd.f32 %v8541, %v8492
      %v8574 = vadd.f32 %v8542, %v8494
      %v8575 = vadd.f32 %v8543, %v8497
      %v8576 = vadd.f32 %v8544, %v8499
      %v8577 = vadd.f32 %v8545, %v8502
      %v8578 = vadd.f32 %v8546, %v8504
      %v8579 = vadd.f32 %v8547, %v8507
      %v8580 = vadd.f32 %v8548, %v8509
      %v8581 = vadd.f32 %v8549, %v8512
      %v8582 = vadd.f32 %v8550, %v8514
      %v8583 = vadd.f32 %v8551, %v8517
      %v8584 = vadd.f32 %v8552, %v8519
      %8585 = vst.msk [vmem:[#allocation4] sm:$0xff] %vm334, %v8553
      %8586 = vst.msk [vmem:[#allocation4 + $0x8] sm:$0xff] %vm334, %v8554
      %8587 = vst.msk [vmem:[#allocation4 + $0x10] sm:$0xff] %vm334, %v8555
      %8588 = vst.msk [vmem:[#allocation4 + $0x18] sm:$0xff] %vm334, %v8556
      %8589 = vst.msk [vmem:[#allocation4 + $0x20] sm:$0xff] %vm334, %v8557
      %8590 = vst.msk [vmem:[#allocation4 + $0x28] sm:$0xff] %vm334, %v8558
      %8591 = vst.msk [vmem:[#allocation4 + $0x30] sm:$0xff] %vm334, %v8559
      %8592 = vst.msk [vmem:[#allocation4 + $0x38] sm:$0xff] %vm334, %v8560
      %8593 = vst.msk [vmem:[#allocation4 + $0x40] sm:$0xff] %vm334, %v8561
      %8594 = vst.msk [vmem:[#allocation4 + $0x48] sm:$0xff] %vm334, %v8562
      %8595 = vst.msk [vmem:[#allocation4 + $0x50] sm:$0xff] %vm334, %v8563
      %8596 = vst.msk [vmem:[#allocation4 + $0x58] sm:$0xff] %vm334, %v8564
      %8597 = vst.msk [vmem:[#allocation4 + $0x60] sm:$0xff] %vm334, %v8565
      %8598 = vst.msk [vmem:[#allocation4 + $0x68] sm:$0xff] %vm334, %v8566
      %8599 = vst.msk [vmem:[#allocation4 + $0x70] sm:$0xff] %vm334, %v8567
      %8600 = vst.msk [vmem:[#allocation4 + $0x78] sm:$0xff] %vm334, %v8568
      %8601 = vst.msk [vmem:[#allocation4 + $0x80] sm:$0xff] %vm334, %v8569
      %8602 = vst.msk [vmem:[#allocation4 + $0x88] sm:$0xff] %vm334, %v8570
      %8603 = vst.msk [vmem:[#allocation4 + $0x90] sm:$0xff] %vm334, %v8571
      %8604 = vst.msk [vmem:[#allocation4 + $0x98] sm:$0xff] %vm334, %v8572
      %8605 = vst.msk [vmem:[#allocation4 + $0xa0] sm:$0xff] %vm334, %v8573
      %8606 = vst.msk [vmem:[#allocation4 + $0xa8] sm:$0xff] %vm334, %v8574
      %8607 = vst.msk [vmem:[#allocation4 + $0xb0] sm:$0xff] %vm334, %v8575
      %8608 = vst.msk [vmem:[#allocation4 + $0xb8] sm:$0xff] %vm334, %v8576
      %8609 = vst.msk [vmem:[#allocation4 + $0xc0] sm:$0xff] %vm334, %v8577
      %8610 = vst.msk [vmem:[#allocation4 + $0xc8] sm:$0xff] %vm334, %v8578
      %8611 = vst.msk [vmem:[#allocation4 + $0xd0] sm:$0xff] %vm334, %v8579
      %8612 = vst.msk [vmem:[#allocation4 + $0xd8] sm:$0xff] %vm334, %v8580
      %8613 = vst.msk [vmem:[#allocation4 + $0xe0] sm:$0xff] %vm334, %v8581
      %8614 = vst.msk [vmem:[#allocation4 + $0xe8] sm:$0xff] %vm334, %v8582
      %8615 = vst.msk [vmem:[#allocation4 + $0xf0] sm:$0xff] %vm334, %v8583
      %8616 = vst.msk [vmem:[#allocation4 + $0xf8] sm:$0xff] %vm334, %v8584
      %v8617 = vld [vmem:[#allocation4] sm:$0xff]
      %v8618 = vld [vmem:[#allocation4 + $0x8] sm:$0xff]
      %v8619 = vld [vmem:[#allocation4 + $0x10] sm:$0xff]
      %v8620 = vld [vmem:[#allocation4 + $0x18] sm:$0xff]
      %v8621 = vld [vmem:[#allocation4 + $0x20] sm:$0xff]
      %v8622 = vld [vmem:[#allocation4 + $0x28] sm:$0xff]
      %v8623 = vld [vmem:[#allocation4 + $0x30] sm:$0xff]
      %v8624 = vld [vmem:[#allocation4 + $0x38] sm:$0xff]
      %v8625 = vld [vmem:[#allocation4 + $0x40] sm:$0xff]
      %v8626 = vld [vmem:[#allocation4 + $0x48] sm:$0xff]
      %v8627 = vld [vmem:[#allocation4 + $0x50] sm:$0xff]
      %v8628 = vld [vmem:[#allocation4 + $0x58] sm:$0xff]
      %v8629 = vld [vmem:[#allocation4 + $0x60] sm:$0xff]
      %v8630 = vld [vmem:[#allocation4 + $0x68] sm:$0xff]
      %v8631 = vld [vmem:[#allocation4 + $0x70] sm:$0xff]
      %v8632 = vld [vmem:[#allocation4 + $0x78] sm:$0xff]
      %v8633 = vld [vmem:[#allocation4 + $0x80] sm:$0xff]
      %v8634 = vld [vmem:[#allocation4 + $0x88] sm:$0xff]
      %v8635 = vld [vmem:[#allocation4 + $0x90] sm:$0xff]
      %v8636 = vld [vmem:[#allocation4 + $0x98] sm:$0xff]
      %v8637 = vld [vmem:[#allocation4 + $0xa0] sm:$0xff]
      %v8638 = vld [vmem:[#allocation4 + $0xa8] sm:$0xff]
      %v8639 = vld [vmem:[#allocation4 + $0xb0] sm:$0xff]
      %v8640 = vld [vmem:[#allocation4 + $0xb8] sm:$0xff]
      %v8641 = vld [vmem:[#allocation4 + $0xc0] sm:$0xff]
      %v8642 = vld [vmem:[#allocation4 + $0xc8] sm:$0xff]
      %v8643 = vld [vmem:[#allocation4 + $0xd0] sm:$0xff]
      %v8644 = vld [vmem:[#allocation4 + $0xd8] sm:$0xff]
      %v8645 = vld [vmem:[#allocation4 + $0xe0] sm:$0xff]
      %v8646 = vld [vmem:[#allocation4 + $0xe8] sm:$0xff]
      %v8647 = vld [vmem:[#allocation4 + $0xf0] sm:$0xff]
      %v8648 = vld [vmem:[#allocation4 + $0xf8] sm:$0xff]
      %v8649 = vld [vmem:[%s8] sm:$0x1]
      %v8651 = vperm.slane %v8649, 0
      %v8653 = vadd.f32 %v8617, %v8651
      %v8654 = vadd.f32 %v8618, %v8651
      %v8655 = vadd.f32 %v8619, %v8651
      %v8656 = vadd.f32 %v8620, %v8651
      %v8657 = vadd.f32 %v8621, %v8651
      %v8658 = vadd.f32 %v8622, %v8651
      %v8659 = vadd.f32 %v8623, %v8651
      %v8660 = vadd.f32 %v8624, %v8651
      %v8661 = vadd.f32 %v8625, %v8651
      %v8662 = vadd.f32 %v8626, %v8651
      %v8663 = vadd.f32 %v8627, %v8651
      %v8664 = vadd.f32 %v8628, %v8651
      %v8665 = vadd.f32 %v8629, %v8651
      %v8666 = vadd.f32 %v8630, %v8651
      %v8667 = vadd.f32 %v8631, %v8651
      %v8668 = vadd.f32 %v8632, %v8651
      %v8669 = vadd.f32 %v8633, %v8651
      %v8670 = vadd.f32 %v8634, %v8651
      %v8671 = vadd.f32 %v8635, %v8651
      %v8672 = vadd.f32 %v8636, %v8651
      %v8673 = vadd.f32 %v8637, %v8651
      %v8674 = vadd.f32 %v8638, %v8651
      %v8675 = vadd.f32 %v8639, %v8651
      %v8676 = vadd.f32 %v8640, %v8651
      %v8677 = vadd.f32 %v8641, %v8651
      %v8678 = vadd.f32 %v8642, %v8651
      %v8679 = vadd.f32 %v8643, %v8651
      %v8680 = vadd.f32 %v8644, %v8651
      %v8681 = vadd.f32 %v8645, %v8651
      %v8682 = vadd.f32 %v8646, %v8651
      %v8683 = vadd.f32 %v8647, %v8651
      %v8684 = vadd.f32 %v8648, %v8651
      %v8685 = vmax.f32 %v8653, 0.0
      %v8686 = vmax.f32 %v8654, 0.0
      %v8687 = vmax.f32 %v8655, 0.0
      %v8688 = vmax.f32 %v8656, 0.0
      %v8689 = vmax.f32 %v8657, 0.0
      %v8690 = vmax.f32 %v8658, 0.0
      %v8691 = vmax.f32 %v8659, 0.0
      %v8692 = vmax.f32 %v8660, 0.0
      %v8693 = vmax.f32 %v8661, 0.0
      %v8694 = vmax.f32 %v8662, 0.0
      %v8695 = vmax.f32 %v8663, 0.0
      %v8696 = vmax.f32 %v8664, 0.0
      %v8697 = vmax.f32 %v8665, 0.0
      %v8698 = vmax.f32 %v8666, 0.0
      %v8699 = vmax.f32 %v8667, 0.0
      %v8700 = vmax.f32 %v8668, 0.0
      %v8701 = vmax.f32 %v8669, 0.0
      %v8702 = vmax.f32 %v8670, 0.0
      %v8703 = vmax.f32 %v8671, 0.0
      %v8704 = vmax.f32 %v8672, 0.0
      %v8705 = vmax.f32 %v8673, 0.0
      %v8706 = vmax.f32 %v8674, 0.0
      %v8707 = vmax.f32 %v8675, 0.0
      %v8708 = vmax.f32 %v8676, 0.0
      %v8709 = vmax.f32 %v8677, 0.0
      %v8710 = vmax.f32 %v8678, 0.0
      %v8711 = vmax.f32 %v8679, 0.0
      %v8712 = vmax.f32 %v8680, 0.0
      %v8713 = vmax.f32 %v8681, 0.0
      %v8714 = vmax.f32 %v8682, 0.0
      %v8715 = vmax.f32 %v8683, 0.0
      %v8716 = vmax.f32 %v8684, 0.0
      %v8717 = vadd.f32 %v434, %v8685
      %v8718 = vadd.f32 %v435, %v8686
      %v8719 = vadd.f32 %v436, %v8687
      %v8720 = vadd.f32 %v437, %v8688
      %v8721 = vadd.f32 %v438, %v8689
      %v8722 = vadd.f32 %v439, %v8690
      %v8723 = vadd.f32 %v440, %v8691
      %v8724 = vadd.f32 %v441, %v8692
      %v8725 = vadd.f32 %v442, %v8693
      %v8726 = vadd.f32 %v443, %v8694
      %v8727 = vadd.f32 %v444, %v8695
      %v8728 = vadd.f32 %v445, %v8696
      %v8729 = vadd.f32 %v446, %v8697
      %v8730 = vadd.f32 %v447, %v8698
      %v8731 = vadd.f32 %v448, %v8699
      %v8732 = vadd.f32 %v449, %v8700
      %v8733 = vadd.f32 %v450, %v8701
      %v8734 = vadd.f32 %v451, %v8702
      %v8735 = vadd.f32 %v452, %v8703
      %v8736 = vadd.f32 %v453, %v8704
      %v8737 = vadd.f32 %v454, %v8705
      %v8738 = vadd.f32 %v455, %v8706
      %v8739 = vadd.f32 %v456, %v8707
      %v8740 = vadd.f32 %v457, %v8708
      %v8741 = vadd.f32 %v458, %v8709
      %v8742 = vadd.f32 %v459, %v8710
      %v8743 = vadd.f32 %v460, %v8711
      %v8744 = vadd.f32 %v461, %v8712
      %v8745 = vadd.f32 %v462, %v8713
      %v8746 = vadd.f32 %v463, %v8714
      %v8747 = vadd.f32 %v464, %v8715
      %v8748 = vadd.f32 %v465, %v8716
      %v8749 = vmax.f32 %v8717, 0.0
      %v8750 = vmax.f32 %v8718, 0.0
      %v8751 = vmax.f32 %v8719, 0.0
      %v8752 = vmax.f32 %v8720, 0.0
      %v8753 = vmax.f32 %v8721, 0.0
      %v8754 = vmax.f32 %v8722, 0.0
      %v8755 = vmax.f32 %v8723, 0.0
      %v8756 = vmax.f32 %v8724, 0.0
      %v8757 = vmax.f32 %v8725, 0.0
      %v8758 = vmax.f32 %v8726, 0.0
      %v8759 = vmax.f32 %v8727, 0.0
      %v8760 = vmax.f32 %v8728, 0.0
      %v8761 = vmax.f32 %v8729, 0.0
      %v8762 = vmax.f32 %v8730, 0.0
      %v8763 = vmax.f32 %v8731, 0.0
      %v8764 = vmax.f32 %v8732, 0.0
      %v8765 = vmax.f32 %v8733, 0.0
      %v8766 = vmax.f32 %v8734, 0.0
      %v8767 = vmax.f32 %v8735, 0.0
      %v8768 = vmax.f32 %v8736, 0.0
      %v8769 = vmax.f32 %v8737, 0.0
      %v8770 = vmax.f32 %v8738, 0.0
      %v8771 = vmax.f32 %v8739, 0.0
      %v8772 = vmax.f32 %v8740, 0.0
      %v8773 = vmax.f32 %v8741, 0.0
      %v8774 = vmax.f32 %v8742, 0.0
      %v8775 = vmax.f32 %v8743, 0.0
      %v8776 = vmax.f32 %v8744, 0.0
      %v8777 = vmax.f32 %v8745, 0.0
      %v8778 = vmax.f32 %v8746, 0.0
      %v8779 = vmax.f32 %v8747, 0.0
      %v8780 = vmax.f32 %v8748, 0.0
      %8781 = vst.msk [vmem:[%s332] sm:$0xff] %vm334, %v8749
      %8782 = vst.msk [vmem:[%s332 + $0x8] sm:$0xff] %vm334, %v8750
      %8783 = vst.msk [vmem:[%s332 + $0x10] sm:$0xff] %vm334, %v8751
      %8784 = vst.msk [vmem:[%s332 + $0x18] sm:$0xff] %vm334, %v8752
      %8785 = vst.msk [vmem:[%s332 + $0x20] sm:$0xff] %vm334, %v8753
      %8786 = vst.msk [vmem:[%s332 + $0x28] sm:$0xff] %vm334, %v8754
      %8787 = vst.msk [vmem:[%s332 + $0x30] sm:$0xff] %vm334, %v8755
      %8788 = vst.msk [vmem:[%s332 + $0x38] sm:$0xff] %vm334, %v8756
      %8789 = vst.msk [vmem:[%s332 + $0x40] sm:$0xff] %vm334, %v8757
      %8790 = vst.msk [vmem:[%s332 + $0x48] sm:$0xff] %vm334, %v8758
      %8791 = vst.msk [vmem:[%s332 + $0x50] sm:$0xff] %vm334, %v8759
      %8792 = vst.msk [vmem:[%s332 + $0x58] sm:$0xff] %vm334, %v8760
      %8793 = vst.msk [vmem:[%s332 + $0x60] sm:$0xff] %vm334, %v8761
      %8794 = vst.msk [vmem:[%s332 + $0x68] sm:$0xff] %vm334, %v8762
      %8795 = vst.msk [vmem:[%s332 + $0x70] sm:$0xff] %vm334, %v8763
      %8796 = vst.msk [vmem:[%s332 + $0x78] sm:$0xff] %vm334, %v8764
      %8797 = vst.msk [vmem:[%s332 + $0x80] sm:$0xff] %vm334, %v8765
      %8798 = vst.msk [vmem:[%s332 + $0x88] sm:$0xff] %vm334, %v8766
      %8799 = vst.msk [vmem:[%s332 + $0x90] sm:$0xff] %vm334, %v8767
      %8800 = vst.msk [vmem:[%s332 + $0x98] sm:$0xff] %vm334, %v8768
      %8801 = vst.msk [vmem:[%s332 + $0xa0] sm:$0xff] %vm334, %v8769
      %8802 = vst.msk [vmem:[%s332 + $0xa8] sm:$0xff] %vm334, %v8770
      %8803 = vst.msk [vmem:[%s332 + $0xb0] sm:$0xff] %vm334, %v8771
      %8804 = vst.msk [vmem:[%s332 + $0xb8] sm:$0xff] %vm334, %v8772
      %8805 = vst.msk [vmem:[%s332 + $0xc0] sm:$0xff] %vm334, %v8773
      %8806 = vst.msk [vmem:[%s332 + $0xc8] sm:$0xff] %vm334, %v8774
      %8807 = vst.msk [vmem:[%s332 + $0xd0] sm:$0xff] %vm334, %v8775
      %8808 = vst.msk [vmem:[%s332 + $0xd8] sm:$0xff] %vm334, %v8776
      %8809 = vst.msk [vmem:[%s332 + $0xe0] sm:$0xff] %vm334, %v8777
      %8810 = vst.msk [vmem:[%s332 + $0xe8] sm:$0xff] %vm334, %v8778
      %8811 = vst.msk [vmem:[%s332 + $0xf0] sm:$0xff] %vm334, %v8779
      %8812 = vst.msk [vmem:[%s332 + $0xf8] sm:$0xff] %vm334, %v8780
      %p8813 = scmp.lt.s32.totalorder %s20, 1
      %s8814 = scalar_select %p8813, %s20, 1
      %s8815 = smul.addr %s8814, 32
      %s8816 = smul.addr %s8815, 8
      %s8817 = scalar_lea.vmem %s9, %s8816
      // Predicated region
      $region57: #{tpu_custom_call.1} parent=55 // pred_check
        %p8818 = pneg %p232
      $region58: #{tpu_custom_call.1} parent=55 // pred_check_branch
        %8820 = sbr.rel (%p8818) target = $region60
      $region59: #{tpu_custom_call.1} parent=55 // pred_region
        _
      $region60: #{tpu_custom_call.1} parent=55 // pred_fallthru
        _
    $region56: #{tpu_custom_call.1} parent=5 // pred_fallthru
      _
    %p8821 = scmp.le.s32.totalorder 2, %s15
    // Predicated region
    $region61: #{tpu_custom_call.1} parent=5 // pred_check
      %p8822 = pneg %p8821
    $region62: #{tpu_custom_call.1} parent=5 // pred_check_branch
      %8824 = sbr.rel (%p8822) target = $region64
    $region63: #{tpu_custom_call.1} parent=5 // pred_region
      %s8825 = ssub.s32 %s15, 2
      // Predicated region
      $region65: #{tpu_custom_call.1} parent=63 // pred_check
        %p8826 = pneg %p238
      $region66: #{tpu_custom_call.1} parent=63 // pred_check_branch
        %8828 = sbr.rel (%p8826) target = $region68
      $region67: #{tpu_custom_call.1} parent=63 // pred_region
        %p8829 = scmp.lt.s32.totalorder %s21, 1
        %s8830 = scalar_select %p8829, %s21, 1
        %s8831 = smul.addr %s8830, 32
        %s8832 = smul.addr %s8831, 8
        %s8833 = scalar_lea.vmem %s9, %s8832
      $region68: #{tpu_custom_call.1} parent=63 // pred_fallthru
        _
    $region64: #{tpu_custom_call.1} parent=5 // pred_fallthru
      _
  $region6: #{tpu_custom_call.1} parent=0 // loop_footer
    %s19 = sadd.s32 1, %s15
  $region7: #{tpu_custom_call.1} parent=0 // loop_footer_branch
    %14 = sbr.rel target = $region3
  $region8: #{tpu_custom_call.1} parent=0 // loop_exit
    _

</llo_original>
